<compile_context>
chip_gen: v7x
topology: tpu7x:2x2x1
jax: 0.10.0
libtpu: 0.0.40
codegen_flags: <defaults>
</compile_context>

<pallas_src>
import functools
import math

import jax
import jax.numpy as jnp
from jax import lax
from jax.experimental import pallas as pl
from jax.experimental.pallas import tpu as pltpu

_GROUPS = 8
_EPS = 1e-5
_PATCH_MAX_CIN = 32                      # im2col single-matmul path only for small Cin
_VMEM_LIMIT_BYTES = 56 * 1024 * 1024     # headroom under v7x's 64 MiB physical VMEM
# TODO(synk): for large feature maps (H=W>=128, Cout>=256) add an S-tile grid axis with a two-pass
# GroupNorm accumulator so per-sample scratch stays under v7x's 64 MiB VMEM, and size
# vmem_limit_bytes per generation (up to ~100 MiB on v5e/v6e).


def _fused_down_block_kernel(x_ref, w1_ref, w23_ref, b_ref, g_ref, be_ref, mask_ref, pmat_ref,
                             o_ref, a_pad, b_pad, patch,
                             *, H, W, Cin, Cout, eps, down_size, use_patch, pad_off):
    Wp2 = W + 2
    S = (H + 2) * Wp2
    tap_base = pad_off - (Wp2 + 1)       # scratch-stored activations sit at 8-aligned offset pad_off
    S_scr = a_pad.shape[0]

    mask = mask_ref[...]                 # (S, 1): 1.0 on real pixels, 0.0 on padding-border rows
    pmat = pmat_ref[...]                 # (Cout, Cout): group-mean pooling matrix (includes 1/cnt)

    def conv_gn_relu(in_ref, base, cin, w, b, gamma, beta, patch_ok):
        taps = [base + dy * Wp2 + dx for dy in range(3) for dx in range(3)]
        # --- 3x3 conv as MXU matmul(s) over shifted row-slices -----------------------------
        if patch_ok:
            # im2col into VMEM scratch -> one K=9*cin matmul (K-dense for small cin).
            for t, k in enumerate(taps):
                patch[:, t * cin:(t + 1) * cin] = in_ref[pl.ds(k, S), :]
            acc = jnp.dot(patch[:, :9 * cin], w, preferred_element_type=jnp.float32)
        else:
            # K already large: 9 shifted-slice matmuls.
            acc = jnp.zeros((S, Cout), jnp.float32)
            for t, k in enumerate(taps):
                acc = acc + jnp.dot(in_ref[pl.ds(k, S), :], w[t * cin:(t + 1) * cin, :],
                                    preferred_element_type=jnp.float32)
        acc = acc + b                                               # conv bias
        # --- GroupNorm over valid pixels (two-pass, exactly-centered variance) -------------
        s1 = jnp.sum(acc * mask, axis=0, keepdims=True)             # (1, Cout)
        mean = jnp.dot(s1, pmat, preferred_element_type=jnp.float32)
        cen = (acc - mean) * mask                                   # zero on padding rows
        s2 = jnp.sum(cen * cen, axis=0, keepdims=True)
        var = jnp.dot(s2, pmat, preferred_element_type=jnp.float32)
        inv = lax.rsqrt(var + eps)
        # --- affine + ReLU (padding rows become relu(beta); masked by the caller) ----------
        return jnp.maximum(cen * (inv * gamma) + beta, 0.0)

    def store_as_padded_input(dst, y):
        # Writes y so that pixel (i,j) lands at padded-image position (i+1, j+1); border = 0.
        dst[pl.ds(0, pad_off), :] = jnp.zeros((pad_off, Cout), jnp.float32)       # head zeros
        dst[pl.ds(pad_off, S), :] = y * mask                                      # interior
        tail = S_scr - pad_off - S
        dst[pl.ds(pad_off + S, tail), :] = jnp.zeros((tail, Cout), jnp.float32)   # tail zeros

    # layer 1 reads the wrapper-padded input (tap base 0)
    y = conv_gn_relu(x_ref, 0, Cin, w1_ref[...], b_ref[0], g_ref[0], be_ref[0], use_patch[0])
    store_as_padded_input(a_pad, y)
    y = conv_gn_relu(a_pad, tap_base, Cout, w23_ref[0], b_ref[1], g_ref[1], be_ref[1], use_patch[1])
    store_as_padded_input(b_pad, y)
    y = conv_gn_relu(b_pad, tap_base, Cout, w23_ref[1], b_ref[2], g_ref[2], be_ref[2], use_patch[2])

    # Stash the last activation flat (pixel (i,j) at row i*Wp2+j); only valid rows are read below.
    a_pad[pl.ds(0, S), :] = y

    if down_size:
        Ho, Wo = H // 2, W // 2
        for io in range(Ho):
            top = (2 * io) * Wp2
            bot = top + Wp2
            r = jnp.maximum(
                jnp.maximum(a_pad[pl.ds(top, Wo, stride=2), :],
                            a_pad[pl.ds(top + 1, Wo, stride=2), :]),
                jnp.maximum(a_pad[pl.ds(bot, Wo, stride=2), :],
                            a_pad[pl.ds(bot + 1, Wo, stride=2), :]))
            o_ref[io] = r
    else:
        for i in range(H):
            o_ref[i] = a_pad[pl.ds(i * Wp2, W), :]


def _flatten_conv_weight(w_oihw):
    # (Cout, Cin, 3, 3) -> (9*Cin, Cout), rows ordered tap-major (dy*3+dx) then input-channel.
    cout, cin = w_oihw.shape[0], w_oihw.shape[1]
    return jnp.transpose(w_oihw, (2, 3, 1, 0)).reshape(9 * cin, cout)


def unet_down_block(x_nchw, params, down_size=True, groups=_GROUPS, eps=_EPS):
    """params: list of 3 tuples (w (Cout,Cin_l,3,3), b, gamma, beta), PyTorch layouts."""
    N, Cin, H, W = x_nchw.shape
    Cout = params[0][0].shape[0]
    assert Cout % groups == 0, "GroupNorm requires Cout divisible by groups"
    Cg = Cout // groups
    Wp2 = W + 2
    S = (H + 2) * Wp2
    extra = 2 * Wp2 + 2
    S_ext = S + extra
    pad_off = ((Wp2 + 1 + 7) // 8) * 8            # 8-aligned store offset inside scratch
    S_scr = pad_off + S + extra

    # --- glue: NCHW -> NHWC, zero-pad, flatten per sample to (S_ext, Cin) ---
    x = jnp.transpose(x_nchw, (0, 2, 3, 1)).astype(jnp.float32)
    xp = jnp.pad(x, ((0, 0), (1, 1), (1, 1), (0, 0))).reshape(N, S, Cin)
    xf = jnp.pad(xp, ((0, 0), (0, extra), (0, 0)))

    # --- parameters in kernel layout ---
    w1 = _flatten_conv_weight(params[0][0])                         # (9*Cin, Cout)
    w23 = jnp.stack([_flatten_conv_weight(params[1][0]),
                     _flatten_conv_weight(params[2][0])])           # (2, 9*Cout, Cout)
    b_all = jnp.stack([p[1] for p in params]).reshape(3, 1, Cout)
    g_all = jnp.stack([p[2] for p in params]).reshape(3, 1, Cout)
    be_all = jnp.stack([p[3] for p in params]).reshape(3, 1, Cout)

    # validity mask of the flattened padded grid (precomputed -> no per-step div/mod in kernel)
    row = jnp.arange(S, dtype=jnp.int32)
    mask = (((row // Wp2) < H) & ((row % Wp2) < W)).astype(jnp.float32).reshape(S, 1)

    # group-mean pooling matrix: (s @ pmat)[c] = (1/(H*W*Cg)) * sum_{c' in group(c)} s[c']
    ch = jnp.arange(Cout, dtype=jnp.int32)
    pmat = ((ch[:, None] // Cg) == (ch[None, :] // Cg)).astype(jnp.float32) / float(H * W * Cg)

    in_ch = (Cin, Cout, Cout)
    use_patch = tuple(c <= _PATCH_MAX_CIN for c in in_ch)
    patch_cands = [9 * c for c, u in zip(in_ch, use_patch) if u]
    patch_w = max(patch_cands) if patch_cands else 128

    if down_size:
        Ho, Wo = H // 2, W // 2
        out_shape = jax.ShapeDtypeStruct((N, Ho, Wo, Cout), jnp.float32)
        out_spec = pl.BlockSpec((None, Ho, Wo, Cout), lambda n: (n, 0, 0, 0))
        out_elems = N * Ho * Wo * Cout
    else:
        out_shape = jax.ShapeDtypeStruct((N, H, W, Cout), jnp.float32)
        out_spec = pl.BlockSpec((None, H, W, Cout), lambda n: (n, 0, 0, 0))
        out_elems = N * H * W * Cout

    kern = functools.partial(
        _fused_down_block_kernel, H=H, W=W, Cin=Cin, Cout=Cout, eps=eps,
        down_size=down_size, use_patch=use_patch, pad_off=pad_off)

    cost = pl.CostEstimate(
        flops=2 * N * H * W * 9 * (Cin * Cout + 2 * Cout * Cout) + 8 * N * S * Cout,
        transcendentals=3 * N * Cout,
        bytes_accessed=4 * (int(xf.size) + int(w1.size) + int(w23.size)
                            + out_elems + 9 * Cout + S + Cout * Cout))

    out = pl.pallas_call(
        kern,
        out_shape=out_shape,
        grid=(N,),
        in_specs=[
            pl.BlockSpec((None, S_ext, Cin), lambda n: (n, 0, 0)),
            pl.BlockSpec((9 * Cin, Cout), lambda n: (0, 0)),
            pl.BlockSpec((2, 9 * Cout, Cout), lambda n: (0, 0, 0)),
            pl.BlockSpec((3, 1, Cout), lambda n: (0, 0, 0)),
            pl.BlockSpec((3, 1, Cout), lambda n: (0, 0, 0)),
            pl.BlockSpec((3, 1, Cout), lambda n: (0, 0, 0)),
            pl.BlockSpec((S, 1), lambda n: (0, 0)),
            pl.BlockSpec((Cout, Cout), lambda n: (0, 0)),
        ],
        out_specs=out_spec,
        scratch_shapes=[
            pltpu.VMEM((S_scr, Cout), jnp.float32),     # layer-1 out / layer-2 in, then y3 stash
            pltpu.VMEM((S_scr, Cout), jnp.float32),     # layer-2 out / layer-3 in
            pltpu.VMEM((S, patch_w), jnp.float32),      # im2col patch
        ],
        compiler_params=pltpu.CompilerParams(
            dimension_semantics=("parallel",),
            vmem_limit_bytes=_VMEM_LIMIT_BYTES),
        cost_estimate=cost,
    )(xf, w1, w23, b_all, g_all, be_all, mask, pmat)

    return jnp.transpose(out, (0, 3, 1, 2))             # NHWC -> NCHW


# ----------------------------------------------------------------------------
# Pure-JAX reference (same semantics as the PyTorch module) for validation.
# ----------------------------------------------------------------------------
def _ref_conv(x_nhwc, w_oihw, b):
    w_hwio = jnp.transpose(w_oihw, (2, 3, 1, 0))
    y = lax.conv_general_dilated(x_nhwc, w_hwio, (1, 1), ((1, 1), (1, 1)),
                                 dimension_numbers=("NHWC", "HWIO", "NHWC"))
    return y + b.reshape(1, 1, 1, -1)


def _ref_gn(x, gamma, beta, groups=_GROUPS, eps=_EPS):
    N, H, W, C = x.shape
    Cg = C // groups
    xg = x.reshape(N, H, W, groups, Cg)
    mean = xg.mean(axis=(1, 2, 4), keepdims=True)
    var = xg.var(axis=(1, 2, 4), keepdims=True)
    xn = ((xg - mean) / jnp.sqrt(var + eps)).reshape(N, H, W, C)
    return xn * gamma.reshape(1, 1, 1, -1) + beta.reshape(1, 1, 1, -1)


def _ref_forward(x_nchw, params, down_size=True):
    x = jnp.transpose(x_nchw, (0, 2, 3, 1)).astype(jnp.float32)
    for (w, b, g, be) in params:
        x = jnp.maximum(_ref_gn(_ref_conv(x, w, b), g, be), 0.0)
    if down_size:
        N, H, W, C = x.shape
        x = x.reshape(N, H // 2, 2, W // 2, 2, C).max(axis=(2, 4))
    return jnp.transpose(x, (0, 3, 1, 2))


# ----------------------------------------------------------------------------
if __name__ == "__main__":
    N, Cin, Cout, H, W = 2, 4, 16, 16, 16   # Cout divisible by 8 for GroupNorm(8, .)

    def init_layer(key, cin, cout):
        k1, k2, k3, k4 = jax.random.split(key, 4)
        w = jax.random.normal(k1, (cout, cin, 3, 3), jnp.float32) / math.sqrt(cin * 9)
        b = 0.01 * jax.random.normal(k2, (cout,), jnp.float32)
        gamma = 1.0 + 0.1 * jax.random.normal(k3, (cout,), jnp.float32)
        beta = 0.1 * jax.random.normal(k4, (cout,), jnp.float32)
        return w, b, gamma, beta

    root = jax.random.PRNGKey(0)
    k0, k1, k2, kx = jax.random.split(root, 4)
    params = [init_layer(k0, Cin, Cout),
              init_layer(k1, Cout, Cout),
              init_layer(k2, Cout, Cout)]
    x = jax.random.normal(kx, (N, Cin, H, W), jnp.float32)

    # down_size=True (pooled) path
    out = jax.block_until_ready(unet_down_block(x, params, down_size=True))
    ref = jax.block_until_ready(_ref_forward(x, params, down_size=True))
    assert out.shape == (N, Cout, H // 2, W // 2), out.shape
    assert out.dtype == jnp.float32
    err = float(jnp.max(jnp.abs(out - ref)))
    assert err < 5e-2, f"down_size=True mismatch vs reference: {err}"

    # down_size=False path
    out_nd = jax.block_until_ready(unet_down_block(x, params, down_size=False))
    ref_nd = jax.block_until_ready(_ref_forward(x, params, down_size=False))
    assert out_nd.shape == (N, Cout, H, W), out_nd.shape
    err_nd = float(jnp.max(jnp.abs(out_nd - ref_nd)))
    assert err_nd < 5e-2, f"down_size=False mismatch vs reference: {err_nd}"

    print("KERNEL_OK")
</pallas_src>

<mosaic_0001>
module attributes {stable_mosaic.version = 11 : i64} {
  func.func @_fused_down_block_kernel(%arg0: i32, %arg1: memref<1x362x4xf32, #tpu.memory_space<vmem>>, %arg2: memref<36x16xf32, #tpu.memory_space<vmem>>, %arg3: memref<2x144x16xf32, #tpu.memory_space<vmem>>, %arg4: memref<3x1x16xf32, #tpu.memory_space<vmem>>, %arg5: memref<3x1x16xf32, #tpu.memory_space<vmem>>, %arg6: memref<3x1x16xf32, #tpu.memory_space<vmem>>, %arg7: memref<324x1xf32, #tpu.memory_space<vmem>>, %arg8: memref<16x16xf32, #tpu.memory_space<vmem>>, %arg9: memref<1x8x8x16xf32, #tpu.memory_space<vmem>>, %arg10: memref<386x16xf32, #tpu.memory_space<vmem>>, %arg11: memref<386x16xf32, #tpu.memory_space<vmem>>, %arg12: memref<324x144xf32, #tpu.memory_space<vmem>>) attributes {dimension_semantics = [#tpu.dimension_semantics<parallel>], iteration_bounds = array<i64: 2>, scalar_prefetch = 0 : i64, scratch_operands = 3 : i64, tpu.core_type = #tpu.core_type<tc>, window_params = [{transform_indices = @transform_0, window_bounds = array<i64: 1, 362, 4>}, {pipeline_mode = #tpu.pipeline_mode<synchronous>, transform_indices = @transform_1, window_bounds = array<i64: 36, 16>}, {pipeline_mode = #tpu.pipeline_mode<synchronous>, transform_indices = @transform_2, window_bounds = array<i64: 2, 144, 16>}, {pipeline_mode = #tpu.pipeline_mode<synchronous>, transform_indices = @transform_3, window_bounds = array<i64: 3, 1, 16>}, {pipeline_mode = #tpu.pipeline_mode<synchronous>, transform_indices = @transform_4, window_bounds = array<i64: 3, 1, 16>}, {pipeline_mode = #tpu.pipeline_mode<synchronous>, transform_indices = @transform_5, window_bounds = array<i64: 3, 1, 16>}, {pipeline_mode = #tpu.pipeline_mode<synchronous>, transform_indices = @transform_6, window_bounds = array<i64: 324, 1>}, {pipeline_mode = #tpu.pipeline_mode<synchronous>, transform_indices = @transform_7, window_bounds = array<i64: 16, 16>}, {transform_indices = @transform_8, window_bounds = array<i64: 1, 8, 8, 16>}]} {
    %c0 = arith.constant 0 : index
    %c0_0 = arith.constant 0 : index
    %0 = vector.load %arg7[%c0, %c0_0] : memref<324x1xf32, #tpu.memory_space<vmem>>, vector<324x1xf32>
    %c0_1 = arith.constant 0 : index
    %c0_2 = arith.constant 0 : index
    %1 = vector.load %arg8[%c0_1, %c0_2] : memref<16x16xf32, #tpu.memory_space<vmem>>, vector<16x16xf32>
    %c0_3 = arith.constant 0 : index
    %c0_4 = arith.constant 0 : index
    %2 = vector.load %arg2[%c0_3, %c0_4] : memref<36x16xf32, #tpu.memory_space<vmem>>, vector<36x16xf32>
    %c0_5 = arith.constant 0 : index
    %c0_6 = arith.constant 0 : index
    %c0_7 = arith.constant 0 : index
    %3 = vector.load %arg4[%c0_5, %c0_6, %c0_7] : memref<3x1x16xf32, #tpu.memory_space<vmem>>, vector<1x1x16xf32>
    %4 = vector.shape_cast %3 : vector<1x1x16xf32> to vector<1x16xf32>
    %c0_8 = arith.constant 0 : index
    %c0_9 = arith.constant 0 : index
    %c0_10 = arith.constant 0 : index
    %5 = vector.load %arg5[%c0_8, %c0_9, %c0_10] : memref<3x1x16xf32, #tpu.memory_space<vmem>>, vector<1x1x16xf32>
    %6 = vector.shape_cast %5 : vector<1x1x16xf32> to vector<1x16xf32>
    %c0_11 = arith.constant 0 : index
    %c0_12 = arith.constant 0 : index
    %c0_13 = arith.constant 0 : index
    %7 = vector.load %arg6[%c0_11, %c0_12, %c0_13] : memref<3x1x16xf32, #tpu.memory_space<vmem>>, vector<1x1x16xf32>
    %8 = vector.shape_cast %7 : vector<1x1x16xf32> to vector<1x16xf32>
    %c0_14 = arith.constant 0 : index
    %c0_15 = arith.constant 0 : index
    %c0_16 = arith.constant 0 : index
    %9 = vector.load %arg1[%c0_14, %c0_15, %c0_16] : memref<1x362x4xf32, #tpu.memory_space<vmem>>, vector<1x324x4xf32>
    %10 = vector.shape_cast %9 : vector<1x324x4xf32> to vector<324x4xf32>
    %c0_17 = arith.constant 0 : index
    %c0_18 = arith.constant 0 : index
    %11 = vector.load %arg12[%c0_17, %c0_18] : memref<324x144xf32, #tpu.memory_space<vmem>>, vector<324x4xf32>
    tpu.vector_store %arg12[%c0_17, %c0_18], %10 {strides = array<i32>} : memref<324x144xf32, #tpu.memory_space<vmem>>, vector<324x4xf32>,
    %c0_19 = arith.constant 0 : index
    %c1 = arith.constant 1 : index
    %c0_20 = arith.constant 0 : index
    %12 = vector.load %arg1[%c0_19, %c1, %c0_20] : memref<1x362x4xf32, #tpu.memory_space<vmem>>, vector<1x324x4xf32>
    %13 = vector.shape_cast %12 : vector<1x324x4xf32> to vector<324x4xf32>
    %c0_21 = arith.constant 0 : index
    %c4 = arith.constant 4 : index
    %14 = vector.load %arg12[%c0_21, %c4] : memref<324x144xf32, #tpu.memory_space<vmem>>, vector<324x4xf32>
    tpu.vector_store %arg12[%c0_21, %c4], %13 {strides = array<i32>} : memref<324x144xf32, #tpu.memory_space<vmem>>, vector<324x4xf32>,
    %c0_22 = arith.constant 0 : index
    %c2 = arith.constant 2 : index
    %c0_23 = arith.constant 0 : index
    %15 = vector.load %arg1[%c0_22, %c2, %c0_23] : memref<1x362x4xf32, #tpu.memory_space<vmem>>, vector<1x324x4xf32>
    %16 = vector.shape_cast %15 : vector<1x324x4xf32> to vector<324x4xf32>
    %c0_24 = arith.constant 0 : index
    %c8 = arith.constant 8 : index
    %17 = vector.load %arg12[%c0_24, %c8] : memref<324x144xf32, #tpu.memory_space<vmem>>, vector<324x4xf32>
    tpu.vector_store %arg12[%c0_24, %c8], %16 {strides = array<i32>} : memref<324x144xf32, #tpu.memory_space<vmem>>, vector<324x4xf32>,
    %c0_25 = arith.constant 0 : index
    %c18 = arith.constant 18 : index
    %c0_26 = arith.constant 0 : index
    %18 = vector.load %arg1[%c0_25, %c18, %c0_26] : memref<1x362x4xf32, #tpu.memory_space<vmem>>, vector<1x324x4xf32>
    %19 = vector.shape_cast %18 : vector<1x324x4xf32> to vector<324x4xf32>
    %c0_27 = arith.constant 0 : index
    %c12 = arith.constant 12 : index
    %20 = vector.load %arg12[%c0_27, %c12] : memref<324x144xf32, #tpu.memory_space<vmem>>, vector<324x4xf32>
    tpu.vector_store %arg12[%c0_27, %c12], %19 {strides = array<i32>} : memref<324x144xf32, #tpu.memory_space<vmem>>, vector<324x4xf32>,
    %c0_28 = arith.constant 0 : index
    %c19 = arith.constant 19 : index
    %c0_29 = arith.constant 0 : index
    %21 = vector.load %arg1[%c0_28, %c19, %c0_29] : memref<1x362x4xf32, #tpu.memory_space<vmem>>, vector<1x324x4xf32>
    %22 = vector.shape_cast %21 : vector<1x324x4xf32> to vector<324x4xf32>
    %c0_30 = arith.constant 0 : index
    %c16 = arith.constant 16 : index
    %23 = vector.load %arg12[%c0_30, %c16] : memref<324x144xf32, #tpu.memory_space<vmem>>, vector<324x4xf32>
    tpu.vector_store %arg12[%c0_30, %c16], %22 {strides = array<i32>} : memref<324x144xf32, #tpu.memory_space<vmem>>, vector<324x4xf32>,
    %c0_31 = arith.constant 0 : index
    %c20 = arith.constant 20 : index
    %c0_32 = arith.constant 0 : index
    %24 = vector.load %arg1[%c0_31, %c20, %c0_32] : memref<1x362x4xf32, #tpu.memory_space<vmem>>, vector<1x324x4xf32>
    %25 = vector.shape_cast %24 : vector<1x324x4xf32> to vector<324x4xf32>
    %c0_33 = arith.constant 0 : index
    %c20_34 = arith.constant 20 : index
    %26 = vector.load %arg12[%c0_33, %c20_34] : memref<324x144xf32, #tpu.memory_space<vmem>>, vector<324x4xf32>
    tpu.vector_store %arg12[%c0_33, %c20_34], %25 {strides = array<i32>} : memref<324x144xf32, #tpu.memory_space<vmem>>, vector<324x4xf32>,
    %c0_35 = arith.constant 0 : index
    %c36 = arith.constant 36 : index
    %c0_36 = arith.constant 0 : index
    %27 = vector.load %arg1[%c0_35, %c36, %c0_36] : memref<1x362x4xf32, #tpu.memory_space<vmem>>, vector<1x324x4xf32>
    %28 = vector.shape_cast %27 : vector<1x324x4xf32> to vector<324x4xf32>
    %c0_37 = arith.constant 0 : index
    %c24 = arith.constant 24 : index
    %29 = vector.load %arg12[%c0_37, %c24] : memref<324x144xf32, #tpu.memory_space<vmem>>, vector<324x4xf32>
    tpu.vector_store %arg12[%c0_37, %c24], %28 {strides = array<i32>} : memref<324x144xf32, #tpu.memory_space<vmem>>, vector<324x4xf32>,
    %c0_38 = arith.constant 0 : index
    %c37 = arith.constant 37 : index
    %c0_39 = arith.constant 0 : index
    %30 = vector.load %arg1[%c0_38, %c37, %c0_39] : memref<1x362x4xf32, #tpu.memory_space<vmem>>, vector<1x324x4xf32>
    %31 = vector.shape_cast %30 : vector<1x324x4xf32> to vector<324x4xf32>
    %c0_40 = arith.constant 0 : index
    %c28 = arith.constant 28 : index
    %32 = vector.load %arg12[%c0_40, %c28] : memref<324x144xf32, #tpu.memory_space<vmem>>, vector<324x4xf32>
    tpu.vector_store %arg12[%c0_40, %c28], %31 {strides = array<i32>} : memref<324x144xf32, #tpu.memory_space<vmem>>, vector<324x4xf32>,
    %c0_41 = arith.constant 0 : index
    %c38 = arith.constant 38 : index
    %c0_42 = arith.constant 0 : index
    %33 = vector.load %arg1[%c0_41, %c38, %c0_42] : memref<1x362x4xf32, #tpu.memory_space<vmem>>, vector<1x324x4xf32>
    %34 = vector.shape_cast %33 : vector<1x324x4xf32> to vector<324x4xf32>
    %c0_43 = arith.constant 0 : index
    %c32 = arith.constant 32 : index
    %35 = vector.load %arg12[%c0_43, %c32] : memref<324x144xf32, #tpu.memory_space<vmem>>, vector<324x4xf32>
    tpu.vector_store %arg12[%c0_43, %c32], %34 {strides = array<i32>} : memref<324x144xf32, #tpu.memory_space<vmem>>, vector<324x4xf32>,
    %c0_44 = arith.constant 0 : index
    %c0_45 = arith.constant 0 : index
    %36 = vector.load %arg12[%c0_44, %c0_45] : memref<324x144xf32, #tpu.memory_space<vmem>>, vector<324x36xf32>
    %cst = arith.constant dense<0.000000e+00> : vector<324x16xf32>
    %37 = tpu.matmul %36, %2, %cst {dimension_numbers = #tpu.dot_dimension_numbers<[1], [0], [0], [1], [0, 0, 1, 1], [], []>} : vector<324x36xf32>, vector<36x16xf32>, vector<324x16xf32> -> vector<324x16xf32>
    %38 = vector.broadcast %4 : vector<1x16xf32> to vector<324x16xf32>
    %39 = arith.addf %37, %38 : vector<324x16xf32>
    %40 = vector.broadcast %0 : vector<324x1xf32> to vector<324x16xf32>
    %41 = arith.mulf %39, %40 : vector<324x16xf32>
    %cst_46 = arith.constant dense<0.000000e+00> : vector<16xf32>
    %42 = vector.multi_reduction <add>, %41, %cst_46 [0] : vector<324x16xf32> to vector<16xf32>
    %43 = vector.shape_cast %42 : vector<16xf32> to vector<1x16xf32>
    %cst_47 = arith.constant dense<0.000000e+00> : vector<1x16xf32>
    %44 = tpu.matmul %43, %1, %cst_47 {dimension_numbers = #tpu.dot_dimension_numbers<[1], [0], [0], [1], [0, 0, 1, 1], [], []>} : vector<1x16xf32>, vector<16x16xf32>, vector<1x16xf32> -> vector<1x16xf32>
    %45 = vector.broadcast %44 : vector<1x16xf32> to vector<324x16xf32>
    %46 = arith.subf %39, %45 : vector<324x16xf32>
    %47 = vector.broadcast %0 : vector<324x1xf32> to vector<324x16xf32>
    %48 = arith.mulf %46, %47 : vector<324x16xf32>
    %49 = arith.mulf %48, %48 : vector<324x16xf32>
    %cst_48 = arith.constant dense<0.000000e+00> : vector<16xf32>
    %50 = vector.multi_reduction <add>, %49, %cst_48 [0] : vector<324x16xf32> to vector<16xf32>
    %51 = vector.shape_cast %50 : vector<16xf32> to vector<1x16xf32>
    %cst_49 = arith.constant dense<0.000000e+00> : vector<1x16xf32>
    %52 = tpu.matmul %51, %1, %cst_49 {dimension_numbers = #tpu.dot_dimension_numbers<[1], [0], [0], [1], [0, 0, 1, 1], [], []>} : vector<1x16xf32>, vector<16x16xf32>, vector<1x16xf32> -> vector<1x16xf32>
    %cst_50 = arith.constant 9.99999974E-6 : f32
    %53 = vector.broadcast %cst_50 : f32 to vector<1x16xf32>
    %54 = arith.addf %52, %53 : vector<1x16xf32>
    %55 = math.rsqrt %54 : vector<1x16xf32>
    %56 = arith.mulf %55, %6 : vector<1x16xf32>
    %57 = vector.broadcast %56 : vector<1x16xf32> to vector<324x16xf32>
    %58 = arith.mulf %48, %57 : vector<324x16xf32>
    %59 = vector.broadcast %8 : vector<1x16xf32> to vector<324x16xf32>
    %60 = arith.addf %58, %59 : vector<324x16xf32>
    %cst_51 = arith.constant 0.000000e+00 : f32
    %61 = vector.broadcast %cst_51 : f32 to vector<324x16xf32>
    %62 = arith.maximumf %60, %61 : vector<324x16xf32>
    %cst_52 = arith.constant 0.000000e+00 : f32
    %63 = vector.broadcast %cst_52 : f32 to vector<24x16xf32>
    %c0_53 = arith.constant 0 : index
    %c0_54 = arith.constant 0 : index
    %64 = vector.load %arg10[%c0_53, %c0_54] : memref<386x16xf32, #tpu.memory_space<vmem>>, vector<24x16xf32>
    tpu.vector_store %arg10[%c0_53, %c0_54], %63 {strides = array<i32>} : memref<386x16xf32, #tpu.memory_space<vmem>>, vector<24x16xf32>,
    %65 = vector.broadcast %0 : vector<324x1xf32> to vector<324x16xf32>
    %66 = arith.mulf %62, %65 : vector<324x16xf32>
    %c24_55 = arith.constant 24 : index
    %c0_56 = arith.constant 0 : index
    %67 = vector.load %arg10[%c24_55, %c0_56] : memref<386x16xf32, #tpu.memory_space<vmem>>, vector<324x16xf32>
    tpu.vector_store %arg10[%c24_55, %c0_56], %66 {strides = array<i32>} : memref<386x16xf32, #tpu.memory_space<vmem>>, vector<324x16xf32>,
    %cst_57 = arith.constant 0.000000e+00 : f32
    %68 = vector.broadcast %cst_57 : f32 to vector<38x16xf32>
    %c348 = arith.constant 348 : index
    %c0_58 = arith.constant 0 : index
    %69 = vector.load %arg10[%c348, %c0_58] : memref<386x16xf32, #tpu.memory_space<vmem>>, vector<38x16xf32>
    tpu.vector_store %arg10[%c348, %c0_58], %68 {strides = array<i32>} : memref<386x16xf32, #tpu.memory_space<vmem>>, vector<38x16xf32>,
    %c0_59 = arith.constant 0 : index
    %c0_60 = arith.constant 0 : index
    %c0_61 = arith.constant 0 : index
    %70 = vector.load %arg3[%c0_59, %c0_60, %c0_61] : memref<2x144x16xf32, #tpu.memory_space<vmem>>, vector<1x144x16xf32>
    %71 = vector.shape_cast %70 : vector<1x144x16xf32> to vector<144x16xf32>
    %c1_62 = arith.constant 1 : index
    %c0_63 = arith.constant 0 : index
    %c0_64 = arith.constant 0 : index
    %72 = vector.load %arg4[%c1_62, %c0_63, %c0_64] : memref<3x1x16xf32, #tpu.memory_space<vmem>>, vector<1x1x16xf32>
    %73 = vector.shape_cast %72 : vector<1x1x16xf32> to vector<1x16xf32>
    %c1_65 = arith.constant 1 : index
    %c0_66 = arith.constant 0 : index
    %c0_67 = arith.constant 0 : index
    %74 = vector.load %arg5[%c1_65, %c0_66, %c0_67] : memref<3x1x16xf32, #tpu.memory_space<vmem>>, vector<1x1x16xf32>
    %75 = vector.shape_cast %74 : vector<1x1x16xf32> to vector<1x16xf32>
    %c1_68 = arith.constant 1 : index
    %c0_69 = arith.constant 0 : index
    %c0_70 = arith.constant 0 : index
    %76 = vector.load %arg6[%c1_68, %c0_69, %c0_70] : memref<3x1x16xf32, #tpu.memory_space<vmem>>, vector<1x1x16xf32>
    %77 = vector.shape_cast %76 : vector<1x1x16xf32> to vector<1x16xf32>
    %c5 = arith.constant 5 : index
    %c0_71 = arith.constant 0 : index
    %78 = vector.load %arg10[%c5, %c0_71] : memref<386x16xf32, #tpu.memory_space<vmem>>, vector<324x16xf32>
    %c0_72 = arith.constant 0 : index
    %c0_73 = arith.constant 0 : index
    %79 = vector.load %arg12[%c0_72, %c0_73] : memref<324x144xf32, #tpu.memory_space<vmem>>, vector<324x16xf32>
    tpu.vector_store %arg12[%c0_72, %c0_73], %78 {strides = array<i32>} : memref<324x144xf32, #tpu.memory_space<vmem>>, vector<324x16xf32>,
    %c6 = arith.constant 6 : index
    %c0_74 = arith.constant 0 : index
    %80 = vector.load %arg10[%c6, %c0_74] : memref<386x16xf32, #tpu.memory_space<vmem>>, vector<324x16xf32>
    %c0_75 = arith.constant 0 : index
    %c16_76 = arith.constant 16 : index
    %81 = vector.load %arg12[%c0_75, %c16_76] : memref<324x144xf32, #tpu.memory_space<vmem>>, vector<324x16xf32>
    tpu.vector_store %arg12[%c0_75, %c16_76], %80 {strides = array<i32>} : memref<324x144xf32, #tpu.memory_space<vmem>>, vector<324x16xf32>,
    %c7 = arith.constant 7 : index
    %c0_77 = arith.constant 0 : index
    %82 = vector.load %arg10[%c7, %c0_77] : memref<386x16xf32, #tpu.memory_space<vmem>>, vector<324x16xf32>
    %c0_78 = arith.constant 0 : index
    %c32_79 = arith.constant 32 : index
    %83 = vector.load %arg12[%c0_78, %c32_79] : memref<324x144xf32, #tpu.memory_space<vmem>>, vector<324x16xf32>
    tpu.vector_store %arg12[%c0_78, %c32_79], %82 {strides = array<i32>} : memref<324x144xf32, #tpu.memory_space<vmem>>, vector<324x16xf32>,
    %c23 = arith.constant 23 : index
    %c0_80 = arith.constant 0 : index
    %84 = vector.load %arg10[%c23, %c0_80] : memref<386x16xf32, #tpu.memory_space<vmem>>, vector<324x16xf32>
    %c0_81 = arith.constant 0 : index
    %c48 = arith.constant 48 : index
    %85 = vector.load %arg12[%c0_81, %c48] : memref<324x144xf32, #tpu.memory_space<vmem>>, vector<324x16xf32>
    tpu.vector_store %arg12[%c0_81, %c48], %84 {strides = array<i32>} : memref<324x144xf32, #tpu.memory_space<vmem>>, vector<324x16xf32>,
    %c24_82 = arith.constant 24 : index
    %c0_83 = arith.constant 0 : index
    %86 = vector.load %arg10[%c24_82, %c0_83] : memref<386x16xf32, #tpu.memory_space<vmem>>, vector<324x16xf32>
    %c0_84 = arith.constant 0 : index
    %c64 = arith.constant 64 : index
    %87 = vector.load %arg12[%c0_84, %c64] : memref<324x144xf32, #tpu.memory_space<vmem>>, vector<324x16xf32>
    tpu.vector_store %arg12[%c0_84, %c64], %86 {strides = array<i32>} : memref<324x144xf32, #tpu.memory_space<vmem>>, vector<324x16xf32>,
    %c25 = arith.constant 25 : index
    %c0_85 = arith.constant 0 : index
    %88 = vector.load %arg10[%c25, %c0_85] : memref<386x16xf32, #tpu.memory_space<vmem>>, vector<324x16xf32>
    %c0_86 = arith.constant 0 : index
    %c80 = arith.constant 80 : index
    %89 = vector.load %arg12[%c0_86, %c80] : memref<324x144xf32, #tpu.memory_space<vmem>>, vector<324x16xf32>
    tpu.vector_store %arg12[%c0_86, %c80], %88 {strides = array<i32>} : memref<324x144xf32, #tpu.memory_space<vmem>>, vector<324x16xf32>,
    %c41 = arith.constant 41 : index
    %c0_87 = arith.constant 0 : index
    %90 = vector.load %arg10[%c41, %c0_87] : memref<386x16xf32, #tpu.memory_space<vmem>>, vector<324x16xf32>
    %c0_88 = arith.constant 0 : index
    %c96 = arith.constant 96 : index
    %91 = vector.load %arg12[%c0_88, %c96] : memref<324x144xf32, #tpu.memory_space<vmem>>, vector<324x16xf32>
    tpu.vector_store %arg12[%c0_88, %c96], %90 {strides = array<i32>} : memref<324x144xf32, #tpu.memory_space<vmem>>, vector<324x16xf32>,
    %c42 = arith.constant 42 : index
    %c0_89 = arith.constant 0 : index
    %92 = vector.load %arg10[%c42, %c0_89] : memref<386x16xf32, #tpu.memory_space<vmem>>, vector<324x16xf32>
    %c0_90 = arith.constant 0 : index
    %c112 = arith.constant 112 : index
    %93 = vector.load %arg12[%c0_90, %c112] : memref<324x144xf32, #tpu.memory_space<vmem>>, vector<324x16xf32>
    tpu.vector_store %arg12[%c0_90, %c112], %92 {strides = array<i32>} : memref<324x144xf32, #tpu.memory_space<vmem>>, vector<324x16xf32>,
    %c43 = arith.constant 43 : index
    %c0_91 = arith.constant 0 : index
    %94 = vector.load %arg10[%c43, %c0_91] : memref<386x16xf32, #tpu.memory_space<vmem>>, vector<324x16xf32>
    %c0_92 = arith.constant 0 : index
    %c128 = arith.constant 128 : index
    %95 = vector.load %arg12[%c0_92, %c128] : memref<324x144xf32, #tpu.memory_space<vmem>>, vector<324x16xf32>
    tpu.vector_store %arg12[%c0_92, %c128], %94 {strides = array<i32>} : memref<324x144xf32, #tpu.memory_space<vmem>>, vector<324x16xf32>,
    %c0_93 = arith.constant 0 : index
    %c0_94 = arith.constant 0 : index
    %96 = vector.load %arg12[%c0_93, %c0_94] : memref<324x144xf32, #tpu.memory_space<vmem>>, vector<324x144xf32>
    %cst_95 = arith.constant dense<0.000000e+00> : vector<324x16xf32>
    %97 = tpu.matmul %96, %71, %cst_95 {dimension_numbers = #tpu.dot_dimension_numbers<[1], [0], [0], [1], [0, 0, 1, 1], [], []>} : vector<324x144xf32>, vector<144x16xf32>, vector<324x16xf32> -> vector<324x16xf32>
    %98 = vector.broadcast %73 : vector<1x16xf32> to vector<324x16xf32>
    %99 = arith.addf %97, %98 : vector<324x16xf32>
    %100 = vector.broadcast %0 : vector<324x1xf32> to vector<324x16xf32>
    %101 = arith.mulf %99, %100 : vector<324x16xf32>
    %cst_96 = arith.constant dense<0.000000e+00> : vector<16xf32>
    %102 = vector.multi_reduction <add>, %101, %cst_96 [0] : vector<324x16xf32> to vector<16xf32>
    %103 = vector.shape_cast %102 : vector<16xf32> to vector<1x16xf32>
    %cst_97 = arith.constant dense<0.000000e+00> : vector<1x16xf32>
    %104 = tpu.matmul %103, %1, %cst_97 {dimension_numbers = #tpu.dot_dimension_numbers<[1], [0], [0], [1], [0, 0, 1, 1], [], []>} : vector<1x16xf32>, vector<16x16xf32>, vector<1x16xf32> -> vector<1x16xf32>
    %105 = vector.broadcast %104 : vector<1x16xf32> to vector<324x16xf32>
    %106 = arith.subf %99, %105 : vector<324x16xf32>
    %107 = vector.broadcast %0 : vector<324x1xf32> to vector<324x16xf32>
    %108 = arith.mulf %106, %107 : vector<324x16xf32>
    %109 = arith.mulf %108, %108 : vector<324x16xf32>
    %cst_98 = arith.constant dense<0.000000e+00> : vector<16xf32>
    %110 = vector.multi_reduction <add>, %109, %cst_98 [0] : vector<324x16xf32> to vector<16xf32>
    %111 = vector.shape_cast %110 : vector<16xf32> to vector<1x16xf32>
    %cst_99 = arith.constant dense<0.000000e+00> : vector<1x16xf32>
    %112 = tpu.matmul %111, %1, %cst_99 {dimension_numbers = #tpu.dot_dimension_numbers<[1], [0], [0], [1], [0, 0, 1, 1], [], []>} : vector<1x16xf32>, vector<16x16xf32>, vector<1x16xf32> -> vector<1x16xf32>
    %cst_100 = arith.constant 9.99999974E-6 : f32
    %113 = vector.broadcast %cst_100 : f32 to vector<1x16xf32>
    %114 = arith.addf %112, %113 : vector<1x16xf32>
    %115 = math.rsqrt %114 : vector<1x16xf32>
    %116 = arith.mulf %115, %75 : vector<1x16xf32>
    %117 = vector.broadcast %116 : vector<1x16xf32> to vector<324x16xf32>
    %118 = arith.mulf %108, %117 : vector<324x16xf32>
    %119 = vector.broadcast %77 : vector<1x16xf32> to vector<324x16xf32>
    %120 = arith.addf %118, %119 : vector<324x16xf32>
    %cst_101 = arith.constant 0.000000e+00 : f32
    %121 = vector.broadcast %cst_101 : f32 to vector<324x16xf32>
    %122 = arith.maximumf %120, %121 : vector<324x16xf32>
    %cst_102 = arith.constant 0.000000e+00 : f32
    %123 = vector.broadcast %cst_102 : f32 to vector<24x16xf32>
    %c0_103 = arith.constant 0 : index
    %c0_104 = arith.constant 0 : index
    %124 = vector.load %arg11[%c0_103, %c0_104] : memref<386x16xf32, #tpu.memory_space<vmem>>, vector<24x16xf32>
    tpu.vector_store %arg11[%c0_103, %c0_104], %123 {strides = array<i32>} : memref<386x16xf32, #tpu.memory_space<vmem>>, vector<24x16xf32>,
    %125 = vector.broadcast %0 : vector<324x1xf32> to vector<324x16xf32>
    %126 = arith.mulf %122, %125 : vector<324x16xf32>
    %c24_105 = arith.constant 24 : index
    %c0_106 = arith.constant 0 : index
    %127 = vector.load %arg11[%c24_105, %c0_106] : memref<386x16xf32, #tpu.memory_space<vmem>>, vector<324x16xf32>
    tpu.vector_store %arg11[%c24_105, %c0_106], %126 {strides = array<i32>} : memref<386x16xf32, #tpu.memory_space<vmem>>, vector<324x16xf32>,
    %cst_107 = arith.constant 0.000000e+00 : f32
    %128 = vector.broadcast %cst_107 : f32 to vector<38x16xf32>
    %c348_108 = arith.constant 348 : index
    %c0_109 = arith.constant 0 : index
    %129 = vector.load %arg11[%c348_108, %c0_109] : memref<386x16xf32, #tpu.memory_space<vmem>>, vector<38x16xf32>
    tpu.vector_store %arg11[%c348_108, %c0_109], %128 {strides = array<i32>} : memref<386x16xf32, #tpu.memory_space<vmem>>, vector<38x16xf32>,
    %c1_110 = arith.constant 1 : index
    %c0_111 = arith.constant 0 : index
    %c0_112 = arith.constant 0 : index
    %130 = vector.load %arg3[%c1_110, %c0_111, %c0_112] : memref<2x144x16xf32, #tpu.memory_space<vmem>>, vector<1x144x16xf32>
    %131 = vector.shape_cast %130 : vector<1x144x16xf32> to vector<144x16xf32>
    %c2_113 = arith.constant 2 : index
    %c0_114 = arith.constant 0 : index
    %c0_115 = arith.constant 0 : index
    %132 = vector.load %arg4[%c2_113, %c0_114, %c0_115] : memref<3x1x16xf32, #tpu.memory_space<vmem>>, vector<1x1x16xf32>
    %133 = vector.shape_cast %132 : vector<1x1x16xf32> to vector<1x16xf32>
    %c2_116 = arith.constant 2 : index
    %c0_117 = arith.constant 0 : index
    %c0_118 = arith.constant 0 : index
    %134 = vector.load %arg5[%c2_116, %c0_117, %c0_118] : memref<3x1x16xf32, #tpu.memory_space<vmem>>, vector<1x1x16xf32>
    %135 = vector.shape_cast %134 : vector<1x1x16xf32> to vector<1x16xf32>
    %c2_119 = arith.constant 2 : index
    %c0_120 = arith.constant 0 : index
    %c0_121 = arith.constant 0 : index
    %136 = vector.load %arg6[%c2_119, %c0_120, %c0_121] : memref<3x1x16xf32, #tpu.memory_space<vmem>>, vector<1x1x16xf32>
    %137 = vector.shape_cast %136 : vector<1x1x16xf32> to vector<1x16xf32>
    %c5_122 = arith.constant 5 : index
    %c0_123 = arith.constant 0 : index
    %138 = vector.load %arg11[%c5_122, %c0_123] : memref<386x16xf32, #tpu.memory_space<vmem>>, vector<324x16xf32>
    %c0_124 = arith.constant 0 : index
    %c0_125 = arith.constant 0 : index
    %139 = vector.load %arg12[%c0_124, %c0_125] : memref<324x144xf32, #tpu.memory_space<vmem>>, vector<324x16xf32>
    tpu.vector_store %arg12[%c0_124, %c0_125], %138 {strides = array<i32>} : memref<324x144xf32, #tpu.memory_space<vmem>>, vector<324x16xf32>,
    %c6_126 = arith.constant 6 : index
    %c0_127 = arith.constant 0 : index
    %140 = vector.load %arg11[%c6_126, %c0_127] : memref<386x16xf32, #tpu.memory_space<vmem>>, vector<324x16xf32>
    %c0_128 = arith.constant 0 : index
    %c16_129 = arith.constant 16 : index
    %141 = vector.load %arg12[%c0_128, %c16_129] : memref<324x144xf32, #tpu.memory_space<vmem>>, vector<324x16xf32>
    tpu.vector_store %arg12[%c0_128, %c16_129], %140 {strides = array<i32>} : memref<324x144xf32, #tpu.memory_space<vmem>>, vector<324x16xf32>,
    %c7_130 = arith.constant 7 : index
    %c0_131 = arith.constant 0 : index
    %142 = vector.load %arg11[%c7_130, %c0_131] : memref<386x16xf32, #tpu.memory_space<vmem>>, vector<324x16xf32>
    %c0_132 = arith.constant 0 : index
    %c32_133 = arith.constant 32 : index
    %143 = vector.load %arg12[%c0_132, %c32_133] : memref<324x144xf32, #tpu.memory_space<vmem>>, vector<324x16xf32>
    tpu.vector_store %arg12[%c0_132, %c32_133], %142 {strides = array<i32>} : memref<324x144xf32, #tpu.memory_space<vmem>>, vector<324x16xf32>,
    %c23_134 = arith.constant 23 : index
    %c0_135 = arith.constant 0 : index
    %144 = vector.load %arg11[%c23_134, %c0_135] : memref<386x16xf32, #tpu.memory_space<vmem>>, vector<324x16xf32>
    %c0_136 = arith.constant 0 : index
    %c48_137 = arith.constant 48 : index
    %145 = vector.load %arg12[%c0_136, %c48_137] : memref<324x144xf32, #tpu.memory_space<vmem>>, vector<324x16xf32>
    tpu.vector_store %arg12[%c0_136, %c48_137], %144 {strides = array<i32>} : memref<324x144xf32, #tpu.memory_space<vmem>>, vector<324x16xf32>,
    %c24_138 = arith.constant 24 : index
    %c0_139 = arith.constant 0 : index
    %146 = vector.load %arg11[%c24_138, %c0_139] : memref<386x16xf32, #tpu.memory_space<vmem>>, vector<324x16xf32>
    %c0_140 = arith.constant 0 : index
    %c64_141 = arith.constant 64 : index
    %147 = vector.load %arg12[%c0_140, %c64_141] : memref<324x144xf32, #tpu.memory_space<vmem>>, vector<324x16xf32>
    tpu.vector_store %arg12[%c0_140, %c64_141], %146 {strides = array<i32>} : memref<324x144xf32, #tpu.memory_space<vmem>>, vector<324x16xf32>,
    %c25_142 = arith.constant 25 : index
    %c0_143 = arith.constant 0 : index
    %148 = vector.load %arg11[%c25_142, %c0_143] : memref<386x16xf32, #tpu.memory_space<vmem>>, vector<324x16xf32>
    %c0_144 = arith.constant 0 : index
    %c80_145 = arith.constant 80 : index
    %149 = vector.load %arg12[%c0_144, %c80_145] : memref<324x144xf32, #tpu.memory_space<vmem>>, vector<324x16xf32>
    tpu.vector_store %arg12[%c0_144, %c80_145], %148 {strides = array<i32>} : memref<324x144xf32, #tpu.memory_space<vmem>>, vector<324x16xf32>,
    %c41_146 = arith.constant 41 : index
    %c0_147 = arith.constant 0 : index
    %150 = vector.load %arg11[%c41_146, %c0_147] : memref<386x16xf32, #tpu.memory_space<vmem>>, vector<324x16xf32>
    %c0_148 = arith.constant 0 : index
    %c96_149 = arith.constant 96 : index
    %151 = vector.load %arg12[%c0_148, %c96_149] : memref<324x144xf32, #tpu.memory_space<vmem>>, vector<324x16xf32>
    tpu.vector_store %arg12[%c0_148, %c96_149], %150 {strides = array<i32>} : memref<324x144xf32, #tpu.memory_space<vmem>>, vector<324x16xf32>,
    %c42_150 = arith.constant 42 : index
    %c0_151 = arith.constant 0 : index
    %152 = vector.load %arg11[%c42_150, %c0_151] : memref<386x16xf32, #tpu.memory_space<vmem>>, vector<324x16xf32>
    %c0_152 = arith.constant 0 : index
    %c112_153 = arith.constant 112 : index
    %153 = vector.load %arg12[%c0_152, %c112_153] : memref<324x144xf32, #tpu.memory_space<vmem>>, vector<324x16xf32>
    tpu.vector_store %arg12[%c0_152, %c112_153], %152 {strides = array<i32>} : memref<324x144xf32, #tpu.memory_space<vmem>>, vector<324x16xf32>,
    %c43_154 = arith.constant 43 : index
    %c0_155 = arith.constant 0 : index
    %154 = vector.load %arg11[%c43_154, %c0_155] : memref<386x16xf32, #tpu.memory_space<vmem>>, vector<324x16xf32>
    %c0_156 = arith.constant 0 : index
    %c128_157 = arith.constant 128 : index
    %155 = vector.load %arg12[%c0_156, %c128_157] : memref<324x144xf32, #tpu.memory_space<vmem>>, vector<324x16xf32>
    tpu.vector_store %arg12[%c0_156, %c128_157], %154 {strides = array<i32>} : memref<324x144xf32, #tpu.memory_space<vmem>>, vector<324x16xf32>,
    %c0_158 = arith.constant 0 : index
    %c0_159 = arith.constant 0 : index
    %156 = vector.load %arg12[%c0_158, %c0_159] : memref<324x144xf32, #tpu.memory_space<vmem>>, vector<324x144xf32>
    %cst_160 = arith.constant dense<0.000000e+00> : vector<324x16xf32>
    %157 = tpu.matmul %156, %131, %cst_160 {dimension_numbers = #tpu.dot_dimension_numbers<[1], [0], [0], [1], [0, 0, 1, 1], [], []>} : vector<324x144xf32>, vector<144x16xf32>, vector<324x16xf32> -> vector<324x16xf32>
    %158 = vector.broadcast %133 : vector<1x16xf32> to vector<324x16xf32>
    %159 = arith.addf %157, %158 : vector<324x16xf32>
    %160 = vector.broadcast %0 : vector<324x1xf32> to vector<324x16xf32>
    %161 = arith.mulf %159, %160 : vector<324x16xf32>
    %cst_161 = arith.constant dense<0.000000e+00> : vector<16xf32>
    %162 = vector.multi_reduction <add>, %161, %cst_161 [0] : vector<324x16xf32> to vector<16xf32>
    %163 = vector.shape_cast %162 : vector<16xf32> to vector<1x16xf32>
    %cst_162 = arith.constant dense<0.000000e+00> : vector<1x16xf32>
    %164 = tpu.matmul %163, %1, %cst_162 {dimension_numbers = #tpu.dot_dimension_numbers<[1], [0], [0], [1], [0, 0, 1, 1], [], []>} : vector<1x16xf32>, vector<16x16xf32>, vector<1x16xf32> -> vector<1x16xf32>
    %165 = vector.broadcast %164 : vector<1x16xf32> to vector<324x16xf32>
    %166 = arith.subf %159, %165 : vector<324x16xf32>
    %167 = vector.broadcast %0 : vector<324x1xf32> to vector<324x16xf32>
    %168 = arith.mulf %166, %167 : vector<324x16xf32>
    %169 = arith.mulf %168, %168 : vector<324x16xf32>
    %cst_163 = arith.constant dense<0.000000e+00> : vector<16xf32>
    %170 = vector.multi_reduction <add>, %169, %cst_163 [0] : vector<324x16xf32> to vector<16xf32>
    %171 = vector.shape_cast %170 : vector<16xf32> to vector<1x16xf32>
    %cst_164 = arith.constant dense<0.000000e+00> : vector<1x16xf32>
    %172 = tpu.matmul %171, %1, %cst_164 {dimension_numbers = #tpu.dot_dimension_numbers<[1], [0], [0], [1], [0, 0, 1, 1], [], []>} : vector<1x16xf32>, vector<16x16xf32>, vector<1x16xf32> -> vector<1x16xf32>
    %cst_165 = arith.constant 9.99999974E-6 : f32
    %173 = vector.broadcast %cst_165 : f32 to vector<1x16xf32>
    %174 = arith.addf %172, %173 : vector<1x16xf32>
    %175 = math.rsqrt %174 : vector<1x16xf32>
    %176 = arith.mulf %175, %135 : vector<1x16xf32>
    %177 = vector.broadcast %176 : vector<1x16xf32> to vector<324x16xf32>
    %178 = arith.mulf %168, %177 : vector<324x16xf32>
    %179 = vector.broadcast %137 : vector<1x16xf32> to vector<324x16xf32>
    %180 = arith.addf %178, %179 : vector<324x16xf32>
    %cst_166 = arith.constant 0.000000e+00 : f32
    %181 = vector.broadcast %cst_166 : f32 to vector<324x16xf32>
    %182 = arith.maximumf %180, %181 : vector<324x16xf32>
    %c0_167 = arith.constant 0 : index
    %c0_168 = arith.constant 0 : index
    %183 = vector.load %arg10[%c0_167, %c0_168] : memref<386x16xf32, #tpu.memory_space<vmem>>, vector<324x16xf32>
    tpu.vector_store %arg10[%c0_167, %c0_168], %182 {strides = array<i32>} : memref<386x16xf32, #tpu.memory_space<vmem>>, vector<324x16xf32>,
    %c0_169 = arith.constant 0 : index
    %c0_170 = arith.constant 0 : index
    %184 = tpu.strided_load %arg10[%c0_169, %c0_170] {strides = array<i32: 2, 1>} : memref<386x16xf32, #tpu.memory_space<vmem>>, vector<8x16xf32>
    %c1_171 = arith.constant 1 : index
    %c0_172 = arith.constant 0 : index
    %185 = tpu.strided_load %arg10[%c1_171, %c0_172] {strides = array<i32: 2, 1>} : memref<386x16xf32, #tpu.memory_space<vmem>>, vector<8x16xf32>
    %186 = arith.maximumf %184, %185 : vector<8x16xf32>
    %c18_173 = arith.constant 18 : index
    %c0_174 = arith.constant 0 : index
    %187 = tpu.strided_load %arg10[%c18_173, %c0_174] {strides = array<i32: 2, 1>} : memref<386x16xf32, #tpu.memory_space<vmem>>, vector<8x16xf32>
    %c19_175 = arith.constant 19 : index
    %c0_176 = arith.constant 0 : index
    %188 = tpu.strided_load %arg10[%c19_175, %c0_176] {strides = array<i32: 2, 1>} : memref<386x16xf32, #tpu.memory_space<vmem>>, vector<8x16xf32>
    %189 = arith.maximumf %187, %188 : vector<8x16xf32>
    %190 = arith.maximumf %186, %189 : vector<8x16xf32>
    %c0_177 = arith.constant 0 : index
    %c0_178 = arith.constant 0 : index
    %c0_179 = arith.constant 0 : index
    %c0_180 = arith.constant 0 : index
    %191 = vector.load %arg9[%c0_177, %c0_178, %c0_179, %c0_180] : memref<1x8x8x16xf32, #tpu.memory_space<vmem>>, vector<1x1x8x16xf32>
    %192 = vector.shape_cast %191 : vector<1x1x8x16xf32> to vector<8x16xf32>
    %193 = vector.shape_cast %190 : vector<8x16xf32> to vector<1x1x8x16xf32>
    tpu.vector_store %arg9[%c0_177, %c0_178, %c0_179, %c0_180], %193 {strides = array<i32>} : memref<1x8x8x16xf32, #tpu.memory_space<vmem>>, vector<1x1x8x16xf32>,
    %c36_181 = arith.constant 36 : index
    %c0_182 = arith.constant 0 : index
    %194 = tpu.strided_load %arg10[%c36_181, %c0_182] {strides = array<i32: 2, 1>} : memref<386x16xf32, #tpu.memory_space<vmem>>, vector<8x16xf32>
    %c37_183 = arith.constant 37 : index
    %c0_184 = arith.constant 0 : index
    %195 = tpu.strided_load %arg10[%c37_183, %c0_184] {strides = array<i32: 2, 1>} : memref<386x16xf32, #tpu.memory_space<vmem>>, vector<8x16xf32>
    %196 = arith.maximumf %194, %195 : vector<8x16xf32>
    %c54 = arith.constant 54 : index
    %c0_185 = arith.constant 0 : index
    %197 = tpu.strided_load %arg10[%c54, %c0_185] {strides = array<i32: 2, 1>} : memref<386x16xf32, #tpu.memory_space<vmem>>, vector<8x16xf32>
    %c55 = arith.constant 55 : index
    %c0_186 = arith.constant 0 : index
    %198 = tpu.strided_load %arg10[%c55, %c0_186] {strides = array<i32: 2, 1>} : memref<386x16xf32, #tpu.memory_space<vmem>>, vector<8x16xf32>
    %199 = arith.maximumf %197, %198 : vector<8x16xf32>
    %200 = arith.maximumf %196, %199 : vector<8x16xf32>
    %c0_187 = arith.constant 0 : index
    %c1_188 = arith.constant 1 : index
    %c0_189 = arith.constant 0 : index
    %c0_190 = arith.constant 0 : index
    %201 = vector.load %arg9[%c0_187, %c1_188, %c0_189, %c0_190] : memref<1x8x8x16xf32, #tpu.memory_space<vmem>>, vector<1x1x8x16xf32>
    %202 = vector.shape_cast %201 : vector<1x1x8x16xf32> to vector<8x16xf32>
    %203 = vector.shape_cast %200 : vector<8x16xf32> to vector<1x1x8x16xf32>
    tpu.vector_store %arg9[%c0_187, %c1_188, %c0_189, %c0_190], %203 {strides = array<i32>} : memref<1x8x8x16xf32, #tpu.memory_space<vmem>>, vector<1x1x8x16xf32>,
    %c72 = arith.constant 72 : index
    %c0_191 = arith.constant 0 : index
    %204 = tpu.strided_load %arg10[%c72, %c0_191] {strides = array<i32: 2, 1>} : memref<386x16xf32, #tpu.memory_space<vmem>>, vector<8x16xf32>
    %c73 = arith.constant 73 : index
    %c0_192 = arith.constant 0 : index
    %205 = tpu.strided_load %arg10[%c73, %c0_192] {strides = array<i32: 2, 1>} : memref<386x16xf32, #tpu.memory_space<vmem>>, vector<8x16xf32>
    %206 = arith.maximumf %204, %205 : vector<8x16xf32>
    %c90 = arith.constant 90 : index
    %c0_193 = arith.constant 0 : index
    %207 = tpu.strided_load %arg10[%c90, %c0_193] {strides = array<i32: 2, 1>} : memref<386x16xf32, #tpu.memory_space<vmem>>, vector<8x16xf32>
    %c91 = arith.constant 91 : index
    %c0_194 = arith.constant 0 : index
    %208 = tpu.strided_load %arg10[%c91, %c0_194] {strides = array<i32: 2, 1>} : memref<386x16xf32, #tpu.memory_space<vmem>>, vector<8x16xf32>
    %209 = arith.maximumf %207, %208 : vector<8x16xf32>
    %210 = arith.maximumf %206, %209 : vector<8x16xf32>
    %c0_195 = arith.constant 0 : index
    %c2_196 = arith.constant 2 : index
    %c0_197 = arith.constant 0 : index
    %c0_198 = arith.constant 0 : index
    %211 = vector.load %arg9[%c0_195, %c2_196, %c0_197, %c0_198] : memref<1x8x8x16xf32, #tpu.memory_space<vmem>>, vector<1x1x8x16xf32>
    %212 = vector.shape_cast %211 : vector<1x1x8x16xf32> to vector<8x16xf32>
    %213 = vector.shape_cast %210 : vector<8x16xf32> to vector<1x1x8x16xf32>
    tpu.vector_store %arg9[%c0_195, %c2_196, %c0_197, %c0_198], %213 {strides = array<i32>} : memref<1x8x8x16xf32, #tpu.memory_space<vmem>>, vector<1x1x8x16xf32>,
    %c108 = arith.constant 108 : index
    %c0_199 = arith.constant 0 : index
    %214 = tpu.strided_load %arg10[%c108, %c0_199] {strides = array<i32: 2, 1>} : memref<386x16xf32, #tpu.memory_space<vmem>>, vector<8x16xf32>
    %c109 = arith.constant 109 : index
    %c0_200 = arith.constant 0 : index
    %215 = tpu.strided_load %arg10[%c109, %c0_200] {strides = array<i32: 2, 1>} : memref<386x16xf32, #tpu.memory_space<vmem>>, vector<8x16xf32>
    %216 = arith.maximumf %214, %215 : vector<8x16xf32>
    %c126 = arith.constant 126 : index
    %c0_201 = arith.constant 0 : index
    %217 = tpu.strided_load %arg10[%c126, %c0_201] {strides = array<i32: 2, 1>} : memref<386x16xf32, #tpu.memory_space<vmem>>, vector<8x16xf32>
    %c127 = arith.constant 127 : index
    %c0_202 = arith.constant 0 : index
    %218 = tpu.strided_load %arg10[%c127, %c0_202] {strides = array<i32: 2, 1>} : memref<386x16xf32, #tpu.memory_space<vmem>>, vector<8x16xf32>
    %219 = arith.maximumf %217, %218 : vector<8x16xf32>
    %220 = arith.maximumf %216, %219 : vector<8x16xf32>
    %c0_203 = arith.constant 0 : index
    %c3 = arith.constant 3 : index
    %c0_204 = arith.constant 0 : index
    %c0_205 = arith.constant 0 : index
    %221 = vector.load %arg9[%c0_203, %c3, %c0_204, %c0_205] : memref<1x8x8x16xf32, #tpu.memory_space<vmem>>, vector<1x1x8x16xf32>
    %222 = vector.shape_cast %221 : vector<1x1x8x16xf32> to vector<8x16xf32>
    %223 = vector.shape_cast %220 : vector<8x16xf32> to vector<1x1x8x16xf32>
    tpu.vector_store %arg9[%c0_203, %c3, %c0_204, %c0_205], %223 {strides = array<i32>} : memref<1x8x8x16xf32, #tpu.memory_space<vmem>>, vector<1x1x8x16xf32>,
    %c144 = arith.constant 144 : index
    %c0_206 = arith.constant 0 : index
    %224 = tpu.strided_load %arg10[%c144, %c0_206] {strides = array<i32: 2, 1>} : memref<386x16xf32, #tpu.memory_space<vmem>>, vector<8x16xf32>
    %c145 = arith.constant 145 : index
    %c0_207 = arith.constant 0 : index
    %225 = tpu.strided_load %arg10[%c145, %c0_207] {strides = array<i32: 2, 1>} : memref<386x16xf32, #tpu.memory_space<vmem>>, vector<8x16xf32>
    %226 = arith.maximumf %224, %225 : vector<8x16xf32>
    %c162 = arith.constant 162 : index
    %c0_208 = arith.constant 0 : index
    %227 = tpu.strided_load %arg10[%c162, %c0_208] {strides = array<i32: 2, 1>} : memref<386x16xf32, #tpu.memory_space<vmem>>, vector<8x16xf32>
    %c163 = arith.constant 163 : index
    %c0_209 = arith.constant 0 : index
    %228 = tpu.strided_load %arg10[%c163, %c0_209] {strides = array<i32: 2, 1>} : memref<386x16xf32, #tpu.memory_space<vmem>>, vector<8x16xf32>
    %229 = arith.maximumf %227, %228 : vector<8x16xf32>
    %230 = arith.maximumf %226, %229 : vector<8x16xf32>
    %c0_210 = arith.constant 0 : index
    %c4_211 = arith.constant 4 : index
    %c0_212 = arith.constant 0 : index
    %c0_213 = arith.constant 0 : index
    %231 = vector.load %arg9[%c0_210, %c4_211, %c0_212, %c0_213] : memref<1x8x8x16xf32, #tpu.memory_space<vmem>>, vector<1x1x8x16xf32>
    %232 = vector.shape_cast %231 : vector<1x1x8x16xf32> to vector<8x16xf32>
    %233 = vector.shape_cast %230 : vector<8x16xf32> to vector<1x1x8x16xf32>
    tpu.vector_store %arg9[%c0_210, %c4_211, %c0_212, %c0_213], %233 {strides = array<i32>} : memref<1x8x8x16xf32, #tpu.memory_space<vmem>>, vector<1x1x8x16xf32>,
    %c180 = arith.constant 180 : index
    %c0_214 = arith.constant 0 : index
    %234 = tpu.strided_load %arg10[%c180, %c0_214] {strides = array<i32: 2, 1>} : memref<386x16xf32, #tpu.memory_space<vmem>>, vector<8x16xf32>
    %c181 = arith.constant 181 : index
    %c0_215 = arith.constant 0 : index
    %235 = tpu.strided_load %arg10[%c181, %c0_215] {strides = array<i32: 2, 1>} : memref<386x16xf32, #tpu.memory_space<vmem>>, vector<8x16xf32>
    %236 = arith.maximumf %234, %235 : vector<8x16xf32>
    %c198 = arith.constant 198 : index
    %c0_216 = arith.constant 0 : index
    %237 = tpu.strided_load %arg10[%c198, %c0_216] {strides = array<i32: 2, 1>} : memref<386x16xf32, #tpu.memory_space<vmem>>, vector<8x16xf32>
    %c199 = arith.constant 199 : index
    %c0_217 = arith.constant 0 : index
    %238 = tpu.strided_load %arg10[%c199, %c0_217] {strides = array<i32: 2, 1>} : memref<386x16xf32, #tpu.memory_space<vmem>>, vector<8x16xf32>
    %239 = arith.maximumf %237, %238 : vector<8x16xf32>
    %240 = arith.maximumf %236, %239 : vector<8x16xf32>
    %c0_218 = arith.constant 0 : index
    %c5_219 = arith.constant 5 : index
    %c0_220 = arith.constant 0 : index
    %c0_221 = arith.constant 0 : index
    %241 = vector.load %arg9[%c0_218, %c5_219, %c0_220, %c0_221] : memref<1x8x8x16xf32, #tpu.memory_space<vmem>>, vector<1x1x8x16xf32>
    %242 = vector.shape_cast %241 : vector<1x1x8x16xf32> to vector<8x16xf32>
    %243 = vector.shape_cast %240 : vector<8x16xf32> to vector<1x1x8x16xf32>
    tpu.vector_store %arg9[%c0_218, %c5_219, %c0_220, %c0_221], %243 {strides = array<i32>} : memref<1x8x8x16xf32, #tpu.memory_space<vmem>>, vector<1x1x8x16xf32>,
    %c216 = arith.constant 216 : index
    %c0_222 = arith.constant 0 : index
    %244 = tpu.strided_load %arg10[%c216, %c0_222] {strides = array<i32: 2, 1>} : memref<386x16xf32, #tpu.memory_space<vmem>>, vector<8x16xf32>
    %c217 = arith.constant 217 : index
    %c0_223 = arith.constant 0 : index
    %245 = tpu.strided_load %arg10[%c217, %c0_223] {strides = array<i32: 2, 1>} : memref<386x16xf32, #tpu.memory_space<vmem>>, vector<8x16xf32>
    %246 = arith.maximumf %244, %245 : vector<8x16xf32>
    %c234 = arith.constant 234 : index
    %c0_224 = arith.constant 0 : index
    %247 = tpu.strided_load %arg10[%c234, %c0_224] {strides = array<i32: 2, 1>} : memref<386x16xf32, #tpu.memory_space<vmem>>, vector<8x16xf32>
    %c235 = arith.constant 235 : index
    %c0_225 = arith.constant 0 : index
    %248 = tpu.strided_load %arg10[%c235, %c0_225] {strides = array<i32: 2, 1>} : memref<386x16xf32, #tpu.memory_space<vmem>>, vector<8x16xf32>
    %249 = arith.maximumf %247, %248 : vector<8x16xf32>
    %250 = arith.maximumf %246, %249 : vector<8x16xf32>
    %c0_226 = arith.constant 0 : index
    %c6_227 = arith.constant 6 : index
    %c0_228 = arith.constant 0 : index
    %c0_229 = arith.constant 0 : index
    %251 = vector.load %arg9[%c0_226, %c6_227, %c0_228, %c0_229] : memref<1x8x8x16xf32, #tpu.memory_space<vmem>>, vector<1x1x8x16xf32>
    %252 = vector.shape_cast %251 : vector<1x1x8x16xf32> to vector<8x16xf32>
    %253 = vector.shape_cast %250 : vector<8x16xf32> to vector<1x1x8x16xf32>
    tpu.vector_store %arg9[%c0_226, %c6_227, %c0_228, %c0_229], %253 {strides = array<i32>} : memref<1x8x8x16xf32, #tpu.memory_space<vmem>>, vector<1x1x8x16xf32>,
    %c252 = arith.constant 252 : index
    %c0_230 = arith.constant 0 : index
    %254 = tpu.strided_load %arg10[%c252, %c0_230] {strides = array<i32: 2, 1>} : memref<386x16xf32, #tpu.memory_space<vmem>>, vector<8x16xf32>
    %c253 = arith.constant 253 : index
    %c0_231 = arith.constant 0 : index
    %255 = tpu.strided_load %arg10[%c253, %c0_231] {strides = array<i32: 2, 1>} : memref<386x16xf32, #tpu.memory_space<vmem>>, vector<8x16xf32>
    %256 = arith.maximumf %254, %255 : vector<8x16xf32>
    %c270 = arith.constant 270 : index
    %c0_232 = arith.constant 0 : index
    %257 = tpu.strided_load %arg10[%c270, %c0_232] {strides = array<i32: 2, 1>} : memref<386x16xf32, #tpu.memory_space<vmem>>, vector<8x16xf32>
    %c271 = arith.constant 271 : index
    %c0_233 = arith.constant 0 : index
    %258 = tpu.strided_load %arg10[%c271, %c0_233] {strides = array<i32: 2, 1>} : memref<386x16xf32, #tpu.memory_space<vmem>>, vector<8x16xf32>
    %259 = arith.maximumf %257, %258 : vector<8x16xf32>
    %260 = arith.maximumf %256, %259 : vector<8x16xf32>
    %c0_234 = arith.constant 0 : index
    %c7_235 = arith.constant 7 : index
    %c0_236 = arith.constant 0 : index
    %c0_237 = arith.constant 0 : index
    %261 = vector.load %arg9[%c0_234, %c7_235, %c0_236, %c0_237] : memref<1x8x8x16xf32, #tpu.memory_space<vmem>>, vector<1x1x8x16xf32>
    %262 = vector.shape_cast %261 : vector<1x1x8x16xf32> to vector<8x16xf32>
    %263 = vector.shape_cast %260 : vector<8x16xf32> to vector<1x1x8x16xf32>
    tpu.vector_store %arg9[%c0_234, %c7_235, %c0_236, %c0_237], %263 {strides = array<i32>} : memref<1x8x8x16xf32, #tpu.memory_space<vmem>>, vector<1x1x8x16xf32>,
    return
  }
  func.func @transform_0(%arg0: i32) -> (i32, i32, i32) {
    %c0_i32 = arith.constant 0 : i32
    %c0_i32_0 = arith.constant 0 : i32
    %c0_i32_1 = arith.constant 0 : i32
    return %arg0, %c0_i32, %c0_i32_0 : i32, i32, i32
  }
  func.func @transform_1(%arg0: i32) -> (i32, i32) {
    %c0_i32 = arith.constant 0 : i32
    %c0_i32_0 = arith.constant 0 : i32
    %c0_i32_1 = arith.constant 0 : i32
    return %c0_i32, %c0_i32_0 : i32, i32
  }
  func.func @transform_2(%arg0: i32) -> (i32, i32, i32) {
    %c0_i32 = arith.constant 0 : i32
    %c0_i32_0 = arith.constant 0 : i32
    %c0_i32_1 = arith.constant 0 : i32
    %c0_i32_2 = arith.constant 0 : i32
    return %c0_i32, %c0_i32_0, %c0_i32_1 : i32, i32, i32
  }
  func.func @transform_3(%arg0: i32) -> (i32, i32, i32) {
    %c0_i32 = arith.constant 0 : i32
    %c0_i32_0 = arith.constant 0 : i32
    %c0_i32_1 = arith.constant 0 : i32
    %c0_i32_2 = arith.constant 0 : i32
    return %c0_i32, %c0_i32_0, %c0_i32_1 : i32, i32, i32
  }
  func.func @transform_4(%arg0: i32) -> (i32, i32, i32) {
    %c0_i32 = arith.constant 0 : i32
    %c0_i32_0 = arith.constant 0 : i32
    %c0_i32_1 = arith.constant 0 : i32
    %c0_i32_2 = arith.constant 0 : i32
    return %c0_i32, %c0_i32_0, %c0_i32_1 : i32, i32, i32
  }
  func.func @transform_5(%arg0: i32) -> (i32, i32, i32) {
    %c0_i32 = arith.constant 0 : i32
    %c0_i32_0 = arith.constant 0 : i32
    %c0_i32_1 = arith.constant 0 : i32
    %c0_i32_2 = arith.constant 0 : i32
    return %c0_i32, %c0_i32_0, %c0_i32_1 : i32, i32, i32
  }
  func.func @transform_6(%arg0: i32) -> (i32, i32) {
    %c0_i32 = arith.constant 0 : i32
    %c0_i32_0 = arith.constant 0 : i32
    %c0_i32_1 = arith.constant 0 : i32
    return %c0_i32, %c0_i32_0 : i32, i32
  }
  func.func @transform_7(%arg0: i32) -> (i32, i32) {
    %c0_i32 = arith.constant 0 : i32
    %c0_i32_0 = arith.constant 0 : i32
    %c0_i32_1 = arith.constant 0 : i32
    return %c0_i32, %c0_i32_0 : i32, i32
  }
  func.func @transform_8(%arg0: i32) -> (i32, i32, i32, i32) {
    %c0_i32 = arith.constant 0 : i32
    %c0_i32_0 = arith.constant 0 : i32
    %c0_i32_1 = arith.constant 0 : i32
    %c0_i32_2 = arith.constant 0 : i32
    return %arg0, %c0_i32, %c0_i32_0, %c0_i32_1 : i32, i32, i32, i32
  }
}

</mosaic_0001>

<llo_original>
// kernel: tpu_custom_call.1
$region0: #{tpu_custom_call.1}
  #allocation0 [shape = 'u32[]', space=smem, size = 0x4, offset = 0x4, fixed_abs, tag = 'smem constant byte address 0x4 - core index']
  #allocation1 [shape = 'u32[144,128]{1,0:T(1,128)}', space=vmem, size = 0x12000, scoped, tag = 'internal scratch']
  #allocation2 [shape = 'f32[386,16]{1,0:T(8,128)}', space=vmem, size = 0x31000, scoped, tag = 'scratch operand']
  #allocation3 [shape = 'f32[386,16]{1,0:T(8,128)}', space=vmem, size = 0x31000, scoped, tag = 'scratch operand']
  #allocation4 [shape = 'f32[324,144]{1,0:T(8,128)}', space=vmem, size = 0x52000, scoped, tag = 'scratch operand']
  %s0 = inlined_call_operand.vmem [shape: f32[2,362,4], index: 0, kind: input, shape index: {}]
  %s1 = inlined_call_operand.vmem [shape: f32[36,16], index: 1, kind: input, shape index: {}]
  %s2 = inlined_call_operand.vmem [shape: f32[2,144,16], index: 2, kind: input, shape index: {}]
  %s3 = inlined_call_operand.vmem [shape: f32[3,1,16], index: 3, kind: input, shape index: {}]
  %s4 = inlined_call_operand.vmem [shape: f32[3,1,16], index: 4, kind: input, shape index: {}]
  %s5 = inlined_call_operand.vmem [shape: f32[3,1,16], index: 5, kind: input, shape index: {}]
  %s6 = inlined_call_operand.vmem [shape: f32[324,1], index: 6, kind: input, shape index: {}]
  %s7 = inlined_call_operand.vmem [shape: f32[16,16], index: 7, kind: input, shape index: {}]
  %s8 = inlined_call_operand.hbm [shape: f32[2,8,8,16], index: 8, kind: output, shape index: {}]
  %s9 = sld [smem:[#allocation0]]
  $region65: #{tpu_custom_call.1} parent=0
    _
  %s11 = ssub.s32 1, %s9
  %s12 = scalar_select 0, %s11, %s9
  $region1: #{tpu_custom_call.1} parent=0
    #allocation5 [shape = 'u8[65536]{0}', space=vmem, size = 0x10000, scoped, tag = 'output window, operand 0']
    #allocation6 [shape = 's32[2]{0}', space=sflag, size = 0x8, scoped, tag = 'scoped memory for tpu_custom_call.1']
    %13 = vsyncpa [#allocation6], 0
    %s14 = scalar_lea.sflag [#allocation6], 1
    %15 = vsyncpa %s14, 0
    loop: start=0, step=1, limit=4
    $region2: #{tpu_custom_call.1} parent=1 // loop_pre_header
      _
    $region3: #{tpu_custom_call.1} parent=1 // loop_header
      %s17 = sphi 0, %s21
      %p18 = scmp.ge.s32.totalorder %s17, 4
      %s27 = sphi 0, %s29
      %s30 = sphi 0, %s27
      %s31 = sphi 0, %s30
      %s47 = sphi 0, %s31
      %s51 = sphi 0, %s51
      %s53 = sphi 0, %s51
      %s54 = sphi 0, %s53
      %s68 = sphi 0, %s54
      %s72 = sphi 0, %s72
      %s74 = sphi 0, %s72
      %s75 = sphi 0, %s74
      %s89 = sphi 0, %s75
      %s93 = sphi 0, %s93
      %s95 = sphi 0, %s93
      %s96 = sphi 0, %s95
      %s110 = sphi 0, %s96
      %s114 = sphi 0, %s114
      %s116 = sphi 0, %s114
      %s117 = sphi 0, %s116
      %s131 = sphi 0, %s117
      %s135 = sphi 0, %s135
      %s137 = sphi 0, %s135
      %s138 = sphi 0, %s137
      %s152 = sphi 0, %s138
      %s156 = sphi 0, %s156
      %s158 = sphi 0, %s156
      %s159 = sphi 0, %s158
      %s173 = sphi 0, %s159
      %s177 = sphi 0, %s177
      %s179 = sphi 0, %s177
      %s180 = sphi 0, %s179
      %s194 = sphi 0, %s180
      %s200 = sphi 0, %s202
      %s203 = sphi 0, %s200
      %s204 = sphi 0, %s203
      %s220 = sphi 0, %s204
    $region4: #{tpu_custom_call.1} parent=1 // loop_header_branch
      %20 = sbr.rel (%p18) target = $region8
    $region5: #{tpu_custom_call.1} parent=1 // loop_body
      %s22 = ssub.s32 %s17, 1
      %s23 = ssub.s32 %s17, 2
      %s24 = sadd.s32 %s17, 1
      %s25 = ssub.s32 %s17, %s24
      %p26 = scmp.eq.s32.totalorder %s25, 0
      %s28 = sadd.s32 %s27, 1
      %s29 = scalar_select %p26, %s27, %s28
      %p32 = pneg %p26
      %p33 = scmp.eq.s32.totalorder %s17, 1
      %p34 = por %p32, %p33
      %p35 = scmp.ne.s32.totalorder %s27, %s30
      %p36 = scmp.eq.s32.totalorder %s17, 0
      %p37 = por %p35, %p36
      %p38 = scmp.ne.s32.totalorder %s27, %s30
      %p39 = scmp.eq.s32.totalorder %s22, 1
      %p40 = por %p38, %p39
      %p41 = scmp.ne.s32.totalorder %s30, %s31
      %p42 = scmp.eq.s32.totalorder %s22, 0
      %p43 = por %p41, %p42
      %p44 = scmp.ne.s32.totalorder %s30, %s31
      %p45 = scmp.eq.s32.totalorder %s23, 1
      %p46 = por %p44, %p45
      %p48 = scmp.ne.s32.totalorder %s31, %s47
      %p49 = scmp.eq.s32.totalorder %s23, 0
      %p50 = por %p48, %p49
      %s52 = sadd.s32 %s51, 1
      %p55 = scmp.eq.s32.totalorder %s17, 1
      %p56 = scmp.ne.s32.totalorder %s51, %s53
      %p57 = scmp.eq.s32.totalorder %s17, 0
      %p58 = por %p56, %p57
      %p59 = scmp.ne.s32.totalorder %s51, %s53
      %p60 = scmp.eq.s32.totalorder %s22, 1
      %p61 = por %p59, %p60
      %p62 = scmp.ne.s32.totalorder %s53, %s54
      %p63 = scmp.eq.s32.totalorder %s22, 0
      %p64 = por %p62, %p63
      %p65 = scmp.ne.s32.totalorder %s53, %s54
      %p66 = scmp.eq.s32.totalorder %s23, 1
      %p67 = por %p65, %p66
      %p69 = scmp.ne.s32.totalorder %s54, %s68
      %p70 = scmp.eq.s32.totalorder %s23, 0
      %p71 = por %p69, %p70
      %s73 = sadd.s32 %s72, 1
      %p76 = scmp.eq.s32.totalorder %s17, 1
      %p77 = scmp.ne.s32.totalorder %s72, %s74
      %p78 = scmp.eq.s32.totalorder %s17, 0
      %p79 = por %p77, %p78
      %p80 = scmp.ne.s32.totalorder %s72, %s74
      %p81 = scmp.eq.s32.totalorder %s22, 1
      %p82 = por %p80, %p81
      %p83 = scmp.ne.s32.totalorder %s74, %s75
      %p84 = scmp.eq.s32.totalorder %s22, 0
      %p85 = por %p83, %p84
      %p86 = scmp.ne.s32.totalorder %s74, %s75
      %p87 = scmp.eq.s32.totalorder %s23, 1
      %p88 = por %p86, %p87
      %p90 = scmp.ne.s32.totalorder %s75, %s89
      %p91 = scmp.eq.s32.totalorder %s23, 0
      %p92 = por %p90, %p91
      %s94 = sadd.s32 %s93, 1
      %p97 = scmp.eq.s32.totalorder %s17, 1
      %p98 = scmp.ne.s32.totalorder %s93, %s95
      %p99 = scmp.eq.s32.totalorder %s17, 0
      %p100 = por %p98, %p99
      %p101 = scmp.ne.s32.totalorder %s93, %s95
      %p102 = scmp.eq.s32.totalorder %s22, 1
      %p103 = por %p101, %p102
      %p104 = scmp.ne.s32.totalorder %s95, %s96
      %p105 = scmp.eq.s32.totalorder %s22, 0
      %p106 = por %p104, %p105
      %p107 = scmp.ne.s32.totalorder %s95, %s96
      %p108 = scmp.eq.s32.totalorder %s23, 1
      %p109 = por %p107, %p108
      %p111 = scmp.ne.s32.totalorder %s96, %s110
      %p112 = scmp.eq.s32.totalorder %s23, 0
      %p113 = por %p111, %p112
      %s115 = sadd.s32 %s114, 1
      %p118 = scmp.eq.s32.totalorder %s17, 1
      %p119 = scmp.ne.s32.totalorder %s114, %s116
      %p120 = scmp.eq.s32.totalorder %s17, 0
      %p121 = por %p119, %p120
      %p122 = scmp.ne.s32.totalorder %s114, %s116
      %p123 = scmp.eq.s32.totalorder %s22, 1
      %p124 = por %p122, %p123
      %p125 = scmp.ne.s32.totalorder %s116, %s117
      %p126 = scmp.eq.s32.totalorder %s22, 0
      %p127 = por %p125, %p126
      %p128 = scmp.ne.s32.totalorder %s116, %s117
      %p129 = scmp.eq.s32.totalorder %s23, 1
      %p130 = por %p128, %p129
      %p132 = scmp.ne.s32.totalorder %s117, %s131
      %p133 = scmp.eq.s32.totalorder %s23, 0
      %p134 = por %p132, %p133
      %s136 = sadd.s32 %s135, 1
      %p139 = scmp.eq.s32.totalorder %s17, 1
      %p140 = scmp.ne.s32.totalorder %s135, %s137
      %p141 = scmp.eq.s32.totalorder %s17, 0
      %p142 = por %p140, %p141
      %p143 = scmp.ne.s32.totalorder %s135, %s137
      %p144 = scmp.eq.s32.totalorder %s22, 1
      %p145 = por %p143, %p144
      %p146 = scmp.ne.s32.totalorder %s137, %s138
      %p147 = scmp.eq.s32.totalorder %s22, 0
      %p148 = por %p146, %p147
      %p149 = scmp.ne.s32.totalorder %s137, %s138
      %p150 = scmp.eq.s32.totalorder %s23, 1
      %p151 = por %p149, %p150
      %p153 = scmp.ne.s32.totalorder %s138, %s152
      %p154 = scmp.eq.s32.totalorder %s23, 0
      %p155 = por %p153, %p154
      %s157 = sadd.s32 %s156, 1
      %p160 = scmp.eq.s32.totalorder %s17, 1
      %p161 = scmp.ne.s32.totalorder %s156, %s158
      %p162 = scmp.eq.s32.totalorder %s17, 0
      %p163 = por %p161, %p162
      %p164 = scmp.ne.s32.totalorder %s156, %s158
      %p165 = scmp.eq.s32.totalorder %s22, 1
      %p166 = por %p164, %p165
      %p167 = scmp.ne.s32.totalorder %s158, %s159
      %p168 = scmp.eq.s32.totalorder %s22, 0
      %p169 = por %p167, %p168
      %p170 = scmp.ne.s32.totalorder %s158, %s159
      %p171 = scmp.eq.s32.totalorder %s23, 1
      %p172 = por %p170, %p171
      %p174 = scmp.ne.s32.totalorder %s159, %s173
      %p175 = scmp.eq.s32.totalorder %s23, 0
      %p176 = por %p174, %p175
      %s178 = sadd.s32 %s177, 1
      %p181 = scmp.eq.s32.totalorder %s17, 1
      %p182 = scmp.ne.s32.totalorder %s177, %s179
      %p183 = scmp.eq.s32.totalorder %s17, 0
      %p184 = por %p182, %p183
      %p185 = scmp.ne.s32.totalorder %s177, %s179
      %p186 = scmp.eq.s32.totalorder %s22, 1
      %p187 = por %p185, %p186
      %p188 = scmp.ne.s32.totalorder %s179, %s180
      %p189 = scmp.eq.s32.totalorder %s22, 0
      %p190 = por %p188, %p189
      %p191 = scmp.ne.s32.totalorder %s179, %s180
      %p192 = scmp.eq.s32.totalorder %s23, 1
      %p193 = por %p191, %p192
      %p195 = scmp.ne.s32.totalorder %s180, %s194
      %p196 = scmp.eq.s32.totalorder %s23, 0
      %p197 = por %p195, %p196
      %s198 = ssub.s32 %s17, %s24
      %p199 = scmp.eq.s32.totalorder %s198, 0
      %s201 = sadd.s32 %s200, 1
      %s202 = scalar_select %p199, %s200, %s201
      %p205 = pneg %p199
      %p206 = scmp.eq.s32.totalorder %s17, 1
      %p207 = por %p205, %p206
      %p208 = scmp.ne.s32.totalorder %s200, %s203
      %p209 = scmp.eq.s32.totalorder %s17, 0
      %p210 = por %p208, %p209
      %p211 = scmp.ne.s32.totalorder %s200, %s203
      %p212 = scmp.eq.s32.totalorder %s22, 1
      %p213 = por %p211, %p212
      %p214 = scmp.ne.s32.totalorder %s203, %s204
      %p215 = scmp.eq.s32.totalorder %s22, 0
      %p216 = por %p214, %p215
      %p217 = scmp.ne.s32.totalorder %s203, %s204
      %p218 = scmp.eq.s32.totalorder %s23, 1
      %p219 = por %p217, %p218
      %p221 = scmp.ne.s32.totalorder %s204, %s220
      %p222 = scmp.eq.s32.totalorder %s23, 0
      %p223 = por %p221, %p222
      %p224 = scmp.le.s32.totalorder 1, %s17
      %p225 = scmp.lt.s32.totalorder %s17, 3
      %p226 = pnand %p224, %p225
      %p227 = pneg %p226
      // Predicated region
      $region9: #{tpu_custom_call.1} parent=5 // pred_check
        _
      $region10: #{tpu_custom_call.1} parent=5 // pred_check_branch
        %229 = sbr.rel (%p226) target = $region12
      $region11: #{tpu_custom_call.1} parent=5 // pred_region
        %s230 = ssub.s32 %s17, 1
        // Predicated region
        $region13: #{tpu_custom_call.1} parent=11 // pred_check
          %p231 = pneg %p64
        $region14: #{tpu_custom_call.1} parent=11 // pred_check_branch
          %233 = sbr.rel (%p231) target = $region16
        $region15: #{tpu_custom_call.1} parent=11 // pred_region
          _
        $region16: #{tpu_custom_call.1} parent=11 // pred_fallthru
          _
        // Predicated region
        $region17: #{tpu_custom_call.1} parent=11 // pred_check
          %p234 = pneg %p85
        $region18: #{tpu_custom_call.1} parent=11 // pred_check_branch
          %236 = sbr.rel (%p234) target = $region20
        $region19: #{tpu_custom_call.1} parent=11 // pred_region
          _
        $region20: #{tpu_custom_call.1} parent=11 // pred_fallthru
          _
        // Predicated region
        $region21: #{tpu_custom_call.1} parent=11 // pred_check
          %p237 = pneg %p106
        $region22: #{tpu_custom_call.1} parent=11 // pred_check_branch
          %239 = sbr.rel (%p237) target = $region24
        $region23: #{tpu_custom_call.1} parent=11 // pred_region
          _
        $region24: #{tpu_custom_call.1} parent=11 // pred_fallthru
          _
        // Predicated region
        $region25: #{tpu_custom_call.1} parent=11 // pred_check
          %p240 = pneg %p127
        $region26: #{tpu_custom_call.1} parent=11 // pred_check_branch
          %242 = sbr.rel (%p240) target = $region28
        $region27: #{tpu_custom_call.1} parent=11 // pred_region
          _
        $region28: #{tpu_custom_call.1} parent=11 // pred_fallthru
          _
        // Predicated region
        $region29: #{tpu_custom_call.1} parent=11 // pred_check
          %p243 = pneg %p148
        $region30: #{tpu_custom_call.1} parent=11 // pred_check_branch
          %245 = sbr.rel (%p243) target = $region32
        $region31: #{tpu_custom_call.1} parent=11 // pred_region
          _
        $region32: #{tpu_custom_call.1} parent=11 // pred_fallthru
          _
        // Predicated region
        $region33: #{tpu_custom_call.1} parent=11 // pred_check
          %p246 = pneg %p169
        $region34: #{tpu_custom_call.1} parent=11 // pred_check_branch
          %248 = sbr.rel (%p246) target = $region36
        $region35: #{tpu_custom_call.1} parent=11 // pred_region
          _
        $region36: #{tpu_custom_call.1} parent=11 // pred_fallthru
          _
        // Predicated region
        $region37: #{tpu_custom_call.1} parent=11 // pred_check
          %p249 = pneg %p190
        $region38: #{tpu_custom_call.1} parent=11 // pred_check_branch
          %251 = sbr.rel (%p249) target = $region40
        $region39: #{tpu_custom_call.1} parent=11 // pred_region
          _
        $region40: #{tpu_custom_call.1} parent=11 // pred_fallthru
          _
      $region12: #{tpu_custom_call.1} parent=5 // pred_fallthru
        _
      %p252 = scmp.lt.s32.totalorder %s17, 2
      // Predicated region
      $region41: #{tpu_custom_call.1} parent=5 // pred_check
        %p253 = pneg %p252
      $region42: #{tpu_custom_call.1} parent=5 // pred_check_branch
        %255 = sbr.rel (%p253) target = $region44
      $region43: #{tpu_custom_call.1} parent=5 // pred_region
        // Predicated region
        $region45: #{tpu_custom_call.1} parent=43 // pred_check
          %p256 = pneg %p37
        $region46: #{tpu_custom_call.1} parent=43 // pred_check_branch
          %258 = sbr.rel (%p256) target = $region48
        $region47: #{tpu_custom_call.1} parent=43 // pred_region
          %p259 = scmp.lt.s32.totalorder %s17, 1
          %s260 = scalar_select %p259, %s17, 1
          %s261 = smul.addr %s260, 46
          %s262 = smul.addr %s261, 8
          %s263 = scalar_lea.vmem %s0, %s262
        $region48: #{tpu_custom_call.1} parent=43 // pred_fallthru
          _
      $region44: #{tpu_custom_call.1} parent=5 // pred_fallthru
        _
      %p264 = scmp.le.s32.totalorder 1, %s17
      %p265 = scmp.lt.s32.totalorder %s17, 3
      %p266 = pnand %p264, %p265
      %p267 = pneg %p266
      // Predicated region
      $region49: #{tpu_custom_call.1} parent=5 // pred_check
        _
      $region50: #{tpu_custom_call.1} parent=5 // pred_check_branch
        %269 = sbr.rel (%p266) target = $region52
      $region51: #{tpu_custom_call.1} parent=5 // pred_region
        %s270 = ssub.s32 %s17, 1
        %p271 = scmp.lt.s32.totalorder %s22, 1
        %s272 = scalar_select %p271, %s22, 1
        %s273 = smul.addr %s272, 46
        %s274 = smul.addr %s273, 8
        %s275 = scalar_lea.vmem %s0, %s274
        %p276 = pneg %p43
        %p277 = pneg %p40
        %p278 = pneg %p64
        %p279 = pneg %p61
        %p280 = pneg %p85
        %p281 = pneg %p82
        %p282 = pneg %p106
        %p283 = pneg %p103
        %p284 = pneg %p127
        %p285 = pneg %p124
        %p286 = pneg %p148
        %p287 = pneg %p145
        %p288 = pneg %p169
        %p289 = pneg %p166
        %p290 = pneg %p190
        %p291 = pneg %p187
        %p292 = pneg %p216
        %p293 = pneg %p213
        %s294 = sand.u32 %s203, 1
        %s295 = scalar_lea.sflag [#allocation6], %s294
        %s296 = sand.u32 %s203, 1
        %s297 = smul.addr %s296, 64
        %s298 = scalar_lea.vmem [#allocation5], %s297
        %p299 = scmp.lt.s32.totalorder %s22, 1
        %s300 = scalar_select %p299, %s22, 1
        %s301 = smul.addr %s300, 46
        %s302 = smul.addr %s301, 8
        %s303 = scalar_lea.vmem %s0, %s302
        %v304 = vld [vmem:[%s6] sm:$0xff]
        %v305 = vld [vmem:[%s6 + $0x8] sm:$0xff]
        %v306 = vld [vmem:[%s6 + $0x10] sm:$0xff]
        %v307 = vld [vmem:[%s6 + $0x18] sm:$0xff]
        %v308 = vld [vmem:[%s6 + $0x20] sm:$0xff]
        %v309 = vld [vmem:[%s6 + $0x28] sm:$0xff]
        %v310 = vld [vmem:[%s6 + $0x30] sm:$0xff]
        %v311 = vld [vmem:[%s6 + $0x38] sm:$0xff]
        %v312 = vld [vmem:[%s6 + $0x40] sm:$0xff]
        %v313 = vld [vmem:[%s6 + $0x48] sm:$0xff]
        %v314 = vld [vmem:[%s6 + $0x50] sm:$0xff]
        %v315 = vld [vmem:[%s6 + $0x58] sm:$0xff]
        %v316 = vld [vmem:[%s6 + $0x60] sm:$0xff]
        %v317 = vld [vmem:[%s6 + $0x68] sm:$0xff]
        %v318 = vld [vmem:[%s6 + $0x70] sm:$0xff]
        %v319 = vld [vmem:[%s6 + $0x78] sm:$0xff]
        %v320 = vld [vmem:[%s6 + $0x80] sm:$0xff]
        %v321 = vld [vmem:[%s6 + $0x88] sm:$0xff]
        %v322 = vld [vmem:[%s6 + $0x90] sm:$0xff]
        %v323 = vld [vmem:[%s6 + $0x98] sm:$0xff]
        %v324 = vld [vmem:[%s6 + $0xa0] sm:$0xff]
        %v325 = vld [vmem:[%s6 + $0xa8] sm:$0xff]
        %v326 = vld [vmem:[%s6 + $0xb0] sm:$0xff]
        %v327 = vld [vmem:[%s6 + $0xb8] sm:$0xff]
        %v328 = vld [vmem:[%s6 + $0xc0] sm:$0xff]
        %v329 = vld [vmem:[%s6 + $0xc8] sm:$0xff]
        %v330 = vld [vmem:[%s6 + $0xd0] sm:$0xff]
        %v331 = vld [vmem:[%s6 + $0xd8] sm:$0xff]
        %v332 = vld [vmem:[%s6 + $0xe0] sm:$0xff]
        %v333 = vld [vmem:[%s6 + $0xe8] sm:$0xff]
        %v334 = vld [vmem:[%s6 + $0xf0] sm:$0xff]
        %v335 = vld [vmem:[%s6 + $0xf8] sm:$0xff]
        %v336 = vld [vmem:[%s6 + $0x100] sm:$0xff]
        %v337 = vld [vmem:[%s6 + $0x108] sm:$0xff]
        %v338 = vld [vmem:[%s6 + $0x110] sm:$0xff]
        %v339 = vld [vmem:[%s6 + $0x118] sm:$0xff]
        %v340 = vld [vmem:[%s6 + $0x120] sm:$0xff]
        %v341 = vld [vmem:[%s6 + $0x128] sm:$0xff]
        %v342 = vld [vmem:[%s6 + $0x130] sm:$0xff]
        %v343 = vld [vmem:[%s6 + $0x138] sm:$0xff]
        %v344 = vld [vmem:[%s6 + $0x140] sm:$0xf]
        %v345 = vld [vmem:[%s7] sm:$0xff]
        %v346 = vld [vmem:[%s7 + $0x8] sm:$0xff]
        %v347 = vld [vmem:[%s1] sm:$0xff]
        %v348 = vld [vmem:[%s1 + $0x8] sm:$0xff]
        %v349 = vld [vmem:[%s1 + $0x10] sm:$0xff]
        %v350 = vld [vmem:[%s1 + $0x18] sm:$0xff]
        %v351 = vld [vmem:[%s1 + $0x20] sm:$0xf]
        %v352 = vld [vmem:[%s3] sm:$0x1]
        %v353 = vld [vmem:[%s4] sm:$0x1]
        %v354 = vld [vmem:[%s5] sm:$0x1]
        %v355 = vld [vmem:[%s303] sm:$0xff]
        %v356 = vld [vmem:[%s303 + $0x8] sm:$0xff]
        %v357 = vld [vmem:[%s303 + $0x10] sm:$0xff]
        %v358 = vld [vmem:[%s303 + $0x18] sm:$0xff]
        %v359 = vld [vmem:[%s303 + $0x20] sm:$0xff]
        %v360 = vld [vmem:[%s303 + $0x28] sm:$0xff]
        %v361 = vld [vmem:[%s303 + $0x30] sm:$0xff]
        %v362 = vld [vmem:[%s303 + $0x38] sm:$0xff]
        %v363 = vld [vmem:[%s303 + $0x40] sm:$0xff]
        %v364 = vld [vmem:[%s303 + $0x48] sm:$0xff]
        %v365 = vld [vmem:[%s303 + $0x50] sm:$0xff]
        %v366 = vld [vmem:[%s303 + $0x58] sm:$0xff]
        %v367 = vld [vmem:[%s303 + $0x60] sm:$0xff]
        %v368 = vld [vmem:[%s303 + $0x68] sm:$0xff]
        %v369 = vld [vmem:[%s303 + $0x70] sm:$0xff]
        %v370 = vld [vmem:[%s303 + $0x78] sm:$0xff]
        %v371 = vld [vmem:[%s303 + $0x80] sm:$0xff]
        %v372 = vld [vmem:[%s303 + $0x88] sm:$0xff]
        %v373 = vld [vmem:[%s303 + $0x90] sm:$0xff]
        %v374 = vld [vmem:[%s303 + $0x98] sm:$0xff]
        %v375 = vld [vmem:[%s303 + $0xa0] sm:$0xff]
        %v376 = vld [vmem:[%s303 + $0xa8] sm:$0xff]
        %v377 = vld [vmem:[%s303 + $0xb0] sm:$0xff]
        %v378 = vld [vmem:[%s303 + $0xb8] sm:$0xff]
        %v379 = vld [vmem:[%s303 + $0xc0] sm:$0xff]
        %v380 = vld [vmem:[%s303 + $0xc8] sm:$0xff]
        %v381 = vld [vmem:[%s303 + $0xd0] sm:$0xff]
        %v382 = vld [vmem:[%s303 + $0xd8] sm:$0xff]
        %v383 = vld [vmem:[%s303 + $0xe0] sm:$0xff]
        %v384 = vld [vmem:[%s303 + $0xe8] sm:$0xff]
        %v385 = vld [vmem:[%s303 + $0xf0] sm:$0xff]
        %v386 = vld [vmem:[%s303 + $0xf8] sm:$0xff]
        %v387 = vld [vmem:[%s303 + $0x100] sm:$0xff]
        %v388 = vld [vmem:[%s303 + $0x108] sm:$0xff]
        %v389 = vld [vmem:[%s303 + $0x110] sm:$0xff]
        %v390 = vld [vmem:[%s303 + $0x118] sm:$0xff]
        %v391 = vld [vmem:[%s303 + $0x120] sm:$0xff]
        %v392 = vld [vmem:[%s303 + $0x128] sm:$0xff]
        %v393 = vld [vmem:[%s303 + $0x130] sm:$0xff]
        %v394 = vld [vmem:[%s303 + $0x138] sm:$0xff]
        %v395 = vld [vmem:[%s303 + $0x140] sm:$0xf]
        %vm396 = vcmask 31744
        %397 = vst.msk [vmem:[#allocation4] sm:$0xff] %vm396, %v355
        %398 = vst.msk [vmem:[#allocation4 + $0x10] sm:$0xff] %vm396, %v356
        %399 = vst.msk [vmem:[#allocation4 + $0x20] sm:$0xff] %vm396, %v357
        %400 = vst.msk [vmem:[#allocation4 + $0x30] sm:$0xff] %vm396, %v358
        %401 = vst.msk [vmem:[#allocation4 + $0x40] sm:$0xff] %vm396, %v359
        %402 = vst.msk [vmem:[#allocation4 + $0x50] sm:$0xff] %vm396, %v360
        %403 = vst.msk [vmem:[#allocation4 + $0x60] sm:$0xff] %vm396, %v361
        %404 = vst.msk [vmem:[#allocation4 + $0x70] sm:$0xff] %vm396, %v362
        %405 = vst.msk [vmem:[#allocation4 + $0x80] sm:$0xff] %vm396, %v363
        %406 = vst.msk [vmem:[#allocation4 + $0x90] sm:$0xff] %vm396, %v364
        %407 = vst.msk [vmem:[#allocation4 + $0xa0] sm:$0xff] %vm396, %v365
        %408 = vst.msk [vmem:[#allocation4 + $0xb0] sm:$0xff] %vm396, %v366
        %409 = vst.msk [vmem:[#allocation4 + $0xc0] sm:$0xff] %vm396, %v367
        %410 = vst.msk [vmem:[#allocation4 + $0xd0] sm:$0xff] %vm396, %v368
        %411 = vst.msk [vmem:[#allocation4 + $0xe0] sm:$0xff] %vm396, %v369
        %412 = vst.msk [vmem:[#allocation4 + $0xf0] sm:$0xff] %vm396, %v370
        %413 = vst.msk [vmem:[#allocation4 + $0x100] sm:$0xff] %vm396, %v371
        %414 = vst.msk [vmem:[#allocation4 + $0x110] sm:$0xff] %vm396, %v372
        %415 = vst.msk [vmem:[#allocation4 + $0x120] sm:$0xff] %vm396, %v373
        %416 = vst.msk [vmem:[#allocation4 + $0x130] sm:$0xff] %vm396, %v374
        %417 = vst.msk [vmem:[#allocation4 + $0x140] sm:$0xff] %vm396, %v375
        %418 = vst.msk [vmem:[#allocation4 + $0x150] sm:$0xff] %vm396, %v376
        %419 = vst.msk [vmem:[#allocation4 + $0x160] sm:$0xff] %vm396, %v377
        %420 = vst.msk [vmem:[#allocation4 + $0x170] sm:$0xff] %vm396, %v378
        %421 = vst.msk [vmem:[#allocation4 + $0x180] sm:$0xff] %vm396, %v379
        %422 = vst.msk [vmem:[#allocation4 + $0x190] sm:$0xff] %vm396, %v380
        %423 = vst.msk [vmem:[#allocation4 + $0x1a0] sm:$0xff] %vm396, %v381
        %424 = vst.msk [vmem:[#allocation4 + $0x1b0] sm:$0xff] %vm396, %v382
        %425 = vst.msk [vmem:[#allocation4 + $0x1c0] sm:$0xff] %vm396, %v383
        %426 = vst.msk [vmem:[#allocation4 + $0x1d0] sm:$0xff] %vm396, %v384
        %427 = vst.msk [vmem:[#allocation4 + $0x1e0] sm:$0xff] %vm396, %v385
        %428 = vst.msk [vmem:[#allocation4 + $0x1f0] sm:$0xff] %vm396, %v386
        %429 = vst.msk [vmem:[#allocation4 + $0x200] sm:$0xff] %vm396, %v387
        %430 = vst.msk [vmem:[#allocation4 + $0x210] sm:$0xff] %vm396, %v388
        %431 = vst.msk [vmem:[#allocation4 + $0x220] sm:$0xff] %vm396, %v389
        %432 = vst.msk [vmem:[#allocation4 + $0x230] sm:$0xff] %vm396, %v390
        %433 = vst.msk [vmem:[#allocation4 + $0x240] sm:$0xff] %vm396, %v391
        %434 = vst.msk [vmem:[#allocation4 + $0x250] sm:$0xff] %vm396, %v392
        %435 = vst.msk [vmem:[#allocation4 + $0x260] sm:$0xff] %vm396, %v393
        %436 = vst.msk [vmem:[#allocation4 + $0x270] sm:$0xff] %vm396, %v394
        %vm437 = vcmask 27648
        %438 = vst.msk [vmem:[#allocation4 + $0x280] sm:$0xf] %vm437, %v395
        %v439 = vld [vmem:[%s303 + $0x1] sm:$0xff]
        %v440 = vld [vmem:[%s303 + $0x9] sm:$0xff]
        %v441 = vld [vmem:[%s303 + $0x11] sm:$0xff]
        %v442 = vld [vmem:[%s303 + $0x19] sm:$0xff]
        %v443 = vld [vmem:[%s303 + $0x21] sm:$0xff]
        %v444 = vld [vmem:[%s303 + $0x29] sm:$0xff]
        %v445 = vld [vmem:[%s303 + $0x31] sm:$0xff]
        %v446 = vld [vmem:[%s303 + $0x39] sm:$0xff]
        %v447 = vld [vmem:[%s303 + $0x41] sm:$0xff]
        %v448 = vld [vmem:[%s303 + $0x49] sm:$0xff]
        %v449 = vld [vmem:[%s303 + $0x51] sm:$0xff]
        %v450 = vld [vmem:[%s303 + $0x59] sm:$0xff]
        %v451 = vld [vmem:[%s303 + $0x61] sm:$0xff]
        %v452 = vld [vmem:[%s303 + $0x69] sm:$0xff]
        %v453 = vld [vmem:[%s303 + $0x71] sm:$0xff]
        %v454 = vld [vmem:[%s303 + $0x79] sm:$0xff]
        %v455 = vld [vmem:[%s303 + $0x81] sm:$0xff]
        %v456 = vld [vmem:[%s303 + $0x89] sm:$0xff]
        %v457 = vld [vmem:[%s303 + $0x91] sm:$0xff]
        %v458 = vld [vmem:[%s303 + $0x99] sm:$0xff]
        %v459 = vld [vmem:[%s303 + $0xa1] sm:$0xff]
        %v460 = vld [vmem:[%s303 + $0xa9] sm:$0xff]
        %v461 = vld [vmem:[%s303 + $0xb1] sm:$0xff]
        %v462 = vld [vmem:[%s303 + $0xb9] sm:$0xff]
        %v463 = vld [vmem:[%s303 + $0xc1] sm:$0xff]
        %v464 = vld [vmem:[%s303 + $0xc9] sm:$0xff]
        %v465 = vld [vmem:[%s303 + $0xd1] sm:$0xff]
        %v466 = vld [vmem:[%s303 + $0xd9] sm:$0xff]
        %v467 = vld [vmem:[%s303 + $0xe1] sm:$0xff]
        %v468 = vld [vmem:[%s303 + $0xe9] sm:$0xff]
        %v469 = vld [vmem:[%s303 + $0xf1] sm:$0xff]
        %v470 = vld [vmem:[%s303 + $0xf9] sm:$0xff]
        %v471 = vld [vmem:[%s303 + $0x101] sm:$0xff]
        %v472 = vld [vmem:[%s303 + $0x109] sm:$0xff]
        %v473 = vld [vmem:[%s303 + $0x111] sm:$0xff]
        %v474 = vld [vmem:[%s303 + $0x119] sm:$0xff]
        %v475 = vld [vmem:[%s303 + $0x121] sm:$0xff]
        %v476 = vld [vmem:[%s303 + $0x129] sm:$0xff]
        %v477 = vld [vmem:[%s303 + $0x131] sm:$0xff]
        %v478 = vld [vmem:[%s303 + $0x139] sm:$0xff]
        %v479 = vld [vmem:[%s303 + $0x141] sm:$0xf]
        %521 = vrot.lane.b32.xlu0 %v439, 4
        %v522 = vpop.permute.xlu0 %521
        %523 = vrot.lane.b32.xlu0 %v440, 4
        %v524 = vpop.permute.xlu0 %523
        %525 = vrot.lane.b32.xlu0 %v441, 4
        %v526 = vpop.permute.xlu0 %525
        %527 = vrot.lane.b32.xlu0 %v442, 4
        %v528 = vpop.permute.xlu0 %527
        %529 = vrot.lane.b32.xlu0 %v443, 4
        %v530 = vpop.permute.xlu0 %529
        %531 = vrot.lane.b32.xlu0 %v444, 4
        %v532 = vpop.permute.xlu0 %531
        %533 = vrot.lane.b32.xlu0 %v445, 4
        %v534 = vpop.permute.xlu0 %533
        %535 = vrot.lane.b32.xlu0 %v446, 4
        %v536 = vpop.permute.xlu0 %535
        %537 = vrot.lane.b32.xlu0 %v447, 4
        %v538 = vpop.permute.xlu0 %537
        %539 = vrot.lane.b32.xlu0 %v448, 4
        %v540 = vpop.permute.xlu0 %539
        %541 = vrot.lane.b32.xlu0 %v449, 4
        %v542 = vpop.permute.xlu0 %541
        %543 = vrot.lane.b32.xlu0 %v450, 4
        %v544 = vpop.permute.xlu0 %543
        %545 = vrot.lane.b32.xlu0 %v451, 4
        %v546 = vpop.permute.xlu0 %545
        %547 = vrot.lane.b32.xlu0 %v452, 4
        %v548 = vpop.permute.xlu0 %547
        %549 = vrot.lane.b32.xlu0 %v453, 4
        %v550 = vpop.permute.xlu0 %549
        %551 = vrot.lane.b32.xlu0 %v454, 4
        %v552 = vpop.permute.xlu0 %551
        %553 = vrot.lane.b32.xlu0 %v455, 4
        %v554 = vpop.permute.xlu0 %553
        %555 = vrot.lane.b32.xlu0 %v456, 4
        %v556 = vpop.permute.xlu0 %555
        %557 = vrot.lane.b32.xlu0 %v457, 4
        %v558 = vpop.permute.xlu0 %557
        %559 = vrot.lane.b32.xlu0 %v458, 4
        %v560 = vpop.permute.xlu0 %559
        %561 = vrot.lane.b32.xlu0 %v459, 4
        %v562 = vpop.permute.xlu0 %561
        %563 = vrot.lane.b32.xlu0 %v460, 4
        %v564 = vpop.permute.xlu0 %563
        %565 = vrot.lane.b32.xlu0 %v461, 4
        %v566 = vpop.permute.xlu0 %565
        %567 = vrot.lane.b32.xlu0 %v462, 4
        %v568 = vpop.permute.xlu0 %567
        %569 = vrot.lane.b32.xlu0 %v463, 4
        %v570 = vpop.permute.xlu0 %569
        %571 = vrot.lane.b32.xlu0 %v464, 4
        %v572 = vpop.permute.xlu0 %571
        %573 = vrot.lane.b32.xlu0 %v465, 4
        %v574 = vpop.permute.xlu0 %573
        %575 = vrot.lane.b32.xlu0 %v466, 4
        %v576 = vpop.permute.xlu0 %575
        %577 = vrot.lane.b32.xlu0 %v467, 4
        %v578 = vpop.permute.xlu0 %577
        %579 = vrot.lane.b32.xlu0 %v468, 4
        %v580 = vpop.permute.xlu0 %579
        %581 = vrot.lane.b32.xlu0 %v469, 4
        %v582 = vpop.permute.xlu0 %581
        %583 = vrot.lane.b32.xlu0 %v470, 4
        %v584 = vpop.permute.xlu0 %583
        %585 = vrot.lane.b32.xlu0 %v471, 4
        %v586 = vpop.permute.xlu0 %585
        %587 = vrot.lane.b32.xlu0 %v472, 4
        %v588 = vpop.permute.xlu0 %587
        %589 = vrot.lane.b32.xlu0 %v473, 4
        %v590 = vpop.permute.xlu0 %589
        %591 = vrot.lane.b32.xlu0 %v474, 4
        %v592 = vpop.permute.xlu0 %591
        %593 = vrot.lane.b32.xlu0 %v475, 4
        %v594 = vpop.permute.xlu0 %593
        %595 = vrot.lane.b32.xlu0 %v476, 4
        %v596 = vpop.permute.xlu0 %595
        %597 = vrot.lane.b32.xlu0 %v477, 4
        %v598 = vpop.permute.xlu0 %597
        %599 = vrot.lane.b32.xlu0 %v478, 4
        %v600 = vpop.permute.xlu0 %599
        %601 = vrot.lane.b32.xlu0 %v479, 4
        %v602 = vpop.permute.xlu0 %601
        %vm644 = vcmask 64544
        %645 = vst.msk [vmem:[#allocation4] sm:$0xff] %vm644, %v522
        %646 = vst.msk [vmem:[#allocation4 + $0x10] sm:$0xff] %vm644, %v524
        %647 = vst.msk [vmem:[#allocation4 + $0x20] sm:$0xff] %vm644, %v526
        %648 = vst.msk [vmem:[#allocation4 + $0x30] sm:$0xff] %vm644, %v528
        %649 = vst.msk [vmem:[#allocation4 + $0x40] sm:$0xff] %vm644, %v530
        %650 = vst.msk [vmem:[#allocation4 + $0x50] sm:$0xff] %vm644, %v532
        %651 = vst.msk [vmem:[#allocation4 + $0x60] sm:$0xff] %vm644, %v534
        %652 = vst.msk [vmem:[#allocation4 + $0x70] sm:$0xff] %vm644, %v536
        %653 = vst.msk [vmem:[#allocation4 + $0x80] sm:$0xff] %vm644, %v538
        %654 = vst.msk [vmem:[#allocation4 + $0x90] sm:$0xff] %vm644, %v540
        %655 = vst.msk [vmem:[#allocation4 + $0xa0] sm:$0xff] %vm644, %v542
        %656 = vst.msk [vmem:[#allocation4 + $0xb0] sm:$0xff] %vm644, %v544
        %657 = vst.msk [vmem:[#allocation4 + $0xc0] sm:$0xff] %vm644, %v546
        %658 = vst.msk [vmem:[#allocation4 + $0xd0] sm:$0xff] %vm644, %v548
        %659 = vst.msk [vmem:[#allocation4 + $0xe0] sm:$0xff] %vm644, %v550
        %660 = vst.msk [vmem:[#allocation4 + $0xf0] sm:$0xff] %vm644, %v552
        %661 = vst.msk [vmem:[#allocation4 + $0x100] sm:$0xff] %vm644, %v554
        %662 = vst.msk [vmem:[#allocation4 + $0x110] sm:$0xff] %vm644, %v556
        %663 = vst.msk [vmem:[#allocation4 + $0x120] sm:$0xff] %vm644, %v558
        %664 = vst.msk [vmem:[#allocation4 + $0x130] sm:$0xff] %vm644, %v560
        %665 = vst.msk [vmem:[#allocation4 + $0x140] sm:$0xff] %vm644, %v562
        %666 = vst.msk [vmem:[#allocation4 + $0x150] sm:$0xff] %vm644, %v564
        %667 = vst.msk [vmem:[#allocation4 + $0x160] sm:$0xff] %vm644, %v566
        %668 = vst.msk [vmem:[#allocation4 + $0x170] sm:$0xff] %vm644, %v568
        %669 = vst.msk [vmem:[#allocation4 + $0x180] sm:$0xff] %vm644, %v570
        %670 = vst.msk [vmem:[#allocation4 + $0x190] sm:$0xff] %vm644, %v572
        %671 = vst.msk [vmem:[#allocation4 + $0x1a0] sm:$0xff] %vm644, %v574
        %672 = vst.msk [vmem:[#allocation4 + $0x1b0] sm:$0xff] %vm644, %v576
        %673 = vst.msk [vmem:[#allocation4 + $0x1c0] sm:$0xff] %vm644, %v578
        %674 = vst.msk [vmem:[#allocation4 + $0x1d0] sm:$0xff] %vm644, %v580
        %675 = vst.msk [vmem:[#allocation4 + $0x1e0] sm:$0xff] %vm644, %v582
        %676 = vst.msk [vmem:[#allocation4 + $0x1f0] sm:$0xff] %vm644, %v584
        %677 = vst.msk [vmem:[#allocation4 + $0x200] sm:$0xff] %vm644, %v586
        %678 = vst.msk [vmem:[#allocation4 + $0x210] sm:$0xff] %vm644, %v588
        %679 = vst.msk [vmem:[#allocation4 + $0x220] sm:$0xff] %vm644, %v590
        %680 = vst.msk [vmem:[#allocation4 + $0x230] sm:$0xff] %vm644, %v592
        %681 = vst.msk [vmem:[#allocation4 + $0x240] sm:$0xff] %vm644, %v594
        %682 = vst.msk [vmem:[#allocation4 + $0x250] sm:$0xff] %vm644, %v596
        %683 = vst.msk [vmem:[#allocation4 + $0x260] sm:$0xff] %vm644, %v598
        %684 = vst.msk [vmem:[#allocation4 + $0x270] sm:$0xff] %vm644, %v600
        %vm685 = vcmask 60448
        %686 = vst.msk [vmem:[#allocation4 + $0x280] sm:$0xf] %vm685, %v602
        %v687 = vld [vmem:[%s303 + $0x2] sm:$0xff]
        %v688 = vld [vmem:[%s303 + $0xa] sm:$0xff]
        %v689 = vld [vmem:[%s303 + $0x12] sm:$0xff]
        %v690 = vld [vmem:[%s303 + $0x1a] sm:$0xff]
        %v691 = vld [vmem:[%s303 + $0x22] sm:$0xff]
        %v692 = vld [vmem:[%s303 + $0x2a] sm:$0xff]
        %v693 = vld [vmem:[%s303 + $0x32] sm:$0xff]
        %v694 = vld [vmem:[%s303 + $0x3a] sm:$0xff]
        %v695 = vld [vmem:[%s303 + $0x42] sm:$0xff]
        %v696 = vld [vmem:[%s303 + $0x4a] sm:$0xff]
        %v697 = vld [vmem:[%s303 + $0x52] sm:$0xff]
        %v698 = vld [vmem:[%s303 + $0x5a] sm:$0xff]
        %v699 = vld [vmem:[%s303 + $0x62] sm:$0xff]
        %v700 = vld [vmem:[%s303 + $0x6a] sm:$0xff]
        %v701 = vld [vmem:[%s303 + $0x72] sm:$0xff]
        %v702 = vld [vmem:[%s303 + $0x7a] sm:$0xff]
        %v703 = vld [vmem:[%s303 + $0x82] sm:$0xff]
        %v704 = vld [vmem:[%s303 + $0x8a] sm:$0xff]
        %v705 = vld [vmem:[%s303 + $0x92] sm:$0xff]
        %v706 = vld [vmem:[%s303 + $0x9a] sm:$0xff]
        %v707 = vld [vmem:[%s303 + $0xa2] sm:$0xff]
        %v708 = vld [vmem:[%s303 + $0xaa] sm:$0xff]
        %v709 = vld [vmem:[%s303 + $0xb2] sm:$0xff]
        %v710 = vld [vmem:[%s303 + $0xba] sm:$0xff]
        %v711 = vld [vmem:[%s303 + $0xc2] sm:$0xff]
        %v712 = vld [vmem:[%s303 + $0xca] sm:$0xff]
        %v713 = vld [vmem:[%s303 + $0xd2] sm:$0xff]
        %v714 = vld [vmem:[%s303 + $0xda] sm:$0xff]
        %v715 = vld [vmem:[%s303 + $0xe2] sm:$0xff]
        %v716 = vld [vmem:[%s303 + $0xea] sm:$0xff]
        %v717 = vld [vmem:[%s303 + $0xf2] sm:$0xff]
        %v718 = vld [vmem:[%s303 + $0xfa] sm:$0xff]
        %v719 = vld [vmem:[%s303 + $0x102] sm:$0xff]
        %v720 = vld [vmem:[%s303 + $0x10a] sm:$0xff]
        %v721 = vld [vmem:[%s303 + $0x112] sm:$0xff]
        %v722 = vld [vmem:[%s303 + $0x11a] sm:$0xff]
        %v723 = vld [vmem:[%s303 + $0x122] sm:$0xff]
        %v724 = vld [vmem:[%s303 + $0x12a] sm:$0xff]
        %v725 = vld [vmem:[%s303 + $0x132] sm:$0xff]
        %v726 = vld [vmem:[%s303 + $0x13a] sm:$0xff]
        %v727 = vld [vmem:[%s303 + $0x142] sm:$0xf]
        %769 = vrot.lane.b32.xlu0 %v687, 8
        %v770 = vpop.permute.xlu0 %769
        %771 = vrot.lane.b32.xlu0 %v688, 8
        %v772 = vpop.permute.xlu0 %771
        %773 = vrot.lane.b32.xlu0 %v689, 8
        %v774 = vpop.permute.xlu0 %773
        %775 = vrot.lane.b32.xlu0 %v690, 8
        %v776 = vpop.permute.xlu0 %775
        %777 = vrot.lane.b32.xlu0 %v691, 8
        %v778 = vpop.permute.xlu0 %777
        %779 = vrot.lane.b32.xlu0 %v692, 8
        %v780 = vpop.permute.xlu0 %779
        %781 = vrot.lane.b32.xlu0 %v693, 8
        %v782 = vpop.permute.xlu0 %781
        %783 = vrot.lane.b32.xlu0 %v694, 8
        %v784 = vpop.permute.xlu0 %783
        %785 = vrot.lane.b32.xlu0 %v695, 8
        %v786 = vpop.permute.xlu0 %785
        %787 = vrot.lane.b32.xlu0 %v696, 8
        %v788 = vpop.permute.xlu0 %787
        %789 = vrot.lane.b32.xlu0 %v697, 8
        %v790 = vpop.permute.xlu0 %789
        %791 = vrot.lane.b32.xlu0 %v698, 8
        %v792 = vpop.permute.xlu0 %791
        %793 = vrot.lane.b32.xlu0 %v699, 8
        %v794 = vpop.permute.xlu0 %793
        %795 = vrot.lane.b32.xlu0 %v700, 8
        %v796 = vpop.permute.xlu0 %795
        %797 = vrot.lane.b32.xlu0 %v701, 8
        %v798 = vpop.permute.xlu0 %797
        %799 = vrot.lane.b32.xlu0 %v702, 8
        %v800 = vpop.permute.xlu0 %799
        %801 = vrot.lane.b32.xlu0 %v703, 8
        %v802 = vpop.permute.xlu0 %801
        %803 = vrot.lane.b32.xlu0 %v704, 8
        %v804 = vpop.permute.xlu0 %803
        %805 = vrot.lane.b32.xlu0 %v705, 8
        %v806 = vpop.permute.xlu0 %805
        %807 = vrot.lane.b32.xlu0 %v706, 8
        %v808 = vpop.permute.xlu0 %807
        %809 = vrot.lane.b32.xlu0 %v707, 8
        %v810 = vpop.permute.xlu0 %809
        %811 = vrot.lane.b32.xlu0 %v708, 8
        %v812 = vpop.permute.xlu0 %811
        %813 = vrot.lane.b32.xlu0 %v709, 8
        %v814 = vpop.permute.xlu0 %813
        %815 = vrot.lane.b32.xlu0 %v710, 8
        %v816 = vpop.permute.xlu0 %815
        %817 = vrot.lane.b32.xlu0 %v711, 8
        %v818 = vpop.permute.xlu0 %817
        %819 = vrot.lane.b32.xlu0 %v712, 8
        %v820 = vpop.permute.xlu0 %819
        %821 = vrot.lane.b32.xlu0 %v713, 8
        %v822 = vpop.permute.xlu0 %821
        %823 = vrot.lane.b32.xlu0 %v714, 8
        %v824 = vpop.permute.xlu0 %823
        %825 = vrot.lane.b32.xlu0 %v715, 8
        %v826 = vpop.permute.xlu0 %825
        %827 = vrot.lane.b32.xlu0 %v716, 8
        %v828 = vpop.permute.xlu0 %827
        %829 = vrot.lane.b32.xlu0 %v717, 8
        %v830 = vpop.permute.xlu0 %829
        %831 = vrot.lane.b32.xlu0 %v718, 8
        %v832 = vpop.permute.xlu0 %831
        %833 = vrot.lane.b32.xlu0 %v719, 8
        %v834 = vpop.permute.xlu0 %833
        %835 = vrot.lane.b32.xlu0 %v720, 8
        %v836 = vpop.permute.xlu0 %835
        %837 = vrot.lane.b32.xlu0 %v721, 8
        %v838 = vpop.permute.xlu0 %837
        %839 = vrot.lane.b32.xlu0 %v722, 8
        %v840 = vpop.permute.xlu0 %839
        %841 = vrot.lane.b32.xlu0 %v723, 8
        %v842 = vpop.permute.xlu0 %841
        %843 = vrot.lane.b32.xlu0 %v724, 8
        %v844 = vpop.permute.xlu0 %843
        %845 = vrot.lane.b32.xlu0 %v725, 8
        %v846 = vpop.permute.xlu0 %845
        %847 = vrot.lane.b32.xlu0 %v726, 8
        %v848 = vpop.permute.xlu0 %847
        %849 = vrot.lane.b32.xlu0 %v727, 8
        %v850 = vpop.permute.xlu0 %849
        %vm892 = vcmask 97344
        %893 = vst.msk [vmem:[#allocation4] sm:$0xff] %vm892, %v770
        %894 = vst.msk [vmem:[#allocation4 + $0x10] sm:$0xff] %vm892, %v772
        %895 = vst.msk [vmem:[#allocation4 + $0x20] sm:$0xff] %vm892, %v774
        %896 = vst.msk [vmem:[#allocation4 + $0x30] sm:$0xff] %vm892, %v776
        %897 = vst.msk [vmem:[#allocation4 + $0x40] sm:$0xff] %vm892, %v778
        %898 = vst.msk [vmem:[#allocation4 + $0x50] sm:$0xff] %vm892, %v780
        %899 = vst.msk [vmem:[#allocation4 + $0x60] sm:$0xff] %vm892, %v782
        %900 = vst.msk [vmem:[#allocation4 + $0x70] sm:$0xff] %vm892, %v784
        %901 = vst.msk [vmem:[#allocation4 + $0x80] sm:$0xff] %vm892, %v786
        %902 = vst.msk [vmem:[#allocation4 + $0x90] sm:$0xff] %vm892, %v788
        %903 = vst.msk [vmem:[#allocation4 + $0xa0] sm:$0xff] %vm892, %v790
        %904 = vst.msk [vmem:[#allocation4 + $0xb0] sm:$0xff] %vm892, %v792
        %905 = vst.msk [vmem:[#allocation4 + $0xc0] sm:$0xff] %vm892, %v794
        %906 = vst.msk [vmem:[#allocation4 + $0xd0] sm:$0xff] %vm892, %v796
        %907 = vst.msk [vmem:[#allocation4 + $0xe0] sm:$0xff] %vm892, %v798
        %908 = vst.msk [vmem:[#allocation4 + $0xf0] sm:$0xff] %vm892, %v800
        %909 = vst.msk [vmem:[#allocation4 + $0x100] sm:$0xff] %vm892, %v802
        %910 = vst.msk [vmem:[#allocation4 + $0x110] sm:$0xff] %vm892, %v804
        %911 = vst.msk [vmem:[#allocation4 + $0x120] sm:$0xff] %vm892, %v806
        %912 = vst.msk [vmem:[#allocation4 + $0x130] sm:$0xff] %vm892, %v808
        %913 = vst.msk [vmem:[#allocation4 + $0x140] sm:$0xff] %vm892, %v810
        %914 = vst.msk [vmem:[#allocation4 + $0x150] sm:$0xff] %vm892, %v812
        %915 = vst.msk [vmem:[#allocation4 + $0x160] sm:$0xff] %vm892, %v814
        %916 = vst.msk [vmem:[#allocation4 + $0x170] sm:$0xff] %vm892, %v816
        %917 = vst.msk [vmem:[#allocation4 + $0x180] sm:$0xff] %vm892, %v818
        %918 = vst.msk [vmem:[#allocation4 + $0x190] sm:$0xff] %vm892, %v820
        %919 = vst.msk [vmem:[#allocation4 + $0x1a0] sm:$0xff] %vm892, %v822
        %920 = vst.msk [vmem:[#allocation4 + $0x1b0] sm:$0xff] %vm892, %v824
        %921 = vst.msk [vmem:[#allocation4 + $0x1c0] sm:$0xff] %vm892, %v826
        %922 = vst.msk [vmem:[#allocation4 + $0x1d0] sm:$0xff] %vm892, %v828
        %923 = vst.msk [vmem:[#allocation4 + $0x1e0] sm:$0xff] %vm892, %v830
        %924 = vst.msk [vmem:[#allocation4 + $0x1f0] sm:$0xff] %vm892, %v832
        %925 = vst.msk [vmem:[#allocation4 + $0x200] sm:$0xff] %vm892, %v834
        %926 = vst.msk [vmem:[#allocation4 + $0x210] sm:$0xff] %vm892, %v836
        %927 = vst.msk [vmem:[#allocation4 + $0x220] sm:$0xff] %vm892, %v838
        %928 = vst.msk [vmem:[#allocation4 + $0x230] sm:$0xff] %vm892, %v840
        %929 = vst.msk [vmem:[#allocation4 + $0x240] sm:$0xff] %vm892, %v842
        %930 = vst.msk [vmem:[#allocation4 + $0x250] sm:$0xff] %vm892, %v844
        %931 = vst.msk [vmem:[#allocation4 + $0x260] sm:$0xff] %vm892, %v846
        %932 = vst.msk [vmem:[#allocation4 + $0x270] sm:$0xff] %vm892, %v848
        %vm933 = vcmask 93248
        %934 = vst.msk [vmem:[#allocation4 + $0x280] sm:$0xf] %vm933, %v850
        %v935 = vld [vmem:[%s303 + $0x12] sm:$0xff]
        %v936 = vld [vmem:[%s303 + $0x1a] sm:$0xff]
        %v937 = vld [vmem:[%s303 + $0x22] sm:$0xff]
        %v938 = vld [vmem:[%s303 + $0x2a] sm:$0xff]
        %v939 = vld [vmem:[%s303 + $0x32] sm:$0xff]
        %v940 = vld [vmem:[%s303 + $0x3a] sm:$0xff]
        %v941 = vld [vmem:[%s303 + $0x42] sm:$0xff]
        %v942 = vld [vmem:[%s303 + $0x4a] sm:$0xff]
        %v943 = vld [vmem:[%s303 + $0x52] sm:$0xff]
        %v944 = vld [vmem:[%s303 + $0x5a] sm:$0xff]
        %v945 = vld [vmem:[%s303 + $0x62] sm:$0xff]
        %v946 = vld [vmem:[%s303 + $0x6a] sm:$0xff]
        %v947 = vld [vmem:[%s303 + $0x72] sm:$0xff]
        %v948 = vld [vmem:[%s303 + $0x7a] sm:$0xff]
        %v949 = vld [vmem:[%s303 + $0x82] sm:$0xff]
        %v950 = vld [vmem:[%s303 + $0x8a] sm:$0xff]
        %v951 = vld [vmem:[%s303 + $0x92] sm:$0xff]
        %v952 = vld [vmem:[%s303 + $0x9a] sm:$0xff]
        %v953 = vld [vmem:[%s303 + $0xa2] sm:$0xff]
        %v954 = vld [vmem:[%s303 + $0xaa] sm:$0xff]
        %v955 = vld [vmem:[%s303 + $0xb2] sm:$0xff]
        %v956 = vld [vmem:[%s303 + $0xba] sm:$0xff]
        %v957 = vld [vmem:[%s303 + $0xc2] sm:$0xff]
        %v958 = vld [vmem:[%s303 + $0xca] sm:$0xff]
        %v959 = vld [vmem:[%s303 + $0xd2] sm:$0xff]
        %v960 = vld [vmem:[%s303 + $0xda] sm:$0xff]
        %v961 = vld [vmem:[%s303 + $0xe2] sm:$0xff]
        %v962 = vld [vmem:[%s303 + $0xea] sm:$0xff]
        %v963 = vld [vmem:[%s303 + $0xf2] sm:$0xff]
        %v964 = vld [vmem:[%s303 + $0xfa] sm:$0xff]
        %v965 = vld [vmem:[%s303 + $0x102] sm:$0xff]
        %v966 = vld [vmem:[%s303 + $0x10a] sm:$0xff]
        %v967 = vld [vmem:[%s303 + $0x112] sm:$0xff]
        %v968 = vld [vmem:[%s303 + $0x11a] sm:$0xff]
        %v969 = vld [vmem:[%s303 + $0x122] sm:$0xff]
        %v970 = vld [vmem:[%s303 + $0x12a] sm:$0xff]
        %v971 = vld [vmem:[%s303 + $0x132] sm:$0xff]
        %v972 = vld [vmem:[%s303 + $0x13a] sm:$0xff]
        %v973 = vld [vmem:[%s303 + $0x142] sm:$0xff]
        %v974 = vld [vmem:[%s303 + $0x14a] sm:$0xff]
        %v975 = vld [vmem:[%s303 + $0x152] sm:$0xf]
        %1017 = vrot.lane.b32.xlu0 %v935, 12
        %v1018 = vpop.permute.xlu0 %1017
        %1019 = vrot.lane.b32.xlu0 %v936, 12
        %v1020 = vpop.permute.xlu0 %1019
        %1021 = vrot.lane.b32.xlu0 %v937, 12
        %v1022 = vpop.permute.xlu0 %1021
        %1023 = vrot.lane.b32.xlu0 %v938, 12
        %v1024 = vpop.permute.xlu0 %1023
        %1025 = vrot.lane.b32.xlu0 %v939, 12
        %v1026 = vpop.permute.xlu0 %1025
        %1027 = vrot.lane.b32.xlu0 %v940, 12
        %v1028 = vpop.permute.xlu0 %1027
        %1029 = vrot.lane.b32.xlu0 %v941, 12
        %v1030 = vpop.permute.xlu0 %1029
        %1031 = vrot.lane.b32.xlu0 %v942, 12
        %v1032 = vpop.permute.xlu0 %1031
        %1033 = vrot.lane.b32.xlu0 %v943, 12
        %v1034 = vpop.permute.xlu0 %1033
        %1035 = vrot.lane.b32.xlu0 %v944, 12
        %v1036 = vpop.permute.xlu0 %1035
        %1037 = vrot.lane.b32.xlu0 %v945, 12
        %v1038 = vpop.permute.xlu0 %1037
        %1039 = vrot.lane.b32.xlu0 %v946, 12
        %v1040 = vpop.permute.xlu0 %1039
        %1041 = vrot.lane.b32.xlu0 %v947, 12
        %v1042 = vpop.permute.xlu0 %1041
        %1043 = vrot.lane.b32.xlu0 %v948, 12
        %v1044 = vpop.permute.xlu0 %1043
        %1045 = vrot.lane.b32.xlu0 %v949, 12
        %v1046 = vpop.permute.xlu0 %1045
        %1047 = vrot.lane.b32.xlu0 %v950, 12
        %v1048 = vpop.permute.xlu0 %1047
        %1049 = vrot.lane.b32.xlu0 %v951, 12
        %v1050 = vpop.permute.xlu0 %1049
        %1051 = vrot.lane.b32.xlu0 %v952, 12
        %v1052 = vpop.permute.xlu0 %1051
        %1053 = vrot.lane.b32.xlu0 %v953, 12
        %v1054 = vpop.permute.xlu0 %1053
        %1055 = vrot.lane.b32.xlu0 %v954, 12
        %v1056 = vpop.permute.xlu0 %1055
        %1057 = vrot.lane.b32.xlu0 %v955, 12
        %v1058 = vpop.permute.xlu0 %1057
        %1059 = vrot.lane.b32.xlu0 %v956, 12
        %v1060 = vpop.permute.xlu0 %1059
        %1061 = vrot.lane.b32.xlu0 %v957, 12
        %v1062 = vpop.permute.xlu0 %1061
        %1063 = vrot.lane.b32.xlu0 %v958, 12
        %v1064 = vpop.permute.xlu0 %1063
        %1065 = vrot.lane.b32.xlu0 %v959, 12
        %v1066 = vpop.permute.xlu0 %1065
        %1067 = vrot.lane.b32.xlu0 %v960, 12
        %v1068 = vpop.permute.xlu0 %1067
        %1069 = vrot.lane.b32.xlu0 %v961, 12
        %v1070 = vpop.permute.xlu0 %1069
        %1071 = vrot.lane.b32.xlu0 %v962, 12
        %v1072 = vpop.permute.xlu0 %1071
        %1073 = vrot.lane.b32.xlu0 %v963, 12
        %v1074 = vpop.permute.xlu0 %1073
        %1075 = vrot.lane.b32.xlu0 %v964, 12
        %v1076 = vpop.permute.xlu0 %1075
        %1077 = vrot.lane.b32.xlu0 %v965, 12
        %v1078 = vpop.permute.xlu0 %1077
        %1079 = vrot.lane.b32.xlu0 %v966, 12
        %v1080 = vpop.permute.xlu0 %1079
        %1081 = vrot.lane.b32.xlu0 %v967, 12
        %v1082 = vpop.permute.xlu0 %1081
        %1083 = vrot.lane.b32.xlu0 %v968, 12
        %v1084 = vpop.permute.xlu0 %1083
        %1085 = vrot.lane.b32.xlu0 %v969, 12
        %v1086 = vpop.permute.xlu0 %1085
        %1087 = vrot.lane.b32.xlu0 %v970, 12
        %v1088 = vpop.permute.xlu0 %1087
        %1089 = vrot.lane.b32.xlu0 %v971, 12
        %v1090 = vpop.permute.xlu0 %1089
        %1091 = vrot.lane.b32.xlu0 %v972, 12
        %v1092 = vpop.permute.xlu0 %1091
        %1093 = vrot.lane.b32.xlu0 %v973, 12
        %v1094 = vpop.permute.xlu0 %1093
        %1095 = vrot.lane.b32.xlu0 %v974, 12
        %v1096 = vpop.permute.xlu0 %1095
        %1097 = vrot.lane.b32.xlu0 %v975, 12
        %v1098 = vpop.permute.xlu0 %1097
        %vm1140 = vcmask 130144
        %1141 = vst.msk [vmem:[#allocation4] sm:$0xff] %vm1140, %v1018
        %1142 = vst.msk [vmem:[#allocation4 + $0x10] sm:$0xff] %vm1140, %v1020
        %1143 = vst.msk [vmem:[#allocation4 + $0x20] sm:$0xff] %vm1140, %v1022
        %1144 = vst.msk [vmem:[#allocation4 + $0x30] sm:$0xff] %vm1140, %v1024
        %1145 = vst.msk [vmem:[#allocation4 + $0x40] sm:$0xff] %vm1140, %v1026
        %1146 = vst.msk [vmem:[#allocation4 + $0x50] sm:$0xff] %vm1140, %v1028
        %1147 = vst.msk [vmem:[#allocation4 + $0x60] sm:$0xff] %vm1140, %v1030
        %1148 = vst.msk [vmem:[#allocation4 + $0x70] sm:$0xff] %vm1140, %v1032
        %1149 = vst.msk [vmem:[#allocation4 + $0x80] sm:$0xff] %vm1140, %v1034
        %1150 = vst.msk [vmem:[#allocation4 + $0x90] sm:$0xff] %vm1140, %v1036
        %1151 = vst.msk [vmem:[#allocation4 + $0xa0] sm:$0xff] %vm1140, %v1038
        %1152 = vst.msk [vmem:[#allocation4 + $0xb0] sm:$0xff] %vm1140, %v1040
        %1153 = vst.msk [vmem:[#allocation4 + $0xc0] sm:$0xff] %vm1140, %v1042
        %1154 = vst.msk [vmem:[#allocation4 + $0xd0] sm:$0xff] %vm1140, %v1044
        %1155 = vst.msk [vmem:[#allocation4 + $0xe0] sm:$0xff] %vm1140, %v1046
        %1156 = vst.msk [vmem:[#allocation4 + $0xf0] sm:$0xff] %vm1140, %v1048
        %1157 = vst.msk [vmem:[#allocation4 + $0x100] sm:$0xff] %vm1140, %v1050
        %1158 = vst.msk [vmem:[#allocation4 + $0x110] sm:$0xff] %vm1140, %v1052
        %1159 = vst.msk [vmem:[#allocation4 + $0x120] sm:$0xff] %vm1140, %v1054
        %1160 = vst.msk [vmem:[#allocation4 + $0x130] sm:$0xff] %vm1140, %v1056
        %1161 = vst.msk [vmem:[#allocation4 + $0x140] sm:$0xff] %vm1140, %v1058
        %1162 = vst.msk [vmem:[#allocation4 + $0x150] sm:$0xff] %vm1140, %v1060
        %1163 = vst.msk [vmem:[#allocation4 + $0x160] sm:$0xff] %vm1140, %v1062
        %1164 = vst.msk [vmem:[#allocation4 + $0x170] sm:$0xff] %vm1140, %v1064
        %1165 = vst.msk [vmem:[#allocation4 + $0x180] sm:$0xff] %vm1140, %v1066
        %1166 = vst.msk [vmem:[#allocation4 + $0x190] sm:$0xff] %vm1140, %v1068
        %1167 = vst.msk [vmem:[#allocation4 + $0x1a0] sm:$0xff] %vm1140, %v1070
        %1168 = vst.msk [vmem:[#allocation4 + $0x1b0] sm:$0xff] %vm1140, %v1072
        %1169 = vst.msk [vmem:[#allocation4 + $0x1c0] sm:$0xff] %vm1140, %v1074
        %1170 = vst.msk [vmem:[#allocation4 + $0x1d0] sm:$0xff] %vm1140, %v1076
        %1171 = vst.msk [vmem:[#allocation4 + $0x1e0] sm:$0xff] %vm1140, %v1078
        %1172 = vst.msk [vmem:[#allocation4 + $0x1f0] sm:$0xff] %vm1140, %v1080
        %1173 = vst.msk [vmem:[#allocation4 + $0x200] sm:$0xff] %vm1140, %v1082
        %1174 = vst.msk [vmem:[#allocation4 + $0x210] sm:$0xff] %vm1140, %v1084
        %1175 = vst.msk [vmem:[#allocation4 + $0x220] sm:$0xff] %vm1140, %v1086
        %1176 = vst.msk [vmem:[#allocation4 + $0x230] sm:$0xff] %vm1140, %v1088
        %1177 = vst.msk [vmem:[#allocation4 + $0x240] sm:$0xff] %vm1140, %v1090
        %1178 = vst.msk [vmem:[#allocation4 + $0x250] sm:$0xff] %vm1140, %v1092
        %1179 = vst.msk [vmem:[#allocation4 + $0x260] sm:$0xff] %vm1140, %v1094
        %1180 = vst.msk [vmem:[#allocation4 + $0x270] sm:$0xff] %vm1140, %v1096
        %vm1181 = vcmask 126048
        %1182 = vst.msk [vmem:[#allocation4 + $0x280] sm:$0xf] %vm1181, %v1098
        %v1183 = vld [vmem:[%s303 + $0x13] sm:$0xff]
        %v1184 = vld [vmem:[%s303 + $0x1b] sm:$0xff]
        %v1185 = vld [vmem:[%s303 + $0x23] sm:$0xff]
        %v1186 = vld [vmem:[%s303 + $0x2b] sm:$0xff]
        %v1187 = vld [vmem:[%s303 + $0x33] sm:$0xff]
        %v1188 = vld [vmem:[%s303 + $0x3b] sm:$0xff]
        %v1189 = vld [vmem:[%s303 + $0x43] sm:$0xff]
        %v1190 = vld [vmem:[%s303 + $0x4b] sm:$0xff]
        %v1191 = vld [vmem:[%s303 + $0x53] sm:$0xff]
        %v1192 = vld [vmem:[%s303 + $0x5b] sm:$0xff]
        %v1193 = vld [vmem:[%s303 + $0x63] sm:$0xff]
        %v1194 = vld [vmem:[%s303 + $0x6b] sm:$0xff]
        %v1195 = vld [vmem:[%s303 + $0x73] sm:$0xff]
        %v1196 = vld [vmem:[%s303 + $0x7b] sm:$0xff]
        %v1197 = vld [vmem:[%s303 + $0x83] sm:$0xff]
        %v1198 = vld [vmem:[%s303 + $0x8b] sm:$0xff]
        %v1199 = vld [vmem:[%s303 + $0x93] sm:$0xff]
        %v1200 = vld [vmem:[%s303 + $0x9b] sm:$0xff]
        %v1201 = vld [vmem:[%s303 + $0xa3] sm:$0xff]
        %v1202 = vld [vmem:[%s303 + $0xab] sm:$0xff]
        %v1203 = vld [vmem:[%s303 + $0xb3] sm:$0xff]
        %v1204 = vld [vmem:[%s303 + $0xbb] sm:$0xff]
        %v1205 = vld [vmem:[%s303 + $0xc3] sm:$0xff]
        %v1206 = vld [vmem:[%s303 + $0xcb] sm:$0xff]
        %v1207 = vld [vmem:[%s303 + $0xd3] sm:$0xff]
        %v1208 = vld [vmem:[%s303 + $0xdb] sm:$0xff]
        %v1209 = vld [vmem:[%s303 + $0xe3] sm:$0xff]
        %v1210 = vld [vmem:[%s303 + $0xeb] sm:$0xff]
        %v1211 = vld [vmem:[%s303 + $0xf3] sm:$0xff]
        %v1212 = vld [vmem:[%s303 + $0xfb] sm:$0xff]
        %v1213 = vld [vmem:[%s303 + $0x103] sm:$0xff]
        %v1214 = vld [vmem:[%s303 + $0x10b] sm:$0xff]
        %v1215 = vld [vmem:[%s303 + $0x113] sm:$0xff]
        %v1216 = vld [vmem:[%s303 + $0x11b] sm:$0xff]
        %v1217 = vld [vmem:[%s303 + $0x123] sm:$0xff]
        %v1218 = vld [vmem:[%s303 + $0x12b] sm:$0xff]
        %v1219 = vld [vmem:[%s303 + $0x133] sm:$0xff]
        %v1220 = vld [vmem:[%s303 + $0x13b] sm:$0xff]
        %v1221 = vld [vmem:[%s303 + $0x143] sm:$0xff]
        %v1222 = vld [vmem:[%s303 + $0x14b] sm:$0xff]
        %v1223 = vld [vmem:[%s303 + $0x153] sm:$0xf]
        %1265 = vrot.lane.b32.xlu0 %v1183, 16
        %v1266 = vpop.permute.xlu0 %1265
        %1267 = vrot.lane.b32.xlu0 %v1184, 16
        %v1268 = vpop.permute.xlu0 %1267
        %1269 = vrot.lane.b32.xlu0 %v1185, 16
        %v1270 = vpop.permute.xlu0 %1269
        %1271 = vrot.lane.b32.xlu0 %v1186, 16
        %v1272 = vpop.permute.xlu0 %1271
        %1273 = vrot.lane.b32.xlu0 %v1187, 16
        %v1274 = vpop.permute.xlu0 %1273
        %1275 = vrot.lane.b32.xlu0 %v1188, 16
        %v1276 = vpop.permute.xlu0 %1275
        %1277 = vrot.lane.b32.xlu0 %v1189, 16
        %v1278 = vpop.permute.xlu0 %1277
        %1279 = vrot.lane.b32.xlu0 %v1190, 16
        %v1280 = vpop.permute.xlu0 %1279
        %1281 = vrot.lane.b32.xlu0 %v1191, 16
        %v1282 = vpop.permute.xlu0 %1281
        %1283 = vrot.lane.b32.xlu0 %v1192, 16
        %v1284 = vpop.permute.xlu0 %1283
        %1285 = vrot.lane.b32.xlu0 %v1193, 16
        %v1286 = vpop.permute.xlu0 %1285
        %1287 = vrot.lane.b32.xlu0 %v1194, 16
        %v1288 = vpop.permute.xlu0 %1287
        %1289 = vrot.lane.b32.xlu0 %v1195, 16
        %v1290 = vpop.permute.xlu0 %1289
        %1291 = vrot.lane.b32.xlu0 %v1196, 16
        %v1292 = vpop.permute.xlu0 %1291
        %1293 = vrot.lane.b32.xlu0 %v1197, 16
        %v1294 = vpop.permute.xlu0 %1293
        %1295 = vrot.lane.b32.xlu0 %v1198, 16
        %v1296 = vpop.permute.xlu0 %1295
        %1297 = vrot.lane.b32.xlu0 %v1199, 16
        %v1298 = vpop.permute.xlu0 %1297
        %1299 = vrot.lane.b32.xlu0 %v1200, 16
        %v1300 = vpop.permute.xlu0 %1299
        %1301 = vrot.lane.b32.xlu0 %v1201, 16
        %v1302 = vpop.permute.xlu0 %1301
        %1303 = vrot.lane.b32.xlu0 %v1202, 16
        %v1304 = vpop.permute.xlu0 %1303
        %1305 = vrot.lane.b32.xlu0 %v1203, 16
        %v1306 = vpop.permute.xlu0 %1305
        %1307 = vrot.lane.b32.xlu0 %v1204, 16
        %v1308 = vpop.permute.xlu0 %1307
        %1309 = vrot.lane.b32.xlu0 %v1205, 16
        %v1310 = vpop.permute.xlu0 %1309
        %1311 = vrot.lane.b32.xlu0 %v1206, 16
        %v1312 = vpop.permute.xlu0 %1311
        %1313 = vrot.lane.b32.xlu0 %v1207, 16
        %v1314 = vpop.permute.xlu0 %1313
        %1315 = vrot.lane.b32.xlu0 %v1208, 16
        %v1316 = vpop.permute.xlu0 %1315
        %1317 = vrot.lane.b32.xlu0 %v1209, 16
        %v1318 = vpop.permute.xlu0 %1317
        %1319 = vrot.lane.b32.xlu0 %v1210, 16
        %v1320 = vpop.permute.xlu0 %1319
        %1321 = vrot.lane.b32.xlu0 %v1211, 16
        %v1322 = vpop.permute.xlu0 %1321
        %1323 = vrot.lane.b32.xlu0 %v1212, 16
        %v1324 = vpop.permute.xlu0 %1323
        %1325 = vrot.lane.b32.xlu0 %v1213, 16
        %v1326 = vpop.permute.xlu0 %1325
        %1327 = vrot.lane.b32.xlu0 %v1214, 16
        %v1328 = vpop.permute.xlu0 %1327
        %1329 = vrot.lane.b32.xlu0 %v1215, 16
        %v1330 = vpop.permute.xlu0 %1329
        %1331 = vrot.lane.b32.xlu0 %v1216, 16
        %v1332 = vpop.permute.xlu0 %1331
        %1333 = vrot.lane.b32.xlu0 %v1217, 16
        %v1334 = vpop.permute.xlu0 %1333
        %1335 = vrot.lane.b32.xlu0 %v1218, 16
        %v1336 = vpop.permute.xlu0 %1335
        %1337 = vrot.lane.b32.xlu0 %v1219, 16
        %v1338 = vpop.permute.xlu0 %1337
        %1339 = vrot.lane.b32.xlu0 %v1220, 16
        %v1340 = vpop.permute.xlu0 %1339
        %1341 = vrot.lane.b32.xlu0 %v1221, 16
        %v1342 = vpop.permute.xlu0 %1341
        %1343 = vrot.lane.b32.xlu0 %v1222, 16
        %v1344 = vpop.permute.xlu0 %1343
        %1345 = vrot.lane.b32.xlu0 %v1223, 16
        %v1346 = vpop.permute.xlu0 %1345
        %vm1388 = vcmask 162944
        %1389 = vst.msk [vmem:[#allocation4] sm:$0xff] %vm1388, %v1266
        %1390 = vst.msk [vmem:[#allocation4 + $0x10] sm:$0xff] %vm1388, %v1268
        %1391 = vst.msk [vmem:[#allocation4 + $0x20] sm:$0xff] %vm1388, %v1270
        %1392 = vst.msk [vmem:[#allocation4 + $0x30] sm:$0xff] %vm1388, %v1272
        %1393 = vst.msk [vmem:[#allocation4 + $0x40] sm:$0xff] %vm1388, %v1274
        %1394 = vst.msk [vmem:[#allocation4 + $0x50] sm:$0xff] %vm1388, %v1276
        %1395 = vst.msk [vmem:[#allocation4 + $0x60] sm:$0xff] %vm1388, %v1278
        %1396 = vst.msk [vmem:[#allocation4 + $0x70] sm:$0xff] %vm1388, %v1280
        %1397 = vst.msk [vmem:[#allocation4 + $0x80] sm:$0xff] %vm1388, %v1282
        %1398 = vst.msk [vmem:[#allocation4 + $0x90] sm:$0xff] %vm1388, %v1284
        %1399 = vst.msk [vmem:[#allocation4 + $0xa0] sm:$0xff] %vm1388, %v1286
        %1400 = vst.msk [vmem:[#allocation4 + $0xb0] sm:$0xff] %vm1388, %v1288
        %1401 = vst.msk [vmem:[#allocation4 + $0xc0] sm:$0xff] %vm1388, %v1290
        %1402 = vst.msk [vmem:[#allocation4 + $0xd0] sm:$0xff] %vm1388, %v1292
        %1403 = vst.msk [vmem:[#allocation4 + $0xe0] sm:$0xff] %vm1388, %v1294
        %1404 = vst.msk [vmem:[#allocation4 + $0xf0] sm:$0xff] %vm1388, %v1296
        %1405 = vst.msk [vmem:[#allocation4 + $0x100] sm:$0xff] %vm1388, %v1298
        %1406 = vst.msk [vmem:[#allocation4 + $0x110] sm:$0xff] %vm1388, %v1300
        %1407 = vst.msk [vmem:[#allocation4 + $0x120] sm:$0xff] %vm1388, %v1302
        %1408 = vst.msk [vmem:[#allocation4 + $0x130] sm:$0xff] %vm1388, %v1304
        %1409 = vst.msk [vmem:[#allocation4 + $0x140] sm:$0xff] %vm1388, %v1306
        %1410 = vst.msk [vmem:[#allocation4 + $0x150] sm:$0xff] %vm1388, %v1308
        %1411 = vst.msk [vmem:[#allocation4 + $0x160] sm:$0xff] %vm1388, %v1310
        %1412 = vst.msk [vmem:[#allocation4 + $0x170] sm:$0xff] %vm1388, %v1312
        %1413 = vst.msk [vmem:[#allocation4 + $0x180] sm:$0xff] %vm1388, %v1314
        %1414 = vst.msk [vmem:[#allocation4 + $0x190] sm:$0xff] %vm1388, %v1316
        %1415 = vst.msk [vmem:[#allocation4 + $0x1a0] sm:$0xff] %vm1388, %v1318
        %1416 = vst.msk [vmem:[#allocation4 + $0x1b0] sm:$0xff] %vm1388, %v1320
        %1417 = vst.msk [vmem:[#allocation4 + $0x1c0] sm:$0xff] %vm1388, %v1322
        %1418 = vst.msk [vmem:[#allocation4 + $0x1d0] sm:$0xff] %vm1388, %v1324
        %1419 = vst.msk [vmem:[#allocation4 + $0x1e0] sm:$0xff] %vm1388, %v1326
        %1420 = vst.msk [vmem:[#allocation4 + $0x1f0] sm:$0xff] %vm1388, %v1328
        %1421 = vst.msk [vmem:[#allocation4 + $0x200] sm:$0xff] %vm1388, %v1330
        %1422 = vst.msk [vmem:[#allocation4 + $0x210] sm:$0xff] %vm1388, %v1332
        %1423 = vst.msk [vmem:[#allocation4 + $0x220] sm:$0xff] %vm1388, %v1334
        %1424 = vst.msk [vmem:[#allocation4 + $0x230] sm:$0xff] %vm1388, %v1336
        %1425 = vst.msk [vmem:[#allocation4 + $0x240] sm:$0xff] %vm1388, %v1338
        %1426 = vst.msk [vmem:[#allocation4 + $0x250] sm:$0xff] %vm1388, %v1340
        %1427 = vst.msk [vmem:[#allocation4 + $0x260] sm:$0xff] %vm1388, %v1342
        %1428 = vst.msk [vmem:[#allocation4 + $0x270] sm:$0xff] %vm1388, %v1344
        %vm1429 = vcmask 158848
        %1430 = vst.msk [vmem:[#allocation4 + $0x280] sm:$0xf] %vm1429, %v1346
        %v1431 = vld [vmem:[%s303 + $0x14] sm:$0xff]
        %v1432 = vld [vmem:[%s303 + $0x1c] sm:$0xff]
        %v1433 = vld [vmem:[%s303 + $0x24] sm:$0xff]
        %v1434 = vld [vmem:[%s303 + $0x2c] sm:$0xff]
        %v1435 = vld [vmem:[%s303 + $0x34] sm:$0xff]
        %v1436 = vld [vmem:[%s303 + $0x3c] sm:$0xff]
        %v1437 = vld [vmem:[%s303 + $0x44] sm:$0xff]
        %v1438 = vld [vmem:[%s303 + $0x4c] sm:$0xff]
        %v1439 = vld [vmem:[%s303 + $0x54] sm:$0xff]
        %v1440 = vld [vmem:[%s303 + $0x5c] sm:$0xff]
        %v1441 = vld [vmem:[%s303 + $0x64] sm:$0xff]
        %v1442 = vld [vmem:[%s303 + $0x6c] sm:$0xff]
        %v1443 = vld [vmem:[%s303 + $0x74] sm:$0xff]
        %v1444 = vld [vmem:[%s303 + $0x7c] sm:$0xff]
        %v1445 = vld [vmem:[%s303 + $0x84] sm:$0xff]
        %v1446 = vld [vmem:[%s303 + $0x8c] sm:$0xff]
        %v1447 = vld [vmem:[%s303 + $0x94] sm:$0xff]
        %v1448 = vld [vmem:[%s303 + $0x9c] sm:$0xff]
        %v1449 = vld [vmem:[%s303 + $0xa4] sm:$0xff]
        %v1450 = vld [vmem:[%s303 + $0xac] sm:$0xff]
        %v1451 = vld [vmem:[%s303 + $0xb4] sm:$0xff]
        %v1452 = vld [vmem:[%s303 + $0xbc] sm:$0xff]
        %v1453 = vld [vmem:[%s303 + $0xc4] sm:$0xff]
        %v1454 = vld [vmem:[%s303 + $0xcc] sm:$0xff]
        %v1455 = vld [vmem:[%s303 + $0xd4] sm:$0xff]
        %v1456 = vld [vmem:[%s303 + $0xdc] sm:$0xff]
        %v1457 = vld [vmem:[%s303 + $0xe4] sm:$0xff]
        %v1458 = vld [vmem:[%s303 + $0xec] sm:$0xff]
        %v1459 = vld [vmem:[%s303 + $0xf4] sm:$0xff]
        %v1460 = vld [vmem:[%s303 + $0xfc] sm:$0xff]
        %v1461 = vld [vmem:[%s303 + $0x104] sm:$0xff]
        %v1462 = vld [vmem:[%s303 + $0x10c] sm:$0xff]
        %v1463 = vld [vmem:[%s303 + $0x114] sm:$0xff]
        %v1464 = vld [vmem:[%s303 + $0x11c] sm:$0xff]
        %v1465 = vld [vmem:[%s303 + $0x124] sm:$0xff]
        %v1466 = vld [vmem:[%s303 + $0x12c] sm:$0xff]
        %v1467 = vld [vmem:[%s303 + $0x134] sm:$0xff]
        %v1468 = vld [vmem:[%s303 + $0x13c] sm:$0xff]
        %v1469 = vld [vmem:[%s303 + $0x144] sm:$0xff]
        %v1470 = vld [vmem:[%s303 + $0x14c] sm:$0xff]
        %v1471 = vld [vmem:[%s303 + $0x154] sm:$0xf]
        %1513 = vrot.lane.b32.xlu0 %v1431, 20
        %v1514 = vpop.permute.xlu0 %1513
        %1515 = vrot.lane.b32.xlu0 %v1432, 20
        %v1516 = vpop.permute.xlu0 %1515
        %1517 = vrot.lane.b32.xlu0 %v1433, 20
        %v1518 = vpop.permute.xlu0 %1517
        %1519 = vrot.lane.b32.xlu0 %v1434, 20
        %v1520 = vpop.permute.xlu0 %1519
        %1521 = vrot.lane.b32.xlu0 %v1435, 20
        %v1522 = vpop.permute.xlu0 %1521
        %1523 = vrot.lane.b32.xlu0 %v1436, 20
        %v1524 = vpop.permute.xlu0 %1523
        %1525 = vrot.lane.b32.xlu0 %v1437, 20
        %v1526 = vpop.permute.xlu0 %1525
        %1527 = vrot.lane.b32.xlu0 %v1438, 20
        %v1528 = vpop.permute.xlu0 %1527
        %1529 = vrot.lane.b32.xlu0 %v1439, 20
        %v1530 = vpop.permute.xlu0 %1529
        %1531 = vrot.lane.b32.xlu0 %v1440, 20
        %v1532 = vpop.permute.xlu0 %1531
        %1533 = vrot.lane.b32.xlu0 %v1441, 20
        %v1534 = vpop.permute.xlu0 %1533
        %1535 = vrot.lane.b32.xlu0 %v1442, 20
        %v1536 = vpop.permute.xlu0 %1535
        %1537 = vrot.lane.b32.xlu0 %v1443, 20
        %v1538 = vpop.permute.xlu0 %1537
        %1539 = vrot.lane.b32.xlu0 %v1444, 20
        %v1540 = vpop.permute.xlu0 %1539
        %1541 = vrot.lane.b32.xlu0 %v1445, 20
        %v1542 = vpop.permute.xlu0 %1541
        %1543 = vrot.lane.b32.xlu0 %v1446, 20
        %v1544 = vpop.permute.xlu0 %1543
        %1545 = vrot.lane.b32.xlu0 %v1447, 20
        %v1546 = vpop.permute.xlu0 %1545
        %1547 = vrot.lane.b32.xlu0 %v1448, 20
        %v1548 = vpop.permute.xlu0 %1547
        %1549 = vrot.lane.b32.xlu0 %v1449, 20
        %v1550 = vpop.permute.xlu0 %1549
        %1551 = vrot.lane.b32.xlu0 %v1450, 20
        %v1552 = vpop.permute.xlu0 %1551
        %1553 = vrot.lane.b32.xlu0 %v1451, 20
        %v1554 = vpop.permute.xlu0 %1553
        %1555 = vrot.lane.b32.xlu0 %v1452, 20
        %v1556 = vpop.permute.xlu0 %1555
        %1557 = vrot.lane.b32.xlu0 %v1453, 20
        %v1558 = vpop.permute.xlu0 %1557
        %1559 = vrot.lane.b32.xlu0 %v1454, 20
        %v1560 = vpop.permute.xlu0 %1559
        %1561 = vrot.lane.b32.xlu0 %v1455, 20
        %v1562 = vpop.permute.xlu0 %1561
        %1563 = vrot.lane.b32.xlu0 %v1456, 20
        %v1564 = vpop.permute.xlu0 %1563
        %1565 = vrot.lane.b32.xlu0 %v1457, 20
        %v1566 = vpop.permute.xlu0 %1565
        %1567 = vrot.lane.b32.xlu0 %v1458, 20
        %v1568 = vpop.permute.xlu0 %1567
        %1569 = vrot.lane.b32.xlu0 %v1459, 20
        %v1570 = vpop.permute.xlu0 %1569
        %1571 = vrot.lane.b32.xlu0 %v1460, 20
        %v1572 = vpop.permute.xlu0 %1571
        %1573 = vrot.lane.b32.xlu0 %v1461, 20
        %v1574 = vpop.permute.xlu0 %1573
        %1575 = vrot.lane.b32.xlu0 %v1462, 20
        %v1576 = vpop.permute.xlu0 %1575
        %1577 = vrot.lane.b32.xlu0 %v1463, 20
        %v1578 = vpop.permute.xlu0 %1577
        %1579 = vrot.lane.b32.xlu0 %v1464, 20
        %v1580 = vpop.permute.xlu0 %1579
        %1581 = vrot.lane.b32.xlu0 %v1465, 20
        %v1582 = vpop.permute.xlu0 %1581
        %1583 = vrot.lane.b32.xlu0 %v1466, 20
        %v1584 = vpop.permute.xlu0 %1583
        %1585 = vrot.lane.b32.xlu0 %v1467, 20
        %v1586 = vpop.permute.xlu0 %1585
        %1587 = vrot.lane.b32.xlu0 %v1468, 20
        %v1588 = vpop.permute.xlu0 %1587
        %1589 = vrot.lane.b32.xlu0 %v1469, 20
        %v1590 = vpop.permute.xlu0 %1589
        %1591 = vrot.lane.b32.xlu0 %v1470, 20
        %v1592 = vpop.permute.xlu0 %1591
        %1593 = vrot.lane.b32.xlu0 %v1471, 20
        %v1594 = vpop.permute.xlu0 %1593
        %vm1636 = vcmask 195744
        %1637 = vst.msk [vmem:[#allocation4] sm:$0xff] %vm1636, %v1514
        %1638 = vst.msk [vmem:[#allocation4 + $0x10] sm:$0xff] %vm1636, %v1516
        %1639 = vst.msk [vmem:[#allocation4 + $0x20] sm:$0xff] %vm1636, %v1518
        %1640 = vst.msk [vmem:[#allocation4 + $0x30] sm:$0xff] %vm1636, %v1520
        %1641 = vst.msk [vmem:[#allocation4 + $0x40] sm:$0xff] %vm1636, %v1522
        %1642 = vst.msk [vmem:[#allocation4 + $0x50] sm:$0xff] %vm1636, %v1524
        %1643 = vst.msk [vmem:[#allocation4 + $0x60] sm:$0xff] %vm1636, %v1526
        %1644 = vst.msk [vmem:[#allocation4 + $0x70] sm:$0xff] %vm1636, %v1528
        %1645 = vst.msk [vmem:[#allocation4 + $0x80] sm:$0xff] %vm1636, %v1530
        %1646 = vst.msk [vmem:[#allocation4 + $0x90] sm:$0xff] %vm1636, %v1532
        %1647 = vst.msk [vmem:[#allocation4 + $0xa0] sm:$0xff] %vm1636, %v1534
        %1648 = vst.msk [vmem:[#allocation4 + $0xb0] sm:$0xff] %vm1636, %v1536
        %1649 = vst.msk [vmem:[#allocation4 + $0xc0] sm:$0xff] %vm1636, %v1538
        %1650 = vst.msk [vmem:[#allocation4 + $0xd0] sm:$0xff] %vm1636, %v1540
        %1651 = vst.msk [vmem:[#allocation4 + $0xe0] sm:$0xff] %vm1636, %v1542
        %1652 = vst.msk [vmem:[#allocation4 + $0xf0] sm:$0xff] %vm1636, %v1544
        %1653 = vst.msk [vmem:[#allocation4 + $0x100] sm:$0xff] %vm1636, %v1546
        %1654 = vst.msk [vmem:[#allocation4 + $0x110] sm:$0xff] %vm1636, %v1548
        %1655 = vst.msk [vmem:[#allocation4 + $0x120] sm:$0xff] %vm1636, %v1550
        %1656 = vst.msk [vmem:[#allocation4 + $0x130] sm:$0xff] %vm1636, %v1552
        %1657 = vst.msk [vmem:[#allocation4 + $0x140] sm:$0xff] %vm1636, %v1554
        %1658 = vst.msk [vmem:[#allocation4 + $0x150] sm:$0xff] %vm1636, %v1556
        %1659 = vst.msk [vmem:[#allocation4 + $0x160] sm:$0xff] %vm1636, %v1558
        %1660 = vst.msk [vmem:[#allocation4 + $0x170] sm:$0xff] %vm1636, %v1560
        %1661 = vst.msk [vmem:[#allocation4 + $0x180] sm:$0xff] %vm1636, %v1562
        %1662 = vst.msk [vmem:[#allocation4 + $0x190] sm:$0xff] %vm1636, %v1564
        %1663 = vst.msk [vmem:[#allocation4 + $0x1a0] sm:$0xff] %vm1636, %v1566
        %1664 = vst.msk [vmem:[#allocation4 + $0x1b0] sm:$0xff] %vm1636, %v1568
        %1665 = vst.msk [vmem:[#allocation4 + $0x1c0] sm:$0xff] %vm1636, %v1570
        %1666 = vst.msk [vmem:[#allocation4 + $0x1d0] sm:$0xff] %vm1636, %v1572
        %1667 = vst.msk [vmem:[#allocation4 + $0x1e0] sm:$0xff] %vm1636, %v1574
        %1668 = vst.msk [vmem:[#allocation4 + $0x1f0] sm:$0xff] %vm1636, %v1576
        %1669 = vst.msk [vmem:[#allocation4 + $0x200] sm:$0xff] %vm1636, %v1578
        %1670 = vst.msk [vmem:[#allocation4 + $0x210] sm:$0xff] %vm1636, %v1580
        %1671 = vst.msk [vmem:[#allocation4 + $0x220] sm:$0xff] %vm1636, %v1582
        %1672 = vst.msk [vmem:[#allocation4 + $0x230] sm:$0xff] %vm1636, %v1584
        %1673 = vst.msk [vmem:[#allocation4 + $0x240] sm:$0xff] %vm1636, %v1586
        %1674 = vst.msk [vmem:[#allocation4 + $0x250] sm:$0xff] %vm1636, %v1588
        %1675 = vst.msk [vmem:[#allocation4 + $0x260] sm:$0xff] %vm1636, %v1590
        %1676 = vst.msk [vmem:[#allocation4 + $0x270] sm:$0xff] %vm1636, %v1592
        %vm1677 = vcmask 191648
        %1678 = vst.msk [vmem:[#allocation4 + $0x280] sm:$0xf] %vm1677, %v1594
        %v1679 = vld [vmem:[%s303 + $0x24] sm:$0xff]
        %v1680 = vld [vmem:[%s303 + $0x2c] sm:$0xff]
        %v1681 = vld [vmem:[%s303 + $0x34] sm:$0xff]
        %v1682 = vld [vmem:[%s303 + $0x3c] sm:$0xff]
        %v1683 = vld [vmem:[%s303 + $0x44] sm:$0xff]
        %v1684 = vld [vmem:[%s303 + $0x4c] sm:$0xff]
        %v1685 = vld [vmem:[%s303 + $0x54] sm:$0xff]
        %v1686 = vld [vmem:[%s303 + $0x5c] sm:$0xff]
        %v1687 = vld [vmem:[%s303 + $0x64] sm:$0xff]
        %v1688 = vld [vmem:[%s303 + $0x6c] sm:$0xff]
        %v1689 = vld [vmem:[%s303 + $0x74] sm:$0xff]
        %v1690 = vld [vmem:[%s303 + $0x7c] sm:$0xff]
        %v1691 = vld [vmem:[%s303 + $0x84] sm:$0xff]
        %v1692 = vld [vmem:[%s303 + $0x8c] sm:$0xff]
        %v1693 = vld [vmem:[%s303 + $0x94] sm:$0xff]
        %v1694 = vld [vmem:[%s303 + $0x9c] sm:$0xff]
        %v1695 = vld [vmem:[%s303 + $0xa4] sm:$0xff]
        %v1696 = vld [vmem:[%s303 + $0xac] sm:$0xff]
        %v1697 = vld [vmem:[%s303 + $0xb4] sm:$0xff]
        %v1698 = vld [vmem:[%s303 + $0xbc] sm:$0xff]
        %v1699 = vld [vmem:[%s303 + $0xc4] sm:$0xff]
        %v1700 = vld [vmem:[%s303 + $0xcc] sm:$0xff]
        %v1701 = vld [vmem:[%s303 + $0xd4] sm:$0xff]
        %v1702 = vld [vmem:[%s303 + $0xdc] sm:$0xff]
        %v1703 = vld [vmem:[%s303 + $0xe4] sm:$0xff]
        %v1704 = vld [vmem:[%s303 + $0xec] sm:$0xff]
        %v1705 = vld [vmem:[%s303 + $0xf4] sm:$0xff]
        %v1706 = vld [vmem:[%s303 + $0xfc] sm:$0xff]
        %v1707 = vld [vmem:[%s303 + $0x104] sm:$0xff]
        %v1708 = vld [vmem:[%s303 + $0x10c] sm:$0xff]
        %v1709 = vld [vmem:[%s303 + $0x114] sm:$0xff]
        %v1710 = vld [vmem:[%s303 + $0x11c] sm:$0xff]
        %v1711 = vld [vmem:[%s303 + $0x124] sm:$0xff]
        %v1712 = vld [vmem:[%s303 + $0x12c] sm:$0xff]
        %v1713 = vld [vmem:[%s303 + $0x134] sm:$0xff]
        %v1714 = vld [vmem:[%s303 + $0x13c] sm:$0xff]
        %v1715 = vld [vmem:[%s303 + $0x144] sm:$0xff]
        %v1716 = vld [vmem:[%s303 + $0x14c] sm:$0xff]
        %v1717 = vld [vmem:[%s303 + $0x154] sm:$0xff]
        %v1718 = vld [vmem:[%s303 + $0x15c] sm:$0xff]
        %v1719 = vld [vmem:[%s303 + $0x164] sm:$0xf]
        %1761 = vrot.lane.b32.xlu0 %v1679, 24
        %v1762 = vpop.permute.xlu0 %1761
        %1763 = vrot.lane.b32.xlu0 %v1680, 24
        %v1764 = vpop.permute.xlu0 %1763
        %1765 = vrot.lane.b32.xlu0 %v1681, 24
        %v1766 = vpop.permute.xlu0 %1765
        %1767 = vrot.lane.b32.xlu0 %v1682, 24
        %v1768 = vpop.permute.xlu0 %1767
        %1769 = vrot.lane.b32.xlu0 %v1683, 24
        %v1770 = vpop.permute.xlu0 %1769
        %1771 = vrot.lane.b32.xlu0 %v1684, 24
        %v1772 = vpop.permute.xlu0 %1771
        %1773 = vrot.lane.b32.xlu0 %v1685, 24
        %v1774 = vpop.permute.xlu0 %1773
        %1775 = vrot.lane.b32.xlu0 %v1686, 24
        %v1776 = vpop.permute.xlu0 %1775
        %1777 = vrot.lane.b32.xlu0 %v1687, 24
        %v1778 = vpop.permute.xlu0 %1777
        %1779 = vrot.lane.b32.xlu0 %v1688, 24
        %v1780 = vpop.permute.xlu0 %1779
        %1781 = vrot.lane.b32.xlu0 %v1689, 24
        %v1782 = vpop.permute.xlu0 %1781
        %1783 = vrot.lane.b32.xlu0 %v1690, 24
        %v1784 = vpop.permute.xlu0 %1783
        %1785 = vrot.lane.b32.xlu0 %v1691, 24
        %v1786 = vpop.permute.xlu0 %1785
        %1787 = vrot.lane.b32.xlu0 %v1692, 24
        %v1788 = vpop.permute.xlu0 %1787
        %1789 = vrot.lane.b32.xlu0 %v1693, 24
        %v1790 = vpop.permute.xlu0 %1789
        %1791 = vrot.lane.b32.xlu0 %v1694, 24
        %v1792 = vpop.permute.xlu0 %1791
        %1793 = vrot.lane.b32.xlu0 %v1695, 24
        %v1794 = vpop.permute.xlu0 %1793
        %1795 = vrot.lane.b32.xlu0 %v1696, 24
        %v1796 = vpop.permute.xlu0 %1795
        %1797 = vrot.lane.b32.xlu0 %v1697, 24
        %v1798 = vpop.permute.xlu0 %1797
        %1799 = vrot.lane.b32.xlu0 %v1698, 24
        %v1800 = vpop.permute.xlu0 %1799
        %1801 = vrot.lane.b32.xlu0 %v1699, 24
        %v1802 = vpop.permute.xlu0 %1801
        %1803 = vrot.lane.b32.xlu0 %v1700, 24
        %v1804 = vpop.permute.xlu0 %1803
        %1805 = vrot.lane.b32.xlu0 %v1701, 24
        %v1806 = vpop.permute.xlu0 %1805
        %1807 = vrot.lane.b32.xlu0 %v1702, 24
        %v1808 = vpop.permute.xlu0 %1807
        %1809 = vrot.lane.b32.xlu0 %v1703, 24
        %v1810 = vpop.permute.xlu0 %1809
        %1811 = vrot.lane.b32.xlu0 %v1704, 24
        %v1812 = vpop.permute.xlu0 %1811
        %1813 = vrot.lane.b32.xlu0 %v1705, 24
        %v1814 = vpop.permute.xlu0 %1813
        %1815 = vrot.lane.b32.xlu0 %v1706, 24
        %v1816 = vpop.permute.xlu0 %1815
        %1817 = vrot.lane.b32.xlu0 %v1707, 24
        %v1818 = vpop.permute.xlu0 %1817
        %1819 = vrot.lane.b32.xlu0 %v1708, 24
        %v1820 = vpop.permute.xlu0 %1819
        %1821 = vrot.lane.b32.xlu0 %v1709, 24
        %v1822 = vpop.permute.xlu0 %1821
        %1823 = vrot.lane.b32.xlu0 %v1710, 24
        %v1824 = vpop.permute.xlu0 %1823
        %1825 = vrot.lane.b32.xlu0 %v1711, 24
        %v1826 = vpop.permute.xlu0 %1825
        %1827 = vrot.lane.b32.xlu0 %v1712, 24
        %v1828 = vpop.permute.xlu0 %1827
        %1829 = vrot.lane.b32.xlu0 %v1713, 24
        %v1830 = vpop.permute.xlu0 %1829
        %1831 = vrot.lane.b32.xlu0 %v1714, 24
        %v1832 = vpop.permute.xlu0 %1831
        %1833 = vrot.lane.b32.xlu0 %v1715, 24
        %v1834 = vpop.permute.xlu0 %1833
        %1835 = vrot.lane.b32.xlu0 %v1716, 24
        %v1836 = vpop.permute.xlu0 %1835
        %1837 = vrot.lane.b32.xlu0 %v1717, 24
        %v1838 = vpop.permute.xlu0 %1837
        %1839 = vrot.lane.b32.xlu0 %v1718, 24
        %v1840 = vpop.permute.xlu0 %1839
        %1841 = vrot.lane.b32.xlu0 %v1719, 24
        %v1842 = vpop.permute.xlu0 %1841
        %vm1884 = vcmask 228544
        %1885 = vst.msk [vmem:[#allocation4] sm:$0xff] %vm1884, %v1762
        %1886 = vst.msk [vmem:[#allocation4 + $0x10] sm:$0xff] %vm1884, %v1764
        %1887 = vst.msk [vmem:[#allocation4 + $0x20] sm:$0xff] %vm1884, %v1766
        %1888 = vst.msk [vmem:[#allocation4 + $0x30] sm:$0xff] %vm1884, %v1768
        %1889 = vst.msk [vmem:[#allocation4 + $0x40] sm:$0xff] %vm1884, %v1770
        %1890 = vst.msk [vmem:[#allocation4 + $0x50] sm:$0xff] %vm1884, %v1772
        %1891 = vst.msk [vmem:[#allocation4 + $0x60] sm:$0xff] %vm1884, %v1774
        %1892 = vst.msk [vmem:[#allocation4 + $0x70] sm:$0xff] %vm1884, %v1776
        %1893 = vst.msk [vmem:[#allocation4 + $0x80] sm:$0xff] %vm1884, %v1778
        %1894 = vst.msk [vmem:[#allocation4 + $0x90] sm:$0xff] %vm1884, %v1780
        %1895 = vst.msk [vmem:[#allocation4 + $0xa0] sm:$0xff] %vm1884, %v1782
        %1896 = vst.msk [vmem:[#allocation4 + $0xb0] sm:$0xff] %vm1884, %v1784
        %1897 = vst.msk [vmem:[#allocation4 + $0xc0] sm:$0xff] %vm1884, %v1786
        %1898 = vst.msk [vmem:[#allocation4 + $0xd0] sm:$0xff] %vm1884, %v1788
        %1899 = vst.msk [vmem:[#allocation4 + $0xe0] sm:$0xff] %vm1884, %v1790
        %1900 = vst.msk [vmem:[#allocation4 + $0xf0] sm:$0xff] %vm1884, %v1792
        %1901 = vst.msk [vmem:[#allocation4 + $0x100] sm:$0xff] %vm1884, %v1794
        %1902 = vst.msk [vmem:[#allocation4 + $0x110] sm:$0xff] %vm1884, %v1796
        %1903 = vst.msk [vmem:[#allocation4 + $0x120] sm:$0xff] %vm1884, %v1798
        %1904 = vst.msk [vmem:[#allocation4 + $0x130] sm:$0xff] %vm1884, %v1800
        %1905 = vst.msk [vmem:[#allocation4 + $0x140] sm:$0xff] %vm1884, %v1802
        %1906 = vst.msk [vmem:[#allocation4 + $0x150] sm:$0xff] %vm1884, %v1804
        %1907 = vst.msk [vmem:[#allocation4 + $0x160] sm:$0xff] %vm1884, %v1806
        %1908 = vst.msk [vmem:[#allocation4 + $0x170] sm:$0xff] %vm1884, %v1808
        %1909 = vst.msk [vmem:[#allocation4 + $0x180] sm:$0xff] %vm1884, %v1810
        %1910 = vst.msk [vmem:[#allocation4 + $0x190] sm:$0xff] %vm1884, %v1812
        %1911 = vst.msk [vmem:[#allocation4 + $0x1a0] sm:$0xff] %vm1884, %v1814
        %1912 = vst.msk [vmem:[#allocation4 + $0x1b0] sm:$0xff] %vm1884, %v1816
        %1913 = vst.msk [vmem:[#allocation4 + $0x1c0] sm:$0xff] %vm1884, %v1818
        %1914 = vst.msk [vmem:[#allocation4 + $0x1d0] sm:$0xff] %vm1884, %v1820
        %1915 = vst.msk [vmem:[#allocation4 + $0x1e0] sm:$0xff] %vm1884, %v1822
        %1916 = vst.msk [vmem:[#allocation4 + $0x1f0] sm:$0xff] %vm1884, %v1824
        %1917 = vst.msk [vmem:[#allocation4 + $0x200] sm:$0xff] %vm1884, %v1826
        %1918 = vst.msk [vmem:[#allocation4 + $0x210] sm:$0xff] %vm1884, %v1828
        %1919 = vst.msk [vmem:[#allocation4 + $0x220] sm:$0xff] %vm1884, %v1830
        %1920 = vst.msk [vmem:[#allocation4 + $0x230] sm:$0xff] %vm1884, %v1832
        %1921 = vst.msk [vmem:[#allocation4 + $0x240] sm:$0xff] %vm1884, %v1834
        %1922 = vst.msk [vmem:[#allocation4 + $0x250] sm:$0xff] %vm1884, %v1836
        %1923 = vst.msk [vmem:[#allocation4 + $0x260] sm:$0xff] %vm1884, %v1838
        %1924 = vst.msk [vmem:[#allocation4 + $0x270] sm:$0xff] %vm1884, %v1840
        %vm1925 = vcmask 224448
        %1926 = vst.msk [vmem:[#allocation4 + $0x280] sm:$0xf] %vm1925, %v1842
        %v1927 = vld [vmem:[%s303 + $0x25] sm:$0xff]
        %v1928 = vld [vmem:[%s303 + $0x2d] sm:$0xff]
        %v1929 = vld [vmem:[%s303 + $0x35] sm:$0xff]
        %v1930 = vld [vmem:[%s303 + $0x3d] sm:$0xff]
        %v1931 = vld [vmem:[%s303 + $0x45] sm:$0xff]
        %v1932 = vld [vmem:[%s303 + $0x4d] sm:$0xff]
        %v1933 = vld [vmem:[%s303 + $0x55] sm:$0xff]
        %v1934 = vld [vmem:[%s303 + $0x5d] sm:$0xff]
        %v1935 = vld [vmem:[%s303 + $0x65] sm:$0xff]
        %v1936 = vld [vmem:[%s303 + $0x6d] sm:$0xff]
        %v1937 = vld [vmem:[%s303 + $0x75] sm:$0xff]
        %v1938 = vld [vmem:[%s303 + $0x7d] sm:$0xff]
        %v1939 = vld [vmem:[%s303 + $0x85] sm:$0xff]
        %v1940 = vld [vmem:[%s303 + $0x8d] sm:$0xff]
        %v1941 = vld [vmem:[%s303 + $0x95] sm:$0xff]
        %v1942 = vld [vmem:[%s303 + $0x9d] sm:$0xff]
        %v1943 = vld [vmem:[%s303 + $0xa5] sm:$0xff]
        %v1944 = vld [vmem:[%s303 + $0xad] sm:$0xff]
        %v1945 = vld [vmem:[%s303 + $0xb5] sm:$0xff]
        %v1946 = vld [vmem:[%s303 + $0xbd] sm:$0xff]
        %v1947 = vld [vmem:[%s303 + $0xc5] sm:$0xff]
        %v1948 = vld [vmem:[%s303 + $0xcd] sm:$0xff]
        %v1949 = vld [vmem:[%s303 + $0xd5] sm:$0xff]
        %v1950 = vld [vmem:[%s303 + $0xdd] sm:$0xff]
        %v1951 = vld [vmem:[%s303 + $0xe5] sm:$0xff]
        %v1952 = vld [vmem:[%s303 + $0xed] sm:$0xff]
        %v1953 = vld [vmem:[%s303 + $0xf5] sm:$0xff]
        %v1954 = vld [vmem:[%s303 + $0xfd] sm:$0xff]
        %v1955 = vld [vmem:[%s303 + $0x105] sm:$0xff]
        %v1956 = vld [vmem:[%s303 + $0x10d] sm:$0xff]
        %v1957 = vld [vmem:[%s303 + $0x115] sm:$0xff]
        %v1958 = vld [vmem:[%s303 + $0x11d] sm:$0xff]
        %v1959 = vld [vmem:[%s303 + $0x125] sm:$0xff]
        %v1960 = vld [vmem:[%s303 + $0x12d] sm:$0xff]
        %v1961 = vld [vmem:[%s303 + $0x135] sm:$0xff]
        %v1962 = vld [vmem:[%s303 + $0x13d] sm:$0xff]
        %v1963 = vld [vmem:[%s303 + $0x145] sm:$0xff]
        %v1964 = vld [vmem:[%s303 + $0x14d] sm:$0xff]
        %v1965 = vld [vmem:[%s303 + $0x155] sm:$0xff]
        %v1966 = vld [vmem:[%s303 + $0x15d] sm:$0xff]
        %v1967 = vld [vmem:[%s303 + $0x165] sm:$0xf]
        %2009 = vrot.lane.b32.xlu0 %v1927, 28
        %v2010 = vpop.permute.xlu0 %2009
        %2011 = vrot.lane.b32.xlu0 %v1928, 28
        %v2012 = vpop.permute.xlu0 %2011
        %2013 = vrot.lane.b32.xlu0 %v1929, 28
        %v2014 = vpop.permute.xlu0 %2013
        %2015 = vrot.lane.b32.xlu0 %v1930, 28
        %v2016 = vpop.permute.xlu0 %2015
        %2017 = vrot.lane.b32.xlu0 %v1931, 28
        %v2018 = vpop.permute.xlu0 %2017
        %2019 = vrot.lane.b32.xlu0 %v1932, 28
        %v2020 = vpop.permute.xlu0 %2019
        %2021 = vrot.lane.b32.xlu0 %v1933, 28
        %v2022 = vpop.permute.xlu0 %2021
        %2023 = vrot.lane.b32.xlu0 %v1934, 28
        %v2024 = vpop.permute.xlu0 %2023
        %2025 = vrot.lane.b32.xlu0 %v1935, 28
        %v2026 = vpop.permute.xlu0 %2025
        %2027 = vrot.lane.b32.xlu0 %v1936, 28
        %v2028 = vpop.permute.xlu0 %2027
        %2029 = vrot.lane.b32.xlu0 %v1937, 28
        %v2030 = vpop.permute.xlu0 %2029
        %2031 = vrot.lane.b32.xlu0 %v1938, 28
        %v2032 = vpop.permute.xlu0 %2031
        %2033 = vrot.lane.b32.xlu0 %v1939, 28
        %v2034 = vpop.permute.xlu0 %2033
        %2035 = vrot.lane.b32.xlu0 %v1940, 28
        %v2036 = vpop.permute.xlu0 %2035
        %2037 = vrot.lane.b32.xlu0 %v1941, 28
        %v2038 = vpop.permute.xlu0 %2037
        %2039 = vrot.lane.b32.xlu0 %v1942, 28
        %v2040 = vpop.permute.xlu0 %2039
        %2041 = vrot.lane.b32.xlu0 %v1943, 28
        %v2042 = vpop.permute.xlu0 %2041
        %2043 = vrot.lane.b32.xlu0 %v1944, 28
        %v2044 = vpop.permute.xlu0 %2043
        %2045 = vrot.lane.b32.xlu0 %v1945, 28
        %v2046 = vpop.permute.xlu0 %2045
        %2047 = vrot.lane.b32.xlu0 %v1946, 28
        %v2048 = vpop.permute.xlu0 %2047
        %2049 = vrot.lane.b32.xlu0 %v1947, 28
        %v2050 = vpop.permute.xlu0 %2049
        %2051 = vrot.lane.b32.xlu0 %v1948, 28
        %v2052 = vpop.permute.xlu0 %2051
        %2053 = vrot.lane.b32.xlu0 %v1949, 28
        %v2054 = vpop.permute.xlu0 %2053
        %2055 = vrot.lane.b32.xlu0 %v1950, 28
        %v2056 = vpop.permute.xlu0 %2055
        %2057 = vrot.lane.b32.xlu0 %v1951, 28
        %v2058 = vpop.permute.xlu0 %2057
        %2059 = vrot.lane.b32.xlu0 %v1952, 28
        %v2060 = vpop.permute.xlu0 %2059
        %2061 = vrot.lane.b32.xlu0 %v1953, 28
        %v2062 = vpop.permute.xlu0 %2061
        %2063 = vrot.lane.b32.xlu0 %v1954, 28
        %v2064 = vpop.permute.xlu0 %2063
        %2065 = vrot.lane.b32.xlu0 %v1955, 28
        %v2066 = vpop.permute.xlu0 %2065
        %2067 = vrot.lane.b32.xlu0 %v1956, 28
        %v2068 = vpop.permute.xlu0 %2067
        %2069 = vrot.lane.b32.xlu0 %v1957, 28
        %v2070 = vpop.permute.xlu0 %2069
        %2071 = vrot.lane.b32.xlu0 %v1958, 28
        %v2072 = vpop.permute.xlu0 %2071
        %2073 = vrot.lane.b32.xlu0 %v1959, 28
        %v2074 = vpop.permute.xlu0 %2073
        %2075 = vrot.lane.b32.xlu0 %v1960, 28
        %v2076 = vpop.permute.xlu0 %2075
        %2077 = vrot.lane.b32.xlu0 %v1961, 28
        %v2078 = vpop.permute.xlu0 %2077
        %2079 = vrot.lane.b32.xlu0 %v1962, 28
        %v2080 = vpop.permute.xlu0 %2079
        %2081 = vrot.lane.b32.xlu0 %v1963, 28
        %v2082 = vpop.permute.xlu0 %2081
        %2083 = vrot.lane.b32.xlu0 %v1964, 28
        %v2084 = vpop.permute.xlu0 %2083
        %2085 = vrot.lane.b32.xlu0 %v1965, 28
        %v2086 = vpop.permute.xlu0 %2085
        %2087 = vrot.lane.b32.xlu0 %v1966, 28
        %v2088 = vpop.permute.xlu0 %2087
        %2089 = vrot.lane.b32.xlu0 %v1967, 28
        %v2090 = vpop.permute.xlu0 %2089
        %vm2132 = vcmask 261344
        %2133 = vst.msk [vmem:[#allocation4] sm:$0xff] %vm2132, %v2010
        %2134 = vst.msk [vmem:[#allocation4 + $0x10] sm:$0xff] %vm2132, %v2012
        %2135 = vst.msk [vmem:[#allocation4 + $0x20] sm:$0xff] %vm2132, %v2014
        %2136 = vst.msk [vmem:[#allocation4 + $0x30] sm:$0xff] %vm2132, %v2016
        %2137 = vst.msk [vmem:[#allocation4 + $0x40] sm:$0xff] %vm2132, %v2018
        %2138 = vst.msk [vmem:[#allocation4 + $0x50] sm:$0xff] %vm2132, %v2020
        %2139 = vst.msk [vmem:[#allocation4 + $0x60] sm:$0xff] %vm2132, %v2022
        %2140 = vst.msk [vmem:[#allocation4 + $0x70] sm:$0xff] %vm2132, %v2024
        %2141 = vst.msk [vmem:[#allocation4 + $0x80] sm:$0xff] %vm2132, %v2026
        %2142 = vst.msk [vmem:[#allocation4 + $0x90] sm:$0xff] %vm2132, %v2028
        %2143 = vst.msk [vmem:[#allocation4 + $0xa0] sm:$0xff] %vm2132, %v2030
        %2144 = vst.msk [vmem:[#allocation4 + $0xb0] sm:$0xff] %vm2132, %v2032
        %2145 = vst.msk [vmem:[#allocation4 + $0xc0] sm:$0xff] %vm2132, %v2034
        %2146 = vst.msk [vmem:[#allocation4 + $0xd0] sm:$0xff] %vm2132, %v2036
        %2147 = vst.msk [vmem:[#allocation4 + $0xe0] sm:$0xff] %vm2132, %v2038
        %2148 = vst.msk [vmem:[#allocation4 + $0xf0] sm:$0xff] %vm2132, %v2040
        %2149 = vst.msk [vmem:[#allocation4 + $0x100] sm:$0xff] %vm2132, %v2042
        %2150 = vst.msk [vmem:[#allocation4 + $0x110] sm:$0xff] %vm2132, %v2044
        %2151 = vst.msk [vmem:[#allocation4 + $0x120] sm:$0xff] %vm2132, %v2046
        %2152 = vst.msk [vmem:[#allocation4 + $0x130] sm:$0xff] %vm2132, %v2048
        %2153 = vst.msk [vmem:[#allocation4 + $0x140] sm:$0xff] %vm2132, %v2050
        %2154 = vst.msk [vmem:[#allocation4 + $0x150] sm:$0xff] %vm2132, %v2052
        %2155 = vst.msk [vmem:[#allocation4 + $0x160] sm:$0xff] %vm2132, %v2054
        %2156 = vst.msk [vmem:[#allocation4 + $0x170] sm:$0xff] %vm2132, %v2056
        %2157 = vst.msk [vmem:[#allocation4 + $0x180] sm:$0xff] %vm2132, %v2058
        %2158 = vst.msk [vmem:[#allocation4 + $0x190] sm:$0xff] %vm2132, %v2060
        %2159 = vst.msk [vmem:[#allocation4 + $0x1a0] sm:$0xff] %vm2132, %v2062
        %2160 = vst.msk [vmem:[#allocation4 + $0x1b0] sm:$0xff] %vm2132, %v2064
        %2161 = vst.msk [vmem:[#allocation4 + $0x1c0] sm:$0xff] %vm2132, %v2066
        %2162 = vst.msk [vmem:[#allocation4 + $0x1d0] sm:$0xff] %vm2132, %v2068
        %2163 = vst.msk [vmem:[#allocation4 + $0x1e0] sm:$0xff] %vm2132, %v2070
        %2164 = vst.msk [vmem:[#allocation4 + $0x1f0] sm:$0xff] %vm2132, %v2072
        %2165 = vst.msk [vmem:[#allocation4 + $0x200] sm:$0xff] %vm2132, %v2074
        %2166 = vst.msk [vmem:[#allocation4 + $0x210] sm:$0xff] %vm2132, %v2076
        %2167 = vst.msk [vmem:[#allocation4 + $0x220] sm:$0xff] %vm2132, %v2078
        %2168 = vst.msk [vmem:[#allocation4 + $0x230] sm:$0xff] %vm2132, %v2080
        %2169 = vst.msk [vmem:[#allocation4 + $0x240] sm:$0xff] %vm2132, %v2082
        %2170 = vst.msk [vmem:[#allocation4 + $0x250] sm:$0xff] %vm2132, %v2084
        %2171 = vst.msk [vmem:[#allocation4 + $0x260] sm:$0xff] %vm2132, %v2086
        %2172 = vst.msk [vmem:[#allocation4 + $0x270] sm:$0xff] %vm2132, %v2088
        %vm2173 = vcmask 257248
        %2174 = vst.msk [vmem:[#allocation4 + $0x280] sm:$0xf] %vm2173, %v2090
        %v2175 = vld [vmem:[%s303 + $0x26] sm:$0xff]
        %v2176 = vld [vmem:[%s303 + $0x2e] sm:$0xff]
        %v2177 = vld [vmem:[%s303 + $0x36] sm:$0xff]
        %v2178 = vld [vmem:[%s303 + $0x3e] sm:$0xff]
        %v2179 = vld [vmem:[%s303 + $0x46] sm:$0xff]
        %v2180 = vld [vmem:[%s303 + $0x4e] sm:$0xff]
        %v2181 = vld [vmem:[%s303 + $0x56] sm:$0xff]
        %v2182 = vld [vmem:[%s303 + $0x5e] sm:$0xff]
        %v2183 = vld [vmem:[%s303 + $0x66] sm:$0xff]
        %v2184 = vld [vmem:[%s303 + $0x6e] sm:$0xff]
        %v2185 = vld [vmem:[%s303 + $0x76] sm:$0xff]
        %v2186 = vld [vmem:[%s303 + $0x7e] sm:$0xff]
        %v2187 = vld [vmem:[%s303 + $0x86] sm:$0xff]
        %v2188 = vld [vmem:[%s303 + $0x8e] sm:$0xff]
        %v2189 = vld [vmem:[%s303 + $0x96] sm:$0xff]
        %v2190 = vld [vmem:[%s303 + $0x9e] sm:$0xff]
        %v2191 = vld [vmem:[%s303 + $0xa6] sm:$0xff]
        %v2192 = vld [vmem:[%s303 + $0xae] sm:$0xff]
        %v2193 = vld [vmem:[%s303 + $0xb6] sm:$0xff]
        %v2194 = vld [vmem:[%s303 + $0xbe] sm:$0xff]
        %v2195 = vld [vmem:[%s303 + $0xc6] sm:$0xff]
        %v2196 = vld [vmem:[%s303 + $0xce] sm:$0xff]
        %v2197 = vld [vmem:[%s303 + $0xd6] sm:$0xff]
        %v2198 = vld [vmem:[%s303 + $0xde] sm:$0xff]
        %v2199 = vld [vmem:[%s303 + $0xe6] sm:$0xff]
        %v2200 = vld [vmem:[%s303 + $0xee] sm:$0xff]
        %v2201 = vld [vmem:[%s303 + $0xf6] sm:$0xff]
        %v2202 = vld [vmem:[%s303 + $0xfe] sm:$0xff]
        %v2203 = vld [vmem:[%s303 + $0x106] sm:$0xff]
        %v2204 = vld [vmem:[%s303 + $0x10e] sm:$0xff]
        %v2205 = vld [vmem:[%s303 + $0x116] sm:$0xff]
        %v2206 = vld [vmem:[%s303 + $0x11e] sm:$0xff]
        %v2207 = vld [vmem:[%s303 + $0x126] sm:$0xff]
        %v2208 = vld [vmem:[%s303 + $0x12e] sm:$0xff]
        %v2209 = vld [vmem:[%s303 + $0x136] sm:$0xff]
        %v2210 = vld [vmem:[%s303 + $0x13e] sm:$0xff]
        %v2211 = vld [vmem:[%s303 + $0x146] sm:$0xff]
        %v2212 = vld [vmem:[%s303 + $0x14e] sm:$0xff]
        %v2213 = vld [vmem:[%s303 + $0x156] sm:$0xff]
        %v2214 = vld [vmem:[%s303 + $0x15e] sm:$0xff]
        %v2215 = vld [vmem:[%s303 + $0x166] sm:$0xf]
        %2257 = vrot.lane.b32.xlu0 %v2175, 32
        %v2258 = vpop.permute.xlu0 %2257
        %2259 = vrot.lane.b32.xlu0 %v2176, 32
        %v2260 = vpop.permute.xlu0 %2259
        %2261 = vrot.lane.b32.xlu0 %v2177, 32
        %v2262 = vpop.permute.xlu0 %2261
        %2263 = vrot.lane.b32.xlu0 %v2178, 32
        %v2264 = vpop.permute.xlu0 %2263
        %2265 = vrot.lane.b32.xlu0 %v2179, 32
        %v2266 = vpop.permute.xlu0 %2265
        %2267 = vrot.lane.b32.xlu0 %v2180, 32
        %v2268 = vpop.permute.xlu0 %2267
        %2269 = vrot.lane.b32.xlu0 %v2181, 32
        %v2270 = vpop.permute.xlu0 %2269
        %2271 = vrot.lane.b32.xlu0 %v2182, 32
        %v2272 = vpop.permute.xlu0 %2271
        %2273 = vrot.lane.b32.xlu0 %v2183, 32
        %v2274 = vpop.permute.xlu0 %2273
        %2275 = vrot.lane.b32.xlu0 %v2184, 32
        %v2276 = vpop.permute.xlu0 %2275
        %2277 = vrot.lane.b32.xlu0 %v2185, 32
        %v2278 = vpop.permute.xlu0 %2277
        %2279 = vrot.lane.b32.xlu0 %v2186, 32
        %v2280 = vpop.permute.xlu0 %2279
        %2281 = vrot.lane.b32.xlu0 %v2187, 32
        %v2282 = vpop.permute.xlu0 %2281
        %2283 = vrot.lane.b32.xlu0 %v2188, 32
        %v2284 = vpop.permute.xlu0 %2283
        %2285 = vrot.lane.b32.xlu0 %v2189, 32
        %v2286 = vpop.permute.xlu0 %2285
        %2287 = vrot.lane.b32.xlu0 %v2190, 32
        %v2288 = vpop.permute.xlu0 %2287
        %2289 = vrot.lane.b32.xlu0 %v2191, 32
        %v2290 = vpop.permute.xlu0 %2289
        %2291 = vrot.lane.b32.xlu0 %v2192, 32
        %v2292 = vpop.permute.xlu0 %2291
        %2293 = vrot.lane.b32.xlu0 %v2193, 32
        %v2294 = vpop.permute.xlu0 %2293
        %2295 = vrot.lane.b32.xlu0 %v2194, 32
        %v2296 = vpop.permute.xlu0 %2295
        %2297 = vrot.lane.b32.xlu0 %v2195, 32
        %v2298 = vpop.permute.xlu0 %2297
        %2299 = vrot.lane.b32.xlu0 %v2196, 32
        %v2300 = vpop.permute.xlu0 %2299
        %2301 = vrot.lane.b32.xlu0 %v2197, 32
        %v2302 = vpop.permute.xlu0 %2301
        %2303 = vrot.lane.b32.xlu0 %v2198, 32
        %v2304 = vpop.permute.xlu0 %2303
        %2305 = vrot.lane.b32.xlu0 %v2199, 32
        %v2306 = vpop.permute.xlu0 %2305
        %2307 = vrot.lane.b32.xlu0 %v2200, 32
        %v2308 = vpop.permute.xlu0 %2307
        %2309 = vrot.lane.b32.xlu0 %v2201, 32
        %v2310 = vpop.permute.xlu0 %2309
        %2311 = vrot.lane.b32.xlu0 %v2202, 32
        %v2312 = vpop.permute.xlu0 %2311
        %2313 = vrot.lane.b32.xlu0 %v2203, 32
        %v2314 = vpop.permute.xlu0 %2313
        %2315 = vrot.lane.b32.xlu0 %v2204, 32
        %v2316 = vpop.permute.xlu0 %2315
        %2317 = vrot.lane.b32.xlu0 %v2205, 32
        %v2318 = vpop.permute.xlu0 %2317
        %2319 = vrot.lane.b32.xlu0 %v2206, 32
        %v2320 = vpop.permute.xlu0 %2319
        %2321 = vrot.lane.b32.xlu0 %v2207, 32
        %v2322 = vpop.permute.xlu0 %2321
        %2323 = vrot.lane.b32.xlu0 %v2208, 32
        %v2324 = vpop.permute.xlu0 %2323
        %2325 = vrot.lane.b32.xlu0 %v2209, 32
        %v2326 = vpop.permute.xlu0 %2325
        %2327 = vrot.lane.b32.xlu0 %v2210, 32
        %v2328 = vpop.permute.xlu0 %2327
        %2329 = vrot.lane.b32.xlu0 %v2211, 32
        %v2330 = vpop.permute.xlu0 %2329
        %2331 = vrot.lane.b32.xlu0 %v2212, 32
        %v2332 = vpop.permute.xlu0 %2331
        %2333 = vrot.lane.b32.xlu0 %v2213, 32
        %v2334 = vpop.permute.xlu0 %2333
        %2335 = vrot.lane.b32.xlu0 %v2214, 32
        %v2336 = vpop.permute.xlu0 %2335
        %2337 = vrot.lane.b32.xlu0 %v2215, 32
        %v2338 = vpop.permute.xlu0 %2337
        %vm2380 = vcmask 294144
        %2381 = vst.msk [vmem:[#allocation4] sm:$0xff] %vm2380, %v2258
        %2382 = vst.msk [vmem:[#allocation4 + $0x10] sm:$0xff] %vm2380, %v2260
        %2383 = vst.msk [vmem:[#allocation4 + $0x20] sm:$0xff] %vm2380, %v2262
        %2384 = vst.msk [vmem:[#allocation4 + $0x30] sm:$0xff] %vm2380, %v2264
        %2385 = vst.msk [vmem:[#allocation4 + $0x40] sm:$0xff] %vm2380, %v2266
        %2386 = vst.msk [vmem:[#allocation4 + $0x50] sm:$0xff] %vm2380, %v2268
        %2387 = vst.msk [vmem:[#allocation4 + $0x60] sm:$0xff] %vm2380, %v2270
        %2388 = vst.msk [vmem:[#allocation4 + $0x70] sm:$0xff] %vm2380, %v2272
        %2389 = vst.msk [vmem:[#allocation4 + $0x80] sm:$0xff] %vm2380, %v2274
        %2390 = vst.msk [vmem:[#allocation4 + $0x90] sm:$0xff] %vm2380, %v2276
        %2391 = vst.msk [vmem:[#allocation4 + $0xa0] sm:$0xff] %vm2380, %v2278
        %2392 = vst.msk [vmem:[#allocation4 + $0xb0] sm:$0xff] %vm2380, %v2280
        %2393 = vst.msk [vmem:[#allocation4 + $0xc0] sm:$0xff] %vm2380, %v2282
        %2394 = vst.msk [vmem:[#allocation4 + $0xd0] sm:$0xff] %vm2380, %v2284
        %2395 = vst.msk [vmem:[#allocation4 + $0xe0] sm:$0xff] %vm2380, %v2286
        %2396 = vst.msk [vmem:[#allocation4 + $0xf0] sm:$0xff] %vm2380, %v2288
        %2397 = vst.msk [vmem:[#allocation4 + $0x100] sm:$0xff] %vm2380, %v2290
        %2398 = vst.msk [vmem:[#allocation4 + $0x110] sm:$0xff] %vm2380, %v2292
        %2399 = vst.msk [vmem:[#allocation4 + $0x120] sm:$0xff] %vm2380, %v2294
        %2400 = vst.msk [vmem:[#allocation4 + $0x130] sm:$0xff] %vm2380, %v2296
        %2401 = vst.msk [vmem:[#allocation4 + $0x140] sm:$0xff] %vm2380, %v2298
        %2402 = vst.msk [vmem:[#allocation4 + $0x150] sm:$0xff] %vm2380, %v2300
        %2403 = vst.msk [vmem:[#allocation4 + $0x160] sm:$0xff] %vm2380, %v2302
        %2404 = vst.msk [vmem:[#allocation4 + $0x170] sm:$0xff] %vm2380, %v2304
        %2405 = vst.msk [vmem:[#allocation4 + $0x180] sm:$0xff] %vm2380, %v2306
        %2406 = vst.msk [vmem:[#allocation4 + $0x190] sm:$0xff] %vm2380, %v2308
        %2407 = vst.msk [vmem:[#allocation4 + $0x1a0] sm:$0xff] %vm2380, %v2310
        %2408 = vst.msk [vmem:[#allocation4 + $0x1b0] sm:$0xff] %vm2380, %v2312
        %2409 = vst.msk [vmem:[#allocation4 + $0x1c0] sm:$0xff] %vm2380, %v2314
        %2410 = vst.msk [vmem:[#allocation4 + $0x1d0] sm:$0xff] %vm2380, %v2316
        %2411 = vst.msk [vmem:[#allocation4 + $0x1e0] sm:$0xff] %vm2380, %v2318
        %2412 = vst.msk [vmem:[#allocation4 + $0x1f0] sm:$0xff] %vm2380, %v2320
        %2413 = vst.msk [vmem:[#allocation4 + $0x200] sm:$0xff] %vm2380, %v2322
        %2414 = vst.msk [vmem:[#allocation4 + $0x210] sm:$0xff] %vm2380, %v2324
        %2415 = vst.msk [vmem:[#allocation4 + $0x220] sm:$0xff] %vm2380, %v2326
        %2416 = vst.msk [vmem:[#allocation4 + $0x230] sm:$0xff] %vm2380, %v2328
        %2417 = vst.msk [vmem:[#allocation4 + $0x240] sm:$0xff] %vm2380, %v2330
        %2418 = vst.msk [vmem:[#allocation4 + $0x250] sm:$0xff] %vm2380, %v2332
        %2419 = vst.msk [vmem:[#allocation4 + $0x260] sm:$0xff] %vm2380, %v2334
        %2420 = vst.msk [vmem:[#allocation4 + $0x270] sm:$0xff] %vm2380, %v2336
        %vm2421 = vcmask 290048
        %2422 = vst.msk [vmem:[#allocation4 + $0x280] sm:$0xf] %vm2421, %v2338
        %v2423 = vld [vmem:[#allocation4] sm:$0xff]
        %v2424 = vld [vmem:[#allocation4 + $0x10] sm:$0xff]
        %v2425 = vld [vmem:[#allocation4 + $0x20] sm:$0xff]
        %v2426 = vld [vmem:[#allocation4 + $0x30] sm:$0xff]
        %v2427 = vld [vmem:[#allocation4 + $0x40] sm:$0xff]
        %v2428 = vld [vmem:[#allocation4 + $0x50] sm:$0xff]
        %v2429 = vld [vmem:[#allocation4 + $0x60] sm:$0xff]
        %v2430 = vld [vmem:[#allocation4 + $0x70] sm:$0xff]
        %v2431 = vld [vmem:[#allocation4 + $0x80] sm:$0xff]
        %v2432 = vld [vmem:[#allocation4 + $0x90] sm:$0xff]
        %v2433 = vld [vmem:[#allocation4 + $0xa0] sm:$0xff]
        %v2434 = vld [vmem:[#allocation4 + $0xb0] sm:$0xff]
        %v2435 = vld [vmem:[#allocation4 + $0xc0] sm:$0xff]
        %v2436 = vld [vmem:[#allocation4 + $0xd0] sm:$0xff]
        %v2437 = vld [vmem:[#allocation4 + $0xe0] sm:$0xff]
        %v2438 = vld [vmem:[#allocation4 + $0xf0] sm:$0xff]
        %v2439 = vld [vmem:[#allocation4 + $0x100] sm:$0xff]
        %v2440 = vld [vmem:[#allocation4 + $0x110] sm:$0xff]
        %v2441 = vld [vmem:[#allocation4 + $0x120] sm:$0xff]
        %v2442 = vld [vmem:[#allocation4 + $0x130] sm:$0xff]
        %v2443 = vld [vmem:[#allocation4 + $0x140] sm:$0xff]
        %v2444 = vld [vmem:[#allocation4 + $0x150] sm:$0xff]
        %v2445 = vld [vmem:[#allocation4 + $0x160] sm:$0xff]
        %v2446 = vld [vmem:[#allocation4 + $0x170] sm:$0xff]
        %v2447 = vld [vmem:[#allocation4 + $0x180] sm:$0xff]
        %v2448 = vld [vmem:[#allocation4 + $0x190] sm:$0xff]
        %v2449 = vld [vmem:[#allocation4 + $0x1a0] sm:$0xff]
        %v2450 = vld [vmem:[#allocation4 + $0x1b0] sm:$0xff]
        %v2451 = vld [vmem:[#allocation4 + $0x1c0] sm:$0xff]
        %v2452 = vld [vmem:[#allocation4 + $0x1d0] sm:$0xff]
        %v2453 = vld [vmem:[#allocation4 + $0x1e0] sm:$0xff]
        %v2454 = vld [vmem:[#allocation4 + $0x1f0] sm:$0xff]
        %v2455 = vld [vmem:[#allocation4 + $0x200] sm:$0xff]
        %v2456 = vld [vmem:[#allocation4 + $0x210] sm:$0xff]
        %v2457 = vld [vmem:[#allocation4 + $0x220] sm:$0xff]
        %v2458 = vld [vmem:[#allocation4 + $0x230] sm:$0xff]
        %v2459 = vld [vmem:[#allocation4 + $0x240] sm:$0xff]
        %v2460 = vld [vmem:[#allocation4 + $0x250] sm:$0xff]
        %v2461 = vld [vmem:[#allocation4 + $0x260] sm:$0xff]
        %v2462 = vld [vmem:[#allocation4 + $0x270] sm:$0xff]
        %v2463 = vld [vmem:[#allocation4 + $0x280] sm:$0xf]
        %v2465 = vlaneseq
        %v2466 = vshrl.u32 %v2465, 7
        %v2467 = vsub.s32 0, %v2466
        %v2468 = vrot.slane %v352, %v2467
        %vm2470 = vcmask 293888
        %v2472 = vsel %vm2470, %v2423, 0
        %v2475 = vsel %vm2470, %v2424, 0
        %v2478 = vsel %vm2470, %v2425, 0
        %v2481 = vsel %vm2470, %v2426, 0
        %v2484 = vsel %vm2470, %v2427, 0
        %v2487 = vsel %vm2470, %v2428, 0
        %v2490 = vsel %vm2470, %v2429, 0
        %v2493 = vsel %vm2470, %v2430, 0
        %v2496 = vsel %vm2470, %v2431, 0
        %v2499 = vsel %vm2470, %v2432, 0
        %v2502 = vsel %vm2470, %v2433, 0
        %v2505 = vsel %vm2470, %v2434, 0
        %v2508 = vsel %vm2470, %v2435, 0
        %v2511 = vsel %vm2470, %v2436, 0
        %v2514 = vsel %vm2470, %v2437, 0
        %v2517 = vsel %vm2470, %v2438, 0
        %v2520 = vsel %vm2470, %v2439, 0
        %v2523 = vsel %vm2470, %v2440, 0
        %v2526 = vsel %vm2470, %v2441, 0
        %v2529 = vsel %vm2470, %v2442, 0
        %v2532 = vsel %vm2470, %v2443, 0
        %v2535 = vsel %vm2470, %v2444, 0
        %v2538 = vsel %vm2470, %v2445, 0
        %v2541 = vsel %vm2470, %v2446, 0
        %v2544 = vsel %vm2470, %v2447, 0
        %v2547 = vsel %vm2470, %v2448, 0
        %v2550 = vsel %vm2470, %v2449, 0
        %v2553 = vsel %vm2470, %v2450, 0
        %v2556 = vsel %vm2470, %v2451, 0
        %v2559 = vsel %vm2470, %v2452, 0
        %v2562 = vsel %vm2470, %v2453, 0
        %v2565 = vsel %vm2470, %v2454, 0
        %v2568 = vsel %vm2470, %v2455, 0
        %v2571 = vsel %vm2470, %v2456, 0
        %v2574 = vsel %vm2470, %v2457, 0
        %v2577 = vsel %vm2470, %v2458, 0
        %v2580 = vsel %vm2470, %v2459, 0
        %v2583 = vsel %vm2470, %v2460, 0
        %v2586 = vsel %vm2470, %v2461, 0
        %v2589 = vsel %vm2470, %v2462, 0
        %v2592 = vsel %vm2470, %v2463, 0
        %vm2594 = vcmask 1043456
        %v2596 = vsel %vm2594, %v351, 0
        %2598 = vmatprep.subr.mxu0 0.0
        %2599 = vmatpush1.msra.mxu0 %v347
        %2600 = vmatprep.subr.mxu0 0.0
        %2601 = vmatpush1.msra.mxu0 %v348
        %2602 = vmatprep.subr.mxu0 0.0
        %2603 = vmatpush1.msra.mxu0 %v349
        %2604 = vmatprep.subr.mxu0 0.0
        %2605 = vmatpush1.msra.mxu0 %v350
        %2606 = vmatprep.subr.mxu0 0.0
        %2607 = vmatpush1.msra.mxu0 %v2596
        %2608 = vmatprep.subr.mxu0 0.0
        %2609 = vmatpush1.msra.mxu0 0.0
        %2610 = vmatprep.subr.mxu0 0.0
        %2611 = vmatpush1.msra.mxu0 0.0
        %2612 = vmatprep.subr.mxu0 0.0
        %2613 = vmatpush1.msra.mxu0 0.0
        %2614 = vmatprep.subr.mxu0 0.0
        %2615 = vmatpush1.msra.mxu0 0.0
        %2616 = vmatprep.subr.mxu0 0.0
        %2617 = vmatpush1.msra.mxu0 0.0
        %2618 = vmatprep.subr.mxu0 0.0
        %2619 = vmatpush1.msra.mxu0 0.0
        %2620 = vmatprep.subr.mxu0 0.0
        %2621 = vmatpush1.msra.mxu0 0.0
        %2622 = vmatprep.subr.mxu0 0.0
        %2623 = vmatpush1.msra.mxu0 0.0
        %2624 = vmatprep.subr.mxu0 0.0
        %2625 = vmatpush1.msra.mxu0 0.0
        %2626 = vmatprep.subr.mxu0 0.0
        %2627 = vmatpush1.msra.mxu0 0.0
        %2628 = vmatprep.subr.mxu0 0.0
        %2629 = vmatpush1.msra.mxu0 0.0
        %2630 = vmatprep.subr.mxu0 0.0
        %2631 = vmatpush1.msra.mxu0 0.0
        %2632 = vmatprep.subr.mxu0 0.0
        %2633 = vmatpush1.msra.mxu0 0.0
        %2634 = vmatprep.subr.mxu0 0.0
        %2635 = vmatpush1.msra.mxu0 0.0
        %2636 = vmatprep.subr.mxu0 0.0
        %2637 = vmatpush1.msra.mxu0 0.0
        %2638 = vmatprep.subr.mxu0 0.0
        %2639 = vmatpush1.msra.mxu0 0.0
        %2640 = vmatprep.subr.mxu0 0.0
        %2641 = vmatpush1.msra.mxu0 0.0
        %2642 = vmatprep.subr.mxu0 0.0
        %2643 = vmatpush1.msra.mxu0 0.0
        %2644 = vmatprep.subr.mxu0 0.0
        %2645 = vmatpush1.msra.mxu0 0.0
        %2646 = vmatprep.subr.mxu0 0.0
        %2647 = vmatpush1.msra.mxu0 0.0
        %2648 = vmatprep.subr.mxu0 0.0
        %2649 = vmatpush1.msra.mxu0 0.0
        %2650 = vmatprep.subr.mxu0 0.0
        %2651 = vmatpush1.msra.mxu0 0.0
        %2652 = vmatprep.subr.mxu0 0.0
        %2653 = vmatpush1.msra.mxu0 0.0
        %2654 = vmatprep.subr.mxu0 0.0
        %2655 = vmatpush1.msra.mxu0 0.0
        %2656 = vmatprep.subr.mxu0 0.0
        %2657 = vmatpush1.msra.mxu0 0.0
        %2658 = vmatprep.subr.mxu0 0.0
        %2659 = vmatpush1.msra.mxu0 0.0
        %2660 = vmatprep.subr.mxu0 0.0
        %2661 = vmatpush1.msra.mxu0 0.0
        %2662 = vmatprep.mubr.f32.mxu0 0.0
        %2663 = vmatmul.mubr.f32.gmra.mrb[0].mxu0 %v2472
        %v2664 = vpop.f32.mrb[0].mxu0
        %v2665 = vadd.f32 %v2468, %v2664
        %v2666 = vpop.f32.mrb[0].mxu0
        %2667 = vmatprep.mubr.f32.mxu0 0.0
        %2668 = vmatmul.mubr.f32.gmra.mrb[0].mxu0 %v2475
        %v2669 = vpop.f32.mrb[0].mxu0
        %v2670 = vadd.f32 %v2468, %v2669
        %v2671 = vpop.f32.mrb[0].mxu0
        %2672 = vmatprep.mubr.f32.mxu0 0.0
        %2673 = vmatmul.mubr.f32.gmra.mrb[0].mxu0 %v2478
        %v2674 = vpop.f32.mrb[0].mxu0
        %v2675 = vadd.f32 %v2468, %v2674
        %v2676 = vpop.f32.mrb[0].mxu0
        %2677 = vmatprep.mubr.f32.mxu0 0.0
        %2678 = vmatmul.mubr.f32.gmra.mrb[0].mxu0 %v2481
        %v2679 = vpop.f32.mrb[0].mxu0
        %v2680 = vadd.f32 %v2468, %v2679
        %v2681 = vpop.f32.mrb[0].mxu0
        %2682 = vmatprep.mubr.f32.mxu0 0.0
        %2683 = vmatmul.mubr.f32.gmra.mrb[0].mxu0 %v2484
        %v2684 = vpop.f32.mrb[0].mxu0
        %v2685 = vadd.f32 %v2468, %v2684
        %v2686 = vpop.f32.mrb[0].mxu0
        %2687 = vmatprep.mubr.f32.mxu0 0.0
        %2688 = vmatmul.mubr.f32.gmra.mrb[0].mxu0 %v2487
        %v2689 = vpop.f32.mrb[0].mxu0
        %v2690 = vadd.f32 %v2468, %v2689
        %v2691 = vpop.f32.mrb[0].mxu0
        %2692 = vmatprep.mubr.f32.mxu0 0.0
        %2693 = vmatmul.mubr.f32.gmra.mrb[0].mxu0 %v2490
        %v2694 = vpop.f32.mrb[0].mxu0
        %v2695 = vadd.f32 %v2468, %v2694
        %v2696 = vpop.f32.mrb[0].mxu0
        %2697 = vmatprep.mubr.f32.mxu0 0.0
        %2698 = vmatmul.mubr.f32.gmra.mrb[0].mxu0 %v2493
        %v2699 = vpop.f32.mrb[0].mxu0
        %v2700 = vadd.f32 %v2468, %v2699
        %v2701 = vpop.f32.mrb[0].mxu0
        %2702 = vmatprep.mubr.f32.mxu0 0.0
        %2703 = vmatmul.mubr.f32.gmra.mrb[0].mxu0 %v2496
        %v2704 = vpop.f32.mrb[0].mxu0
        %v2705 = vadd.f32 %v2468, %v2704
        %v2706 = vpop.f32.mrb[0].mxu0
        %2707 = vmatprep.mubr.f32.mxu0 0.0
        %2708 = vmatmul.mubr.f32.gmra.mrb[0].mxu0 %v2499
        %v2709 = vpop.f32.mrb[0].mxu0
        %v2710 = vadd.f32 %v2468, %v2709
        %v2711 = vpop.f32.mrb[0].mxu0
        %2712 = vmatprep.mubr.f32.mxu0 0.0
        %2713 = vmatmul.mubr.f32.gmra.mrb[0].mxu0 %v2502
        %v2714 = vpop.f32.mrb[0].mxu0
        %v2715 = vadd.f32 %v2468, %v2714
        %v2716 = vpop.f32.mrb[0].mxu0
        %2717 = vmatprep.mubr.f32.mxu0 0.0
        %2718 = vmatmul.mubr.f32.gmra.mrb[0].mxu0 %v2505
        %v2719 = vpop.f32.mrb[0].mxu0
        %v2720 = vadd.f32 %v2468, %v2719
        %v2721 = vpop.f32.mrb[0].mxu0
        %2722 = vmatprep.mubr.f32.mxu0 0.0
        %2723 = vmatmul.mubr.f32.gmra.mrb[0].mxu0 %v2508
        %v2724 = vpop.f32.mrb[0].mxu0
        %v2725 = vadd.f32 %v2468, %v2724
        %v2726 = vpop.f32.mrb[0].mxu0
        %2727 = vmatprep.mubr.f32.mxu0 0.0
        %2728 = vmatmul.mubr.f32.gmra.mrb[0].mxu0 %v2511
        %v2729 = vpop.f32.mrb[0].mxu0
        %v2730 = vadd.f32 %v2468, %v2729
        %v2731 = vpop.f32.mrb[0].mxu0
        %2732 = vmatprep.mubr.f32.mxu0 0.0
        %2733 = vmatmul.mubr.f32.gmra.mrb[0].mxu0 %v2514
        %v2734 = vpop.f32.mrb[0].mxu0
        %v2735 = vadd.f32 %v2468, %v2734
        %v2736 = vpop.f32.mrb[0].mxu0
        %2737 = vmatprep.mubr.f32.mxu0 0.0
        %2738 = vmatmul.mubr.f32.gmra.mrb[0].mxu0 %v2517
        %v2739 = vpop.f32.mrb[0].mxu0
        %v2740 = vadd.f32 %v2468, %v2739
        %v2741 = vpop.f32.mrb[0].mxu0
        %2742 = vmatprep.mubr.f32.mxu0 0.0
        %2743 = vmatmul.mubr.f32.gmra.mrb[0].mxu0 %v2520
        %v2744 = vpop.f32.mrb[0].mxu0
        %v2745 = vadd.f32 %v2468, %v2744
        %v2746 = vpop.f32.mrb[0].mxu0
        %2747 = vmatprep.mubr.f32.mxu0 0.0
        %2748 = vmatmul.mubr.f32.gmra.mrb[0].mxu0 %v2523
        %v2749 = vpop.f32.mrb[0].mxu0
        %v2750 = vadd.f32 %v2468, %v2749
        %v2751 = vpop.f32.mrb[0].mxu0
        %2752 = vmatprep.mubr.f32.mxu0 0.0
        %2753 = vmatmul.mubr.f32.gmra.mrb[0].mxu0 %v2526
        %v2754 = vpop.f32.mrb[0].mxu0
        %v2755 = vadd.f32 %v2468, %v2754
        %v2756 = vpop.f32.mrb[0].mxu0
        %2757 = vmatprep.mubr.f32.mxu0 0.0
        %2758 = vmatmul.mubr.f32.gmra.mrb[0].mxu0 %v2529
        %v2759 = vpop.f32.mrb[0].mxu0
        %v2760 = vadd.f32 %v2468, %v2759
        %v2761 = vpop.f32.mrb[0].mxu0
        %2762 = vmatprep.mubr.f32.mxu0 0.0
        %2763 = vmatmul.mubr.f32.gmra.mrb[0].mxu0 %v2532
        %v2764 = vpop.f32.mrb[0].mxu0
        %v2765 = vadd.f32 %v2468, %v2764
        %v2766 = vpop.f32.mrb[0].mxu0
        %2767 = vmatprep.mubr.f32.mxu0 0.0
        %2768 = vmatmul.mubr.f32.gmra.mrb[0].mxu0 %v2535
        %v2769 = vpop.f32.mrb[0].mxu0
        %v2770 = vadd.f32 %v2468, %v2769
        %v2771 = vpop.f32.mrb[0].mxu0
        %2772 = vmatprep.mubr.f32.mxu0 0.0
        %2773 = vmatmul.mubr.f32.gmra.mrb[0].mxu0 %v2538
        %v2774 = vpop.f32.mrb[0].mxu0
        %v2775 = vadd.f32 %v2468, %v2774
        %v2776 = vpop.f32.mrb[0].mxu0
        %2777 = vmatprep.mubr.f32.mxu0 0.0
        %2778 = vmatmul.mubr.f32.gmra.mrb[0].mxu0 %v2541
        %v2779 = vpop.f32.mrb[0].mxu0
        %v2780 = vadd.f32 %v2468, %v2779
        %v2781 = vpop.f32.mrb[0].mxu0
        %2782 = vmatprep.mubr.f32.mxu0 0.0
        %2783 = vmatmul.mubr.f32.gmra.mrb[0].mxu0 %v2544
        %v2784 = vpop.f32.mrb[0].mxu0
        %v2785 = vadd.f32 %v2468, %v2784
        %v2786 = vpop.f32.mrb[0].mxu0
        %2787 = vmatprep.mubr.f32.mxu0 0.0
        %2788 = vmatmul.mubr.f32.gmra.mrb[0].mxu0 %v2547
        %v2789 = vpop.f32.mrb[0].mxu0
        %v2790 = vadd.f32 %v2468, %v2789
        %v2791 = vpop.f32.mrb[0].mxu0
        %2792 = vmatprep.mubr.f32.mxu0 0.0
        %2793 = vmatmul.mubr.f32.gmra.mrb[0].mxu0 %v2550
        %v2794 = vpop.f32.mrb[0].mxu0
        %v2795 = vadd.f32 %v2468, %v2794
        %v2796 = vpop.f32.mrb[0].mxu0
        %2797 = vmatprep.mubr.f32.mxu0 0.0
        %2798 = vmatmul.mubr.f32.gmra.mrb[0].mxu0 %v2553
        %v2799 = vpop.f32.mrb[0].mxu0
        %v2800 = vadd.f32 %v2468, %v2799
        %v2801 = vpop.f32.mrb[0].mxu0
        %2802 = vmatprep.mubr.f32.mxu0 0.0
        %2803 = vmatmul.mubr.f32.gmra.mrb[0].mxu0 %v2556
        %v2804 = vpop.f32.mrb[0].mxu0
        %v2805 = vadd.f32 %v2468, %v2804
        %v2806 = vpop.f32.mrb[0].mxu0
        %2807 = vmatprep.mubr.f32.mxu0 0.0
        %2808 = vmatmul.mubr.f32.gmra.mrb[0].mxu0 %v2559
        %v2809 = vpop.f32.mrb[0].mxu0
        %v2810 = vadd.f32 %v2468, %v2809
        %v2811 = vpop.f32.mrb[0].mxu0
        %2812 = vmatprep.mubr.f32.mxu0 0.0
        %2813 = vmatmul.mubr.f32.gmra.mrb[0].mxu0 %v2562
        %v2814 = vpop.f32.mrb[0].mxu0
        %v2815 = vadd.f32 %v2468, %v2814
        %v2816 = vpop.f32.mrb[0].mxu0
        %2817 = vmatprep.mubr.f32.mxu0 0.0
        %2818 = vmatmul.mubr.f32.gmra.mrb[0].mxu0 %v2565
        %v2819 = vpop.f32.mrb[0].mxu0
        %v2820 = vadd.f32 %v2468, %v2819
        %v2821 = vpop.f32.mrb[0].mxu0
        %2822 = vmatprep.mubr.f32.mxu0 0.0
        %2823 = vmatmul.mubr.f32.gmra.mrb[0].mxu0 %v2568
        %v2824 = vpop.f32.mrb[0].mxu0
        %v2825 = vadd.f32 %v2468, %v2824
        %v2826 = vpop.f32.mrb[0].mxu0
        %2827 = vmatprep.mubr.f32.mxu0 0.0
        %2828 = vmatmul.mubr.f32.gmra.mrb[0].mxu0 %v2571
        %v2829 = vpop.f32.mrb[0].mxu0
        %v2830 = vadd.f32 %v2468, %v2829
        %v2831 = vpop.f32.mrb[0].mxu0
        %2832 = vmatprep.mubr.f32.mxu0 0.0
        %2833 = vmatmul.mubr.f32.gmra.mrb[0].mxu0 %v2574
        %v2834 = vpop.f32.mrb[0].mxu0
        %v2835 = vadd.f32 %v2468, %v2834
        %v2836 = vpop.f32.mrb[0].mxu0
        %2837 = vmatprep.mubr.f32.mxu0 0.0
        %2838 = vmatmul.mubr.f32.gmra.mrb[0].mxu0 %v2577
        %v2839 = vpop.f32.mrb[0].mxu0
        %v2840 = vadd.f32 %v2468, %v2839
        %v2841 = vpop.f32.mrb[0].mxu0
        %2842 = vmatprep.mubr.f32.mxu0 0.0
        %2843 = vmatmul.mubr.f32.gmra.mrb[0].mxu0 %v2580
        %v2844 = vpop.f32.mrb[0].mxu0
        %v2845 = vadd.f32 %v2468, %v2844
        %v2846 = vpop.f32.mrb[0].mxu0
        %2847 = vmatprep.mubr.f32.mxu0 0.0
        %2848 = vmatmul.mubr.f32.gmra.mrb[0].mxu0 %v2583
        %v2849 = vpop.f32.mrb[0].mxu0
        %v2850 = vadd.f32 %v2468, %v2849
        %v2851 = vpop.f32.mrb[0].mxu0
        %2852 = vmatprep.mubr.f32.mxu0 0.0
        %2853 = vmatmul.mubr.f32.gmra.mrb[0].mxu0 %v2586
        %v2854 = vpop.f32.mrb[0].mxu0
        %v2855 = vadd.f32 %v2468, %v2854
        %v2856 = vpop.f32.mrb[0].mxu0
        %2857 = vmatprep.mubr.f32.mxu0 0.0
        %2858 = vmatmul.mubr.f32.gmra.mrb[0].mxu0 %v2589
        %v2859 = vpop.f32.mrb[0].mxu0
        %v2860 = vadd.f32 %v2468, %v2859
        %v2861 = vpop.f32.mrb[0].mxu0
        %2862 = vmatprep.mubr.f32.mxu0 0.0
        %2863 = vmatmul.mubr.f32.gmra.mrb[0].mxu0 %v2592
        %v2864 = vpop.f32.mrb[0].mxu0
        %v2865 = vadd.f32 %v2468, %v2864
        %v2866 = vpop.f32.mrb[0].mxu0
        %2867 = vdwg.mxu0
        %2869 = vset.pattern.permute.xlu0 0
        %2870 = vperm.xlu0 %2869, %v304
        %v2871 = vpop.permute.xlu0 %2870
        %2874 = vset.pattern.permute.xlu0 0
        %2875 = vperm.xlu0 %2874, %v305
        %v2876 = vpop.permute.xlu0 %2875
        %2879 = vset.pattern.permute.xlu0 0
        %2880 = vperm.xlu0 %2879, %v306
        %v2881 = vpop.permute.xlu0 %2880
        %2884 = vset.pattern.permute.xlu0 0
        %2885 = vperm.xlu0 %2884, %v307
        %v2886 = vpop.permute.xlu0 %2885
        %2889 = vset.pattern.permute.xlu0 0
        %2890 = vperm.xlu0 %2889, %v308
        %v2891 = vpop.permute.xlu0 %2890
        %2894 = vset.pattern.permute.xlu0 0
        %2895 = vperm.xlu0 %2894, %v309
        %v2896 = vpop.permute.xlu0 %2895
        %2899 = vset.pattern.permute.xlu0 0
        %2900 = vperm.xlu0 %2899, %v310
        %v2901 = vpop.permute.xlu0 %2900
        %2904 = vset.pattern.permute.xlu0 0
        %2905 = vperm.xlu0 %2904, %v311
        %v2906 = vpop.permute.xlu0 %2905
        %2909 = vset.pattern.permute.xlu0 0
        %2910 = vperm.xlu0 %2909, %v312
        %v2911 = vpop.permute.xlu0 %2910
        %2914 = vset.pattern.permute.xlu0 0
        %2915 = vperm.xlu0 %2914, %v313
        %v2916 = vpop.permute.xlu0 %2915
        %2919 = vset.pattern.permute.xlu0 0
        %2920 = vperm.xlu0 %2919, %v314
        %v2921 = vpop.permute.xlu0 %2920
        %2924 = vset.pattern.permute.xlu0 0
        %2925 = vperm.xlu0 %2924, %v315
        %v2926 = vpop.permute.xlu0 %2925
        %2929 = vset.pattern.permute.xlu0 0
        %2930 = vperm.xlu0 %2929, %v316
        %v2931 = vpop.permute.xlu0 %2930
        %2934 = vset.pattern.permute.xlu0 0
        %2935 = vperm.xlu0 %2934, %v317
        %v2936 = vpop.permute.xlu0 %2935
        %2939 = vset.pattern.permute.xlu0 0
        %2940 = vperm.xlu0 %2939, %v318
        %v2941 = vpop.permute.xlu0 %2940
        %2944 = vset.pattern.permute.xlu0 0
        %2945 = vperm.xlu0 %2944, %v319
        %v2946 = vpop.permute.xlu0 %2945
        %2949 = vset.pattern.permute.xlu0 0
        %2950 = vperm.xlu0 %2949, %v320
        %v2951 = vpop.permute.xlu0 %2950
        %2954 = vset.pattern.permute.xlu0 0
        %2955 = vperm.xlu0 %2954, %v321
        %v2956 = vpop.permute.xlu0 %2955
        %2959 = vset.pattern.permute.xlu0 0
        %2960 = vperm.xlu0 %2959, %v322
        %v2961 = vpop.permute.xlu0 %2960
        %2964 = vset.pattern.permute.xlu0 0
        %2965 = vperm.xlu0 %2964, %v323
        %v2966 = vpop.permute.xlu0 %2965
        %2969 = vset.pattern.permute.xlu0 0
        %2970 = vperm.xlu0 %2969, %v324
        %v2971 = vpop.permute.xlu0 %2970
        %2974 = vset.pattern.permute.xlu0 0
        %2975 = vperm.xlu0 %2974, %v325
        %v2976 = vpop.permute.xlu0 %2975
        %2979 = vset.pattern.permute.xlu0 0
        %2980 = vperm.xlu0 %2979, %v326
        %v2981 = vpop.permute.xlu0 %2980
        %2984 = vset.pattern.permute.xlu0 0
        %2985 = vperm.xlu0 %2984, %v327
        %v2986 = vpop.permute.xlu0 %2985
        %2989 = vset.pattern.permute.xlu0 0
        %2990 = vperm.xlu0 %2989, %v328
        %v2991 = vpop.permute.xlu0 %2990
        %2994 = vset.pattern.permute.xlu0 0
        %2995 = vperm.xlu0 %2994, %v329
        %v2996 = vpop.permute.xlu0 %2995
        %2999 = vset.pattern.permute.xlu0 0
        %3000 = vperm.xlu0 %2999, %v330
        %v3001 = vpop.permute.xlu0 %3000
        %3004 = vset.pattern.permute.xlu0 0
        %3005 = vperm.xlu0 %3004, %v331
        %v3006 = vpop.permute.xlu0 %3005
        %3009 = vset.pattern.permute.xlu0 0
        %3010 = vperm.xlu0 %3009, %v332
        %v3011 = vpop.permute.xlu0 %3010
        %3014 = vset.pattern.permute.xlu0 0
        %3015 = vperm.xlu0 %3014, %v333
        %v3016 = vpop.permute.xlu0 %3015
        %3019 = vset.pattern.permute.xlu0 0
        %3020 = vperm.xlu0 %3019, %v334
        %v3021 = vpop.permute.xlu0 %3020
        %3024 = vset.pattern.permute.xlu0 0
        %3025 = vperm.xlu0 %3024, %v335
        %v3026 = vpop.permute.xlu0 %3025
        %3029 = vset.pattern.permute.xlu0 0
        %3030 = vperm.xlu0 %3029, %v336
        %v3031 = vpop.permute.xlu0 %3030
        %3034 = vset.pattern.permute.xlu0 0
        %3035 = vperm.xlu0 %3034, %v337
        %v3036 = vpop.permute.xlu0 %3035
        %3039 = vset.pattern.permute.xlu0 0
        %3040 = vperm.xlu0 %3039, %v338
        %v3041 = vpop.permute.xlu0 %3040
        %3044 = vset.pattern.permute.xlu0 0
        %3045 = vperm.xlu0 %3044, %v339
        %v3046 = vpop.permute.xlu0 %3045
        %3049 = vset.pattern.permute.xlu0 0
        %3050 = vperm.xlu0 %3049, %v340
        %v3051 = vpop.permute.xlu0 %3050
        %3054 = vset.pattern.permute.xlu0 0
        %3055 = vperm.xlu0 %3054, %v341
        %v3056 = vpop.permute.xlu0 %3055
        %3059 = vset.pattern.permute.xlu0 0
        %3060 = vperm.xlu0 %3059, %v342
        %v3061 = vpop.permute.xlu0 %3060
        %3064 = vset.pattern.permute.xlu0 0
        %3065 = vperm.xlu0 %3064, %v343
        %v3066 = vpop.permute.xlu0 %3065
        %3069 = vset.pattern.permute.xlu0 0
        %3070 = vperm.xlu0 %3069, %v344
        %v3071 = vpop.permute.xlu0 %3070
        %v3073 = vmul.f32 %v2665, %v2871
        %v3074 = vmul.f32 %v2670, %v2876
        %v3075 = vmul.f32 %v2675, %v2881
        %v3076 = vmul.f32 %v2680, %v2886
        %v3077 = vmul.f32 %v2685, %v2891
        %v3078 = vmul.f32 %v2690, %v2896
        %v3079 = vmul.f32 %v2695, %v2901
        %v3080 = vmul.f32 %v2700, %v2906
        %v3081 = vmul.f32 %v2705, %v2911
        %v3082 = vmul.f32 %v2710, %v2916
        %v3083 = vmul.f32 %v2715, %v2921
        %v3084 = vmul.f32 %v2720, %v2926
        %v3085 = vmul.f32 %v2725, %v2931
        %v3086 = vmul.f32 %v2730, %v2936
        %v3087 = vmul.f32 %v2735, %v2941
        %v3088 = vmul.f32 %v2740, %v2946
        %v3089 = vmul.f32 %v2745, %v2951
        %v3090 = vmul.f32 %v2750, %v2956
        %v3091 = vmul.f32 %v2755, %v2961
        %v3092 = vmul.f32 %v2760, %v2966
        %v3093 = vmul.f32 %v2765, %v2971
        %v3094 = vmul.f32 %v2770, %v2976
        %v3095 = vmul.f32 %v2775, %v2981
        %v3096 = vmul.f32 %v2780, %v2986
        %v3097 = vmul.f32 %v2785, %v2991
        %v3098 = vmul.f32 %v2790, %v2996
        %v3099 = vmul.f32 %v2795, %v3001
        %v3100 = vmul.f32 %v2800, %v3006
        %v3101 = vmul.f32 %v2805, %v3011
        %v3102 = vmul.f32 %v2810, %v3016
        %v3103 = vmul.f32 %v2815, %v3021
        %v3104 = vmul.f32 %v2820, %v3026
        %v3105 = vmul.f32 %v2825, %v3031
        %v3106 = vmul.f32 %v2830, %v3036
        %v3107 = vmul.f32 %v2835, %v3041
        %v3108 = vmul.f32 %v2840, %v3046
        %v3109 = vmul.f32 %v2845, %v3051
        %v3110 = vmul.f32 %v2850, %v3056
        %v3111 = vmul.f32 %v2855, %v3061
        %v3112 = vmul.f32 %v2860, %v3066
        %v3113 = vmul.f32 %v2865, %v3071
        %vm3114 = vcmask 130048
        %v3115 = vsel %vm3114, %v3073, 0.0
        %v3116 = vsel %vm3114, %v3074, 0.0
        %v3117 = vadd.f32 %v3115, %v3116
        %v3118 = vsel %vm3114, %v3075, 0.0
        %v3119 = vadd.f32 %v3117, %v3118
        %v3120 = vsel %vm3114, %v3076, 0.0
        %v3121 = vadd.f32 %v3119, %v3120
        %v3122 = vsel %vm3114, %v3077, 0.0
        %v3123 = vadd.f32 %v3121, %v3122
        %v3124 = vsel %vm3114, %v3078, 0.0
        %v3125 = vadd.f32 %v3123, %v3124
        %v3126 = vsel %vm3114, %v3079, 0.0
        %v3127 = vadd.f32 %v3125, %v3126
        %v3128 = vsel %vm3114, %v3080, 0.0
        %v3129 = vadd.f32 %v3127, %v3128
        %v3130 = vsel %vm3114, %v3081, 0.0
        %v3131 = vadd.f32 %v3129, %v3130
        %v3132 = vsel %vm3114, %v3082, 0.0
        %v3133 = vadd.f32 %v3131, %v3132
        %v3134 = vsel %vm3114, %v3083, 0.0
        %v3135 = vadd.f32 %v3133, %v3134
        %v3136 = vsel %vm3114, %v3084, 0.0
        %v3137 = vadd.f32 %v3135, %v3136
        %v3138 = vsel %vm3114, %v3085, 0.0
        %v3139 = vadd.f32 %v3137, %v3138
        %v3140 = vsel %vm3114, %v3086, 0.0
        %v3141 = vadd.f32 %v3139, %v3140
        %v3142 = vsel %vm3114, %v3087, 0.0
        %v3143 = vadd.f32 %v3141, %v3142
        %v3144 = vsel %vm3114, %v3088, 0.0
        %v3145 = vadd.f32 %v3143, %v3144
        %v3146 = vsel %vm3114, %v3089, 0.0
        %v3147 = vadd.f32 %v3145, %v3146
        %v3148 = vsel %vm3114, %v3090, 0.0
        %v3149 = vadd.f32 %v3147, %v3148
        %v3150 = vsel %vm3114, %v3091, 0.0
        %v3151 = vadd.f32 %v3149, %v3150
        %v3152 = vsel %vm3114, %v3092, 0.0
        %v3153 = vadd.f32 %v3151, %v3152
        %v3154 = vsel %vm3114, %v3093, 0.0
        %v3155 = vadd.f32 %v3153, %v3154
        %v3156 = vsel %vm3114, %v3094, 0.0
        %v3157 = vadd.f32 %v3155, %v3156
        %v3158 = vsel %vm3114, %v3095, 0.0
        %v3159 = vadd.f32 %v3157, %v3158
        %v3160 = vsel %vm3114, %v3096, 0.0
        %v3161 = vadd.f32 %v3159, %v3160
        %v3162 = vsel %vm3114, %v3097, 0.0
        %v3163 = vadd.f32 %v3161, %v3162
        %v3164 = vsel %vm3114, %v3098, 0.0
        %v3165 = vadd.f32 %v3163, %v3164
        %v3166 = vsel %vm3114, %v3099, 0.0
        %v3167 = vadd.f32 %v3165, %v3166
        %v3168 = vsel %vm3114, %v3100, 0.0
        %v3169 = vadd.f32 %v3167, %v3168
        %v3170 = vsel %vm3114, %v3101, 0.0
        %v3171 = vadd.f32 %v3169, %v3170
        %v3172 = vsel %vm3114, %v3102, 0.0
        %v3173 = vadd.f32 %v3171, %v3172
        %v3174 = vsel %vm3114, %v3103, 0.0
        %v3175 = vadd.f32 %v3173, %v3174
        %v3176 = vsel %vm3114, %v3104, 0.0
        %v3177 = vadd.f32 %v3175, %v3176
        %v3178 = vsel %vm3114, %v3105, 0.0
        %v3179 = vadd.f32 %v3177, %v3178
        %v3180 = vsel %vm3114, %v3106, 0.0
        %v3181 = vadd.f32 %v3179, %v3180
        %v3182 = vsel %vm3114, %v3107, 0.0
        %v3183 = vadd.f32 %v3181, %v3182
        %v3184 = vsel %vm3114, %v3108, 0.0
        %v3185 = vadd.f32 %v3183, %v3184
        %v3186 = vsel %vm3114, %v3109, 0.0
        %v3187 = vadd.f32 %v3185, %v3186
        %v3188 = vsel %vm3114, %v3110, 0.0
        %v3189 = vadd.f32 %v3187, %v3188
        %v3190 = vsel %vm3114, %v3111, 0.0
        %v3191 = vadd.f32 %v3189, %v3190
        %v3192 = vsel %vm3114, %v3112, 0.0
        %v3193 = vadd.f32 %v3191, %v3192
        %vm3194 = vcmask 125952
        %v3195 = vsel %vm3194, %v3113, 0.0
        %v3196 = vadd.f32 %v3193, %v3195
        %v3197 = vrot.slane %v3196, 4
        %v3198 = vadd.f32 %v3196, %v3197
        %v3199 = vrot.slane %v3198, 2
        %v3200 = vadd.f32 %v3198, %v3199
        %v3201 = vrot.slane %v3200, 1
        %v3202 = vadd.f32 %v3200, %v3201
        %v3204 = vsel %vm3114, %v3202, 0
        %3206 = vmatprep.subr.mxu0 0.0
        %3207 = vmatpush1.msra.mxu0 %v345
        %3208 = vmatprep.subr.mxu0 0.0
        %3209 = vmatpush1.msra.mxu0 %v346
        %3210 = vmatprep.subr.mxu0 0.0
        %3211 = vmatpush1.msra.mxu0 0.0
        %3212 = vmatprep.subr.mxu0 0.0
        %3213 = vmatpush1.msra.mxu0 0.0
        %3214 = vmatprep.subr.mxu0 0.0
        %3215 = vmatpush1.msra.mxu0 0.0
        %3216 = vmatprep.subr.mxu0 0.0
        %3217 = vmatpush1.msra.mxu0 0.0
        %3218 = vmatprep.subr.mxu0 0.0
        %3219 = vmatpush1.msra.mxu0 0.0
        %3220 = vmatprep.subr.mxu0 0.0
        %3221 = vmatpush1.msra.mxu0 0.0
        %3222 = vmatprep.subr.mxu0 0.0
        %3223 = vmatpush1.msra.mxu0 0.0
        %3224 = vmatprep.subr.mxu0 0.0
        %3225 = vmatpush1.msra.mxu0 0.0
        %3226 = vmatprep.subr.mxu0 0.0
        %3227 = vmatpush1.msra.mxu0 0.0
        %3228 = vmatprep.subr.mxu0 0.0
        %3229 = vmatpush1.msra.mxu0 0.0
        %3230 = vmatprep.subr.mxu0 0.0
        %3231 = vmatpush1.msra.mxu0 0.0
        %3232 = vmatprep.subr.mxu0 0.0
        %3233 = vmatpush1.msra.mxu0 0.0
        %3234 = vmatprep.subr.mxu0 0.0
        %3235 = vmatpush1.msra.mxu0 0.0
        %3236 = vmatprep.subr.mxu0 0.0
        %3237 = vmatpush1.msra.mxu0 0.0
        %3238 = vmatprep.subr.mxu0 0.0
        %3239 = vmatpush1.msra.mxu0 0.0
        %3240 = vmatprep.subr.mxu0 0.0
        %3241 = vmatpush1.msra.mxu0 0.0
        %3242 = vmatprep.subr.mxu0 0.0
        %3243 = vmatpush1.msra.mxu0 0.0
        %3244 = vmatprep.subr.mxu0 0.0
        %3245 = vmatpush1.msra.mxu0 0.0
        %3246 = vmatprep.subr.mxu0 0.0
        %3247 = vmatpush1.msra.mxu0 0.0
        %3248 = vmatprep.subr.mxu0 0.0
        %3249 = vmatpush1.msra.mxu0 0.0
        %3250 = vmatprep.subr.mxu0 0.0
        %3251 = vmatpush1.msra.mxu0 0.0
        %3252 = vmatprep.subr.mxu0 0.0
        %3253 = vmatpush1.msra.mxu0 0.0
        %3254 = vmatprep.subr.mxu0 0.0
        %3255 = vmatpush1.msra.mxu0 0.0
        %3256 = vmatprep.subr.mxu0 0.0
        %3257 = vmatpush1.msra.mxu0 0.0
        %3258 = vmatprep.subr.mxu0 0.0
        %3259 = vmatpush1.msra.mxu0 0.0
        %3260 = vmatprep.subr.mxu0 0.0
        %3261 = vmatpush1.msra.mxu0 0.0
        %3262 = vmatprep.subr.mxu0 0.0
        %3263 = vmatpush1.msra.mxu0 0.0
        %3264 = vmatprep.subr.mxu0 0.0
        %3265 = vmatpush1.msra.mxu0 0.0
        %3266 = vmatprep.subr.mxu0 0.0
        %3267 = vmatpush1.msra.mxu0 0.0
        %3268 = vmatprep.subr.mxu0 0.0
        %3269 = vmatpush1.msra.mxu0 0.0
        %3270 = vmatprep.mubr.f32.mxu0 0.0
        %3271 = vmatmul.mubr.f32.gmra.mrb[0].mxu0 %v3204
        %v3272 = vpop.f32.mrb[0].mxu0
        %v3273 = vadd.f32 0.0, %v3272
        %v3274 = vpop.f32.mrb[0].mxu0
        %3275 = vdwg.mxu0
        %v3276 = vlaneseq
        %v3277 = vshrl.u32 %v3276, 7
        %v3278 = vsub.s32 0, %v3277
        %v3279 = vrot.slane %v3273, %v3278
        %v3280 = vsub.f32 %v2665, %v3279
        %v3281 = vsub.f32 %v2670, %v3279
        %v3282 = vsub.f32 %v2675, %v3279
        %v3283 = vsub.f32 %v2680, %v3279
        %v3284 = vsub.f32 %v2685, %v3279
        %v3285 = vsub.f32 %v2690, %v3279
        %v3286 = vsub.f32 %v2695, %v3279
        %v3287 = vsub.f32 %v2700, %v3279
        %v3288 = vsub.f32 %v2705, %v3279
        %v3289 = vsub.f32 %v2710, %v3279
        %v3290 = vsub.f32 %v2715, %v3279
        %v3291 = vsub.f32 %v2720, %v3279
        %v3292 = vsub.f32 %v2725, %v3279
        %v3293 = vsub.f32 %v2730, %v3279
        %v3294 = vsub.f32 %v2735, %v3279
        %v3295 = vsub.f32 %v2740, %v3279
        %v3296 = vsub.f32 %v2745, %v3279
        %v3297 = vsub.f32 %v2750, %v3279
        %v3298 = vsub.f32 %v2755, %v3279
        %v3299 = vsub.f32 %v2760, %v3279
        %v3300 = vsub.f32 %v2765, %v3279
        %v3301 = vsub.f32 %v2770, %v3279
        %v3302 = vsub.f32 %v2775, %v3279
        %v3303 = vsub.f32 %v2780, %v3279
        %v3304 = vsub.f32 %v2785, %v3279
        %v3305 = vsub.f32 %v2790, %v3279
        %v3306 = vsub.f32 %v2795, %v3279
        %v3307 = vsub.f32 %v2800, %v3279
        %v3308 = vsub.f32 %v2805, %v3279
        %v3309 = vsub.f32 %v2810, %v3279
        %v3310 = vsub.f32 %v2815, %v3279
        %v3311 = vsub.f32 %v2820, %v3279
        %v3312 = vsub.f32 %v2825, %v3279
        %v3313 = vsub.f32 %v2830, %v3279
        %v3314 = vsub.f32 %v2835, %v3279
        %v3315 = vsub.f32 %v2840, %v3279
        %v3316 = vsub.f32 %v2845, %v3279
        %v3317 = vsub.f32 %v2850, %v3279
        %v3318 = vsub.f32 %v2855, %v3279
        %v3319 = vsub.f32 %v2860, %v3279
        %v3320 = vsub.f32 %v2865, %v3279
        %v3321 = vmul.f32 %v3280, %v2871
        %v3322 = vmul.f32 %v3281, %v2876
        %v3323 = vmul.f32 %v3282, %v2881
        %v3324 = vmul.f32 %v3283, %v2886
        %v3325 = vmul.f32 %v3284, %v2891
        %v3326 = vmul.f32 %v3285, %v2896
        %v3327 = vmul.f32 %v3286, %v2901
        %v3328 = vmul.f32 %v3287, %v2906
        %v3329 = vmul.f32 %v3288, %v2911
        %v3330 = vmul.f32 %v3289, %v2916
        %v3331 = vmul.f32 %v3290, %v2921
        %v3332 = vmul.f32 %v3291, %v2926
        %v3333 = vmul.f32 %v3292, %v2931
        %v3334 = vmul.f32 %v3293, %v2936
        %v3335 = vmul.f32 %v3294, %v2941
        %v3336 = vmul.f32 %v3295, %v2946
        %v3337 = vmul.f32 %v3296, %v2951
        %v3338 = vmul.f32 %v3297, %v2956
        %v3339 = vmul.f32 %v3298, %v2961
        %v3340 = vmul.f32 %v3299, %v2966
        %v3341 = vmul.f32 %v3300, %v2971
        %v3342 = vmul.f32 %v3301, %v2976
        %v3343 = vmul.f32 %v3302, %v2981
        %v3344 = vmul.f32 %v3303, %v2986
        %v3345 = vmul.f32 %v3304, %v2991
        %v3346 = vmul.f32 %v3305, %v2996
        %v3347 = vmul.f32 %v3306, %v3001
        %v3348 = vmul.f32 %v3307, %v3006
        %v3349 = vmul.f32 %v3308, %v3011
        %v3350 = vmul.f32 %v3309, %v3016
        %v3351 = vmul.f32 %v3310, %v3021
        %v3352 = vmul.f32 %v3311, %v3026
        %v3353 = vmul.f32 %v3312, %v3031
        %v3354 = vmul.f32 %v3313, %v3036
        %v3355 = vmul.f32 %v3314, %v3041
        %v3356 = vmul.f32 %v3315, %v3046
        %v3357 = vmul.f32 %v3316, %v3051
        %v3358 = vmul.f32 %v3317, %v3056
        %v3359 = vmul.f32 %v3318, %v3061
        %v3360 = vmul.f32 %v3319, %v3066
        %v3361 = vmul.f32 %v3320, %v3071
        %v3362 = vmul.f32 %v3321, %v3321
        %v3363 = vmul.f32 %v3322, %v3322
        %v3364 = vmul.f32 %v3323, %v3323
        %v3365 = vmul.f32 %v3324, %v3324
        %v3366 = vmul.f32 %v3325, %v3325
        %v3367 = vmul.f32 %v3326, %v3326
        %v3368 = vmul.f32 %v3327, %v3327
        %v3369 = vmul.f32 %v3328, %v3328
        %v3370 = vmul.f32 %v3329, %v3329
        %v3371 = vmul.f32 %v3330, %v3330
        %v3372 = vmul.f32 %v3331, %v3331
        %v3373 = vmul.f32 %v3332, %v3332
        %v3374 = vmul.f32 %v3333, %v3333
        %v3375 = vmul.f32 %v3334, %v3334
        %v3376 = vmul.f32 %v3335, %v3335
        %v3377 = vmul.f32 %v3336, %v3336
        %v3378 = vmul.f32 %v3337, %v3337
        %v3379 = vmul.f32 %v3338, %v3338
        %v3380 = vmul.f32 %v3339, %v3339
        %v3381 = vmul.f32 %v3340, %v3340
        %v3382 = vmul.f32 %v3341, %v3341
        %v3383 = vmul.f32 %v3342, %v3342
        %v3384 = vmul.f32 %v3343, %v3343
        %v3385 = vmul.f32 %v3344, %v3344
        %v3386 = vmul.f32 %v3345, %v3345
        %v3387 = vmul.f32 %v3346, %v3346
        %v3388 = vmul.f32 %v3347, %v3347
        %v3389 = vmul.f32 %v3348, %v3348
        %v3390 = vmul.f32 %v3349, %v3349
        %v3391 = vmul.f32 %v3350, %v3350
        %v3392 = vmul.f32 %v3351, %v3351
        %v3393 = vmul.f32 %v3352, %v3352
        %v3394 = vmul.f32 %v3353, %v3353
        %v3395 = vmul.f32 %v3354, %v3354
        %v3396 = vmul.f32 %v3355, %v3355
        %v3397 = vmul.f32 %v3356, %v3356
        %v3398 = vmul.f32 %v3357, %v3357
        %v3399 = vmul.f32 %v3358, %v3358
        %v3400 = vmul.f32 %v3359, %v3359
        %v3401 = vmul.f32 %v3360, %v3360
        %v3402 = vmul.f32 %v3361, %v3361
        %v3403 = vsel %vm3114, %v3362, 0.0
        %v3404 = vsel %vm3114, %v3363, 0.0
        %v3405 = vadd.f32 %v3403, %v3404
        %v3406 = vsel %vm3114, %v3364, 0.0
        %v3407 = vadd.f32 %v3405, %v3406
        %v3408 = vsel %vm3114, %v3365, 0.0
        %v3409 = vadd.f32 %v3407, %v3408
        %v3410 = vsel %vm3114, %v3366, 0.0
        %v3411 = vadd.f32 %v3409, %v3410
        %v3412 = vsel %vm3114, %v3367, 0.0
        %v3413 = vadd.f32 %v3411, %v3412
        %v3414 = vsel %vm3114, %v3368, 0.0
        %v3415 = vadd.f32 %v3413, %v3414
        %v3416 = vsel %vm3114, %v3369, 0.0
        %v3417 = vadd.f32 %v3415, %v3416
        %v3418 = vsel %vm3114, %v3370, 0.0
        %v3419 = vadd.f32 %v3417, %v3418
        %v3420 = vsel %vm3114, %v3371, 0.0
        %v3421 = vadd.f32 %v3419, %v3420
        %v3422 = vsel %vm3114, %v3372, 0.0
        %v3423 = vadd.f32 %v3421, %v3422
        %v3424 = vsel %vm3114, %v3373, 0.0
        %v3425 = vadd.f32 %v3423, %v3424
        %v3426 = vsel %vm3114, %v3374, 0.0
        %v3427 = vadd.f32 %v3425, %v3426
        %v3428 = vsel %vm3114, %v3375, 0.0
        %v3429 = vadd.f32 %v3427, %v3428
        %v3430 = vsel %vm3114, %v3376, 0.0
        %v3431 = vadd.f32 %v3429, %v3430
        %v3432 = vsel %vm3114, %v3377, 0.0
        %v3433 = vadd.f32 %v3431, %v3432
        %v3434 = vsel %vm3114, %v3378, 0.0
        %v3435 = vadd.f32 %v3433, %v3434
        %v3436 = vsel %vm3114, %v3379, 0.0
        %v3437 = vadd.f32 %v3435, %v3436
        %v3438 = vsel %vm3114, %v3380, 0.0
        %v3439 = vadd.f32 %v3437, %v3438
        %v3440 = vsel %vm3114, %v3381, 0.0
        %v3441 = vadd.f32 %v3439, %v3440
        %v3442 = vsel %vm3114, %v3382, 0.0
        %v3443 = vadd.f32 %v3441, %v3442
        %v3444 = vsel %vm3114, %v3383, 0.0
        %v3445 = vadd.f32 %v3443, %v3444
        %v3446 = vsel %vm3114, %v3384, 0.0
        %v3447 = vadd.f32 %v3445, %v3446
        %v3448 = vsel %vm3114, %v3385, 0.0
        %v3449 = vadd.f32 %v3447, %v3448
        %v3450 = vsel %vm3114, %v3386, 0.0
        %v3451 = vadd.f32 %v3449, %v3450
        %v3452 = vsel %vm3114, %v3387, 0.0
        %v3453 = vadd.f32 %v3451, %v3452
        %v3454 = vsel %vm3114, %v3388, 0.0
        %v3455 = vadd.f32 %v3453, %v3454
        %v3456 = vsel %vm3114, %v3389, 0.0
        %v3457 = vadd.f32 %v3455, %v3456
        %v3458 = vsel %vm3114, %v3390, 0.0
        %v3459 = vadd.f32 %v3457, %v3458
        %v3460 = vsel %vm3114, %v3391, 0.0
        %v3461 = vadd.f32 %v3459, %v3460
        %v3462 = vsel %vm3114, %v3392, 0.0
        %v3463 = vadd.f32 %v3461, %v3462
        %v3464 = vsel %vm3114, %v3393, 0.0
        %v3465 = vadd.f32 %v3463, %v3464
        %v3466 = vsel %vm3114, %v3394, 0.0
        %v3467 = vadd.f32 %v3465, %v3466
        %v3468 = vsel %vm3114, %v3395, 0.0
        %v3469 = vadd.f32 %v3467, %v3468
        %v3470 = vsel %vm3114, %v3396, 0.0
        %v3471 = vadd.f32 %v3469, %v3470
        %v3472 = vsel %vm3114, %v3397, 0.0
        %v3473 = vadd.f32 %v3471, %v3472
        %v3474 = vsel %vm3114, %v3398, 0.0
        %v3475 = vadd.f32 %v3473, %v3474
        %v3476 = vsel %vm3114, %v3399, 0.0
        %v3477 = vadd.f32 %v3475, %v3476
        %v3478 = vsel %vm3114, %v3400, 0.0
        %v3479 = vadd.f32 %v3477, %v3478
        %v3480 = vsel %vm3114, %v3401, 0.0
        %v3481 = vadd.f32 %v3479, %v3480
        %v3482 = vsel %vm3194, %v3402, 0.0
        %v3483 = vadd.f32 %v3481, %v3482
        %v3484 = vrot.slane %v3483, 4
        %v3485 = vadd.f32 %v3483, %v3484
        %v3486 = vrot.slane %v3485, 2
        %v3487 = vadd.f32 %v3485, %v3486
        %v3488 = vrot.slane %v3487, 1
        %v3489 = vadd.f32 %v3487, %v3488
        %v3491 = vsel %vm3114, %v3489, 0
        %3493 = vmatprep.subr.mxu0 0.0
        %3494 = vmatpush1.msra.mxu0 %v345
        %3495 = vmatprep.subr.mxu0 0.0
        %3496 = vmatpush1.msra.mxu0 %v346
        %3497 = vmatprep.subr.mxu0 0.0
        %3498 = vmatpush1.msra.mxu0 0.0
        %3499 = vmatprep.subr.mxu0 0.0
        %3500 = vmatpush1.msra.mxu0 0.0
        %3501 = vmatprep.subr.mxu0 0.0
        %3502 = vmatpush1.msra.mxu0 0.0
        %3503 = vmatprep.subr.mxu0 0.0
        %3504 = vmatpush1.msra.mxu0 0.0
        %3505 = vmatprep.subr.mxu0 0.0
        %3506 = vmatpush1.msra.mxu0 0.0
        %3507 = vmatprep.subr.mxu0 0.0
        %3508 = vmatpush1.msra.mxu0 0.0
        %3509 = vmatprep.subr.mxu0 0.0
        %3510 = vmatpush1.msra.mxu0 0.0
        %3511 = vmatprep.subr.mxu0 0.0
        %3512 = vmatpush1.msra.mxu0 0.0
        %3513 = vmatprep.subr.mxu0 0.0
        %3514 = vmatpush1.msra.mxu0 0.0
        %3515 = vmatprep.subr.mxu0 0.0
        %3516 = vmatpush1.msra.mxu0 0.0
        %3517 = vmatprep.subr.mxu0 0.0
        %3518 = vmatpush1.msra.mxu0 0.0
        %3519 = vmatprep.subr.mxu0 0.0
        %3520 = vmatpush1.msra.mxu0 0.0
        %3521 = vmatprep.subr.mxu0 0.0
        %3522 = vmatpush1.msra.mxu0 0.0
        %3523 = vmatprep.subr.mxu0 0.0
        %3524 = vmatpush1.msra.mxu0 0.0
        %3525 = vmatprep.subr.mxu0 0.0
        %3526 = vmatpush1.msra.mxu0 0.0
        %3527 = vmatprep.subr.mxu0 0.0
        %3528 = vmatpush1.msra.mxu0 0.0
        %3529 = vmatprep.subr.mxu0 0.0
        %3530 = vmatpush1.msra.mxu0 0.0
        %3531 = vmatprep.subr.mxu0 0.0
        %3532 = vmatpush1.msra.mxu0 0.0
        %3533 = vmatprep.subr.mxu0 0.0
        %3534 = vmatpush1.msra.mxu0 0.0
        %3535 = vmatprep.subr.mxu0 0.0
        %3536 = vmatpush1.msra.mxu0 0.0
        %3537 = vmatprep.subr.mxu0 0.0
        %3538 = vmatpush1.msra.mxu0 0.0
        %3539 = vmatprep.subr.mxu0 0.0
        %3540 = vmatpush1.msra.mxu0 0.0
        %3541 = vmatprep.subr.mxu0 0.0
        %3542 = vmatpush1.msra.mxu0 0.0
        %3543 = vmatprep.subr.mxu0 0.0
        %3544 = vmatpush1.msra.mxu0 0.0
        %3545 = vmatprep.subr.mxu0 0.0
        %3546 = vmatpush1.msra.mxu0 0.0
        %3547 = vmatprep.subr.mxu0 0.0
        %3548 = vmatpush1.msra.mxu0 0.0
        %3549 = vmatprep.subr.mxu0 0.0
        %3550 = vmatpush1.msra.mxu0 0.0
        %3551 = vmatprep.subr.mxu0 0.0
        %3552 = vmatpush1.msra.mxu0 0.0
        %3553 = vmatprep.subr.mxu0 0.0
        %3554 = vmatpush1.msra.mxu0 0.0
        %3555 = vmatprep.subr.mxu0 0.0
        %3556 = vmatpush1.msra.mxu0 0.0
        %3557 = vmatprep.mubr.f32.mxu0 0.0
        %3558 = vmatmul.mubr.f32.gmra.mrb[0].mxu0 %v3491
        %v3559 = vpop.f32.mrb[0].mxu0
        %v3560 = vadd.f32 1e-05, %v3559
        %v3561 = vpop.f32.mrb[0].mxu0
        %3562 = vdwg.mxu0
        %v3563 = vrsqrt.pop %v3560
        %v3564 = vmul.f32 %v3563, %v353
        %v3565 = vlaneseq
        %v3566 = vshrl.u32 %v3565, 7
        %v3567 = vsub.s32 0, %v3566
        %v3568 = vrot.slane %v3564, %v3567
        %v3569 = vmul.f32 %v3321, %v3568
        %v3570 = vmul.f32 %v3322, %v3568
        %v3571 = vmul.f32 %v3323, %v3568
        %v3572 = vmul.f32 %v3324, %v3568
        %v3573 = vmul.f32 %v3325, %v3568
        %v3574 = vmul.f32 %v3326, %v3568
        %v3575 = vmul.f32 %v3327, %v3568
        %v3576 = vmul.f32 %v3328, %v3568
        %v3577 = vmul.f32 %v3329, %v3568
        %v3578 = vmul.f32 %v3330, %v3568
        %v3579 = vmul.f32 %v3331, %v3568
        %v3580 = vmul.f32 %v3332, %v3568
        %v3581 = vmul.f32 %v3333, %v3568
        %v3582 = vmul.f32 %v3334, %v3568
        %v3583 = vmul.f32 %v3335, %v3568
        %v3584 = vmul.f32 %v3336, %v3568
        %v3585 = vmul.f32 %v3337, %v3568
        %v3586 = vmul.f32 %v3338, %v3568
        %v3587 = vmul.f32 %v3339, %v3568
        %v3588 = vmul.f32 %v3340, %v3568
        %v3589 = vmul.f32 %v3341, %v3568
        %v3590 = vmul.f32 %v3342, %v3568
        %v3591 = vmul.f32 %v3343, %v3568
        %v3592 = vmul.f32 %v3344, %v3568
        %v3593 = vmul.f32 %v3345, %v3568
        %v3594 = vmul.f32 %v3346, %v3568
        %v3595 = vmul.f32 %v3347, %v3568
        %v3596 = vmul.f32 %v3348, %v3568
        %v3597 = vmul.f32 %v3349, %v3568
        %v3598 = vmul.f32 %v3350, %v3568
        %v3599 = vmul.f32 %v3351, %v3568
        %v3600 = vmul.f32 %v3352, %v3568
        %v3601 = vmul.f32 %v3353, %v3568
        %v3602 = vmul.f32 %v3354, %v3568
        %v3603 = vmul.f32 %v3355, %v3568
        %v3604 = vmul.f32 %v3356, %v3568
        %v3605 = vmul.f32 %v3357, %v3568
        %v3606 = vmul.f32 %v3358, %v3568
        %v3607 = vmul.f32 %v3359, %v3568
        %v3608 = vmul.f32 %v3360, %v3568
        %v3609 = vmul.f32 %v3361, %v3568
        %v3611 = vlaneseq
        %v3612 = vshrl.u32 %v3611, 7
        %v3613 = vsub.s32 0, %v3612
        %v3614 = vrot.slane %v354, %v3613
        %v3616 = vadd.f32 %v3569, %v3614
        %v3617 = vadd.f32 %v3570, %v3614
        %v3618 = vadd.f32 %v3571, %v3614
        %v3619 = vadd.f32 %v3572, %v3614
        %v3620 = vadd.f32 %v3573, %v3614
        %v3621 = vadd.f32 %v3574, %v3614
        %v3622 = vadd.f32 %v3575, %v3614
        %v3623 = vadd.f32 %v3576, %v3614
        %v3624 = vadd.f32 %v3577, %v3614
        %v3625 = vadd.f32 %v3578, %v3614
        %v3626 = vadd.f32 %v3579, %v3614
        %v3627 = vadd.f32 %v3580, %v3614
        %v3628 = vadd.f32 %v3581, %v3614
        %v3629 = vadd.f32 %v3582, %v3614
        %v3630 = vadd.f32 %v3583, %v3614
        %v3631 = vadd.f32 %v3584, %v3614
        %v3632 = vadd.f32 %v3585, %v3614
        %v3633 = vadd.f32 %v3586, %v3614
        %v3634 = vadd.f32 %v3587, %v3614
        %v3635 = vadd.f32 %v3588, %v3614
        %v3636 = vadd.f32 %v3589, %v3614
        %v3637 = vadd.f32 %v3590, %v3614
        %v3638 = vadd.f32 %v3591, %v3614
        %v3639 = vadd.f32 %v3592, %v3614
        %v3640 = vadd.f32 %v3593, %v3614
        %v3641 = vadd.f32 %v3594, %v3614
        %v3642 = vadd.f32 %v3595, %v3614
        %v3643 = vadd.f32 %v3596, %v3614
        %v3644 = vadd.f32 %v3597, %v3614
        %v3645 = vadd.f32 %v3598, %v3614
        %v3646 = vadd.f32 %v3599, %v3614
        %v3647 = vadd.f32 %v3600, %v3614
        %v3648 = vadd.f32 %v3601, %v3614
        %v3649 = vadd.f32 %v3602, %v3614
        %v3650 = vadd.f32 %v3603, %v3614
        %v3651 = vadd.f32 %v3604, %v3614
        %v3652 = vadd.f32 %v3605, %v3614
        %v3653 = vadd.f32 %v3606, %v3614
        %v3654 = vadd.f32 %v3607, %v3614
        %v3655 = vadd.f32 %v3608, %v3614
        %v3656 = vadd.f32 %v3609, %v3614
        %v3657 = vmax.f32 %v3616, 0.0
        %v3658 = vmax.f32 %v3617, 0.0
        %v3659 = vmax.f32 %v3618, 0.0
        %v3660 = vmax.f32 %v3619, 0.0
        %v3661 = vmax.f32 %v3620, 0.0
        %v3662 = vmax.f32 %v3621, 0.0
        %v3663 = vmax.f32 %v3622, 0.0
        %v3664 = vmax.f32 %v3623, 0.0
        %v3665 = vmax.f32 %v3624, 0.0
        %v3666 = vmax.f32 %v3625, 0.0
        %v3667 = vmax.f32 %v3626, 0.0
        %v3668 = vmax.f32 %v3627, 0.0
        %v3669 = vmax.f32 %v3628, 0.0
        %v3670 = vmax.f32 %v3629, 0.0
        %v3671 = vmax.f32 %v3630, 0.0
        %v3672 = vmax.f32 %v3631, 0.0
        %v3673 = vmax.f32 %v3632, 0.0
        %v3674 = vmax.f32 %v3633, 0.0
        %v3675 = vmax.f32 %v3634, 0.0
        %v3676 = vmax.f32 %v3635, 0.0
        %v3677 = vmax.f32 %v3636, 0.0
        %v3678 = vmax.f32 %v3637, 0.0
        %v3679 = vmax.f32 %v3638, 0.0
        %v3680 = vmax.f32 %v3639, 0.0
        %v3681 = vmax.f32 %v3640, 0.0
        %v3682 = vmax.f32 %v3641, 0.0
        %v3683 = vmax.f32 %v3642, 0.0
        %v3684 = vmax.f32 %v3643, 0.0
        %v3685 = vmax.f32 %v3644, 0.0
        %v3686 = vmax.f32 %v3645, 0.0
        %v3687 = vmax.f32 %v3646, 0.0
        %v3688 = vmax.f32 %v3647, 0.0
        %v3689 = vmax.f32 %v3648, 0.0
        %v3690 = vmax.f32 %v3649, 0.0
        %v3691 = vmax.f32 %v3650, 0.0
        %v3692 = vmax.f32 %v3651, 0.0
        %v3693 = vmax.f32 %v3652, 0.0
        %v3694 = vmax.f32 %v3653, 0.0
        %v3695 = vmax.f32 %v3654, 0.0
        %v3696 = vmax.f32 %v3655, 0.0
        %v3697 = vmax.f32 %v3656, 0.0
        %3698 = vst.msk [vmem:[#allocation2] sm:$0xff] %vm3114, 0.0
        %3699 = vst.msk [vmem:[#allocation2 + $0x8] sm:$0xff] %vm3114, 0.0
        %3700 = vst.msk [vmem:[#allocation2 + $0x10] sm:$0xff] %vm3114, 0.0
        %v3701 = vmul.f32 %v3657, %v2871
        %v3702 = vmul.f32 %v3658, %v2876
        %v3703 = vmul.f32 %v3659, %v2881
        %v3704 = vmul.f32 %v3660, %v2886
        %v3705 = vmul.f32 %v3661, %v2891
        %v3706 = vmul.f32 %v3662, %v2896
        %v3707 = vmul.f32 %v3663, %v2901
        %v3708 = vmul.f32 %v3664, %v2906
        %v3709 = vmul.f32 %v3665, %v2911
        %v3710 = vmul.f32 %v3666, %v2916
        %v3711 = vmul.f32 %v3667, %v2921
        %v3712 = vmul.f32 %v3668, %v2926
        %v3713 = vmul.f32 %v3669, %v2931
        %v3714 = vmul.f32 %v3670, %v2936
        %v3715 = vmul.f32 %v3671, %v2941
        %v3716 = vmul.f32 %v3672, %v2946
        %v3717 = vmul.f32 %v3673, %v2951
        %v3718 = vmul.f32 %v3674, %v2956
        %v3719 = vmul.f32 %v3675, %v2961
        %v3720 = vmul.f32 %v3676, %v2966
        %v3721 = vmul.f32 %v3677, %v2971
        %v3722 = vmul.f32 %v3678, %v2976
        %v3723 = vmul.f32 %v3679, %v2981
        %v3724 = vmul.f32 %v3680, %v2986
        %v3725 = vmul.f32 %v3681, %v2991
        %v3726 = vmul.f32 %v3682, %v2996
        %v3727 = vmul.f32 %v3683, %v3001
        %v3728 = vmul.f32 %v3684, %v3006
        %v3729 = vmul.f32 %v3685, %v3011
        %v3730 = vmul.f32 %v3686, %v3016
        %v3731 = vmul.f32 %v3687, %v3021
        %v3732 = vmul.f32 %v3688, %v3026
        %v3733 = vmul.f32 %v3689, %v3031
        %v3734 = vmul.f32 %v3690, %v3036
        %v3735 = vmul.f32 %v3691, %v3041
        %v3736 = vmul.f32 %v3692, %v3046
        %v3737 = vmul.f32 %v3693, %v3051
        %v3738 = vmul.f32 %v3694, %v3056
        %v3739 = vmul.f32 %v3695, %v3061
        %v3740 = vmul.f32 %v3696, %v3066
        %v3741 = vmul.f32 %v3697, %v3071
        %3742 = vst.msk [vmem:[#allocation2 + $0x18] sm:$0xff] %vm3114, %v3701
        %3743 = vst.msk [vmem:[#allocation2 + $0x20] sm:$0xff] %vm3114, %v3702
        %3744 = vst.msk [vmem:[#allocation2 + $0x28] sm:$0xff] %vm3114, %v3703
        %3745 = vst.msk [vmem:[#allocation2 + $0x30] sm:$0xff] %vm3114, %v3704
        %3746 = vst.msk [vmem:[#allocation2 + $0x38] sm:$0xff] %vm3114, %v3705
        %3747 = vst.msk [vmem:[#allocation2 + $0x40] sm:$0xff] %vm3114, %v3706
        %3748 = vst.msk [vmem:[#allocation2 + $0x48] sm:$0xff] %vm3114, %v3707
        %3749 = vst.msk [vmem:[#allocation2 + $0x50] sm:$0xff] %vm3114, %v3708
        %3750 = vst.msk [vmem:[#allocation2 + $0x58] sm:$0xff] %vm3114, %v3709
        %3751 = vst.msk [vmem:[#allocation2 + $0x60] sm:$0xff] %vm3114, %v3710
        %3752 = vst.msk [vmem:[#allocation2 + $0x68] sm:$0xff] %vm3114, %v3711
        %3753 = vst.msk [vmem:[#allocation2 + $0x70] sm:$0xff] %vm3114, %v3712
        %3754 = vst.msk [vmem:[#allocation2 + $0x78] sm:$0xff] %vm3114, %v3713
        %3755 = vst.msk [vmem:[#allocation2 + $0x80] sm:$0xff] %vm3114, %v3714
        %3756 = vst.msk [vmem:[#allocation2 + $0x88] sm:$0xff] %vm3114, %v3715
        %3757 = vst.msk [vmem:[#allocation2 + $0x90] sm:$0xff] %vm3114, %v3716
        %3758 = vst.msk [vmem:[#allocation2 + $0x98] sm:$0xff] %vm3114, %v3717
        %3759 = vst.msk [vmem:[#allocation2 + $0xa0] sm:$0xff] %vm3114, %v3718
        %3760 = vst.msk [vmem:[#allocation2 + $0xa8] sm:$0xff] %vm3114, %v3719
        %3761 = vst.msk [vmem:[#allocation2 + $0xb0] sm:$0xff] %vm3114, %v3720
        %3762 = vst.msk [vmem:[#allocation2 + $0xb8] sm:$0xff] %vm3114, %v3721
        %3763 = vst.msk [vmem:[#allocation2 + $0xc0] sm:$0xff] %vm3114, %v3722
        %3764 = vst.msk [vmem:[#allocation2 + $0xc8] sm:$0xff] %vm3114, %v3723
        %3765 = vst.msk [vmem:[#allocation2 + $0xd0] sm:$0xff] %vm3114, %v3724
        %3766 = vst.msk [vmem:[#allocation2 + $0xd8] sm:$0xff] %vm3114, %v3725
        %3767 = vst.msk [vmem:[#allocation2 + $0xe0] sm:$0xff] %vm3114, %v3726
        %3768 = vst.msk [vmem:[#allocation2 + $0xe8] sm:$0xff] %vm3114, %v3727
        %3769 = vst.msk [vmem:[#allocation2 + $0xf0] sm:$0xff] %vm3114, %v3728
        %3770 = vst.msk [vmem:[#allocation2 + $0xf8] sm:$0xff] %vm3114, %v3729
        %3771 = vst.msk [vmem:[#allocation2 + $0x100] sm:$0xff] %vm3114, %v3730
        %3772 = vst.msk [vmem:[#allocation2 + $0x108] sm:$0xff] %vm3114, %v3731
        %3773 = vst.msk [vmem:[#allocation2 + $0x110] sm:$0xff] %vm3114, %v3732
        %3774 = vst.msk [vmem:[#allocation2 + $0x118] sm:$0xff] %vm3114, %v3733
        %3775 = vst.msk [vmem:[#allocation2 + $0x120] sm:$0xff] %vm3114, %v3734
        %3776 = vst.msk [vmem:[#allocation2 + $0x128] sm:$0xff] %vm3114, %v3735
        %3777 = vst.msk [vmem:[#allocation2 + $0x130] sm:$0xff] %vm3114, %v3736
        %3778 = vst.msk [vmem:[#allocation2 + $0x138] sm:$0xff] %vm3114, %v3737
        %3779 = vst.msk [vmem:[#allocation2 + $0x140] sm:$0xff] %vm3114, %v3738
        %3780 = vst.msk [vmem:[#allocation2 + $0x148] sm:$0xff] %vm3114, %v3739
        %3781 = vst.msk [vmem:[#allocation2 + $0x150] sm:$0xff] %vm3114, %v3740
        %3782 = vst.msk [vmem:[#allocation2 + $0x158] sm:$0xf] %vm3194, %v3741
        %3783 = vst.msk [vmem:[#allocation2 + $0x15c] sm:$0xff] %vm3114, 0.0
        %3784 = vst.msk [vmem:[#allocation2 + $0x164] sm:$0xff] %vm3114, 0.0
        %3785 = vst.msk [vmem:[#allocation2 + $0x16c] sm:$0xff] %vm3114, 0.0
        %3786 = vst.msk [vmem:[#allocation2 + $0x174] sm:$0xff] %vm3114, 0.0
        %vm3787 = vcmask 128000
        %3788 = vst.msk [vmem:[#allocation2 + $0x17c] sm:$0x3f] %vm3787, 0.0
        %v3789 = vld [vmem:[%s2] sm:$0xff]
        %v3790 = vld [vmem:[%s2 + $0x8] sm:$0xff]
        %v3791 = vld [vmem:[%s2 + $0x10] sm:$0xff]
        %v3792 = vld [vmem:[%s2 + $0x18] sm:$0xff]
        %v3793 = vld [vmem:[%s2 + $0x20] sm:$0xff]
        %v3794 = vld [vmem:[%s2 + $0x28] sm:$0xff]
        %v3795 = vld [vmem:[%s2 + $0x30] sm:$0xff]
        %v3796 = vld [vmem:[%s2 + $0x38] sm:$0xff]
        %v3797 = vld [vmem:[%s2 + $0x40] sm:$0xff]
        %v3798 = vld [vmem:[%s2 + $0x48] sm:$0xff]
        %v3799 = vld [vmem:[%s2 + $0x50] sm:$0xff]
        %v3800 = vld [vmem:[%s2 + $0x58] sm:$0xff]
        %v3801 = vld [vmem:[%s2 + $0x60] sm:$0xff]
        %v3802 = vld [vmem:[%s2 + $0x68] sm:$0xff]
        %v3803 = vld [vmem:[%s2 + $0x70] sm:$0xff]
        %v3804 = vld [vmem:[%s2 + $0x78] sm:$0xff]
        %v3805 = vld [vmem:[%s2 + $0x80] sm:$0xff]
        %v3806 = vld [vmem:[%s2 + $0x88] sm:$0xff]
        %s3807 = scalar_lea.vmem %s3, 1
        %v3808 = vld [vmem:[%s3807] sm:$0x1]
        %s3809 = scalar_lea.vmem %s4, 1
        %v3810 = vld [vmem:[%s3809] sm:$0x1]
        %s3811 = scalar_lea.vmem %s5, 1
        %v3812 = vld [vmem:[%s3811] sm:$0x1]
        %v3813 = vld [vmem:[#allocation2 + $0x5] sm:$0xff]
        %v3814 = vld [vmem:[#allocation2 + $0xd] sm:$0xff]
        %v3815 = vld [vmem:[#allocation2 + $0x15] sm:$0xff]
        %v3816 = vld [vmem:[#allocation2 + $0x1d] sm:$0xff]
        %v3817 = vld [vmem:[#allocation2 + $0x25] sm:$0xff]
        %v3818 = vld [vmem:[#allocation2 + $0x2d] sm:$0xff]
        %v3819 = vld [vmem:[#allocation2 + $0x35] sm:$0xff]
        %v3820 = vld [vmem:[#allocation2 + $0x3d] sm:$0xff]
        %v3821 = vld [vmem:[#allocation2 + $0x45] sm:$0xff]
        %v3822 = vld [vmem:[#allocation2 + $0x4d] sm:$0xff]
        %v3823 = vld [vmem:[#allocation2 + $0x55] sm:$0xff]
        %v3824 = vld [vmem:[#allocation2 + $0x5d] sm:$0xff]
        %v3825 = vld [vmem:[#allocation2 + $0x65] sm:$0xff]
        %v3826 = vld [vmem:[#allocation2 + $0x6d] sm:$0xff]
        %v3827 = vld [vmem:[#allocation2 + $0x75] sm:$0xff]
        %v3828 = vld [vmem:[#allocation2 + $0x7d] sm:$0xff]
        %v3829 = vld [vmem:[#allocation2 + $0x85] sm:$0xff]
        %v3830 = vld [vmem:[#allocation2 + $0x8d] sm:$0xff]
        %v3831 = vld [vmem:[#allocation2 + $0x95] sm:$0xff]
        %v3832 = vld [vmem:[#allocation2 + $0x9d] sm:$0xff]
        %v3833 = vld [vmem:[#allocation2 + $0xa5] sm:$0xff]
        %v3834 = vld [vmem:[#allocation2 + $0xad] sm:$0xff]
        %v3835 = vld [vmem:[#allocation2 + $0xb5] sm:$0xff]
        %v3836 = vld [vmem:[#allocation2 + $0xbd] sm:$0xff]
        %v3837 = vld [vmem:[#allocation2 + $0xc5] sm:$0xff]
        %v3838 = vld [vmem:[#allocation2 + $0xcd] sm:$0xff]
        %v3839 = vld [vmem:[#allocation2 + $0xd5] sm:$0xff]
        %v3840 = vld [vmem:[#allocation2 + $0xdd] sm:$0xff]
        %v3841 = vld [vmem:[#allocation2 + $0xe5] sm:$0xff]
        %v3842 = vld [vmem:[#allocation2 + $0xed] sm:$0xff]
        %v3843 = vld [vmem:[#allocation2 + $0xf5] sm:$0xff]
        %v3844 = vld [vmem:[#allocation2 + $0xfd] sm:$0xff]
        %v3845 = vld [vmem:[#allocation2 + $0x105] sm:$0xff]
        %v3846 = vld [vmem:[#allocation2 + $0x10d] sm:$0xff]
        %v3847 = vld [vmem:[#allocation2 + $0x115] sm:$0xff]
        %v3848 = vld [vmem:[#allocation2 + $0x11d] sm:$0xff]
        %v3849 = vld [vmem:[#allocation2 + $0x125] sm:$0xff]
        %v3850 = vld [vmem:[#allocation2 + $0x12d] sm:$0xff]
        %v3851 = vld [vmem:[#allocation2 + $0x135] sm:$0xff]
        %v3852 = vld [vmem:[#allocation2 + $0x13d] sm:$0xff]
        %v3853 = vld [vmem:[#allocation2 + $0x145] sm:$0xf]
        %3854 = vst.msk [vmem:[#allocation4] sm:$0xff] %vm3114, %v3813
        %3855 = vst.msk [vmem:[#allocation4 + $0x10] sm:$0xff] %vm3114, %v3814
        %3856 = vst.msk [vmem:[#allocation4 + $0x20] sm:$0xff] %vm3114, %v3815
        %3857 = vst.msk [vmem:[#allocation4 + $0x30] sm:$0xff] %vm3114, %v3816
        %3858 = vst.msk [vmem:[#allocation4 + $0x40] sm:$0xff] %vm3114, %v3817
        %3859 = vst.msk [vmem:[#allocation4 + $0x50] sm:$0xff] %vm3114, %v3818
        %3860 = vst.msk [vmem:[#allocation4 + $0x60] sm:$0xff] %vm3114, %v3819
        %3861 = vst.msk [vmem:[#allocation4 + $0x70] sm:$0xff] %vm3114, %v3820
        %3862 = vst.msk [vmem:[#allocation4 + $0x80] sm:$0xff] %vm3114, %v3821
        %3863 = vst.msk [vmem:[#allocation4 + $0x90] sm:$0xff] %vm3114, %v3822
        %3864 = vst.msk [vmem:[#allocation4 + $0xa0] sm:$0xff] %vm3114, %v3823
        %3865 = vst.msk [vmem:[#allocation4 + $0xb0] sm:$0xff] %vm3114, %v3824
        %3866 = vst.msk [vmem:[#allocation4 + $0xc0] sm:$0xff] %vm3114, %v3825
        %3867 = vst.msk [vmem:[#allocation4 + $0xd0] sm:$0xff] %vm3114, %v3826
        %3868 = vst.msk [vmem:[#allocation4 + $0xe0] sm:$0xff] %vm3114, %v3827
        %3869 = vst.msk [vmem:[#allocation4 + $0xf0] sm:$0xff] %vm3114, %v3828
        %3870 = vst.msk [vmem:[#allocation4 + $0x100] sm:$0xff] %vm3114, %v3829
        %3871 = vst.msk [vmem:[#allocation4 + $0x110] sm:$0xff] %vm3114, %v3830
        %3872 = vst.msk [vmem:[#allocation4 + $0x120] sm:$0xff] %vm3114, %v3831
        %3873 = vst.msk [vmem:[#allocation4 + $0x130] sm:$0xff] %vm3114, %v3832
        %3874 = vst.msk [vmem:[#allocation4 + $0x140] sm:$0xff] %vm3114, %v3833
        %3875 = vst.msk [vmem:[#allocation4 + $0x150] sm:$0xff] %vm3114, %v3834
        %3876 = vst.msk [vmem:[#allocation4 + $0x160] sm:$0xff] %vm3114, %v3835
        %3877 = vst.msk [vmem:[#allocation4 + $0x170] sm:$0xff] %vm3114, %v3836
        %3878 = vst.msk [vmem:[#allocation4 + $0x180] sm:$0xff] %vm3114, %v3837
        %3879 = vst.msk [vmem:[#allocation4 + $0x190] sm:$0xff] %vm3114, %v3838
        %3880 = vst.msk [vmem:[#allocation4 + $0x1a0] sm:$0xff] %vm3114, %v3839
        %3881 = vst.msk [vmem:[#allocation4 + $0x1b0] sm:$0xff] %vm3114, %v3840
        %3882 = vst.msk [vmem:[#allocation4 + $0x1c0] sm:$0xff] %vm3114, %v3841
        %3883 = vst.msk [vmem:[#allocation4 + $0x1d0] sm:$0xff] %vm3114, %v3842
        %3884 = vst.msk [vmem:[#allocation4 + $0x1e0] sm:$0xff] %vm3114, %v3843
        %3885 = vst.msk [vmem:[#allocation4 + $0x1f0] sm:$0xff] %vm3114, %v3844
        %3886 = vst.msk [vmem:[#allocation4 + $0x200] sm:$0xff] %vm3114, %v3845
        %3887 = vst.msk [vmem:[#allocation4 + $0x210] sm:$0xff] %vm3114, %v3846
        %3888 = vst.msk [vmem:[#allocation4 + $0x220] sm:$0xff] %vm3114, %v3847
        %3889 = vst.msk [vmem:[#allocation4 + $0x230] sm:$0xff] %vm3114, %v3848
        %3890 = vst.msk [vmem:[#allocation4 + $0x240] sm:$0xff] %vm3114, %v3849
        %3891 = vst.msk [vmem:[#allocation4 + $0x250] sm:$0xff] %vm3114, %v3850
        %3892 = vst.msk [vmem:[#allocation4 + $0x260] sm:$0xff] %vm3114, %v3851
        %3893 = vst.msk [vmem:[#allocation4 + $0x270] sm:$0xff] %vm3114, %v3852
        %3894 = vst.msk [vmem:[#allocation4 + $0x280] sm:$0xf] %vm3194, %v3853
        %v3895 = vld [vmem:[#allocation2 + $0x6] sm:$0xff]
        %v3896 = vld [vmem:[#allocation2 + $0xe] sm:$0xff]
        %v3897 = vld [vmem:[#allocation2 + $0x16] sm:$0xff]
        %v3898 = vld [vmem:[#allocation2 + $0x1e] sm:$0xff]
        %v3899 = vld [vmem:[#allocation2 + $0x26] sm:$0xff]
        %v3900 = vld [vmem:[#allocation2 + $0x2e] sm:$0xff]
        %v3901 = vld [vmem:[#allocation2 + $0x36] sm:$0xff]
        %v3902 = vld [vmem:[#allocation2 + $0x3e] sm:$0xff]
        %v3903 = vld [vmem:[#allocation2 + $0x46] sm:$0xff]
        %v3904 = vld [vmem:[#allocation2 + $0x4e] sm:$0xff]
        %v3905 = vld [vmem:[#allocation2 + $0x56] sm:$0xff]
        %v3906 = vld [vmem:[#allocation2 + $0x5e] sm:$0xff]
        %v3907 = vld [vmem:[#allocation2 + $0x66] sm:$0xff]
        %v3908 = vld [vmem:[#allocation2 + $0x6e] sm:$0xff]
        %v3909 = vld [vmem:[#allocation2 + $0x76] sm:$0xff]
        %v3910 = vld [vmem:[#allocation2 + $0x7e] sm:$0xff]
        %v3911 = vld [vmem:[#allocation2 + $0x86] sm:$0xff]
        %v3912 = vld [vmem:[#allocation2 + $0x8e] sm:$0xff]
        %v3913 = vld [vmem:[#allocation2 + $0x96] sm:$0xff]
        %v3914 = vld [vmem:[#allocation2 + $0x9e] sm:$0xff]
        %v3915 = vld [vmem:[#allocation2 + $0xa6] sm:$0xff]
        %v3916 = vld [vmem:[#allocation2 + $0xae] sm:$0xff]
        %v3917 = vld [vmem:[#allocation2 + $0xb6] sm:$0xff]
        %v3918 = vld [vmem:[#allocation2 + $0xbe] sm:$0xff]
        %v3919 = vld [vmem:[#allocation2 + $0xc6] sm:$0xff]
        %v3920 = vld [vmem:[#allocation2 + $0xce] sm:$0xff]
        %v3921 = vld [vmem:[#allocation2 + $0xd6] sm:$0xff]
        %v3922 = vld [vmem:[#allocation2 + $0xde] sm:$0xff]
        %v3923 = vld [vmem:[#allocation2 + $0xe6] sm:$0xff]
        %v3924 = vld [vmem:[#allocation2 + $0xee] sm:$0xff]
        %v3925 = vld [vmem:[#allocation2 + $0xf6] sm:$0xff]
        %v3926 = vld [vmem:[#allocation2 + $0xfe] sm:$0xff]
        %v3927 = vld [vmem:[#allocation2 + $0x106] sm:$0xff]
        %v3928 = vld [vmem:[#allocation2 + $0x10e] sm:$0xff]
        %v3929 = vld [vmem:[#allocation2 + $0x116] sm:$0xff]
        %v3930 = vld [vmem:[#allocation2 + $0x11e] sm:$0xff]
        %v3931 = vld [vmem:[#allocation2 + $0x126] sm:$0xff]
        %v3932 = vld [vmem:[#allocation2 + $0x12e] sm:$0xff]
        %v3933 = vld [vmem:[#allocation2 + $0x136] sm:$0xff]
        %v3934 = vld [vmem:[#allocation2 + $0x13e] sm:$0xff]
        %v3935 = vld [vmem:[#allocation2 + $0x146] sm:$0xf]
        %3977 = vrot.lane.b32.xlu0 %v3895, 16
        %v3978 = vpop.permute.xlu0 %3977
        %3979 = vrot.lane.b32.xlu0 %v3896, 16
        %v3980 = vpop.permute.xlu0 %3979
        %3981 = vrot.lane.b32.xlu0 %v3897, 16
        %v3982 = vpop.permute.xlu0 %3981
        %3983 = vrot.lane.b32.xlu0 %v3898, 16
        %v3984 = vpop.permute.xlu0 %3983
        %3985 = vrot.lane.b32.xlu0 %v3899, 16
        %v3986 = vpop.permute.xlu0 %3985
        %3987 = vrot.lane.b32.xlu0 %v3900, 16
        %v3988 = vpop.permute.xlu0 %3987
        %3989 = vrot.lane.b32.xlu0 %v3901, 16
        %v3990 = vpop.permute.xlu0 %3989
        %3991 = vrot.lane.b32.xlu0 %v3902, 16
        %v3992 = vpop.permute.xlu0 %3991
        %3993 = vrot.lane.b32.xlu0 %v3903, 16
        %v3994 = vpop.permute.xlu0 %3993
        %3995 = vrot.lane.b32.xlu0 %v3904, 16
        %v3996 = vpop.permute.xlu0 %3995
        %3997 = vrot.lane.b32.xlu0 %v3905, 16
        %v3998 = vpop.permute.xlu0 %3997
        %3999 = vrot.lane.b32.xlu0 %v3906, 16
        %v4000 = vpop.permute.xlu0 %3999
        %4001 = vrot.lane.b32.xlu0 %v3907, 16
        %v4002 = vpop.permute.xlu0 %4001
        %4003 = vrot.lane.b32.xlu0 %v3908, 16
        %v4004 = vpop.permute.xlu0 %4003
        %4005 = vrot.lane.b32.xlu0 %v3909, 16
        %v4006 = vpop.permute.xlu0 %4005
        %4007 = vrot.lane.b32.xlu0 %v3910, 16
        %v4008 = vpop.permute.xlu0 %4007
        %4009 = vrot.lane.b32.xlu0 %v3911, 16
        %v4010 = vpop.permute.xlu0 %4009
        %4011 = vrot.lane.b32.xlu0 %v3912, 16
        %v4012 = vpop.permute.xlu0 %4011
        %4013 = vrot.lane.b32.xlu0 %v3913, 16
        %v4014 = vpop.permute.xlu0 %4013
        %4015 = vrot.lane.b32.xlu0 %v3914, 16
        %v4016 = vpop.permute.xlu0 %4015
        %4017 = vrot.lane.b32.xlu0 %v3915, 16
        %v4018 = vpop.permute.xlu0 %4017
        %4019 = vrot.lane.b32.xlu0 %v3916, 16
        %v4020 = vpop.permute.xlu0 %4019
        %4021 = vrot.lane.b32.xlu0 %v3917, 16
        %v4022 = vpop.permute.xlu0 %4021
        %4023 = vrot.lane.b32.xlu0 %v3918, 16
        %v4024 = vpop.permute.xlu0 %4023
        %4025 = vrot.lane.b32.xlu0 %v3919, 16
        %v4026 = vpop.permute.xlu0 %4025
        %4027 = vrot.lane.b32.xlu0 %v3920, 16
        %v4028 = vpop.permute.xlu0 %4027
        %4029 = vrot.lane.b32.xlu0 %v3921, 16
        %v4030 = vpop.permute.xlu0 %4029
        %4031 = vrot.lane.b32.xlu0 %v3922, 16
        %v4032 = vpop.permute.xlu0 %4031
        %4033 = vrot.lane.b32.xlu0 %v3923, 16
        %v4034 = vpop.permute.xlu0 %4033
        %4035 = vrot.lane.b32.xlu0 %v3924, 16
        %v4036 = vpop.permute.xlu0 %4035
        %4037 = vrot.lane.b32.xlu0 %v3925, 16
        %v4038 = vpop.permute.xlu0 %4037
        %4039 = vrot.lane.b32.xlu0 %v3926, 16
        %v4040 = vpop.permute.xlu0 %4039
        %4041 = vrot.lane.b32.xlu0 %v3927, 16
        %v4042 = vpop.permute.xlu0 %4041
        %4043 = vrot.lane.b32.xlu0 %v3928, 16
        %v4044 = vpop.permute.xlu0 %4043
        %4045 = vrot.lane.b32.xlu0 %v3929, 16
        %v4046 = vpop.permute.xlu0 %4045
        %4047 = vrot.lane.b32.xlu0 %v3930, 16
        %v4048 = vpop.permute.xlu0 %4047
        %4049 = vrot.lane.b32.xlu0 %v3931, 16
        %v4050 = vpop.permute.xlu0 %4049
        %4051 = vrot.lane.b32.xlu0 %v3932, 16
        %v4052 = vpop.permute.xlu0 %4051
        %4053 = vrot.lane.b32.xlu0 %v3933, 16
        %v4054 = vpop.permute.xlu0 %4053
        %4055 = vrot.lane.b32.xlu0 %v3934, 16
        %v4056 = vpop.permute.xlu0 %4055
        %4057 = vrot.lane.b32.xlu0 %v3935, 16
        %v4058 = vpop.permute.xlu0 %4057
        %vm4100 = vcmask 261248
        %4101 = vst.msk [vmem:[#allocation4] sm:$0xff] %vm4100, %v3978
        %4102 = vst.msk [vmem:[#allocation4 + $0x10] sm:$0xff] %vm4100, %v3980
        %4103 = vst.msk [vmem:[#allocation4 + $0x20] sm:$0xff] %vm4100, %v3982
        %4104 = vst.msk [vmem:[#allocation4 + $0x30] sm:$0xff] %vm4100, %v3984
        %4105 = vst.msk [vmem:[#allocation4 + $0x40] sm:$0xff] %vm4100, %v3986
        %4106 = vst.msk [vmem:[#allocation4 + $0x50] sm:$0xff] %vm4100, %v3988
        %4107 = vst.msk [vmem:[#allocation4 + $0x60] sm:$0xff] %vm4100, %v3990
        %4108 = vst.msk [vmem:[#allocation4 + $0x70] sm:$0xff] %vm4100, %v3992
        %4109 = vst.msk [vmem:[#allocation4 + $0x80] sm:$0xff] %vm4100, %v3994
        %4110 = vst.msk [vmem:[#allocation4 + $0x90] sm:$0xff] %vm4100, %v3996
        %4111 = vst.msk [vmem:[#allocation4 + $0xa0] sm:$0xff] %vm4100, %v3998
        %4112 = vst.msk [vmem:[#allocation4 + $0xb0] sm:$0xff] %vm4100, %v4000
        %4113 = vst.msk [vmem:[#allocation4 + $0xc0] sm:$0xff] %vm4100, %v4002
        %4114 = vst.msk [vmem:[#allocation4 + $0xd0] sm:$0xff] %vm4100, %v4004
        %4115 = vst.msk [vmem:[#allocation4 + $0xe0] sm:$0xff] %vm4100, %v4006
        %4116 = vst.msk [vmem:[#allocation4 + $0xf0] sm:$0xff] %vm4100, %v4008
        %4117 = vst.msk [vmem:[#allocation4 + $0x100] sm:$0xff] %vm4100, %v4010
        %4118 = vst.msk [vmem:[#allocation4 + $0x110] sm:$0xff] %vm4100, %v4012
        %4119 = vst.msk [vmem:[#allocation4 + $0x120] sm:$0xff] %vm4100, %v4014
        %4120 = vst.msk [vmem:[#allocation4 + $0x130] sm:$0xff] %vm4100, %v4016
        %4121 = vst.msk [vmem:[#allocation4 + $0x140] sm:$0xff] %vm4100, %v4018
        %4122 = vst.msk [vmem:[#allocation4 + $0x150] sm:$0xff] %vm4100, %v4020
        %4123 = vst.msk [vmem:[#allocation4 + $0x160] sm:$0xff] %vm4100, %v4022
        %4124 = vst.msk [vmem:[#allocation4 + $0x170] sm:$0xff] %vm4100, %v4024
        %4125 = vst.msk [vmem:[#allocation4 + $0x180] sm:$0xff] %vm4100, %v4026
        %4126 = vst.msk [vmem:[#allocation4 + $0x190] sm:$0xff] %vm4100, %v4028
        %4127 = vst.msk [vmem:[#allocation4 + $0x1a0] sm:$0xff] %vm4100, %v4030
        %4128 = vst.msk [vmem:[#allocation4 + $0x1b0] sm:$0xff] %vm4100, %v4032
        %4129 = vst.msk [vmem:[#allocation4 + $0x1c0] sm:$0xff] %vm4100, %v4034
        %4130 = vst.msk [vmem:[#allocation4 + $0x1d0] sm:$0xff] %vm4100, %v4036
        %4131 = vst.msk [vmem:[#allocation4 + $0x1e0] sm:$0xff] %vm4100, %v4038
        %4132 = vst.msk [vmem:[#allocation4 + $0x1f0] sm:$0xff] %vm4100, %v4040
        %4133 = vst.msk [vmem:[#allocation4 + $0x200] sm:$0xff] %vm4100, %v4042
        %4134 = vst.msk [vmem:[#allocation4 + $0x210] sm:$0xff] %vm4100, %v4044
        %4135 = vst.msk [vmem:[#allocation4 + $0x220] sm:$0xff] %vm4100, %v4046
        %4136 = vst.msk [vmem:[#allocation4 + $0x230] sm:$0xff] %vm4100, %v4048
        %4137 = vst.msk [vmem:[#allocation4 + $0x240] sm:$0xff] %vm4100, %v4050
        %4138 = vst.msk [vmem:[#allocation4 + $0x250] sm:$0xff] %vm4100, %v4052
        %4139 = vst.msk [vmem:[#allocation4 + $0x260] sm:$0xff] %vm4100, %v4054
        %4140 = vst.msk [vmem:[#allocation4 + $0x270] sm:$0xff] %vm4100, %v4056
        %vm4141 = vcmask 257152
        %4142 = vst.msk [vmem:[#allocation4 + $0x280] sm:$0xf] %vm4141, %v4058
        %v4143 = vld [vmem:[#allocation2 + $0x7] sm:$0xff]
        %v4144 = vld [vmem:[#allocation2 + $0xf] sm:$0xff]
        %v4145 = vld [vmem:[#allocation2 + $0x17] sm:$0xff]
        %v4146 = vld [vmem:[#allocation2 + $0x1f] sm:$0xff]
        %v4147 = vld [vmem:[#allocation2 + $0x27] sm:$0xff]
        %v4148 = vld [vmem:[#allocation2 + $0x2f] sm:$0xff]
        %v4149 = vld [vmem:[#allocation2 + $0x37] sm:$0xff]
        %v4150 = vld [vmem:[#allocation2 + $0x3f] sm:$0xff]
        %v4151 = vld [vmem:[#allocation2 + $0x47] sm:$0xff]
        %v4152 = vld [vmem:[#allocation2 + $0x4f] sm:$0xff]
        %v4153 = vld [vmem:[#allocation2 + $0x57] sm:$0xff]
        %v4154 = vld [vmem:[#allocation2 + $0x5f] sm:$0xff]
        %v4155 = vld [vmem:[#allocation2 + $0x67] sm:$0xff]
        %v4156 = vld [vmem:[#allocation2 + $0x6f] sm:$0xff]
        %v4157 = vld [vmem:[#allocation2 + $0x77] sm:$0xff]
        %v4158 = vld [vmem:[#allocation2 + $0x7f] sm:$0xff]
        %v4159 = vld [vmem:[#allocation2 + $0x87] sm:$0xff]
        %v4160 = vld [vmem:[#allocation2 + $0x8f] sm:$0xff]
        %v4161 = vld [vmem:[#allocation2 + $0x97] sm:$0xff]
        %v4162 = vld [vmem:[#allocation2 + $0x9f] sm:$0xff]
        %v4163 = vld [vmem:[#allocation2 + $0xa7] sm:$0xff]
        %v4164 = vld [vmem:[#allocation2 + $0xaf] sm:$0xff]
        %v4165 = vld [vmem:[#allocation2 + $0xb7] sm:$0xff]
        %v4166 = vld [vmem:[#allocation2 + $0xbf] sm:$0xff]
        %v4167 = vld [vmem:[#allocation2 + $0xc7] sm:$0xff]
        %v4168 = vld [vmem:[#allocation2 + $0xcf] sm:$0xff]
        %v4169 = vld [vmem:[#allocation2 + $0xd7] sm:$0xff]
        %v4170 = vld [vmem:[#allocation2 + $0xdf] sm:$0xff]
        %v4171 = vld [vmem:[#allocation2 + $0xe7] sm:$0xff]
        %v4172 = vld [vmem:[#allocation2 + $0xef] sm:$0xff]
        %v4173 = vld [vmem:[#allocation2 + $0xf7] sm:$0xff]
        %v4174 = vld [vmem:[#allocation2 + $0xff] sm:$0xff]
        %v4175 = vld [vmem:[#allocation2 + $0x107] sm:$0xff]
        %v4176 = vld [vmem:[#allocation2 + $0x10f] sm:$0xff]
        %v4177 = vld [vmem:[#allocation2 + $0x117] sm:$0xff]
        %v4178 = vld [vmem:[#allocation2 + $0x11f] sm:$0xff]
        %v4179 = vld [vmem:[#allocation2 + $0x127] sm:$0xff]
        %v4180 = vld [vmem:[#allocation2 + $0x12f] sm:$0xff]
        %v4181 = vld [vmem:[#allocation2 + $0x137] sm:$0xff]
        %v4182 = vld [vmem:[#allocation2 + $0x13f] sm:$0xff]
        %v4183 = vld [vmem:[#allocation2 + $0x147] sm:$0xf]
        %4225 = vrot.lane.b32.xlu0 %v4143, 32
        %v4226 = vpop.permute.xlu0 %4225
        %4227 = vrot.lane.b32.xlu0 %v4144, 32
        %v4228 = vpop.permute.xlu0 %4227
        %4229 = vrot.lane.b32.xlu0 %v4145, 32
        %v4230 = vpop.permute.xlu0 %4229
        %4231 = vrot.lane.b32.xlu0 %v4146, 32
        %v4232 = vpop.permute.xlu0 %4231
        %4233 = vrot.lane.b32.xlu0 %v4147, 32
        %v4234 = vpop.permute.xlu0 %4233
        %4235 = vrot.lane.b32.xlu0 %v4148, 32
        %v4236 = vpop.permute.xlu0 %4235
        %4237 = vrot.lane.b32.xlu0 %v4149, 32
        %v4238 = vpop.permute.xlu0 %4237
        %4239 = vrot.lane.b32.xlu0 %v4150, 32
        %v4240 = vpop.permute.xlu0 %4239
        %4241 = vrot.lane.b32.xlu0 %v4151, 32
        %v4242 = vpop.permute.xlu0 %4241
        %4243 = vrot.lane.b32.xlu0 %v4152, 32
        %v4244 = vpop.permute.xlu0 %4243
        %4245 = vrot.lane.b32.xlu0 %v4153, 32
        %v4246 = vpop.permute.xlu0 %4245
        %4247 = vrot.lane.b32.xlu0 %v4154, 32
        %v4248 = vpop.permute.xlu0 %4247
        %4249 = vrot.lane.b32.xlu0 %v4155, 32
        %v4250 = vpop.permute.xlu0 %4249
        %4251 = vrot.lane.b32.xlu0 %v4156, 32
        %v4252 = vpop.permute.xlu0 %4251
        %4253 = vrot.lane.b32.xlu0 %v4157, 32
        %v4254 = vpop.permute.xlu0 %4253
        %4255 = vrot.lane.b32.xlu0 %v4158, 32
        %v4256 = vpop.permute.xlu0 %4255
        %4257 = vrot.lane.b32.xlu0 %v4159, 32
        %v4258 = vpop.permute.xlu0 %4257
        %4259 = vrot.lane.b32.xlu0 %v4160, 32
        %v4260 = vpop.permute.xlu0 %4259
        %4261 = vrot.lane.b32.xlu0 %v4161, 32
        %v4262 = vpop.permute.xlu0 %4261
        %4263 = vrot.lane.b32.xlu0 %v4162, 32
        %v4264 = vpop.permute.xlu0 %4263
        %4265 = vrot.lane.b32.xlu0 %v4163, 32
        %v4266 = vpop.permute.xlu0 %4265
        %4267 = vrot.lane.b32.xlu0 %v4164, 32
        %v4268 = vpop.permute.xlu0 %4267
        %4269 = vrot.lane.b32.xlu0 %v4165, 32
        %v4270 = vpop.permute.xlu0 %4269
        %4271 = vrot.lane.b32.xlu0 %v4166, 32
        %v4272 = vpop.permute.xlu0 %4271
        %4273 = vrot.lane.b32.xlu0 %v4167, 32
        %v4274 = vpop.permute.xlu0 %4273
        %4275 = vrot.lane.b32.xlu0 %v4168, 32
        %v4276 = vpop.permute.xlu0 %4275
        %4277 = vrot.lane.b32.xlu0 %v4169, 32
        %v4278 = vpop.permute.xlu0 %4277
        %4279 = vrot.lane.b32.xlu0 %v4170, 32
        %v4280 = vpop.permute.xlu0 %4279
        %4281 = vrot.lane.b32.xlu0 %v4171, 32
        %v4282 = vpop.permute.xlu0 %4281
        %4283 = vrot.lane.b32.xlu0 %v4172, 32
        %v4284 = vpop.permute.xlu0 %4283
        %4285 = vrot.lane.b32.xlu0 %v4173, 32
        %v4286 = vpop.permute.xlu0 %4285
        %4287 = vrot.lane.b32.xlu0 %v4174, 32
        %v4288 = vpop.permute.xlu0 %4287
        %4289 = vrot.lane.b32.xlu0 %v4175, 32
        %v4290 = vpop.permute.xlu0 %4289
        %4291 = vrot.lane.b32.xlu0 %v4176, 32
        %v4292 = vpop.permute.xlu0 %4291
        %4293 = vrot.lane.b32.xlu0 %v4177, 32
        %v4294 = vpop.permute.xlu0 %4293
        %4295 = vrot.lane.b32.xlu0 %v4178, 32
        %v4296 = vpop.permute.xlu0 %4295
        %4297 = vrot.lane.b32.xlu0 %v4179, 32
        %v4298 = vpop.permute.xlu0 %4297
        %4299 = vrot.lane.b32.xlu0 %v4180, 32
        %v4300 = vpop.permute.xlu0 %4299
        %4301 = vrot.lane.b32.xlu0 %v4181, 32
        %v4302 = vpop.permute.xlu0 %4301
        %4303 = vrot.lane.b32.xlu0 %v4182, 32
        %v4304 = vpop.permute.xlu0 %4303
        %4305 = vrot.lane.b32.xlu0 %v4183, 32
        %v4306 = vpop.permute.xlu0 %4305
        %vm4348 = vcmask 392448
        %4349 = vst.msk [vmem:[#allocation4] sm:$0xff] %vm4348, %v4226
        %4350 = vst.msk [vmem:[#allocation4 + $0x10] sm:$0xff] %vm4348, %v4228
        %4351 = vst.msk [vmem:[#allocation4 + $0x20] sm:$0xff] %vm4348, %v4230
        %4352 = vst.msk [vmem:[#allocation4 + $0x30] sm:$0xff] %vm4348, %v4232
        %4353 = vst.msk [vmem:[#allocation4 + $0x40] sm:$0xff] %vm4348, %v4234
        %4354 = vst.msk [vmem:[#allocation4 + $0x50] sm:$0xff] %vm4348, %v4236
        %4355 = vst.msk [vmem:[#allocation4 + $0x60] sm:$0xff] %vm4348, %v4238
        %4356 = vst.msk [vmem:[#allocation4 + $0x70] sm:$0xff] %vm4348, %v4240
        %4357 = vst.msk [vmem:[#allocation4 + $0x80] sm:$0xff] %vm4348, %v4242
        %4358 = vst.msk [vmem:[#allocation4 + $0x90] sm:$0xff] %vm4348, %v4244
        %4359 = vst.msk [vmem:[#allocation4 + $0xa0] sm:$0xff] %vm4348, %v4246
        %4360 = vst.msk [vmem:[#allocation4 + $0xb0] sm:$0xff] %vm4348, %v4248
        %4361 = vst.msk [vmem:[#allocation4 + $0xc0] sm:$0xff] %vm4348, %v4250
        %4362 = vst.msk [vmem:[#allocation4 + $0xd0] sm:$0xff] %vm4348, %v4252
        %4363 = vst.msk [vmem:[#allocation4 + $0xe0] sm:$0xff] %vm4348, %v4254
        %4364 = vst.msk [vmem:[#allocation4 + $0xf0] sm:$0xff] %vm4348, %v4256
        %4365 = vst.msk [vmem:[#allocation4 + $0x100] sm:$0xff] %vm4348, %v4258
        %4366 = vst.msk [vmem:[#allocation4 + $0x110] sm:$0xff] %vm4348, %v4260
        %4367 = vst.msk [vmem:[#allocation4 + $0x120] sm:$0xff] %vm4348, %v4262
        %4368 = vst.msk [vmem:[#allocation4 + $0x130] sm:$0xff] %vm4348, %v4264
        %4369 = vst.msk [vmem:[#allocation4 + $0x140] sm:$0xff] %vm4348, %v4266
        %4370 = vst.msk [vmem:[#allocation4 + $0x150] sm:$0xff] %vm4348, %v4268
        %4371 = vst.msk [vmem:[#allocation4 + $0x160] sm:$0xff] %vm4348, %v4270
        %4372 = vst.msk [vmem:[#allocation4 + $0x170] sm:$0xff] %vm4348, %v4272
        %4373 = vst.msk [vmem:[#allocation4 + $0x180] sm:$0xff] %vm4348, %v4274
        %4374 = vst.msk [vmem:[#allocation4 + $0x190] sm:$0xff] %vm4348, %v4276
        %4375 = vst.msk [vmem:[#allocation4 + $0x1a0] sm:$0xff] %vm4348, %v4278
        %4376 = vst.msk [vmem:[#allocation4 + $0x1b0] sm:$0xff] %vm4348, %v4280
        %4377 = vst.msk [vmem:[#allocation4 + $0x1c0] sm:$0xff] %vm4348, %v4282
        %4378 = vst.msk [vmem:[#allocation4 + $0x1d0] sm:$0xff] %vm4348, %v4284
        %4379 = vst.msk [vmem:[#allocation4 + $0x1e0] sm:$0xff] %vm4348, %v4286
        %4380 = vst.msk [vmem:[#allocation4 + $0x1f0] sm:$0xff] %vm4348, %v4288
        %4381 = vst.msk [vmem:[#allocation4 + $0x200] sm:$0xff] %vm4348, %v4290
        %4382 = vst.msk [vmem:[#allocation4 + $0x210] sm:$0xff] %vm4348, %v4292
        %4383 = vst.msk [vmem:[#allocation4 + $0x220] sm:$0xff] %vm4348, %v4294
        %4384 = vst.msk [vmem:[#allocation4 + $0x230] sm:$0xff] %vm4348, %v4296
        %4385 = vst.msk [vmem:[#allocation4 + $0x240] sm:$0xff] %vm4348, %v4298
        %4386 = vst.msk [vmem:[#allocation4 + $0x250] sm:$0xff] %vm4348, %v4300
        %4387 = vst.msk [vmem:[#allocation4 + $0x260] sm:$0xff] %vm4348, %v4302
        %4388 = vst.msk [vmem:[#allocation4 + $0x270] sm:$0xff] %vm4348, %v4304
        %vm4389 = vcmask 388352
        %4390 = vst.msk [vmem:[#allocation4 + $0x280] sm:$0xf] %vm4389, %v4306
        %v4391 = vld [vmem:[#allocation2 + $0x17] sm:$0xff]
        %v4392 = vld [vmem:[#allocation2 + $0x1f] sm:$0xff]
        %v4393 = vld [vmem:[#allocation2 + $0x27] sm:$0xff]
        %v4394 = vld [vmem:[#allocation2 + $0x2f] sm:$0xff]
        %v4395 = vld [vmem:[#allocation2 + $0x37] sm:$0xff]
        %v4396 = vld [vmem:[#allocation2 + $0x3f] sm:$0xff]
        %v4397 = vld [vmem:[#allocation2 + $0x47] sm:$0xff]
        %v4398 = vld [vmem:[#allocation2 + $0x4f] sm:$0xff]
        %v4399 = vld [vmem:[#allocation2 + $0x57] sm:$0xff]
        %v4400 = vld [vmem:[#allocation2 + $0x5f] sm:$0xff]
        %v4401 = vld [vmem:[#allocation2 + $0x67] sm:$0xff]
        %v4402 = vld [vmem:[#allocation2 + $0x6f] sm:$0xff]
        %v4403 = vld [vmem:[#allocation2 + $0x77] sm:$0xff]
        %v4404 = vld [vmem:[#allocation2 + $0x7f] sm:$0xff]
        %v4405 = vld [vmem:[#allocation2 + $0x87] sm:$0xff]
        %v4406 = vld [vmem:[#allocation2 + $0x8f] sm:$0xff]
        %v4407 = vld [vmem:[#allocation2 + $0x97] sm:$0xff]
        %v4408 = vld [vmem:[#allocation2 + $0x9f] sm:$0xff]
        %v4409 = vld [vmem:[#allocation2 + $0xa7] sm:$0xff]
        %v4410 = vld [vmem:[#allocation2 + $0xaf] sm:$0xff]
        %v4411 = vld [vmem:[#allocation2 + $0xb7] sm:$0xff]
        %v4412 = vld [vmem:[#allocation2 + $0xbf] sm:$0xff]
        %v4413 = vld [vmem:[#allocation2 + $0xc7] sm:$0xff]
        %v4414 = vld [vmem:[#allocation2 + $0xcf] sm:$0xff]
        %v4415 = vld [vmem:[#allocation2 + $0xd7] sm:$0xff]
        %v4416 = vld [vmem:[#allocation2 + $0xdf] sm:$0xff]
        %v4417 = vld [vmem:[#allocation2 + $0xe7] sm:$0xff]
        %v4418 = vld [vmem:[#allocation2 + $0xef] sm:$0xff]
        %v4419 = vld [vmem:[#allocation2 + $0xf7] sm:$0xff]
        %v4420 = vld [vmem:[#allocation2 + $0xff] sm:$0xff]
        %v4421 = vld [vmem:[#allocation2 + $0x107] sm:$0xff]
        %v4422 = vld [vmem:[#allocation2 + $0x10f] sm:$0xff]
        %v4423 = vld [vmem:[#allocation2 + $0x117] sm:$0xff]
        %v4424 = vld [vmem:[#allocation2 + $0x11f] sm:$0xff]
        %v4425 = vld [vmem:[#allocation2 + $0x127] sm:$0xff]
        %v4426 = vld [vmem:[#allocation2 + $0x12f] sm:$0xff]
        %v4427 = vld [vmem:[#allocation2 + $0x137] sm:$0xff]
        %v4428 = vld [vmem:[#allocation2 + $0x13f] sm:$0xff]
        %v4429 = vld [vmem:[#allocation2 + $0x147] sm:$0xff]
        %v4430 = vld [vmem:[#allocation2 + $0x14f] sm:$0xff]
        %v4431 = vld [vmem:[#allocation2 + $0x157] sm:$0xf]
        %4473 = vrot.lane.b32.xlu0 %v4391, 48
        %v4474 = vpop.permute.xlu0 %4473
        %4475 = vrot.lane.b32.xlu0 %v4392, 48
        %v4476 = vpop.permute.xlu0 %4475
        %4477 = vrot.lane.b32.xlu0 %v4393, 48
        %v4478 = vpop.permute.xlu0 %4477
        %4479 = vrot.lane.b32.xlu0 %v4394, 48
        %v4480 = vpop.permute.xlu0 %4479
        %4481 = vrot.lane.b32.xlu0 %v4395, 48
        %v4482 = vpop.permute.xlu0 %4481
        %4483 = vrot.lane.b32.xlu0 %v4396, 48
        %v4484 = vpop.permute.xlu0 %4483
        %4485 = vrot.lane.b32.xlu0 %v4397, 48
        %v4486 = vpop.permute.xlu0 %4485
        %4487 = vrot.lane.b32.xlu0 %v4398, 48
        %v4488 = vpop.permute.xlu0 %4487
        %4489 = vrot.lane.b32.xlu0 %v4399, 48
        %v4490 = vpop.permute.xlu0 %4489
        %4491 = vrot.lane.b32.xlu0 %v4400, 48
        %v4492 = vpop.permute.xlu0 %4491
        %4493 = vrot.lane.b32.xlu0 %v4401, 48
        %v4494 = vpop.permute.xlu0 %4493
        %4495 = vrot.lane.b32.xlu0 %v4402, 48
        %v4496 = vpop.permute.xlu0 %4495
        %4497 = vrot.lane.b32.xlu0 %v4403, 48
        %v4498 = vpop.permute.xlu0 %4497
        %4499 = vrot.lane.b32.xlu0 %v4404, 48
        %v4500 = vpop.permute.xlu0 %4499
        %4501 = vrot.lane.b32.xlu0 %v4405, 48
        %v4502 = vpop.permute.xlu0 %4501
        %4503 = vrot.lane.b32.xlu0 %v4406, 48
        %v4504 = vpop.permute.xlu0 %4503
        %4505 = vrot.lane.b32.xlu0 %v4407, 48
        %v4506 = vpop.permute.xlu0 %4505
        %4507 = vrot.lane.b32.xlu0 %v4408, 48
        %v4508 = vpop.permute.xlu0 %4507
        %4509 = vrot.lane.b32.xlu0 %v4409, 48
        %v4510 = vpop.permute.xlu0 %4509
        %4511 = vrot.lane.b32.xlu0 %v4410, 48
        %v4512 = vpop.permute.xlu0 %4511
        %4513 = vrot.lane.b32.xlu0 %v4411, 48
        %v4514 = vpop.permute.xlu0 %4513
        %4515 = vrot.lane.b32.xlu0 %v4412, 48
        %v4516 = vpop.permute.xlu0 %4515
        %4517 = vrot.lane.b32.xlu0 %v4413, 48
        %v4518 = vpop.permute.xlu0 %4517
        %4519 = vrot.lane.b32.xlu0 %v4414, 48
        %v4520 = vpop.permute.xlu0 %4519
        %4521 = vrot.lane.b32.xlu0 %v4415, 48
        %v4522 = vpop.permute.xlu0 %4521
        %4523 = vrot.lane.b32.xlu0 %v4416, 48
        %v4524 = vpop.permute.xlu0 %4523
        %4525 = vrot.lane.b32.xlu0 %v4417, 48
        %v4526 = vpop.permute.xlu0 %4525
        %4527 = vrot.lane.b32.xlu0 %v4418, 48
        %v4528 = vpop.permute.xlu0 %4527
        %4529 = vrot.lane.b32.xlu0 %v4419, 48
        %v4530 = vpop.permute.xlu0 %4529
        %4531 = vrot.lane.b32.xlu0 %v4420, 48
        %v4532 = vpop.permute.xlu0 %4531
        %4533 = vrot.lane.b32.xlu0 %v4421, 48
        %v4534 = vpop.permute.xlu0 %4533
        %4535 = vrot.lane.b32.xlu0 %v4422, 48
        %v4536 = vpop.permute.xlu0 %4535
        %4537 = vrot.lane.b32.xlu0 %v4423, 48
        %v4538 = vpop.permute.xlu0 %4537
        %4539 = vrot.lane.b32.xlu0 %v4424, 48
        %v4540 = vpop.permute.xlu0 %4539
        %4541 = vrot.lane.b32.xlu0 %v4425, 48
        %v4542 = vpop.permute.xlu0 %4541
        %4543 = vrot.lane.b32.xlu0 %v4426, 48
        %v4544 = vpop.permute.xlu0 %4543
        %4545 = vrot.lane.b32.xlu0 %v4427, 48
        %v4546 = vpop.permute.xlu0 %4545
        %4547 = vrot.lane.b32.xlu0 %v4428, 48
        %v4548 = vpop.permute.xlu0 %4547
        %4549 = vrot.lane.b32.xlu0 %v4429, 48
        %v4550 = vpop.permute.xlu0 %4549
        %4551 = vrot.lane.b32.xlu0 %v4430, 48
        %v4552 = vpop.permute.xlu0 %4551
        %4553 = vrot.lane.b32.xlu0 %v4431, 48
        %v4554 = vpop.permute.xlu0 %4553
        %vm4596 = vcmask 523648
        %4597 = vst.msk [vmem:[#allocation4] sm:$0xff] %vm4596, %v4474
        %4598 = vst.msk [vmem:[#allocation4 + $0x10] sm:$0xff] %vm4596, %v4476
        %4599 = vst.msk [vmem:[#allocation4 + $0x20] sm:$0xff] %vm4596, %v4478
        %4600 = vst.msk [vmem:[#allocation4 + $0x30] sm:$0xff] %vm4596, %v4480
        %4601 = vst.msk [vmem:[#allocation4 + $0x40] sm:$0xff] %vm4596, %v4482
        %4602 = vst.msk [vmem:[#allocation4 + $0x50] sm:$0xff] %vm4596, %v4484
        %4603 = vst.msk [vmem:[#allocation4 + $0x60] sm:$0xff] %vm4596, %v4486
        %4604 = vst.msk [vmem:[#allocation4 + $0x70] sm:$0xff] %vm4596, %v4488
        %4605 = vst.msk [vmem:[#allocation4 + $0x80] sm:$0xff] %vm4596, %v4490
        %4606 = vst.msk [vmem:[#allocation4 + $0x90] sm:$0xff] %vm4596, %v4492
        %4607 = vst.msk [vmem:[#allocation4 + $0xa0] sm:$0xff] %vm4596, %v4494
        %4608 = vst.msk [vmem:[#allocation4 + $0xb0] sm:$0xff] %vm4596, %v4496
        %4609 = vst.msk [vmem:[#allocation4 + $0xc0] sm:$0xff] %vm4596, %v4498
        %4610 = vst.msk [vmem:[#allocation4 + $0xd0] sm:$0xff] %vm4596, %v4500
        %4611 = vst.msk [vmem:[#allocation4 + $0xe0] sm:$0xff] %vm4596, %v4502
        %4612 = vst.msk [vmem:[#allocation4 + $0xf0] sm:$0xff] %vm4596, %v4504
        %4613 = vst.msk [vmem:[#allocation4 + $0x100] sm:$0xff] %vm4596, %v4506
        %4614 = vst.msk [vmem:[#allocation4 + $0x110] sm:$0xff] %vm4596, %v4508
        %4615 = vst.msk [vmem:[#allocation4 + $0x120] sm:$0xff] %vm4596, %v4510
        %4616 = vst.msk [vmem:[#allocation4 + $0x130] sm:$0xff] %vm4596, %v4512
        %4617 = vst.msk [vmem:[#allocation4 + $0x140] sm:$0xff] %vm4596, %v4514
        %4618 = vst.msk [vmem:[#allocation4 + $0x150] sm:$0xff] %vm4596, %v4516
        %4619 = vst.msk [vmem:[#allocation4 + $0x160] sm:$0xff] %vm4596, %v4518
        %4620 = vst.msk [vmem:[#allocation4 + $0x170] sm:$0xff] %vm4596, %v4520
        %4621 = vst.msk [vmem:[#allocation4 + $0x180] sm:$0xff] %vm4596, %v4522
        %4622 = vst.msk [vmem:[#allocation4 + $0x190] sm:$0xff] %vm4596, %v4524
        %4623 = vst.msk [vmem:[#allocation4 + $0x1a0] sm:$0xff] %vm4596, %v4526
        %4624 = vst.msk [vmem:[#allocation4 + $0x1b0] sm:$0xff] %vm4596, %v4528
        %4625 = vst.msk [vmem:[#allocation4 + $0x1c0] sm:$0xff] %vm4596, %v4530
        %4626 = vst.msk [vmem:[#allocation4 + $0x1d0] sm:$0xff] %vm4596, %v4532
        %4627 = vst.msk [vmem:[#allocation4 + $0x1e0] sm:$0xff] %vm4596, %v4534
        %4628 = vst.msk [vmem:[#allocation4 + $0x1f0] sm:$0xff] %vm4596, %v4536
        %4629 = vst.msk [vmem:[#allocation4 + $0x200] sm:$0xff] %vm4596, %v4538
        %4630 = vst.msk [vmem:[#allocation4 + $0x210] sm:$0xff] %vm4596, %v4540
        %4631 = vst.msk [vmem:[#allocation4 + $0x220] sm:$0xff] %vm4596, %v4542
        %4632 = vst.msk [vmem:[#allocation4 + $0x230] sm:$0xff] %vm4596, %v4544
        %4633 = vst.msk [vmem:[#allocation4 + $0x240] sm:$0xff] %vm4596, %v4546
        %4634 = vst.msk [vmem:[#allocation4 + $0x250] sm:$0xff] %vm4596, %v4548
        %4635 = vst.msk [vmem:[#allocation4 + $0x260] sm:$0xff] %vm4596, %v4550
        %4636 = vst.msk [vmem:[#allocation4 + $0x270] sm:$0xff] %vm4596, %v4552
        %vm4637 = vcmask 519552
        %4638 = vst.msk [vmem:[#allocation4 + $0x280] sm:$0xf] %vm4637, %v4554
        %v4639 = vld [vmem:[#allocation2 + $0x18] sm:$0xff]
        %v4640 = vld [vmem:[#allocation2 + $0x20] sm:$0xff]
        %v4641 = vld [vmem:[#allocation2 + $0x28] sm:$0xff]
        %v4642 = vld [vmem:[#allocation2 + $0x30] sm:$0xff]
        %v4643 = vld [vmem:[#allocation2 + $0x38] sm:$0xff]
        %v4644 = vld [vmem:[#allocation2 + $0x40] sm:$0xff]
        %v4645 = vld [vmem:[#allocation2 + $0x48] sm:$0xff]
        %v4646 = vld [vmem:[#allocation2 + $0x50] sm:$0xff]
        %v4647 = vld [vmem:[#allocation2 + $0x58] sm:$0xff]
        %v4648 = vld [vmem:[#allocation2 + $0x60] sm:$0xff]
        %v4649 = vld [vmem:[#allocation2 + $0x68] sm:$0xff]
        %v4650 = vld [vmem:[#allocation2 + $0x70] sm:$0xff]
        %v4651 = vld [vmem:[#allocation2 + $0x78] sm:$0xff]
        %v4652 = vld [vmem:[#allocation2 + $0x80] sm:$0xff]
        %v4653 = vld [vmem:[#allocation2 + $0x88] sm:$0xff]
        %v4654 = vld [vmem:[#allocation2 + $0x90] sm:$0xff]
        %v4655 = vld [vmem:[#allocation2 + $0x98] sm:$0xff]
        %v4656 = vld [vmem:[#allocation2 + $0xa0] sm:$0xff]
        %v4657 = vld [vmem:[#allocation2 + $0xa8] sm:$0xff]
        %v4658 = vld [vmem:[#allocation2 + $0xb0] sm:$0xff]
        %v4659 = vld [vmem:[#allocation2 + $0xb8] sm:$0xff]
        %v4660 = vld [vmem:[#allocation2 + $0xc0] sm:$0xff]
        %v4661 = vld [vmem:[#allocation2 + $0xc8] sm:$0xff]
        %v4662 = vld [vmem:[#allocation2 + $0xd0] sm:$0xff]
        %v4663 = vld [vmem:[#allocation2 + $0xd8] sm:$0xff]
        %v4664 = vld [vmem:[#allocation2 + $0xe0] sm:$0xff]
        %v4665 = vld [vmem:[#allocation2 + $0xe8] sm:$0xff]
        %v4666 = vld [vmem:[#allocation2 + $0xf0] sm:$0xff]
        %v4667 = vld [vmem:[#allocation2 + $0xf8] sm:$0xff]
        %v4668 = vld [vmem:[#allocation2 + $0x100] sm:$0xff]
        %v4669 = vld [vmem:[#allocation2 + $0x108] sm:$0xff]
        %v4670 = vld [vmem:[#allocation2 + $0x110] sm:$0xff]
        %v4671 = vld [vmem:[#allocation2 + $0x118] sm:$0xff]
        %v4672 = vld [vmem:[#allocation2 + $0x120] sm:$0xff]
        %v4673 = vld [vmem:[#allocation2 + $0x128] sm:$0xff]
        %v4674 = vld [vmem:[#allocation2 + $0x130] sm:$0xff]
        %v4675 = vld [vmem:[#allocation2 + $0x138] sm:$0xff]
        %v4676 = vld [vmem:[#allocation2 + $0x140] sm:$0xff]
        %v4677 = vld [vmem:[#allocation2 + $0x148] sm:$0xff]
        %v4678 = vld [vmem:[#allocation2 + $0x150] sm:$0xff]
        %v4679 = vld [vmem:[#allocation2 + $0x158] sm:$0xf]
        %4721 = vrot.lane.b32.xlu0 %v4639, 64
        %v4722 = vpop.permute.xlu0 %4721
        %4723 = vrot.lane.b32.xlu0 %v4640, 64
        %v4724 = vpop.permute.xlu0 %4723
        %4725 = vrot.lane.b32.xlu0 %v4641, 64
        %v4726 = vpop.permute.xlu0 %4725
        %4727 = vrot.lane.b32.xlu0 %v4642, 64
        %v4728 = vpop.permute.xlu0 %4727
        %4729 = vrot.lane.b32.xlu0 %v4643, 64
        %v4730 = vpop.permute.xlu0 %4729
        %4731 = vrot.lane.b32.xlu0 %v4644, 64
        %v4732 = vpop.permute.xlu0 %4731
        %4733 = vrot.lane.b32.xlu0 %v4645, 64
        %v4734 = vpop.permute.xlu0 %4733
        %4735 = vrot.lane.b32.xlu0 %v4646, 64
        %v4736 = vpop.permute.xlu0 %4735
        %4737 = vrot.lane.b32.xlu0 %v4647, 64
        %v4738 = vpop.permute.xlu0 %4737
        %4739 = vrot.lane.b32.xlu0 %v4648, 64
        %v4740 = vpop.permute.xlu0 %4739
        %4741 = vrot.lane.b32.xlu0 %v4649, 64
        %v4742 = vpop.permute.xlu0 %4741
        %4743 = vrot.lane.b32.xlu0 %v4650, 64
        %v4744 = vpop.permute.xlu0 %4743
        %4745 = vrot.lane.b32.xlu0 %v4651, 64
        %v4746 = vpop.permute.xlu0 %4745
        %4747 = vrot.lane.b32.xlu0 %v4652, 64
        %v4748 = vpop.permute.xlu0 %4747
        %4749 = vrot.lane.b32.xlu0 %v4653, 64
        %v4750 = vpop.permute.xlu0 %4749
        %4751 = vrot.lane.b32.xlu0 %v4654, 64
        %v4752 = vpop.permute.xlu0 %4751
        %4753 = vrot.lane.b32.xlu0 %v4655, 64
        %v4754 = vpop.permute.xlu0 %4753
        %4755 = vrot.lane.b32.xlu0 %v4656, 64
        %v4756 = vpop.permute.xlu0 %4755
        %4757 = vrot.lane.b32.xlu0 %v4657, 64
        %v4758 = vpop.permute.xlu0 %4757
        %4759 = vrot.lane.b32.xlu0 %v4658, 64
        %v4760 = vpop.permute.xlu0 %4759
        %4761 = vrot.lane.b32.xlu0 %v4659, 64
        %v4762 = vpop.permute.xlu0 %4761
        %4763 = vrot.lane.b32.xlu0 %v4660, 64
        %v4764 = vpop.permute.xlu0 %4763
        %4765 = vrot.lane.b32.xlu0 %v4661, 64
        %v4766 = vpop.permute.xlu0 %4765
        %4767 = vrot.lane.b32.xlu0 %v4662, 64
        %v4768 = vpop.permute.xlu0 %4767
        %4769 = vrot.lane.b32.xlu0 %v4663, 64
        %v4770 = vpop.permute.xlu0 %4769
        %4771 = vrot.lane.b32.xlu0 %v4664, 64
        %v4772 = vpop.permute.xlu0 %4771
        %4773 = vrot.lane.b32.xlu0 %v4665, 64
        %v4774 = vpop.permute.xlu0 %4773
        %4775 = vrot.lane.b32.xlu0 %v4666, 64
        %v4776 = vpop.permute.xlu0 %4775
        %4777 = vrot.lane.b32.xlu0 %v4667, 64
        %v4778 = vpop.permute.xlu0 %4777
        %4779 = vrot.lane.b32.xlu0 %v4668, 64
        %v4780 = vpop.permute.xlu0 %4779
        %4781 = vrot.lane.b32.xlu0 %v4669, 64
        %v4782 = vpop.permute.xlu0 %4781
        %4783 = vrot.lane.b32.xlu0 %v4670, 64
        %v4784 = vpop.permute.xlu0 %4783
        %4785 = vrot.lane.b32.xlu0 %v4671, 64
        %v4786 = vpop.permute.xlu0 %4785
        %4787 = vrot.lane.b32.xlu0 %v4672, 64
        %v4788 = vpop.permute.xlu0 %4787
        %4789 = vrot.lane.b32.xlu0 %v4673, 64
        %v4790 = vpop.permute.xlu0 %4789
        %4791 = vrot.lane.b32.xlu0 %v4674, 64
        %v4792 = vpop.permute.xlu0 %4791
        %4793 = vrot.lane.b32.xlu0 %v4675, 64
        %v4794 = vpop.permute.xlu0 %4793
        %4795 = vrot.lane.b32.xlu0 %v4676, 64
        %v4796 = vpop.permute.xlu0 %4795
        %4797 = vrot.lane.b32.xlu0 %v4677, 64
        %v4798 = vpop.permute.xlu0 %4797
        %4799 = vrot.lane.b32.xlu0 %v4678, 64
        %v4800 = vpop.permute.xlu0 %4799
        %4801 = vrot.lane.b32.xlu0 %v4679, 64
        %v4802 = vpop.permute.xlu0 %4801
        %vm4844 = vcmask 654848
        %4845 = vst.msk [vmem:[#allocation4] sm:$0xff] %vm4844, %v4722
        %4846 = vst.msk [vmem:[#allocation4 + $0x10] sm:$0xff] %vm4844, %v4724
        %4847 = vst.msk [vmem:[#allocation4 + $0x20] sm:$0xff] %vm4844, %v4726
        %4848 = vst.msk [vmem:[#allocation4 + $0x30] sm:$0xff] %vm4844, %v4728
        %4849 = vst.msk [vmem:[#allocation4 + $0x40] sm:$0xff] %vm4844, %v4730
        %4850 = vst.msk [vmem:[#allocation4 + $0x50] sm:$0xff] %vm4844, %v4732
        %4851 = vst.msk [vmem:[#allocation4 + $0x60] sm:$0xff] %vm4844, %v4734
        %4852 = vst.msk [vmem:[#allocation4 + $0x70] sm:$0xff] %vm4844, %v4736
        %4853 = vst.msk [vmem:[#allocation4 + $0x80] sm:$0xff] %vm4844, %v4738
        %4854 = vst.msk [vmem:[#allocation4 + $0x90] sm:$0xff] %vm4844, %v4740
        %4855 = vst.msk [vmem:[#allocation4 + $0xa0] sm:$0xff] %vm4844, %v4742
        %4856 = vst.msk [vmem:[#allocation4 + $0xb0] sm:$0xff] %vm4844, %v4744
        %4857 = vst.msk [vmem:[#allocation4 + $0xc0] sm:$0xff] %vm4844, %v4746
        %4858 = vst.msk [vmem:[#allocation4 + $0xd0] sm:$0xff] %vm4844, %v4748
        %4859 = vst.msk [vmem:[#allocation4 + $0xe0] sm:$0xff] %vm4844, %v4750
        %4860 = vst.msk [vmem:[#allocation4 + $0xf0] sm:$0xff] %vm4844, %v4752
        %4861 = vst.msk [vmem:[#allocation4 + $0x100] sm:$0xff] %vm4844, %v4754
        %4862 = vst.msk [vmem:[#allocation4 + $0x110] sm:$0xff] %vm4844, %v4756
        %4863 = vst.msk [vmem:[#allocation4 + $0x120] sm:$0xff] %vm4844, %v4758
        %4864 = vst.msk [vmem:[#allocation4 + $0x130] sm:$0xff] %vm4844, %v4760
        %4865 = vst.msk [vmem:[#allocation4 + $0x140] sm:$0xff] %vm4844, %v4762
        %4866 = vst.msk [vmem:[#allocation4 + $0x150] sm:$0xff] %vm4844, %v4764
        %4867 = vst.msk [vmem:[#allocation4 + $0x160] sm:$0xff] %vm4844, %v4766
        %4868 = vst.msk [vmem:[#allocation4 + $0x170] sm:$0xff] %vm4844, %v4768
        %4869 = vst.msk [vmem:[#allocation4 + $0x180] sm:$0xff] %vm4844, %v4770
        %4870 = vst.msk [vmem:[#allocation4 + $0x190] sm:$0xff] %vm4844, %v4772
        %4871 = vst.msk [vmem:[#allocation4 + $0x1a0] sm:$0xff] %vm4844, %v4774
        %4872 = vst.msk [vmem:[#allocation4 + $0x1b0] sm:$0xff] %vm4844, %v4776
        %4873 = vst.msk [vmem:[#allocation4 + $0x1c0] sm:$0xff] %vm4844, %v4778
        %4874 = vst.msk [vmem:[#allocation4 + $0x1d0] sm:$0xff] %vm4844, %v4780
        %4875 = vst.msk [vmem:[#allocation4 + $0x1e0] sm:$0xff] %vm4844, %v4782
        %4876 = vst.msk [vmem:[#allocation4 + $0x1f0] sm:$0xff] %vm4844, %v4784
        %4877 = vst.msk [vmem:[#allocation4 + $0x200] sm:$0xff] %vm4844, %v4786
        %4878 = vst.msk [vmem:[#allocation4 + $0x210] sm:$0xff] %vm4844, %v4788
        %4879 = vst.msk [vmem:[#allocation4 + $0x220] sm:$0xff] %vm4844, %v4790
        %4880 = vst.msk [vmem:[#allocation4 + $0x230] sm:$0xff] %vm4844, %v4792
        %4881 = vst.msk [vmem:[#allocation4 + $0x240] sm:$0xff] %vm4844, %v4794
        %4882 = vst.msk [vmem:[#allocation4 + $0x250] sm:$0xff] %vm4844, %v4796
        %4883 = vst.msk [vmem:[#allocation4 + $0x260] sm:$0xff] %vm4844, %v4798
        %4884 = vst.msk [vmem:[#allocation4 + $0x270] sm:$0xff] %vm4844, %v4800
        %vm4885 = vcmask 650752
        %4886 = vst.msk [vmem:[#allocation4 + $0x280] sm:$0xf] %vm4885, %v4802
        %v4887 = vld [vmem:[#allocation2 + $0x19] sm:$0xff]
        %v4888 = vld [vmem:[#allocation2 + $0x21] sm:$0xff]
        %v4889 = vld [vmem:[#allocation2 + $0x29] sm:$0xff]
        %v4890 = vld [vmem:[#allocation2 + $0x31] sm:$0xff]
        %v4891 = vld [vmem:[#allocation2 + $0x39] sm:$0xff]
        %v4892 = vld [vmem:[#allocation2 + $0x41] sm:$0xff]
        %v4893 = vld [vmem:[#allocation2 + $0x49] sm:$0xff]
        %v4894 = vld [vmem:[#allocation2 + $0x51] sm:$0xff]
        %v4895 = vld [vmem:[#allocation2 + $0x59] sm:$0xff]
        %v4896 = vld [vmem:[#allocation2 + $0x61] sm:$0xff]
        %v4897 = vld [vmem:[#allocation2 + $0x69] sm:$0xff]
        %v4898 = vld [vmem:[#allocation2 + $0x71] sm:$0xff]
        %v4899 = vld [vmem:[#allocation2 + $0x79] sm:$0xff]
        %v4900 = vld [vmem:[#allocation2 + $0x81] sm:$0xff]
        %v4901 = vld [vmem:[#allocation2 + $0x89] sm:$0xff]
        %v4902 = vld [vmem:[#allocation2 + $0x91] sm:$0xff]
        %v4903 = vld [vmem:[#allocation2 + $0x99] sm:$0xff]
        %v4904 = vld [vmem:[#allocation2 + $0xa1] sm:$0xff]
        %v4905 = vld [vmem:[#allocation2 + $0xa9] sm:$0xff]
        %v4906 = vld [vmem:[#allocation2 + $0xb1] sm:$0xff]
        %v4907 = vld [vmem:[#allocation2 + $0xb9] sm:$0xff]
        %v4908 = vld [vmem:[#allocation2 + $0xc1] sm:$0xff]
        %v4909 = vld [vmem:[#allocation2 + $0xc9] sm:$0xff]
        %v4910 = vld [vmem:[#allocation2 + $0xd1] sm:$0xff]
        %v4911 = vld [vmem:[#allocation2 + $0xd9] sm:$0xff]
        %v4912 = vld [vmem:[#allocation2 + $0xe1] sm:$0xff]
        %v4913 = vld [vmem:[#allocation2 + $0xe9] sm:$0xff]
        %v4914 = vld [vmem:[#allocation2 + $0xf1] sm:$0xff]
        %v4915 = vld [vmem:[#allocation2 + $0xf9] sm:$0xff]
        %v4916 = vld [vmem:[#allocation2 + $0x101] sm:$0xff]
        %v4917 = vld [vmem:[#allocation2 + $0x109] sm:$0xff]
        %v4918 = vld [vmem:[#allocation2 + $0x111] sm:$0xff]
        %v4919 = vld [vmem:[#allocation2 + $0x119] sm:$0xff]
        %v4920 = vld [vmem:[#allocation2 + $0x121] sm:$0xff]
        %v4921 = vld [vmem:[#allocation2 + $0x129] sm:$0xff]
        %v4922 = vld [vmem:[#allocation2 + $0x131] sm:$0xff]
        %v4923 = vld [vmem:[#allocation2 + $0x139] sm:$0xff]
        %v4924 = vld [vmem:[#allocation2 + $0x141] sm:$0xff]
        %v4925 = vld [vmem:[#allocation2 + $0x149] sm:$0xff]
        %v4926 = vld [vmem:[#allocation2 + $0x151] sm:$0xff]
        %v4927 = vld [vmem:[#allocation2 + $0x159] sm:$0xf]
        %4969 = vrot.lane.b32.xlu0 %v4887, 80
        %v4970 = vpop.permute.xlu0 %4969
        %4971 = vrot.lane.b32.xlu0 %v4888, 80
        %v4972 = vpop.permute.xlu0 %4971
        %4973 = vrot.lane.b32.xlu0 %v4889, 80
        %v4974 = vpop.permute.xlu0 %4973
        %4975 = vrot.lane.b32.xlu0 %v4890, 80
        %v4976 = vpop.permute.xlu0 %4975
        %4977 = vrot.lane.b32.xlu0 %v4891, 80
        %v4978 = vpop.permute.xlu0 %4977
        %4979 = vrot.lane.b32.xlu0 %v4892, 80
        %v4980 = vpop.permute.xlu0 %4979
        %4981 = vrot.lane.b32.xlu0 %v4893, 80
        %v4982 = vpop.permute.xlu0 %4981
        %4983 = vrot.lane.b32.xlu0 %v4894, 80
        %v4984 = vpop.permute.xlu0 %4983
        %4985 = vrot.lane.b32.xlu0 %v4895, 80
        %v4986 = vpop.permute.xlu0 %4985
        %4987 = vrot.lane.b32.xlu0 %v4896, 80
        %v4988 = vpop.permute.xlu0 %4987
        %4989 = vrot.lane.b32.xlu0 %v4897, 80
        %v4990 = vpop.permute.xlu0 %4989
        %4991 = vrot.lane.b32.xlu0 %v4898, 80
        %v4992 = vpop.permute.xlu0 %4991
        %4993 = vrot.lane.b32.xlu0 %v4899, 80
        %v4994 = vpop.permute.xlu0 %4993
        %4995 = vrot.lane.b32.xlu0 %v4900, 80
        %v4996 = vpop.permute.xlu0 %4995
        %4997 = vrot.lane.b32.xlu0 %v4901, 80
        %v4998 = vpop.permute.xlu0 %4997
        %4999 = vrot.lane.b32.xlu0 %v4902, 80
        %v5000 = vpop.permute.xlu0 %4999
        %5001 = vrot.lane.b32.xlu0 %v4903, 80
        %v5002 = vpop.permute.xlu0 %5001
        %5003 = vrot.lane.b32.xlu0 %v4904, 80
        %v5004 = vpop.permute.xlu0 %5003
        %5005 = vrot.lane.b32.xlu0 %v4905, 80
        %v5006 = vpop.permute.xlu0 %5005
        %5007 = vrot.lane.b32.xlu0 %v4906, 80
        %v5008 = vpop.permute.xlu0 %5007
        %5009 = vrot.lane.b32.xlu0 %v4907, 80
        %v5010 = vpop.permute.xlu0 %5009
        %5011 = vrot.lane.b32.xlu0 %v4908, 80
        %v5012 = vpop.permute.xlu0 %5011
        %5013 = vrot.lane.b32.xlu0 %v4909, 80
        %v5014 = vpop.permute.xlu0 %5013
        %5015 = vrot.lane.b32.xlu0 %v4910, 80
        %v5016 = vpop.permute.xlu0 %5015
        %5017 = vrot.lane.b32.xlu0 %v4911, 80
        %v5018 = vpop.permute.xlu0 %5017
        %5019 = vrot.lane.b32.xlu0 %v4912, 80
        %v5020 = vpop.permute.xlu0 %5019
        %5021 = vrot.lane.b32.xlu0 %v4913, 80
        %v5022 = vpop.permute.xlu0 %5021
        %5023 = vrot.lane.b32.xlu0 %v4914, 80
        %v5024 = vpop.permute.xlu0 %5023
        %5025 = vrot.lane.b32.xlu0 %v4915, 80
        %v5026 = vpop.permute.xlu0 %5025
        %5027 = vrot.lane.b32.xlu0 %v4916, 80
        %v5028 = vpop.permute.xlu0 %5027
        %5029 = vrot.lane.b32.xlu0 %v4917, 80
        %v5030 = vpop.permute.xlu0 %5029
        %5031 = vrot.lane.b32.xlu0 %v4918, 80
        %v5032 = vpop.permute.xlu0 %5031
        %5033 = vrot.lane.b32.xlu0 %v4919, 80
        %v5034 = vpop.permute.xlu0 %5033
        %5035 = vrot.lane.b32.xlu0 %v4920, 80
        %v5036 = vpop.permute.xlu0 %5035
        %5037 = vrot.lane.b32.xlu0 %v4921, 80
        %v5038 = vpop.permute.xlu0 %5037
        %5039 = vrot.lane.b32.xlu0 %v4922, 80
        %v5040 = vpop.permute.xlu0 %5039
        %5041 = vrot.lane.b32.xlu0 %v4923, 80
        %v5042 = vpop.permute.xlu0 %5041
        %5043 = vrot.lane.b32.xlu0 %v4924, 80
        %v5044 = vpop.permute.xlu0 %5043
        %5045 = vrot.lane.b32.xlu0 %v4925, 80
        %v5046 = vpop.permute.xlu0 %5045
        %5047 = vrot.lane.b32.xlu0 %v4926, 80
        %v5048 = vpop.permute.xlu0 %5047
        %5049 = vrot.lane.b32.xlu0 %v4927, 80
        %v5050 = vpop.permute.xlu0 %5049
        %vm5092 = vcmask 786048
        %5093 = vst.msk [vmem:[#allocation4] sm:$0xff] %vm5092, %v4970
        %5094 = vst.msk [vmem:[#allocation4 + $0x10] sm:$0xff] %vm5092, %v4972
        %5095 = vst.msk [vmem:[#allocation4 + $0x20] sm:$0xff] %vm5092, %v4974
        %5096 = vst.msk [vmem:[#allocation4 + $0x30] sm:$0xff] %vm5092, %v4976
        %5097 = vst.msk [vmem:[#allocation4 + $0x40] sm:$0xff] %vm5092, %v4978
        %5098 = vst.msk [vmem:[#allocation4 + $0x50] sm:$0xff] %vm5092, %v4980
        %5099 = vst.msk [vmem:[#allocation4 + $0x60] sm:$0xff] %vm5092, %v4982
        %5100 = vst.msk [vmem:[#allocation4 + $0x70] sm:$0xff] %vm5092, %v4984
        %5101 = vst.msk [vmem:[#allocation4 + $0x80] sm:$0xff] %vm5092, %v4986
        %5102 = vst.msk [vmem:[#allocation4 + $0x90] sm:$0xff] %vm5092, %v4988
        %5103 = vst.msk [vmem:[#allocation4 + $0xa0] sm:$0xff] %vm5092, %v4990
        %5104 = vst.msk [vmem:[#allocation4 + $0xb0] sm:$0xff] %vm5092, %v4992
        %5105 = vst.msk [vmem:[#allocation4 + $0xc0] sm:$0xff] %vm5092, %v4994
        %5106 = vst.msk [vmem:[#allocation4 + $0xd0] sm:$0xff] %vm5092, %v4996
        %5107 = vst.msk [vmem:[#allocation4 + $0xe0] sm:$0xff] %vm5092, %v4998
        %5108 = vst.msk [vmem:[#allocation4 + $0xf0] sm:$0xff] %vm5092, %v5000
        %5109 = vst.msk [vmem:[#allocation4 + $0x100] sm:$0xff] %vm5092, %v5002
        %5110 = vst.msk [vmem:[#allocation4 + $0x110] sm:$0xff] %vm5092, %v5004
        %5111 = vst.msk [vmem:[#allocation4 + $0x120] sm:$0xff] %vm5092, %v5006
        %5112 = vst.msk [vmem:[#allocation4 + $0x130] sm:$0xff] %vm5092, %v5008
        %5113 = vst.msk [vmem:[#allocation4 + $0x140] sm:$0xff] %vm5092, %v5010
        %5114 = vst.msk [vmem:[#allocation4 + $0x150] sm:$0xff] %vm5092, %v5012
        %5115 = vst.msk [vmem:[#allocation4 + $0x160] sm:$0xff] %vm5092, %v5014
        %5116 = vst.msk [vmem:[#allocation4 + $0x170] sm:$0xff] %vm5092, %v5016
        %5117 = vst.msk [vmem:[#allocation4 + $0x180] sm:$0xff] %vm5092, %v5018
        %5118 = vst.msk [vmem:[#allocation4 + $0x190] sm:$0xff] %vm5092, %v5020
        %5119 = vst.msk [vmem:[#allocation4 + $0x1a0] sm:$0xff] %vm5092, %v5022
        %5120 = vst.msk [vmem:[#allocation4 + $0x1b0] sm:$0xff] %vm5092, %v5024
        %5121 = vst.msk [vmem:[#allocation4 + $0x1c0] sm:$0xff] %vm5092, %v5026
        %5122 = vst.msk [vmem:[#allocation4 + $0x1d0] sm:$0xff] %vm5092, %v5028
        %5123 = vst.msk [vmem:[#allocation4 + $0x1e0] sm:$0xff] %vm5092, %v5030
        %5124 = vst.msk [vmem:[#allocation4 + $0x1f0] sm:$0xff] %vm5092, %v5032
        %5125 = vst.msk [vmem:[#allocation4 + $0x200] sm:$0xff] %vm5092, %v5034
        %5126 = vst.msk [vmem:[#allocation4 + $0x210] sm:$0xff] %vm5092, %v5036
        %5127 = vst.msk [vmem:[#allocation4 + $0x220] sm:$0xff] %vm5092, %v5038
        %5128 = vst.msk [vmem:[#allocation4 + $0x230] sm:$0xff] %vm5092, %v5040
        %5129 = vst.msk [vmem:[#allocation4 + $0x240] sm:$0xff] %vm5092, %v5042
        %5130 = vst.msk [vmem:[#allocation4 + $0x250] sm:$0xff] %vm5092, %v5044
        %5131 = vst.msk [vmem:[#allocation4 + $0x260] sm:$0xff] %vm5092, %v5046
        %5132 = vst.msk [vmem:[#allocation4 + $0x270] sm:$0xff] %vm5092, %v5048
        %vm5133 = vcmask 781952
        %5134 = vst.msk [vmem:[#allocation4 + $0x280] sm:$0xf] %vm5133, %v5050
        %v5135 = vld [vmem:[#allocation2 + $0x29] sm:$0xff]
        %v5136 = vld [vmem:[#allocation2 + $0x31] sm:$0xff]
        %v5137 = vld [vmem:[#allocation2 + $0x39] sm:$0xff]
        %v5138 = vld [vmem:[#allocation2 + $0x41] sm:$0xff]
        %v5139 = vld [vmem:[#allocation2 + $0x49] sm:$0xff]
        %v5140 = vld [vmem:[#allocation2 + $0x51] sm:$0xff]
        %v5141 = vld [vmem:[#allocation2 + $0x59] sm:$0xff]
        %v5142 = vld [vmem:[#allocation2 + $0x61] sm:$0xff]
        %v5143 = vld [vmem:[#allocation2 + $0x69] sm:$0xff]
        %v5144 = vld [vmem:[#allocation2 + $0x71] sm:$0xff]
        %v5145 = vld [vmem:[#allocation2 + $0x79] sm:$0xff]
        %v5146 = vld [vmem:[#allocation2 + $0x81] sm:$0xff]
        %v5147 = vld [vmem:[#allocation2 + $0x89] sm:$0xff]
        %v5148 = vld [vmem:[#allocation2 + $0x91] sm:$0xff]
        %v5149 = vld [vmem:[#allocation2 + $0x99] sm:$0xff]
        %v5150 = vld [vmem:[#allocation2 + $0xa1] sm:$0xff]
        %v5151 = vld [vmem:[#allocation2 + $0xa9] sm:$0xff]
        %v5152 = vld [vmem:[#allocation2 + $0xb1] sm:$0xff]
        %v5153 = vld [vmem:[#allocation2 + $0xb9] sm:$0xff]
        %v5154 = vld [vmem:[#allocation2 + $0xc1] sm:$0xff]
        %v5155 = vld [vmem:[#allocation2 + $0xc9] sm:$0xff]
        %v5156 = vld [vmem:[#allocation2 + $0xd1] sm:$0xff]
        %v5157 = vld [vmem:[#allocation2 + $0xd9] sm:$0xff]
        %v5158 = vld [vmem:[#allocation2 + $0xe1] sm:$0xff]
        %v5159 = vld [vmem:[#allocation2 + $0xe9] sm:$0xff]
        %v5160 = vld [vmem:[#allocation2 + $0xf1] sm:$0xff]
        %v5161 = vld [vmem:[#allocation2 + $0xf9] sm:$0xff]
        %v5162 = vld [vmem:[#allocation2 + $0x101] sm:$0xff]
        %v5163 = vld [vmem:[#allocation2 + $0x109] sm:$0xff]
        %v5164 = vld [vmem:[#allocation2 + $0x111] sm:$0xff]
        %v5165 = vld [vmem:[#allocation2 + $0x119] sm:$0xff]
        %v5166 = vld [vmem:[#allocation2 + $0x121] sm:$0xff]
        %v5167 = vld [vmem:[#allocation2 + $0x129] sm:$0xff]
        %v5168 = vld [vmem:[#allocation2 + $0x131] sm:$0xff]
        %v5169 = vld [vmem:[#allocation2 + $0x139] sm:$0xff]
        %v5170 = vld [vmem:[#allocation2 + $0x141] sm:$0xff]
        %v5171 = vld [vmem:[#allocation2 + $0x149] sm:$0xff]
        %v5172 = vld [vmem:[#allocation2 + $0x151] sm:$0xff]
        %v5173 = vld [vmem:[#allocation2 + $0x159] sm:$0xff]
        %v5174 = vld [vmem:[#allocation2 + $0x161] sm:$0xff]
        %v5175 = vld [vmem:[#allocation2 + $0x169] sm:$0xf]
        %5217 = vrot.lane.b32.xlu0 %v5135, 96
        %v5218 = vpop.permute.xlu0 %5217
        %5219 = vrot.lane.b32.xlu0 %v5136, 96
        %v5220 = vpop.permute.xlu0 %5219
        %5221 = vrot.lane.b32.xlu0 %v5137, 96
        %v5222 = vpop.permute.xlu0 %5221
        %5223 = vrot.lane.b32.xlu0 %v5138, 96
        %v5224 = vpop.permute.xlu0 %5223
        %5225 = vrot.lane.b32.xlu0 %v5139, 96
        %v5226 = vpop.permute.xlu0 %5225
        %5227 = vrot.lane.b32.xlu0 %v5140, 96
        %v5228 = vpop.permute.xlu0 %5227
        %5229 = vrot.lane.b32.xlu0 %v5141, 96
        %v5230 = vpop.permute.xlu0 %5229
        %5231 = vrot.lane.b32.xlu0 %v5142, 96
        %v5232 = vpop.permute.xlu0 %5231
        %5233 = vrot.lane.b32.xlu0 %v5143, 96
        %v5234 = vpop.permute.xlu0 %5233
        %5235 = vrot.lane.b32.xlu0 %v5144, 96
        %v5236 = vpop.permute.xlu0 %5235
        %5237 = vrot.lane.b32.xlu0 %v5145, 96
        %v5238 = vpop.permute.xlu0 %5237
        %5239 = vrot.lane.b32.xlu0 %v5146, 96
        %v5240 = vpop.permute.xlu0 %5239
        %5241 = vrot.lane.b32.xlu0 %v5147, 96
        %v5242 = vpop.permute.xlu0 %5241
        %5243 = vrot.lane.b32.xlu0 %v5148, 96
        %v5244 = vpop.permute.xlu0 %5243
        %5245 = vrot.lane.b32.xlu0 %v5149, 96
        %v5246 = vpop.permute.xlu0 %5245
        %5247 = vrot.lane.b32.xlu0 %v5150, 96
        %v5248 = vpop.permute.xlu0 %5247
        %5249 = vrot.lane.b32.xlu0 %v5151, 96
        %v5250 = vpop.permute.xlu0 %5249
        %5251 = vrot.lane.b32.xlu0 %v5152, 96
        %v5252 = vpop.permute.xlu0 %5251
        %5253 = vrot.lane.b32.xlu0 %v5153, 96
        %v5254 = vpop.permute.xlu0 %5253
        %5255 = vrot.lane.b32.xlu0 %v5154, 96
        %v5256 = vpop.permute.xlu0 %5255
        %5257 = vrot.lane.b32.xlu0 %v5155, 96
        %v5258 = vpop.permute.xlu0 %5257
        %5259 = vrot.lane.b32.xlu0 %v5156, 96
        %v5260 = vpop.permute.xlu0 %5259
        %5261 = vrot.lane.b32.xlu0 %v5157, 96
        %v5262 = vpop.permute.xlu0 %5261
        %5263 = vrot.lane.b32.xlu0 %v5158, 96
        %v5264 = vpop.permute.xlu0 %5263
        %5265 = vrot.lane.b32.xlu0 %v5159, 96
        %v5266 = vpop.permute.xlu0 %5265
        %5267 = vrot.lane.b32.xlu0 %v5160, 96
        %v5268 = vpop.permute.xlu0 %5267
        %5269 = vrot.lane.b32.xlu0 %v5161, 96
        %v5270 = vpop.permute.xlu0 %5269
        %5271 = vrot.lane.b32.xlu0 %v5162, 96
        %v5272 = vpop.permute.xlu0 %5271
        %5273 = vrot.lane.b32.xlu0 %v5163, 96
        %v5274 = vpop.permute.xlu0 %5273
        %5275 = vrot.lane.b32.xlu0 %v5164, 96
        %v5276 = vpop.permute.xlu0 %5275
        %5277 = vrot.lane.b32.xlu0 %v5165, 96
        %v5278 = vpop.permute.xlu0 %5277
        %5279 = vrot.lane.b32.xlu0 %v5166, 96
        %v5280 = vpop.permute.xlu0 %5279
        %5281 = vrot.lane.b32.xlu0 %v5167, 96
        %v5282 = vpop.permute.xlu0 %5281
        %5283 = vrot.lane.b32.xlu0 %v5168, 96
        %v5284 = vpop.permute.xlu0 %5283
        %5285 = vrot.lane.b32.xlu0 %v5169, 96
        %v5286 = vpop.permute.xlu0 %5285
        %5287 = vrot.lane.b32.xlu0 %v5170, 96
        %v5288 = vpop.permute.xlu0 %5287
        %5289 = vrot.lane.b32.xlu0 %v5171, 96
        %v5290 = vpop.permute.xlu0 %5289
        %5291 = vrot.lane.b32.xlu0 %v5172, 96
        %v5292 = vpop.permute.xlu0 %5291
        %5293 = vrot.lane.b32.xlu0 %v5173, 96
        %v5294 = vpop.permute.xlu0 %5293
        %5295 = vrot.lane.b32.xlu0 %v5174, 96
        %v5296 = vpop.permute.xlu0 %5295
        %5297 = vrot.lane.b32.xlu0 %v5175, 96
        %v5298 = vpop.permute.xlu0 %5297
        %vm5340 = vcmask 917248
        %5341 = vst.msk [vmem:[#allocation4] sm:$0xff] %vm5340, %v5218
        %5342 = vst.msk [vmem:[#allocation4 + $0x10] sm:$0xff] %vm5340, %v5220
        %5343 = vst.msk [vmem:[#allocation4 + $0x20] sm:$0xff] %vm5340, %v5222
        %5344 = vst.msk [vmem:[#allocation4 + $0x30] sm:$0xff] %vm5340, %v5224
        %5345 = vst.msk [vmem:[#allocation4 + $0x40] sm:$0xff] %vm5340, %v5226
        %5346 = vst.msk [vmem:[#allocation4 + $0x50] sm:$0xff] %vm5340, %v5228
        %5347 = vst.msk [vmem:[#allocation4 + $0x60] sm:$0xff] %vm5340, %v5230
        %5348 = vst.msk [vmem:[#allocation4 + $0x70] sm:$0xff] %vm5340, %v5232
        %5349 = vst.msk [vmem:[#allocation4 + $0x80] sm:$0xff] %vm5340, %v5234
        %5350 = vst.msk [vmem:[#allocation4 + $0x90] sm:$0xff] %vm5340, %v5236
        %5351 = vst.msk [vmem:[#allocation4 + $0xa0] sm:$0xff] %vm5340, %v5238
        %5352 = vst.msk [vmem:[#allocation4 + $0xb0] sm:$0xff] %vm5340, %v5240
        %5353 = vst.msk [vmem:[#allocation4 + $0xc0] sm:$0xff] %vm5340, %v5242
        %5354 = vst.msk [vmem:[#allocation4 + $0xd0] sm:$0xff] %vm5340, %v5244
        %5355 = vst.msk [vmem:[#allocation4 + $0xe0] sm:$0xff] %vm5340, %v5246
        %5356 = vst.msk [vmem:[#allocation4 + $0xf0] sm:$0xff] %vm5340, %v5248
        %5357 = vst.msk [vmem:[#allocation4 + $0x100] sm:$0xff] %vm5340, %v5250
        %5358 = vst.msk [vmem:[#allocation4 + $0x110] sm:$0xff] %vm5340, %v5252
        %5359 = vst.msk [vmem:[#allocation4 + $0x120] sm:$0xff] %vm5340, %v5254
        %5360 = vst.msk [vmem:[#allocation4 + $0x130] sm:$0xff] %vm5340, %v5256
        %5361 = vst.msk [vmem:[#allocation4 + $0x140] sm:$0xff] %vm5340, %v5258
        %5362 = vst.msk [vmem:[#allocation4 + $0x150] sm:$0xff] %vm5340, %v5260
        %5363 = vst.msk [vmem:[#allocation4 + $0x160] sm:$0xff] %vm5340, %v5262
        %5364 = vst.msk [vmem:[#allocation4 + $0x170] sm:$0xff] %vm5340, %v5264
        %5365 = vst.msk [vmem:[#allocation4 + $0x180] sm:$0xff] %vm5340, %v5266
        %5366 = vst.msk [vmem:[#allocation4 + $0x190] sm:$0xff] %vm5340, %v5268
        %5367 = vst.msk [vmem:[#allocation4 + $0x1a0] sm:$0xff] %vm5340, %v5270
        %5368 = vst.msk [vmem:[#allocation4 + $0x1b0] sm:$0xff] %vm5340, %v5272
        %5369 = vst.msk [vmem:[#allocation4 + $0x1c0] sm:$0xff] %vm5340, %v5274
        %5370 = vst.msk [vmem:[#allocation4 + $0x1d0] sm:$0xff] %vm5340, %v5276
        %5371 = vst.msk [vmem:[#allocation4 + $0x1e0] sm:$0xff] %vm5340, %v5278
        %5372 = vst.msk [vmem:[#allocation4 + $0x1f0] sm:$0xff] %vm5340, %v5280
        %5373 = vst.msk [vmem:[#allocation4 + $0x200] sm:$0xff] %vm5340, %v5282
        %5374 = vst.msk [vmem:[#allocation4 + $0x210] sm:$0xff] %vm5340, %v5284
        %5375 = vst.msk [vmem:[#allocation4 + $0x220] sm:$0xff] %vm5340, %v5286
        %5376 = vst.msk [vmem:[#allocation4 + $0x230] sm:$0xff] %vm5340, %v5288
        %5377 = vst.msk [vmem:[#allocation4 + $0x240] sm:$0xff] %vm5340, %v5290
        %5378 = vst.msk [vmem:[#allocation4 + $0x250] sm:$0xff] %vm5340, %v5292
        %5379 = vst.msk [vmem:[#allocation4 + $0x260] sm:$0xff] %vm5340, %v5294
        %5380 = vst.msk [vmem:[#allocation4 + $0x270] sm:$0xff] %vm5340, %v5296
        %vm5381 = vcmask 913152
        %5382 = vst.msk [vmem:[#allocation4 + $0x280] sm:$0xf] %vm5381, %v5298
        %v5383 = vld [vmem:[#allocation2 + $0x2a] sm:$0xff]
        %v5384 = vld [vmem:[#allocation2 + $0x32] sm:$0xff]
        %v5385 = vld [vmem:[#allocation2 + $0x3a] sm:$0xff]
        %v5386 = vld [vmem:[#allocation2 + $0x42] sm:$0xff]
        %v5387 = vld [vmem:[#allocation2 + $0x4a] sm:$0xff]
        %v5388 = vld [vmem:[#allocation2 + $0x52] sm:$0xff]
        %v5389 = vld [vmem:[#allocation2 + $0x5a] sm:$0xff]
        %v5390 = vld [vmem:[#allocation2 + $0x62] sm:$0xff]
        %v5391 = vld [vmem:[#allocation2 + $0x6a] sm:$0xff]
        %v5392 = vld [vmem:[#allocation2 + $0x72] sm:$0xff]
        %v5393 = vld [vmem:[#allocation2 + $0x7a] sm:$0xff]
        %v5394 = vld [vmem:[#allocation2 + $0x82] sm:$0xff]
        %v5395 = vld [vmem:[#allocation2 + $0x8a] sm:$0xff]
        %v5396 = vld [vmem:[#allocation2 + $0x92] sm:$0xff]
        %v5397 = vld [vmem:[#allocation2 + $0x9a] sm:$0xff]
        %v5398 = vld [vmem:[#allocation2 + $0xa2] sm:$0xff]
        %v5399 = vld [vmem:[#allocation2 + $0xaa] sm:$0xff]
        %v5400 = vld [vmem:[#allocation2 + $0xb2] sm:$0xff]
        %v5401 = vld [vmem:[#allocation2 + $0xba] sm:$0xff]
        %v5402 = vld [vmem:[#allocation2 + $0xc2] sm:$0xff]
        %v5403 = vld [vmem:[#allocation2 + $0xca] sm:$0xff]
        %v5404 = vld [vmem:[#allocation2 + $0xd2] sm:$0xff]
        %v5405 = vld [vmem:[#allocation2 + $0xda] sm:$0xff]
        %v5406 = vld [vmem:[#allocation2 + $0xe2] sm:$0xff]
        %v5407 = vld [vmem:[#allocation2 + $0xea] sm:$0xff]
        %v5408 = vld [vmem:[#allocation2 + $0xf2] sm:$0xff]
        %v5409 = vld [vmem:[#allocation2 + $0xfa] sm:$0xff]
        %v5410 = vld [vmem:[#allocation2 + $0x102] sm:$0xff]
        %v5411 = vld [vmem:[#allocation2 + $0x10a] sm:$0xff]
        %v5412 = vld [vmem:[#allocation2 + $0x112] sm:$0xff]
        %v5413 = vld [vmem:[#allocation2 + $0x11a] sm:$0xff]
        %v5414 = vld [vmem:[#allocation2 + $0x122] sm:$0xff]
        %v5415 = vld [vmem:[#allocation2 + $0x12a] sm:$0xff]
        %v5416 = vld [vmem:[#allocation2 + $0x132] sm:$0xff]
        %v5417 = vld [vmem:[#allocation2 + $0x13a] sm:$0xff]
        %v5418 = vld [vmem:[#allocation2 + $0x142] sm:$0xff]
        %v5419 = vld [vmem:[#allocation2 + $0x14a] sm:$0xff]
        %v5420 = vld [vmem:[#allocation2 + $0x152] sm:$0xff]
        %v5421 = vld [vmem:[#allocation2 + $0x15a] sm:$0xff]
        %v5422 = vld [vmem:[#allocation2 + $0x162] sm:$0xff]
        %v5423 = vld [vmem:[#allocation2 + $0x16a] sm:$0xf]
        %5465 = vrot.lane.b32.xlu0 %v5383, 112
        %v5466 = vpop.permute.xlu0 %5465
        %5467 = vrot.lane.b32.xlu0 %v5384, 112
        %v5468 = vpop.permute.xlu0 %5467
        %5469 = vrot.lane.b32.xlu0 %v5385, 112
        %v5470 = vpop.permute.xlu0 %5469
        %5471 = vrot.lane.b32.xlu0 %v5386, 112
        %v5472 = vpop.permute.xlu0 %5471
        %5473 = vrot.lane.b32.xlu0 %v5387, 112
        %v5474 = vpop.permute.xlu0 %5473
        %5475 = vrot.lane.b32.xlu0 %v5388, 112
        %v5476 = vpop.permute.xlu0 %5475
        %5477 = vrot.lane.b32.xlu0 %v5389, 112
        %v5478 = vpop.permute.xlu0 %5477
        %5479 = vrot.lane.b32.xlu0 %v5390, 112
        %v5480 = vpop.permute.xlu0 %5479
        %5481 = vrot.lane.b32.xlu0 %v5391, 112
        %v5482 = vpop.permute.xlu0 %5481
        %5483 = vrot.lane.b32.xlu0 %v5392, 112
        %v5484 = vpop.permute.xlu0 %5483
        %5485 = vrot.lane.b32.xlu0 %v5393, 112
        %v5486 = vpop.permute.xlu0 %5485
        %5487 = vrot.lane.b32.xlu0 %v5394, 112
        %v5488 = vpop.permute.xlu0 %5487
        %5489 = vrot.lane.b32.xlu0 %v5395, 112
        %v5490 = vpop.permute.xlu0 %5489
        %5491 = vrot.lane.b32.xlu0 %v5396, 112
        %v5492 = vpop.permute.xlu0 %5491
        %5493 = vrot.lane.b32.xlu0 %v5397, 112
        %v5494 = vpop.permute.xlu0 %5493
        %5495 = vrot.lane.b32.xlu0 %v5398, 112
        %v5496 = vpop.permute.xlu0 %5495
        %5497 = vrot.lane.b32.xlu0 %v5399, 112
        %v5498 = vpop.permute.xlu0 %5497
        %5499 = vrot.lane.b32.xlu0 %v5400, 112
        %v5500 = vpop.permute.xlu0 %5499
        %5501 = vrot.lane.b32.xlu0 %v5401, 112
        %v5502 = vpop.permute.xlu0 %5501
        %5503 = vrot.lane.b32.xlu0 %v5402, 112
        %v5504 = vpop.permute.xlu0 %5503
        %5505 = vrot.lane.b32.xlu0 %v5403, 112
        %v5506 = vpop.permute.xlu0 %5505
        %5507 = vrot.lane.b32.xlu0 %v5404, 112
        %v5508 = vpop.permute.xlu0 %5507
        %5509 = vrot.lane.b32.xlu0 %v5405, 112
        %v5510 = vpop.permute.xlu0 %5509
        %5511 = vrot.lane.b32.xlu0 %v5406, 112
        %v5512 = vpop.permute.xlu0 %5511
        %5513 = vrot.lane.b32.xlu0 %v5407, 112
        %v5514 = vpop.permute.xlu0 %5513
        %5515 = vrot.lane.b32.xlu0 %v5408, 112
        %v5516 = vpop.permute.xlu0 %5515
        %5517 = vrot.lane.b32.xlu0 %v5409, 112
        %v5518 = vpop.permute.xlu0 %5517
        %5519 = vrot.lane.b32.xlu0 %v5410, 112
        %v5520 = vpop.permute.xlu0 %5519
        %5521 = vrot.lane.b32.xlu0 %v5411, 112
        %v5522 = vpop.permute.xlu0 %5521
        %5523 = vrot.lane.b32.xlu0 %v5412, 112
        %v5524 = vpop.permute.xlu0 %5523
        %5525 = vrot.lane.b32.xlu0 %v5413, 112
        %v5526 = vpop.permute.xlu0 %5525
        %5527 = vrot.lane.b32.xlu0 %v5414, 112
        %v5528 = vpop.permute.xlu0 %5527
        %5529 = vrot.lane.b32.xlu0 %v5415, 112
        %v5530 = vpop.permute.xlu0 %5529
        %5531 = vrot.lane.b32.xlu0 %v5416, 112
        %v5532 = vpop.permute.xlu0 %5531
        %5533 = vrot.lane.b32.xlu0 %v5417, 112
        %v5534 = vpop.permute.xlu0 %5533
        %5535 = vrot.lane.b32.xlu0 %v5418, 112
        %v5536 = vpop.permute.xlu0 %5535
        %5537 = vrot.lane.b32.xlu0 %v5419, 112
        %v5538 = vpop.permute.xlu0 %5537
        %5539 = vrot.lane.b32.xlu0 %v5420, 112
        %v5540 = vpop.permute.xlu0 %5539
        %5541 = vrot.lane.b32.xlu0 %v5421, 112
        %v5542 = vpop.permute.xlu0 %5541
        %5543 = vrot.lane.b32.xlu0 %v5422, 112
        %v5544 = vpop.permute.xlu0 %5543
        %5545 = vrot.lane.b32.xlu0 %v5423, 112
        %v5546 = vpop.permute.xlu0 %5545
        %vm5588 = vcmask 1048448
        %5589 = vst.msk [vmem:[#allocation4] sm:$0xff] %vm5588, %v5466
        %5590 = vst.msk [vmem:[#allocation4 + $0x10] sm:$0xff] %vm5588, %v5468
        %5591 = vst.msk [vmem:[#allocation4 + $0x20] sm:$0xff] %vm5588, %v5470
        %5592 = vst.msk [vmem:[#allocation4 + $0x30] sm:$0xff] %vm5588, %v5472
        %5593 = vst.msk [vmem:[#allocation4 + $0x40] sm:$0xff] %vm5588, %v5474
        %5594 = vst.msk [vmem:[#allocation4 + $0x50] sm:$0xff] %vm5588, %v5476
        %5595 = vst.msk [vmem:[#allocation4 + $0x60] sm:$0xff] %vm5588, %v5478
        %5596 = vst.msk [vmem:[#allocation4 + $0x70] sm:$0xff] %vm5588, %v5480
        %5597 = vst.msk [vmem:[#allocation4 + $0x80] sm:$0xff] %vm5588, %v5482
        %5598 = vst.msk [vmem:[#allocation4 + $0x90] sm:$0xff] %vm5588, %v5484
        %5599 = vst.msk [vmem:[#allocation4 + $0xa0] sm:$0xff] %vm5588, %v5486
        %5600 = vst.msk [vmem:[#allocation4 + $0xb0] sm:$0xff] %vm5588, %v5488
        %5601 = vst.msk [vmem:[#allocation4 + $0xc0] sm:$0xff] %vm5588, %v5490
        %5602 = vst.msk [vmem:[#allocation4 + $0xd0] sm:$0xff] %vm5588, %v5492
        %5603 = vst.msk [vmem:[#allocation4 + $0xe0] sm:$0xff] %vm5588, %v5494
        %5604 = vst.msk [vmem:[#allocation4 + $0xf0] sm:$0xff] %vm5588, %v5496
        %5605 = vst.msk [vmem:[#allocation4 + $0x100] sm:$0xff] %vm5588, %v5498
        %5606 = vst.msk [vmem:[#allocation4 + $0x110] sm:$0xff] %vm5588, %v5500
        %5607 = vst.msk [vmem:[#allocation4 + $0x120] sm:$0xff] %vm5588, %v5502
        %5608 = vst.msk [vmem:[#allocation4 + $0x130] sm:$0xff] %vm5588, %v5504
        %5609 = vst.msk [vmem:[#allocation4 + $0x140] sm:$0xff] %vm5588, %v5506
        %5610 = vst.msk [vmem:[#allocation4 + $0x150] sm:$0xff] %vm5588, %v5508
        %5611 = vst.msk [vmem:[#allocation4 + $0x160] sm:$0xff] %vm5588, %v5510
        %5612 = vst.msk [vmem:[#allocation4 + $0x170] sm:$0xff] %vm5588, %v5512
        %5613 = vst.msk [vmem:[#allocation4 + $0x180] sm:$0xff] %vm5588, %v5514
        %5614 = vst.msk [vmem:[#allocation4 + $0x190] sm:$0xff] %vm5588, %v5516
        %5615 = vst.msk [vmem:[#allocation4 + $0x1a0] sm:$0xff] %vm5588, %v5518
        %5616 = vst.msk [vmem:[#allocation4 + $0x1b0] sm:$0xff] %vm5588, %v5520
        %5617 = vst.msk [vmem:[#allocation4 + $0x1c0] sm:$0xff] %vm5588, %v5522
        %5618 = vst.msk [vmem:[#allocation4 + $0x1d0] sm:$0xff] %vm5588, %v5524
        %5619 = vst.msk [vmem:[#allocation4 + $0x1e0] sm:$0xff] %vm5588, %v5526
        %5620 = vst.msk [vmem:[#allocation4 + $0x1f0] sm:$0xff] %vm5588, %v5528
        %5621 = vst.msk [vmem:[#allocation4 + $0x200] sm:$0xff] %vm5588, %v5530
        %5622 = vst.msk [vmem:[#allocation4 + $0x210] sm:$0xff] %vm5588, %v5532
        %5623 = vst.msk [vmem:[#allocation4 + $0x220] sm:$0xff] %vm5588, %v5534
        %5624 = vst.msk [vmem:[#allocation4 + $0x230] sm:$0xff] %vm5588, %v5536
        %5625 = vst.msk [vmem:[#allocation4 + $0x240] sm:$0xff] %vm5588, %v5538
        %5626 = vst.msk [vmem:[#allocation4 + $0x250] sm:$0xff] %vm5588, %v5540
        %5627 = vst.msk [vmem:[#allocation4 + $0x260] sm:$0xff] %vm5588, %v5542
        %5628 = vst.msk [vmem:[#allocation4 + $0x270] sm:$0xff] %vm5588, %v5544
        %vm5629 = vcmask 1044352
        %5630 = vst.msk [vmem:[#allocation4 + $0x280] sm:$0xf] %vm5629, %v5546
        %v5631 = vld [vmem:[#allocation2 + $0x2b] sm:$0xff]
        %v5632 = vld [vmem:[#allocation2 + $0x33] sm:$0xff]
        %v5633 = vld [vmem:[#allocation2 + $0x3b] sm:$0xff]
        %v5634 = vld [vmem:[#allocation2 + $0x43] sm:$0xff]
        %v5635 = vld [vmem:[#allocation2 + $0x4b] sm:$0xff]
        %v5636 = vld [vmem:[#allocation2 + $0x53] sm:$0xff]
        %v5637 = vld [vmem:[#allocation2 + $0x5b] sm:$0xff]
        %v5638 = vld [vmem:[#allocation2 + $0x63] sm:$0xff]
        %v5639 = vld [vmem:[#allocation2 + $0x6b] sm:$0xff]
        %v5640 = vld [vmem:[#allocation2 + $0x73] sm:$0xff]
        %v5641 = vld [vmem:[#allocation2 + $0x7b] sm:$0xff]
        %v5642 = vld [vmem:[#allocation2 + $0x83] sm:$0xff]
        %v5643 = vld [vmem:[#allocation2 + $0x8b] sm:$0xff]
        %v5644 = vld [vmem:[#allocation2 + $0x93] sm:$0xff]
        %v5645 = vld [vmem:[#allocation2 + $0x9b] sm:$0xff]
        %v5646 = vld [vmem:[#allocation2 + $0xa3] sm:$0xff]
        %v5647 = vld [vmem:[#allocation2 + $0xab] sm:$0xff]
        %v5648 = vld [vmem:[#allocation2 + $0xb3] sm:$0xff]
        %v5649 = vld [vmem:[#allocation2 + $0xbb] sm:$0xff]
        %v5650 = vld [vmem:[#allocation2 + $0xc3] sm:$0xff]
        %v5651 = vld [vmem:[#allocation2 + $0xcb] sm:$0xff]
        %v5652 = vld [vmem:[#allocation2 + $0xd3] sm:$0xff]
        %v5653 = vld [vmem:[#allocation2 + $0xdb] sm:$0xff]
        %v5654 = vld [vmem:[#allocation2 + $0xe3] sm:$0xff]
        %v5655 = vld [vmem:[#allocation2 + $0xeb] sm:$0xff]
        %v5656 = vld [vmem:[#allocation2 + $0xf3] sm:$0xff]
        %v5657 = vld [vmem:[#allocation2 + $0xfb] sm:$0xff]
        %v5658 = vld [vmem:[#allocation2 + $0x103] sm:$0xff]
        %v5659 = vld [vmem:[#allocation2 + $0x10b] sm:$0xff]
        %v5660 = vld [vmem:[#allocation2 + $0x113] sm:$0xff]
        %v5661 = vld [vmem:[#allocation2 + $0x11b] sm:$0xff]
        %v5662 = vld [vmem:[#allocation2 + $0x123] sm:$0xff]
        %v5663 = vld [vmem:[#allocation2 + $0x12b] sm:$0xff]
        %v5664 = vld [vmem:[#allocation2 + $0x133] sm:$0xff]
        %v5665 = vld [vmem:[#allocation2 + $0x13b] sm:$0xff]
        %v5666 = vld [vmem:[#allocation2 + $0x143] sm:$0xff]
        %v5667 = vld [vmem:[#allocation2 + $0x14b] sm:$0xff]
        %v5668 = vld [vmem:[#allocation2 + $0x153] sm:$0xff]
        %v5669 = vld [vmem:[#allocation2 + $0x15b] sm:$0xff]
        %v5670 = vld [vmem:[#allocation2 + $0x163] sm:$0xff]
        %v5671 = vld [vmem:[#allocation2 + $0x16b] sm:$0xf]
        %5672 = vst.msk [vmem:[#allocation4 + $0x8] sm:$0xff] %vm3114, %v5631
        %5673 = vst.msk [vmem:[#allocation4 + $0x18] sm:$0xff] %vm3114, %v5632
        %5674 = vst.msk [vmem:[#allocation4 + $0x28] sm:$0xff] %vm3114, %v5633
        %5675 = vst.msk [vmem:[#allocation4 + $0x38] sm:$0xff] %vm3114, %v5634
        %5676 = vst.msk [vmem:[#allocation4 + $0x48] sm:$0xff] %vm3114, %v5635
        %5677 = vst.msk [vmem:[#allocation4 + $0x58] sm:$0xff] %vm3114, %v5636
        %5678 = vst.msk [vmem:[#allocation4 + $0x68] sm:$0xff] %vm3114, %v5637
        %5679 = vst.msk [vmem:[#allocation4 + $0x78] sm:$0xff] %vm3114, %v5638
        %5680 = vst.msk [vmem:[#allocation4 + $0x88] sm:$0xff] %vm3114, %v5639
        %5681 = vst.msk [vmem:[#allocation4 + $0x98] sm:$0xff] %vm3114, %v5640
        %5682 = vst.msk [vmem:[#allocation4 + $0xa8] sm:$0xff] %vm3114, %v5641
        %5683 = vst.msk [vmem:[#allocation4 + $0xb8] sm:$0xff] %vm3114, %v5642
        %5684 = vst.msk [vmem:[#allocation4 + $0xc8] sm:$0xff] %vm3114, %v5643
        %5685 = vst.msk [vmem:[#allocation4 + $0xd8] sm:$0xff] %vm3114, %v5644
        %5686 = vst.msk [vmem:[#allocation4 + $0xe8] sm:$0xff] %vm3114, %v5645
        %5687 = vst.msk [vmem:[#allocation4 + $0xf8] sm:$0xff] %vm3114, %v5646
        %5688 = vst.msk [vmem:[#allocation4 + $0x108] sm:$0xff] %vm3114, %v5647
        %5689 = vst.msk [vmem:[#allocation4 + $0x118] sm:$0xff] %vm3114, %v5648
        %5690 = vst.msk [vmem:[#allocation4 + $0x128] sm:$0xff] %vm3114, %v5649
        %5691 = vst.msk [vmem:[#allocation4 + $0x138] sm:$0xff] %vm3114, %v5650
        %5692 = vst.msk [vmem:[#allocation4 + $0x148] sm:$0xff] %vm3114, %v5651
        %5693 = vst.msk [vmem:[#allocation4 + $0x158] sm:$0xff] %vm3114, %v5652
        %5694 = vst.msk [vmem:[#allocation4 + $0x168] sm:$0xff] %vm3114, %v5653
        %5695 = vst.msk [vmem:[#allocation4 + $0x178] sm:$0xff] %vm3114, %v5654
        %5696 = vst.msk [vmem:[#allocation4 + $0x188] sm:$0xff] %vm3114, %v5655
        %5697 = vst.msk [vmem:[#allocation4 + $0x198] sm:$0xff] %vm3114, %v5656
        %5698 = vst.msk [vmem:[#allocation4 + $0x1a8] sm:$0xff] %vm3114, %v5657
        %5699 = vst.msk [vmem:[#allocation4 + $0x1b8] sm:$0xff] %vm3114, %v5658
        %5700 = vst.msk [vmem:[#allocation4 + $0x1c8] sm:$0xff] %vm3114, %v5659
        %5701 = vst.msk [vmem:[#allocation4 + $0x1d8] sm:$0xff] %vm3114, %v5660
        %5702 = vst.msk [vmem:[#allocation4 + $0x1e8] sm:$0xff] %vm3114, %v5661
        %5703 = vst.msk [vmem:[#allocation4 + $0x1f8] sm:$0xff] %vm3114, %v5662
        %5704 = vst.msk [vmem:[#allocation4 + $0x208] sm:$0xff] %vm3114, %v5663
        %5705 = vst.msk [vmem:[#allocation4 + $0x218] sm:$0xff] %vm3114, %v5664
        %5706 = vst.msk [vmem:[#allocation4 + $0x228] sm:$0xff] %vm3114, %v5665
        %5707 = vst.msk [vmem:[#allocation4 + $0x238] sm:$0xff] %vm3114, %v5666
        %5708 = vst.msk [vmem:[#allocation4 + $0x248] sm:$0xff] %vm3114, %v5667
        %5709 = vst.msk [vmem:[#allocation4 + $0x258] sm:$0xff] %vm3114, %v5668
        %5710 = vst.msk [vmem:[#allocation4 + $0x268] sm:$0xff] %vm3114, %v5669
        %5711 = vst.msk [vmem:[#allocation4 + $0x278] sm:$0xff] %vm3114, %v5670
        %5712 = vst.msk [vmem:[#allocation4 + $0x288] sm:$0xf] %vm3194, %v5671
        %v5713 = vld [vmem:[#allocation4] sm:$0xff]
        %v5714 = vld [vmem:[#allocation4 + $0x8] sm:$0xff]
        %v5715 = vld [vmem:[#allocation4 + $0x10] sm:$0xff]
        %v5716 = vld [vmem:[#allocation4 + $0x18] sm:$0xff]
        %v5717 = vld [vmem:[#allocation4 + $0x20] sm:$0xff]
        %v5718 = vld [vmem:[#allocation4 + $0x28] sm:$0xff]
        %v5719 = vld [vmem:[#allocation4 + $0x30] sm:$0xff]
        %v5720 = vld [vmem:[#allocation4 + $0x38] sm:$0xff]
        %v5721 = vld [vmem:[#allocation4 + $0x40] sm:$0xff]
        %v5722 = vld [vmem:[#allocation4 + $0x48] sm:$0xff]
        %v5723 = vld [vmem:[#allocation4 + $0x50] sm:$0xff]
        %v5724 = vld [vmem:[#allocation4 + $0x58] sm:$0xff]
        %v5725 = vld [vmem:[#allocation4 + $0x60] sm:$0xff]
        %v5726 = vld [vmem:[#allocation4 + $0x68] sm:$0xff]
        %v5727 = vld [vmem:[#allocation4 + $0x70] sm:$0xff]
        %v5728 = vld [vmem:[#allocation4 + $0x78] sm:$0xff]
        %v5729 = vld [vmem:[#allocation4 + $0x80] sm:$0xff]
        %v5730 = vld [vmem:[#allocation4 + $0x88] sm:$0xff]
        %v5731 = vld [vmem:[#allocation4 + $0x90] sm:$0xff]
        %v5732 = vld [vmem:[#allocation4 + $0x98] sm:$0xff]
        %v5733 = vld [vmem:[#allocation4 + $0xa0] sm:$0xff]
        %v5734 = vld [vmem:[#allocation4 + $0xa8] sm:$0xff]
        %v5735 = vld [vmem:[#allocation4 + $0xb0] sm:$0xff]
        %v5736 = vld [vmem:[#allocation4 + $0xb8] sm:$0xff]
        %v5737 = vld [vmem:[#allocation4 + $0xc0] sm:$0xff]
        %v5738 = vld [vmem:[#allocation4 + $0xc8] sm:$0xff]
        %v5739 = vld [vmem:[#allocation4 + $0xd0] sm:$0xff]
        %v5740 = vld [vmem:[#allocation4 + $0xd8] sm:$0xff]
        %v5741 = vld [vmem:[#allocation4 + $0xe0] sm:$0xff]
        %v5742 = vld [vmem:[#allocation4 + $0xe8] sm:$0xff]
        %v5743 = vld [vmem:[#allocation4 + $0xf0] sm:$0xff]
        %v5744 = vld [vmem:[#allocation4 + $0xf8] sm:$0xff]
        %v5745 = vld [vmem:[#allocation4 + $0x100] sm:$0xff]
        %v5746 = vld [vmem:[#allocation4 + $0x108] sm:$0xff]
        %v5747 = vld [vmem:[#allocation4 + $0x110] sm:$0xff]
        %v5748 = vld [vmem:[#allocation4 + $0x118] sm:$0xff]
        %v5749 = vld [vmem:[#allocation4 + $0x120] sm:$0xff]
        %v5750 = vld [vmem:[#allocation4 + $0x128] sm:$0xff]
        %v5751 = vld [vmem:[#allocation4 + $0x130] sm:$0xff]
        %v5752 = vld [vmem:[#allocation4 + $0x138] sm:$0xff]
        %v5753 = vld [vmem:[#allocation4 + $0x140] sm:$0xff]
        %v5754 = vld [vmem:[#allocation4 + $0x148] sm:$0xff]
        %v5755 = vld [vmem:[#allocation4 + $0x150] sm:$0xff]
        %v5756 = vld [vmem:[#allocation4 + $0x158] sm:$0xff]
        %v5757 = vld [vmem:[#allocation4 + $0x160] sm:$0xff]
        %v5758 = vld [vmem:[#allocation4 + $0x168] sm:$0xff]
        %v5759 = vld [vmem:[#allocation4 + $0x170] sm:$0xff]
        %v5760 = vld [vmem:[#allocation4 + $0x178] sm:$0xff]
        %v5761 = vld [vmem:[#allocation4 + $0x180] sm:$0xff]
        %v5762 = vld [vmem:[#allocation4 + $0x188] sm:$0xff]
        %v5763 = vld [vmem:[#allocation4 + $0x190] sm:$0xff]
        %v5764 = vld [vmem:[#allocation4 + $0x198] sm:$0xff]
        %v5765 = vld [vmem:[#allocation4 + $0x1a0] sm:$0xff]
        %v5766 = vld [vmem:[#allocation4 + $0x1a8] sm:$0xff]
        %v5767 = vld [vmem:[#allocation4 + $0x1b0] sm:$0xff]
        %v5768 = vld [vmem:[#allocation4 + $0x1b8] sm:$0xff]
        %v5769 = vld [vmem:[#allocation4 + $0x1c0] sm:$0xff]
        %v5770 = vld [vmem:[#allocation4 + $0x1c8] sm:$0xff]
        %v5771 = vld [vmem:[#allocation4 + $0x1d0] sm:$0xff]
        %v5772 = vld [vmem:[#allocation4 + $0x1d8] sm:$0xff]
        %v5773 = vld [vmem:[#allocation4 + $0x1e0] sm:$0xff]
        %v5774 = vld [vmem:[#allocation4 + $0x1e8] sm:$0xff]
        %v5775 = vld [vmem:[#allocation4 + $0x1f0] sm:$0xff]
        %v5776 = vld [vmem:[#allocation4 + $0x1f8] sm:$0xff]
        %v5777 = vld [vmem:[#allocation4 + $0x200] sm:$0xff]
        %v5778 = vld [vmem:[#allocation4 + $0x208] sm:$0xff]
        %v5779 = vld [vmem:[#allocation4 + $0x210] sm:$0xff]
        %v5780 = vld [vmem:[#allocation4 + $0x218] sm:$0xff]
        %v5781 = vld [vmem:[#allocation4 + $0x220] sm:$0xff]
        %v5782 = vld [vmem:[#allocation4 + $0x228] sm:$0xff]
        %v5783 = vld [vmem:[#allocation4 + $0x230] sm:$0xff]
        %v5784 = vld [vmem:[#allocation4 + $0x238] sm:$0xff]
        %v5785 = vld [vmem:[#allocation4 + $0x240] sm:$0xff]
        %v5786 = vld [vmem:[#allocation4 + $0x248] sm:$0xff]
        %v5787 = vld [vmem:[#allocation4 + $0x250] sm:$0xff]
        %v5788 = vld [vmem:[#allocation4 + $0x258] sm:$0xff]
        %v5789 = vld [vmem:[#allocation4 + $0x260] sm:$0xff]
        %v5790 = vld [vmem:[#allocation4 + $0x268] sm:$0xff]
        %v5791 = vld [vmem:[#allocation4 + $0x270] sm:$0xff]
        %v5792 = vld [vmem:[#allocation4 + $0x278] sm:$0xff]
        %v5793 = vld [vmem:[#allocation4 + $0x280] sm:$0xf]
        %v5794 = vld [vmem:[#allocation4 + $0x288] sm:$0xf]
        %v5796 = vlaneseq
        %v5797 = vshrl.u32 %v5796, 7
        %v5798 = vsub.s32 0, %v5797
        %v5799 = vrot.slane %v3808, %v5798
        %v5802 = vsel %vm3114, %v5714, 0
        %v5805 = vsel %vm3114, %v5716, 0
        %v5808 = vsel %vm3114, %v5718, 0
        %v5811 = vsel %vm3114, %v5720, 0
        %v5814 = vsel %vm3114, %v5722, 0
        %v5817 = vsel %vm3114, %v5724, 0
        %v5820 = vsel %vm3114, %v5726, 0
        %v5823 = vsel %vm3114, %v5728, 0
        %v5826 = vsel %vm3114, %v5730, 0
        %v5829 = vsel %vm3114, %v5732, 0
        %v5832 = vsel %vm3114, %v5734, 0
        %v5835 = vsel %vm3114, %v5736, 0
        %v5838 = vsel %vm3114, %v5738, 0
        %v5841 = vsel %vm3114, %v5740, 0
        %v5844 = vsel %vm3114, %v5742, 0
        %v5847 = vsel %vm3114, %v5744, 0
        %v5850 = vsel %vm3114, %v5746, 0
        %v5853 = vsel %vm3114, %v5748, 0
        %v5856 = vsel %vm3114, %v5750, 0
        %v5859 = vsel %vm3114, %v5752, 0
        %v5862 = vsel %vm3114, %v5754, 0
        %v5865 = vsel %vm3114, %v5756, 0
        %v5868 = vsel %vm3114, %v5758, 0
        %v5871 = vsel %vm3114, %v5760, 0
        %v5874 = vsel %vm3114, %v5762, 0
        %v5877 = vsel %vm3114, %v5764, 0
        %v5880 = vsel %vm3114, %v5766, 0
        %v5883 = vsel %vm3114, %v5768, 0
        %v5886 = vsel %vm3114, %v5770, 0
        %v5889 = vsel %vm3114, %v5772, 0
        %v5892 = vsel %vm3114, %v5774, 0
        %v5895 = vsel %vm3114, %v5776, 0
        %v5898 = vsel %vm3114, %v5778, 0
        %v5901 = vsel %vm3114, %v5780, 0
        %v5904 = vsel %vm3114, %v5782, 0
        %v5907 = vsel %vm3114, %v5784, 0
        %v5910 = vsel %vm3114, %v5786, 0
        %v5913 = vsel %vm3114, %v5788, 0
        %v5916 = vsel %vm3114, %v5790, 0
        %v5919 = vsel %vm3114, %v5792, 0
        %v5922 = vsel %vm3114, %v5794, 0
        %5924 = vmatprep.subr.mxu0 0.0
        %5925 = vmatpush1.msra.mxu0 %v3789
        %5926 = vmatprep.subr.mxu0 0.0
        %5927 = vmatpush1.msra.mxu0 %v3790
        %5928 = vmatprep.subr.mxu0 0.0
        %5929 = vmatpush1.msra.mxu0 %v3791
        %5930 = vmatprep.subr.mxu0 0.0
        %5931 = vmatpush1.msra.mxu0 %v3792
        %5932 = vmatprep.subr.mxu0 0.0
        %5933 = vmatpush1.msra.mxu0 %v3793
        %5934 = vmatprep.subr.mxu0 0.0
        %5935 = vmatpush1.msra.mxu0 %v3794
        %5936 = vmatprep.subr.mxu0 0.0
        %5937 = vmatpush1.msra.mxu0 %v3795
        %5938 = vmatprep.subr.mxu0 0.0
        %5939 = vmatpush1.msra.mxu0 %v3796
        %5940 = vmatprep.subr.mxu0 0.0
        %5941 = vmatpush1.msra.mxu0 %v3797
        %5942 = vmatprep.subr.mxu0 0.0
        %5943 = vmatpush1.msra.mxu0 %v3798
        %5944 = vmatprep.subr.mxu0 0.0
        %5945 = vmatpush1.msra.mxu0 %v3799
        %5946 = vmatprep.subr.mxu0 0.0
        %5947 = vmatpush1.msra.mxu0 %v3800
        %5948 = vmatprep.subr.mxu0 0.0
        %5949 = vmatpush1.msra.mxu0 %v3801
        %5950 = vmatprep.subr.mxu0 0.0
        %5951 = vmatpush1.msra.mxu0 %v3802
        %5952 = vmatprep.subr.mxu0 0.0
        %5953 = vmatpush1.msra.mxu0 %v3803
        %5954 = vmatprep.subr.mxu0 0.0
        %5955 = vmatpush1.msra.mxu0 %v3804
        %5956 = vmatprep.subr.mxu0 0.0
        %5957 = vmatpush1.msra.mxu0 %v3805
        %5958 = vmatprep.subr.mxu0 0.0
        %5959 = vmatpush1.msra.mxu0 %v3806
        %5960 = vmatprep.subr.mxu0 0.0
        %5961 = vmatpush1.msra.mxu0 0.0
        %5962 = vmatprep.subr.mxu0 0.0
        %5963 = vmatpush1.msra.mxu0 0.0
        %5964 = vmatprep.subr.mxu0 0.0
        %5965 = vmatpush1.msra.mxu0 0.0
        %5966 = vmatprep.subr.mxu0 0.0
        %5967 = vmatpush1.msra.mxu0 0.0
        %5968 = vmatprep.subr.mxu0 0.0
        %5969 = vmatpush1.msra.mxu0 0.0
        %5970 = vmatprep.subr.mxu0 0.0
        %5971 = vmatpush1.msra.mxu0 0.0
        %5972 = vmatprep.subr.mxu0 0.0
        %5973 = vmatpush1.msra.mxu0 0.0
        %5974 = vmatprep.subr.mxu0 0.0
        %5975 = vmatpush1.msra.mxu0 0.0
        %5976 = vmatprep.subr.mxu0 0.0
        %5977 = vmatpush1.msra.mxu0 0.0
        %5978 = vmatprep.subr.mxu0 0.0
        %5979 = vmatpush1.msra.mxu0 0.0
        %5980 = vmatprep.subr.mxu0 0.0
        %5981 = vmatpush1.msra.mxu0 0.0
        %5982 = vmatprep.subr.mxu0 0.0
        %5983 = vmatpush1.msra.mxu0 0.0
        %5984 = vmatprep.subr.mxu0 0.0
        %5985 = vmatpush1.msra.mxu0 0.0
        %5986 = vmatprep.subr.mxu0 0.0
        %5987 = vmatpush1.msra.mxu0 0.0
        %5988 = vmatprep.mubr.f32.mxu0 %v5802
        %5989 = vmatmul.mubr.f32.gmra.mrb[0].mxu0 %v5713
        %v5990 = vpop.f32.mrb[0].mxu0
        %v5991 = vadd.f32 %v5799, %v5990
        %v5992 = vpop.f32.mrb[0].mxu0
        %5993 = vmatprep.mubr.f32.mxu0 %v5805
        %5994 = vmatmul.mubr.f32.gmra.mrb[0].mxu0 %v5715
        %v5995 = vpop.f32.mrb[0].mxu0
        %v5996 = vadd.f32 %v5799, %v5995
        %v5997 = vpop.f32.mrb[0].mxu0
        %5998 = vmatprep.mubr.f32.mxu0 %v5808
        %5999 = vmatmul.mubr.f32.gmra.mrb[0].mxu0 %v5717
        %v6000 = vpop.f32.mrb[0].mxu0
        %v6001 = vadd.f32 %v5799, %v6000
        %v6002 = vpop.f32.mrb[0].mxu0
        %6003 = vmatprep.mubr.f32.mxu0 %v5811
        %6004 = vmatmul.mubr.f32.gmra.mrb[0].mxu0 %v5719
        %v6005 = vpop.f32.mrb[0].mxu0
        %v6006 = vadd.f32 %v5799, %v6005
        %v6007 = vpop.f32.mrb[0].mxu0
        %6008 = vmatprep.mubr.f32.mxu0 %v5814
        %6009 = vmatmul.mubr.f32.gmra.mrb[0].mxu0 %v5721
        %v6010 = vpop.f32.mrb[0].mxu0
        %v6011 = vadd.f32 %v5799, %v6010
        %v6012 = vpop.f32.mrb[0].mxu0
        %6013 = vmatprep.mubr.f32.mxu0 %v5817
        %6014 = vmatmul.mubr.f32.gmra.mrb[0].mxu0 %v5723
        %v6015 = vpop.f32.mrb[0].mxu0
        %v6016 = vadd.f32 %v5799, %v6015
        %v6017 = vpop.f32.mrb[0].mxu0
        %6018 = vmatprep.mubr.f32.mxu0 %v5820
        %6019 = vmatmul.mubr.f32.gmra.mrb[0].mxu0 %v5725
        %v6020 = vpop.f32.mrb[0].mxu0
        %v6021 = vadd.f32 %v5799, %v6020
        %v6022 = vpop.f32.mrb[0].mxu0
        %6023 = vmatprep.mubr.f32.mxu0 %v5823
        %6024 = vmatmul.mubr.f32.gmra.mrb[0].mxu0 %v5727
        %v6025 = vpop.f32.mrb[0].mxu0
        %v6026 = vadd.f32 %v5799, %v6025
        %v6027 = vpop.f32.mrb[0].mxu0
        %6028 = vmatprep.mubr.f32.mxu0 %v5826
        %6029 = vmatmul.mubr.f32.gmra.mrb[0].mxu0 %v5729
        %v6030 = vpop.f32.mrb[0].mxu0
        %v6031 = vadd.f32 %v5799, %v6030
        %v6032 = vpop.f32.mrb[0].mxu0
        %6033 = vmatprep.mubr.f32.mxu0 %v5829
        %6034 = vmatmul.mubr.f32.gmra.mrb[0].mxu0 %v5731
        %v6035 = vpop.f32.mrb[0].mxu0
        %v6036 = vadd.f32 %v5799, %v6035
        %v6037 = vpop.f32.mrb[0].mxu0
        %6038 = vmatprep.mubr.f32.mxu0 %v5832
        %6039 = vmatmul.mubr.f32.gmra.mrb[0].mxu0 %v5733
        %v6040 = vpop.f32.mrb[0].mxu0
        %v6041 = vadd.f32 %v5799, %v6040
        %v6042 = vpop.f32.mrb[0].mxu0
        %6043 = vmatprep.mubr.f32.mxu0 %v5835
        %6044 = vmatmul.mubr.f32.gmra.mrb[0].mxu0 %v5735
        %v6045 = vpop.f32.mrb[0].mxu0
        %v6046 = vadd.f32 %v5799, %v6045
        %v6047 = vpop.f32.mrb[0].mxu0
        %6048 = vmatprep.mubr.f32.mxu0 %v5838
        %6049 = vmatmul.mubr.f32.gmra.mrb[0].mxu0 %v5737
        %v6050 = vpop.f32.mrb[0].mxu0
        %v6051 = vadd.f32 %v5799, %v6050
        %v6052 = vpop.f32.mrb[0].mxu0
        %6053 = vmatprep.mubr.f32.mxu0 %v5841
        %6054 = vmatmul.mubr.f32.gmra.mrb[0].mxu0 %v5739
        %v6055 = vpop.f32.mrb[0].mxu0
        %v6056 = vadd.f32 %v5799, %v6055
        %v6057 = vpop.f32.mrb[0].mxu0
        %6058 = vmatprep.mubr.f32.mxu0 %v5844
        %6059 = vmatmul.mubr.f32.gmra.mrb[0].mxu0 %v5741
        %v6060 = vpop.f32.mrb[0].mxu0
        %v6061 = vadd.f32 %v5799, %v6060
        %v6062 = vpop.f32.mrb[0].mxu0
        %6063 = vmatprep.mubr.f32.mxu0 %v5847
        %6064 = vmatmul.mubr.f32.gmra.mrb[0].mxu0 %v5743
        %v6065 = vpop.f32.mrb[0].mxu0
        %v6066 = vadd.f32 %v5799, %v6065
        %v6067 = vpop.f32.mrb[0].mxu0
        %6068 = vmatprep.mubr.f32.mxu0 %v5850
        %6069 = vmatmul.mubr.f32.gmra.mrb[0].mxu0 %v5745
        %v6070 = vpop.f32.mrb[0].mxu0
        %v6071 = vadd.f32 %v5799, %v6070
        %v6072 = vpop.f32.mrb[0].mxu0
        %6073 = vmatprep.mubr.f32.mxu0 %v5853
        %6074 = vmatmul.mubr.f32.gmra.mrb[0].mxu0 %v5747
        %v6075 = vpop.f32.mrb[0].mxu0
        %v6076 = vadd.f32 %v5799, %v6075
        %v6077 = vpop.f32.mrb[0].mxu0
        %6078 = vmatprep.mubr.f32.mxu0 %v5856
        %6079 = vmatmul.mubr.f32.gmra.mrb[0].mxu0 %v5749
        %v6080 = vpop.f32.mrb[0].mxu0
        %v6081 = vadd.f32 %v5799, %v6080
        %v6082 = vpop.f32.mrb[0].mxu0
        %6083 = vmatprep.mubr.f32.mxu0 %v5859
        %6084 = vmatmul.mubr.f32.gmra.mrb[0].mxu0 %v5751
        %v6085 = vpop.f32.mrb[0].mxu0
        %v6086 = vadd.f32 %v5799, %v6085
        %v6087 = vpop.f32.mrb[0].mxu0
        %6088 = vmatprep.mubr.f32.mxu0 %v5862
        %6089 = vmatmul.mubr.f32.gmra.mrb[0].mxu0 %v5753
        %v6090 = vpop.f32.mrb[0].mxu0
        %v6091 = vadd.f32 %v5799, %v6090
        %v6092 = vpop.f32.mrb[0].mxu0
        %6093 = vmatprep.mubr.f32.mxu0 %v5865
        %6094 = vmatmul.mubr.f32.gmra.mrb[0].mxu0 %v5755
        %v6095 = vpop.f32.mrb[0].mxu0
        %v6096 = vadd.f32 %v5799, %v6095
        %v6097 = vpop.f32.mrb[0].mxu0
        %6098 = vmatprep.mubr.f32.mxu0 %v5868
        %6099 = vmatmul.mubr.f32.gmra.mrb[0].mxu0 %v5757
        %v6100 = vpop.f32.mrb[0].mxu0
        %v6101 = vadd.f32 %v5799, %v6100
        %v6102 = vpop.f32.mrb[0].mxu0
        %6103 = vmatprep.mubr.f32.mxu0 %v5871
        %6104 = vmatmul.mubr.f32.gmra.mrb[0].mxu0 %v5759
        %v6105 = vpop.f32.mrb[0].mxu0
        %v6106 = vadd.f32 %v5799, %v6105
        %v6107 = vpop.f32.mrb[0].mxu0
        %6108 = vmatprep.mubr.f32.mxu0 %v5874
        %6109 = vmatmul.mubr.f32.gmra.mrb[0].mxu0 %v5761
        %v6110 = vpop.f32.mrb[0].mxu0
        %v6111 = vadd.f32 %v5799, %v6110
        %v6112 = vpop.f32.mrb[0].mxu0
        %6113 = vmatprep.mubr.f32.mxu0 %v5877
        %6114 = vmatmul.mubr.f32.gmra.mrb[0].mxu0 %v5763
        %v6115 = vpop.f32.mrb[0].mxu0
        %v6116 = vadd.f32 %v5799, %v6115
        %v6117 = vpop.f32.mrb[0].mxu0
        %6118 = vmatprep.mubr.f32.mxu0 %v5880
        %6119 = vmatmul.mubr.f32.gmra.mrb[0].mxu0 %v5765
        %v6120 = vpop.f32.mrb[0].mxu0
        %v6121 = vadd.f32 %v5799, %v6120
        %v6122 = vpop.f32.mrb[0].mxu0
        %6123 = vmatprep.mubr.f32.mxu0 %v5883
        %6124 = vmatmul.mubr.f32.gmra.mrb[0].mxu0 %v5767
        %v6125 = vpop.f32.mrb[0].mxu0
        %v6126 = vadd.f32 %v5799, %v6125
        %v6127 = vpop.f32.mrb[0].mxu0
        %6128 = vmatprep.mubr.f32.mxu0 %v5886
        %6129 = vmatmul.mubr.f32.gmra.mrb[0].mxu0 %v5769
        %v6130 = vpop.f32.mrb[0].mxu0
        %v6131 = vadd.f32 %v5799, %v6130
        %v6132 = vpop.f32.mrb[0].mxu0
        %6133 = vmatprep.mubr.f32.mxu0 %v5889
        %6134 = vmatmul.mubr.f32.gmra.mrb[0].mxu0 %v5771
        %v6135 = vpop.f32.mrb[0].mxu0
        %v6136 = vadd.f32 %v5799, %v6135
        %v6137 = vpop.f32.mrb[0].mxu0
        %6138 = vmatprep.mubr.f32.mxu0 %v5892
        %6139 = vmatmul.mubr.f32.gmra.mrb[0].mxu0 %v5773
        %v6140 = vpop.f32.mrb[0].mxu0
        %v6141 = vadd.f32 %v5799, %v6140
        %v6142 = vpop.f32.mrb[0].mxu0
        %6143 = vmatprep.mubr.f32.mxu0 %v5895
        %6144 = vmatmul.mubr.f32.gmra.mrb[0].mxu0 %v5775
        %v6145 = vpop.f32.mrb[0].mxu0
        %v6146 = vadd.f32 %v5799, %v6145
        %v6147 = vpop.f32.mrb[0].mxu0
        %6148 = vmatprep.mubr.f32.mxu0 %v5898
        %6149 = vmatmul.mubr.f32.gmra.mrb[0].mxu0 %v5777
        %v6150 = vpop.f32.mrb[0].mxu0
        %v6151 = vadd.f32 %v5799, %v6150
        %v6152 = vpop.f32.mrb[0].mxu0
        %6153 = vmatprep.mubr.f32.mxu0 %v5901
        %6154 = vmatmul.mubr.f32.gmra.mrb[0].mxu0 %v5779
        %v6155 = vpop.f32.mrb[0].mxu0
        %v6156 = vadd.f32 %v5799, %v6155
        %v6157 = vpop.f32.mrb[0].mxu0
        %6158 = vmatprep.mubr.f32.mxu0 %v5904
        %6159 = vmatmul.mubr.f32.gmra.mrb[0].mxu0 %v5781
        %v6160 = vpop.f32.mrb[0].mxu0
        %v6161 = vadd.f32 %v5799, %v6160
        %v6162 = vpop.f32.mrb[0].mxu0
        %6163 = vmatprep.mubr.f32.mxu0 %v5907
        %6164 = vmatmul.mubr.f32.gmra.mrb[0].mxu0 %v5783
        %v6165 = vpop.f32.mrb[0].mxu0
        %v6166 = vadd.f32 %v5799, %v6165
        %v6167 = vpop.f32.mrb[0].mxu0
        %6168 = vmatprep.mubr.f32.mxu0 %v5910
        %6169 = vmatmul.mubr.f32.gmra.mrb[0].mxu0 %v5785
        %v6170 = vpop.f32.mrb[0].mxu0
        %v6171 = vadd.f32 %v5799, %v6170
        %v6172 = vpop.f32.mrb[0].mxu0
        %6173 = vmatprep.mubr.f32.mxu0 %v5913
        %6174 = vmatmul.mubr.f32.gmra.mrb[0].mxu0 %v5787
        %v6175 = vpop.f32.mrb[0].mxu0
        %v6176 = vadd.f32 %v5799, %v6175
        %v6177 = vpop.f32.mrb[0].mxu0
        %6178 = vmatprep.mubr.f32.mxu0 %v5916
        %6179 = vmatmul.mubr.f32.gmra.mrb[0].mxu0 %v5789
        %v6180 = vpop.f32.mrb[0].mxu0
        %v6181 = vadd.f32 %v5799, %v6180
        %v6182 = vpop.f32.mrb[0].mxu0
        %6183 = vmatprep.mubr.f32.mxu0 %v5919
        %6184 = vmatmul.mubr.f32.gmra.mrb[0].mxu0 %v5791
        %v6185 = vpop.f32.mrb[0].mxu0
        %v6186 = vadd.f32 %v5799, %v6185
        %v6187 = vpop.f32.mrb[0].mxu0
        %6188 = vmatprep.mubr.f32.mxu0 %v5922
        %6189 = vmatmul.mubr.f32.gmra.mrb[0].mxu0 %v5793
        %v6190 = vpop.f32.mrb[0].mxu0
        %v6191 = vadd.f32 %v5799, %v6190
        %v6192 = vpop.f32.mrb[0].mxu0
        %6193 = vdwg.mxu0
        %v6194 = vmul.f32 %v5991, %v2871
        %v6195 = vmul.f32 %v5996, %v2876
        %v6196 = vmul.f32 %v6001, %v2881
        %v6197 = vmul.f32 %v6006, %v2886
        %v6198 = vmul.f32 %v6011, %v2891
        %v6199 = vmul.f32 %v6016, %v2896
        %v6200 = vmul.f32 %v6021, %v2901
        %v6201 = vmul.f32 %v6026, %v2906
        %v6202 = vmul.f32 %v6031, %v2911
        %v6203 = vmul.f32 %v6036, %v2916
        %v6204 = vmul.f32 %v6041, %v2921
        %v6205 = vmul.f32 %v6046, %v2926
        %v6206 = vmul.f32 %v6051, %v2931
        %v6207 = vmul.f32 %v6056, %v2936
        %v6208 = vmul.f32 %v6061, %v2941
        %v6209 = vmul.f32 %v6066, %v2946
        %v6210 = vmul.f32 %v6071, %v2951
        %v6211 = vmul.f32 %v6076, %v2956
        %v6212 = vmul.f32 %v6081, %v2961
        %v6213 = vmul.f32 %v6086, %v2966
        %v6214 = vmul.f32 %v6091, %v2971
        %v6215 = vmul.f32 %v6096, %v2976
        %v6216 = vmul.f32 %v6101, %v2981
        %v6217 = vmul.f32 %v6106, %v2986
        %v6218 = vmul.f32 %v6111, %v2991
        %v6219 = vmul.f32 %v6116, %v2996
        %v6220 = vmul.f32 %v6121, %v3001
        %v6221 = vmul.f32 %v6126, %v3006
        %v6222 = vmul.f32 %v6131, %v3011
        %v6223 = vmul.f32 %v6136, %v3016
        %v6224 = vmul.f32 %v6141, %v3021
        %v6225 = vmul.f32 %v6146, %v3026
        %v6226 = vmul.f32 %v6151, %v3031
        %v6227 = vmul.f32 %v6156, %v3036
        %v6228 = vmul.f32 %v6161, %v3041
        %v6229 = vmul.f32 %v6166, %v3046
        %v6230 = vmul.f32 %v6171, %v3051
        %v6231 = vmul.f32 %v6176, %v3056
        %v6232 = vmul.f32 %v6181, %v3061
        %v6233 = vmul.f32 %v6186, %v3066
        %v6234 = vmul.f32 %v6191, %v3071
        %v6235 = vsel %vm3114, %v6194, 0.0
        %v6236 = vsel %vm3114, %v6195, 0.0
        %v6237 = vadd.f32 %v6235, %v6236
        %v6238 = vsel %vm3114, %v6196, 0.0
        %v6239 = vadd.f32 %v6237, %v6238
        %v6240 = vsel %vm3114, %v6197, 0.0
        %v6241 = vadd.f32 %v6239, %v6240
        %v6242 = vsel %vm3114, %v6198, 0.0
        %v6243 = vadd.f32 %v6241, %v6242
        %v6244 = vsel %vm3114, %v6199, 0.0
        %v6245 = vadd.f32 %v6243, %v6244
        %v6246 = vsel %vm3114, %v6200, 0.0
        %v6247 = vadd.f32 %v6245, %v6246
        %v6248 = vsel %vm3114, %v6201, 0.0
        %v6249 = vadd.f32 %v6247, %v6248
        %v6250 = vsel %vm3114, %v6202, 0.0
        %v6251 = vadd.f32 %v6249, %v6250
        %v6252 = vsel %vm3114, %v6203, 0.0
        %v6253 = vadd.f32 %v6251, %v6252
        %v6254 = vsel %vm3114, %v6204, 0.0
        %v6255 = vadd.f32 %v6253, %v6254
        %v6256 = vsel %vm3114, %v6205, 0.0
        %v6257 = vadd.f32 %v6255, %v6256
        %v6258 = vsel %vm3114, %v6206, 0.0
        %v6259 = vadd.f32 %v6257, %v6258
        %v6260 = vsel %vm3114, %v6207, 0.0
        %v6261 = vadd.f32 %v6259, %v6260
        %v6262 = vsel %vm3114, %v6208, 0.0
        %v6263 = vadd.f32 %v6261, %v6262
        %v6264 = vsel %vm3114, %v6209, 0.0
        %v6265 = vadd.f32 %v6263, %v6264
        %v6266 = vsel %vm3114, %v6210, 0.0
        %v6267 = vadd.f32 %v6265, %v6266
        %v6268 = vsel %vm3114, %v6211, 0.0
        %v6269 = vadd.f32 %v6267, %v6268
        %v6270 = vsel %vm3114, %v6212, 0.0
        %v6271 = vadd.f32 %v6269, %v6270
        %v6272 = vsel %vm3114, %v6213, 0.0
        %v6273 = vadd.f32 %v6271, %v6272
        %v6274 = vsel %vm3114, %v6214, 0.0
        %v6275 = vadd.f32 %v6273, %v6274
        %v6276 = vsel %vm3114, %v6215, 0.0
        %v6277 = vadd.f32 %v6275, %v6276
        %v6278 = vsel %vm3114, %v6216, 0.0
        %v6279 = vadd.f32 %v6277, %v6278
        %v6280 = vsel %vm3114, %v6217, 0.0
        %v6281 = vadd.f32 %v6279, %v6280
        %v6282 = vsel %vm3114, %v6218, 0.0
        %v6283 = vadd.f32 %v6281, %v6282
        %v6284 = vsel %vm3114, %v6219, 0.0
        %v6285 = vadd.f32 %v6283, %v6284
        %v6286 = vsel %vm3114, %v6220, 0.0
        %v6287 = vadd.f32 %v6285, %v6286
        %v6288 = vsel %vm3114, %v6221, 0.0
        %v6289 = vadd.f32 %v6287, %v6288
        %v6290 = vsel %vm3114, %v6222, 0.0
        %v6291 = vadd.f32 %v6289, %v6290
        %v6292 = vsel %vm3114, %v6223, 0.0
        %v6293 = vadd.f32 %v6291, %v6292
        %v6294 = vsel %vm3114, %v6224, 0.0
        %v6295 = vadd.f32 %v6293, %v6294
        %v6296 = vsel %vm3114, %v6225, 0.0
        %v6297 = vadd.f32 %v6295, %v6296
        %v6298 = vsel %vm3114, %v6226, 0.0
        %v6299 = vadd.f32 %v6297, %v6298
        %v6300 = vsel %vm3114, %v6227, 0.0
        %v6301 = vadd.f32 %v6299, %v6300
        %v6302 = vsel %vm3114, %v6228, 0.0
        %v6303 = vadd.f32 %v6301, %v6302
        %v6304 = vsel %vm3114, %v6229, 0.0
        %v6305 = vadd.f32 %v6303, %v6304
        %v6306 = vsel %vm3114, %v6230, 0.0
        %v6307 = vadd.f32 %v6305, %v6306
        %v6308 = vsel %vm3114, %v6231, 0.0
        %v6309 = vadd.f32 %v6307, %v6308
        %v6310 = vsel %vm3114, %v6232, 0.0
        %v6311 = vadd.f32 %v6309, %v6310
        %v6312 = vsel %vm3114, %v6233, 0.0
        %v6313 = vadd.f32 %v6311, %v6312
        %v6314 = vsel %vm3194, %v6234, 0.0
        %v6315 = vadd.f32 %v6313, %v6314
        %v6316 = vrot.slane %v6315, 4
        %v6317 = vadd.f32 %v6315, %v6316
        %v6318 = vrot.slane %v6317, 2
        %v6319 = vadd.f32 %v6317, %v6318
        %v6320 = vrot.slane %v6319, 1
        %v6321 = vadd.f32 %v6319, %v6320
        %v6323 = vsel %vm3114, %v6321, 0
        %6325 = vmatprep.subr.mxu0 0.0
        %6326 = vmatpush1.msra.mxu0 %v345
        %6327 = vmatprep.subr.mxu0 0.0
        %6328 = vmatpush1.msra.mxu0 %v346
        %6329 = vmatprep.subr.mxu0 0.0
        %6330 = vmatpush1.msra.mxu0 0.0
        %6331 = vmatprep.subr.mxu0 0.0
        %6332 = vmatpush1.msra.mxu0 0.0
        %6333 = vmatprep.subr.mxu0 0.0
        %6334 = vmatpush1.msra.mxu0 0.0
        %6335 = vmatprep.subr.mxu0 0.0
        %6336 = vmatpush1.msra.mxu0 0.0
        %6337 = vmatprep.subr.mxu0 0.0
        %6338 = vmatpush1.msra.mxu0 0.0
        %6339 = vmatprep.subr.mxu0 0.0
        %6340 = vmatpush1.msra.mxu0 0.0
        %6341 = vmatprep.subr.mxu0 0.0
        %6342 = vmatpush1.msra.mxu0 0.0
        %6343 = vmatprep.subr.mxu0 0.0
        %6344 = vmatpush1.msra.mxu0 0.0
        %6345 = vmatprep.subr.mxu0 0.0
        %6346 = vmatpush1.msra.mxu0 0.0
        %6347 = vmatprep.subr.mxu0 0.0
        %6348 = vmatpush1.msra.mxu0 0.0
        %6349 = vmatprep.subr.mxu0 0.0
        %6350 = vmatpush1.msra.mxu0 0.0
        %6351 = vmatprep.subr.mxu0 0.0
        %6352 = vmatpush1.msra.mxu0 0.0
        %6353 = vmatprep.subr.mxu0 0.0
        %6354 = vmatpush1.msra.mxu0 0.0
        %6355 = vmatprep.subr.mxu0 0.0
        %6356 = vmatpush1.msra.mxu0 0.0
        %6357 = vmatprep.subr.mxu0 0.0
        %6358 = vmatpush1.msra.mxu0 0.0
        %6359 = vmatprep.subr.mxu0 0.0
        %6360 = vmatpush1.msra.mxu0 0.0
        %6361 = vmatprep.subr.mxu0 0.0
        %6362 = vmatpush1.msra.mxu0 0.0
        %6363 = vmatprep.subr.mxu0 0.0
        %6364 = vmatpush1.msra.mxu0 0.0
        %6365 = vmatprep.subr.mxu0 0.0
        %6366 = vmatpush1.msra.mxu0 0.0
        %6367 = vmatprep.subr.mxu0 0.0
        %6368 = vmatpush1.msra.mxu0 0.0
        %6369 = vmatprep.subr.mxu0 0.0
        %6370 = vmatpush1.msra.mxu0 0.0
        %6371 = vmatprep.subr.mxu0 0.0
        %6372 = vmatpush1.msra.mxu0 0.0
        %6373 = vmatprep.subr.mxu0 0.0
        %6374 = vmatpush1.msra.mxu0 0.0
        %6375 = vmatprep.subr.mxu0 0.0
        %6376 = vmatpush1.msra.mxu0 0.0
        %6377 = vmatprep.subr.mxu0 0.0
        %6378 = vmatpush1.msra.mxu0 0.0
        %6379 = vmatprep.subr.mxu0 0.0
        %6380 = vmatpush1.msra.mxu0 0.0
        %6381 = vmatprep.subr.mxu0 0.0
        %6382 = vmatpush1.msra.mxu0 0.0
        %6383 = vmatprep.subr.mxu0 0.0
        %6384 = vmatpush1.msra.mxu0 0.0
        %6385 = vmatprep.subr.mxu0 0.0
        %6386 = vmatpush1.msra.mxu0 0.0
        %6387 = vmatprep.subr.mxu0 0.0
        %6388 = vmatpush1.msra.mxu0 0.0
        %6389 = vmatprep.mubr.f32.mxu0 0.0
        %6390 = vmatmul.mubr.f32.gmra.mrb[0].mxu0 %v6323
        %v6391 = vpop.f32.mrb[0].mxu0
        %v6392 = vadd.f32 0.0, %v6391
        %v6393 = vpop.f32.mrb[0].mxu0
        %6394 = vdwg.mxu0
        %v6395 = vlaneseq
        %v6396 = vshrl.u32 %v6395, 7
        %v6397 = vsub.s32 0, %v6396
        %v6398 = vrot.slane %v6392, %v6397
        %v6399 = vsub.f32 %v5991, %v6398
        %v6400 = vsub.f32 %v5996, %v6398
        %v6401 = vsub.f32 %v6001, %v6398
        %v6402 = vsub.f32 %v6006, %v6398
        %v6403 = vsub.f32 %v6011, %v6398
        %v6404 = vsub.f32 %v6016, %v6398
        %v6405 = vsub.f32 %v6021, %v6398
        %v6406 = vsub.f32 %v6026, %v6398
        %v6407 = vsub.f32 %v6031, %v6398
        %v6408 = vsub.f32 %v6036, %v6398
        %v6409 = vsub.f32 %v6041, %v6398
        %v6410 = vsub.f32 %v6046, %v6398
        %v6411 = vsub.f32 %v6051, %v6398
        %v6412 = vsub.f32 %v6056, %v6398
        %v6413 = vsub.f32 %v6061, %v6398
        %v6414 = vsub.f32 %v6066, %v6398
        %v6415 = vsub.f32 %v6071, %v6398
        %v6416 = vsub.f32 %v6076, %v6398
        %v6417 = vsub.f32 %v6081, %v6398
        %v6418 = vsub.f32 %v6086, %v6398
        %v6419 = vsub.f32 %v6091, %v6398
        %v6420 = vsub.f32 %v6096, %v6398
        %v6421 = vsub.f32 %v6101, %v6398
        %v6422 = vsub.f32 %v6106, %v6398
        %v6423 = vsub.f32 %v6111, %v6398
        %v6424 = vsub.f32 %v6116, %v6398
        %v6425 = vsub.f32 %v6121, %v6398
        %v6426 = vsub.f32 %v6126, %v6398
        %v6427 = vsub.f32 %v6131, %v6398
        %v6428 = vsub.f32 %v6136, %v6398
        %v6429 = vsub.f32 %v6141, %v6398
        %v6430 = vsub.f32 %v6146, %v6398
        %v6431 = vsub.f32 %v6151, %v6398
        %v6432 = vsub.f32 %v6156, %v6398
        %v6433 = vsub.f32 %v6161, %v6398
        %v6434 = vsub.f32 %v6166, %v6398
        %v6435 = vsub.f32 %v6171, %v6398
        %v6436 = vsub.f32 %v6176, %v6398
        %v6437 = vsub.f32 %v6181, %v6398
        %v6438 = vsub.f32 %v6186, %v6398
        %v6439 = vsub.f32 %v6191, %v6398
        %v6440 = vmul.f32 %v6399, %v2871
        %v6441 = vmul.f32 %v6400, %v2876
        %v6442 = vmul.f32 %v6401, %v2881
        %v6443 = vmul.f32 %v6402, %v2886
        %v6444 = vmul.f32 %v6403, %v2891
        %v6445 = vmul.f32 %v6404, %v2896
        %v6446 = vmul.f32 %v6405, %v2901
        %v6447 = vmul.f32 %v6406, %v2906
        %v6448 = vmul.f32 %v6407, %v2911
        %v6449 = vmul.f32 %v6408, %v2916
        %v6450 = vmul.f32 %v6409, %v2921
        %v6451 = vmul.f32 %v6410, %v2926
        %v6452 = vmul.f32 %v6411, %v2931
        %v6453 = vmul.f32 %v6412, %v2936
        %v6454 = vmul.f32 %v6413, %v2941
        %v6455 = vmul.f32 %v6414, %v2946
        %v6456 = vmul.f32 %v6415, %v2951
        %v6457 = vmul.f32 %v6416, %v2956
        %v6458 = vmul.f32 %v6417, %v2961
        %v6459 = vmul.f32 %v6418, %v2966
        %v6460 = vmul.f32 %v6419, %v2971
        %v6461 = vmul.f32 %v6420, %v2976
        %v6462 = vmul.f32 %v6421, %v2981
        %v6463 = vmul.f32 %v6422, %v2986
        %v6464 = vmul.f32 %v6423, %v2991
        %v6465 = vmul.f32 %v6424, %v2996
        %v6466 = vmul.f32 %v6425, %v3001
        %v6467 = vmul.f32 %v6426, %v3006
        %v6468 = vmul.f32 %v6427, %v3011
        %v6469 = vmul.f32 %v6428, %v3016
        %v6470 = vmul.f32 %v6429, %v3021
        %v6471 = vmul.f32 %v6430, %v3026
        %v6472 = vmul.f32 %v6431, %v3031
        %v6473 = vmul.f32 %v6432, %v3036
        %v6474 = vmul.f32 %v6433, %v3041
        %v6475 = vmul.f32 %v6434, %v3046
        %v6476 = vmul.f32 %v6435, %v3051
        %v6477 = vmul.f32 %v6436, %v3056
        %v6478 = vmul.f32 %v6437, %v3061
        %v6479 = vmul.f32 %v6438, %v3066
        %v6480 = vmul.f32 %v6439, %v3071
        %v6481 = vmul.f32 %v6440, %v6440
        %v6482 = vmul.f32 %v6441, %v6441
        %v6483 = vmul.f32 %v6442, %v6442
        %v6484 = vmul.f32 %v6443, %v6443
        %v6485 = vmul.f32 %v6444, %v6444
        %v6486 = vmul.f32 %v6445, %v6445
        %v6487 = vmul.f32 %v6446, %v6446
        %v6488 = vmul.f32 %v6447, %v6447
        %v6489 = vmul.f32 %v6448, %v6448
        %v6490 = vmul.f32 %v6449, %v6449
        %v6491 = vmul.f32 %v6450, %v6450
        %v6492 = vmul.f32 %v6451, %v6451
        %v6493 = vmul.f32 %v6452, %v6452
        %v6494 = vmul.f32 %v6453, %v6453
        %v6495 = vmul.f32 %v6454, %v6454
        %v6496 = vmul.f32 %v6455, %v6455
        %v6497 = vmul.f32 %v6456, %v6456
        %v6498 = vmul.f32 %v6457, %v6457
        %v6499 = vmul.f32 %v6458, %v6458
        %v6500 = vmul.f32 %v6459, %v6459
        %v6501 = vmul.f32 %v6460, %v6460
        %v6502 = vmul.f32 %v6461, %v6461
        %v6503 = vmul.f32 %v6462, %v6462
        %v6504 = vmul.f32 %v6463, %v6463
        %v6505 = vmul.f32 %v6464, %v6464
        %v6506 = vmul.f32 %v6465, %v6465
        %v6507 = vmul.f32 %v6466, %v6466
        %v6508 = vmul.f32 %v6467, %v6467
        %v6509 = vmul.f32 %v6468, %v6468
        %v6510 = vmul.f32 %v6469, %v6469
        %v6511 = vmul.f32 %v6470, %v6470
        %v6512 = vmul.f32 %v6471, %v6471
        %v6513 = vmul.f32 %v6472, %v6472
        %v6514 = vmul.f32 %v6473, %v6473
        %v6515 = vmul.f32 %v6474, %v6474
        %v6516 = vmul.f32 %v6475, %v6475
        %v6517 = vmul.f32 %v6476, %v6476
        %v6518 = vmul.f32 %v6477, %v6477
        %v6519 = vmul.f32 %v6478, %v6478
        %v6520 = vmul.f32 %v6479, %v6479
        %v6521 = vmul.f32 %v6480, %v6480
        %v6522 = vsel %vm3114, %v6481, 0.0
        %v6523 = vsel %vm3114, %v6482, 0.0
        %v6524 = vadd.f32 %v6522, %v6523
        %v6525 = vsel %vm3114, %v6483, 0.0
        %v6526 = vadd.f32 %v6524, %v6525
        %v6527 = vsel %vm3114, %v6484, 0.0
        %v6528 = vadd.f32 %v6526, %v6527
        %v6529 = vsel %vm3114, %v6485, 0.0
        %v6530 = vadd.f32 %v6528, %v6529
        %v6531 = vsel %vm3114, %v6486, 0.0
        %v6532 = vadd.f32 %v6530, %v6531
        %v6533 = vsel %vm3114, %v6487, 0.0
        %v6534 = vadd.f32 %v6532, %v6533
        %v6535 = vsel %vm3114, %v6488, 0.0
        %v6536 = vadd.f32 %v6534, %v6535
        %v6537 = vsel %vm3114, %v6489, 0.0
        %v6538 = vadd.f32 %v6536, %v6537
        %v6539 = vsel %vm3114, %v6490, 0.0
        %v6540 = vadd.f32 %v6538, %v6539
        %v6541 = vsel %vm3114, %v6491, 0.0
        %v6542 = vadd.f32 %v6540, %v6541
        %v6543 = vsel %vm3114, %v6492, 0.0
        %v6544 = vadd.f32 %v6542, %v6543
        %v6545 = vsel %vm3114, %v6493, 0.0
        %v6546 = vadd.f32 %v6544, %v6545
        %v6547 = vsel %vm3114, %v6494, 0.0
        %v6548 = vadd.f32 %v6546, %v6547
        %v6549 = vsel %vm3114, %v6495, 0.0
        %v6550 = vadd.f32 %v6548, %v6549
        %v6551 = vsel %vm3114, %v6496, 0.0
        %v6552 = vadd.f32 %v6550, %v6551
        %v6553 = vsel %vm3114, %v6497, 0.0
        %v6554 = vadd.f32 %v6552, %v6553
        %v6555 = vsel %vm3114, %v6498, 0.0
        %v6556 = vadd.f32 %v6554, %v6555
        %v6557 = vsel %vm3114, %v6499, 0.0
        %v6558 = vadd.f32 %v6556, %v6557
        %v6559 = vsel %vm3114, %v6500, 0.0
        %v6560 = vadd.f32 %v6558, %v6559
        %v6561 = vsel %vm3114, %v6501, 0.0
        %v6562 = vadd.f32 %v6560, %v6561
        %v6563 = vsel %vm3114, %v6502, 0.0
        %v6564 = vadd.f32 %v6562, %v6563
        %v6565 = vsel %vm3114, %v6503, 0.0
        %v6566 = vadd.f32 %v6564, %v6565
        %v6567 = vsel %vm3114, %v6504, 0.0
        %v6568 = vadd.f32 %v6566, %v6567
        %v6569 = vsel %vm3114, %v6505, 0.0
        %v6570 = vadd.f32 %v6568, %v6569
        %v6571 = vsel %vm3114, %v6506, 0.0
        %v6572 = vadd.f32 %v6570, %v6571
        %v6573 = vsel %vm3114, %v6507, 0.0
        %v6574 = vadd.f32 %v6572, %v6573
        %v6575 = vsel %vm3114, %v6508, 0.0
        %v6576 = vadd.f32 %v6574, %v6575
        %v6577 = vsel %vm3114, %v6509, 0.0
        %v6578 = vadd.f32 %v6576, %v6577
        %v6579 = vsel %vm3114, %v6510, 0.0
        %v6580 = vadd.f32 %v6578, %v6579
        %v6581 = vsel %vm3114, %v6511, 0.0
        %v6582 = vadd.f32 %v6580, %v6581
        %v6583 = vsel %vm3114, %v6512, 0.0
        %v6584 = vadd.f32 %v6582, %v6583
        %v6585 = vsel %vm3114, %v6513, 0.0
        %v6586 = vadd.f32 %v6584, %v6585
        %v6587 = vsel %vm3114, %v6514, 0.0
        %v6588 = vadd.f32 %v6586, %v6587
        %v6589 = vsel %vm3114, %v6515, 0.0
        %v6590 = vadd.f32 %v6588, %v6589
        %v6591 = vsel %vm3114, %v6516, 0.0
        %v6592 = vadd.f32 %v6590, %v6591
        %v6593 = vsel %vm3114, %v6517, 0.0
        %v6594 = vadd.f32 %v6592, %v6593
        %v6595 = vsel %vm3114, %v6518, 0.0
        %v6596 = vadd.f32 %v6594, %v6595
        %v6597 = vsel %vm3114, %v6519, 0.0
        %v6598 = vadd.f32 %v6596, %v6597
        %v6599 = vsel %vm3114, %v6520, 0.0
        %v6600 = vadd.f32 %v6598, %v6599
        %v6601 = vsel %vm3194, %v6521, 0.0
        %v6602 = vadd.f32 %v6600, %v6601
        %v6603 = vrot.slane %v6602, 4
        %v6604 = vadd.f32 %v6602, %v6603
        %v6605 = vrot.slane %v6604, 2
        %v6606 = vadd.f32 %v6604, %v6605
        %v6607 = vrot.slane %v6606, 1
        %v6608 = vadd.f32 %v6606, %v6607
        %v6610 = vsel %vm3114, %v6608, 0
        %6612 = vmatprep.subr.mxu0 0.0
        %6613 = vmatpush1.msra.mxu0 %v345
        %6614 = vmatprep.subr.mxu0 0.0
        %6615 = vmatpush1.msra.mxu0 %v346
        %6616 = vmatprep.subr.mxu0 0.0
        %6617 = vmatpush1.msra.mxu0 0.0
        %6618 = vmatprep.subr.mxu0 0.0
        %6619 = vmatpush1.msra.mxu0 0.0
        %6620 = vmatprep.subr.mxu0 0.0
        %6621 = vmatpush1.msra.mxu0 0.0
        %6622 = vmatprep.subr.mxu0 0.0
        %6623 = vmatpush1.msra.mxu0 0.0
        %6624 = vmatprep.subr.mxu0 0.0
        %6625 = vmatpush1.msra.mxu0 0.0
        %6626 = vmatprep.subr.mxu0 0.0
        %6627 = vmatpush1.msra.mxu0 0.0
        %6628 = vmatprep.subr.mxu0 0.0
        %6629 = vmatpush1.msra.mxu0 0.0
        %6630 = vmatprep.subr.mxu0 0.0
        %6631 = vmatpush1.msra.mxu0 0.0
        %6632 = vmatprep.subr.mxu0 0.0
        %6633 = vmatpush1.msra.mxu0 0.0
        %6634 = vmatprep.subr.mxu0 0.0
        %6635 = vmatpush1.msra.mxu0 0.0
        %6636 = vmatprep.subr.mxu0 0.0
        %6637 = vmatpush1.msra.mxu0 0.0
        %6638 = vmatprep.subr.mxu0 0.0
        %6639 = vmatpush1.msra.mxu0 0.0
        %6640 = vmatprep.subr.mxu0 0.0
        %6641 = vmatpush1.msra.mxu0 0.0
        %6642 = vmatprep.subr.mxu0 0.0
        %6643 = vmatpush1.msra.mxu0 0.0
        %6644 = vmatprep.subr.mxu0 0.0
        %6645 = vmatpush1.msra.mxu0 0.0
        %6646 = vmatprep.subr.mxu0 0.0
        %6647 = vmatpush1.msra.mxu0 0.0
        %6648 = vmatprep.subr.mxu0 0.0
        %6649 = vmatpush1.msra.mxu0 0.0
        %6650 = vmatprep.subr.mxu0 0.0
        %6651 = vmatpush1.msra.mxu0 0.0
        %6652 = vmatprep.subr.mxu0 0.0
        %6653 = vmatpush1.msra.mxu0 0.0
        %6654 = vmatprep.subr.mxu0 0.0
        %6655 = vmatpush1.msra.mxu0 0.0
        %6656 = vmatprep.subr.mxu0 0.0
        %6657 = vmatpush1.msra.mxu0 0.0
        %6658 = vmatprep.subr.mxu0 0.0
        %6659 = vmatpush1.msra.mxu0 0.0
        %6660 = vmatprep.subr.mxu0 0.0
        %6661 = vmatpush1.msra.mxu0 0.0
        %6662 = vmatprep.subr.mxu0 0.0
        %6663 = vmatpush1.msra.mxu0 0.0
        %6664 = vmatprep.subr.mxu0 0.0
        %6665 = vmatpush1.msra.mxu0 0.0
        %6666 = vmatprep.subr.mxu0 0.0
        %6667 = vmatpush1.msra.mxu0 0.0
        %6668 = vmatprep.subr.mxu0 0.0
        %6669 = vmatpush1.msra.mxu0 0.0
        %6670 = vmatprep.subr.mxu0 0.0
        %6671 = vmatpush1.msra.mxu0 0.0
        %6672 = vmatprep.subr.mxu0 0.0
        %6673 = vmatpush1.msra.mxu0 0.0
        %6674 = vmatprep.subr.mxu0 0.0
        %6675 = vmatpush1.msra.mxu0 0.0
        %6676 = vmatprep.mubr.f32.mxu0 0.0
        %6677 = vmatmul.mubr.f32.gmra.mrb[0].mxu0 %v6610
        %v6678 = vpop.f32.mrb[0].mxu0
        %v6679 = vadd.f32 1e-05, %v6678
        %v6680 = vpop.f32.mrb[0].mxu0
        %6681 = vdwg.mxu0
        %v6682 = vrsqrt.pop %v6679
        %v6683 = vmul.f32 %v6682, %v3810
        %v6684 = vlaneseq
        %v6685 = vshrl.u32 %v6684, 7
        %v6686 = vsub.s32 0, %v6685
        %v6687 = vrot.slane %v6683, %v6686
        %v6688 = vmul.f32 %v6440, %v6687
        %v6689 = vmul.f32 %v6441, %v6687
        %v6690 = vmul.f32 %v6442, %v6687
        %v6691 = vmul.f32 %v6443, %v6687
        %v6692 = vmul.f32 %v6444, %v6687
        %v6693 = vmul.f32 %v6445, %v6687
        %v6694 = vmul.f32 %v6446, %v6687
        %v6695 = vmul.f32 %v6447, %v6687
        %v6696 = vmul.f32 %v6448, %v6687
        %v6697 = vmul.f32 %v6449, %v6687
        %v6698 = vmul.f32 %v6450, %v6687
        %v6699 = vmul.f32 %v6451, %v6687
        %v6700 = vmul.f32 %v6452, %v6687
        %v6701 = vmul.f32 %v6453, %v6687
        %v6702 = vmul.f32 %v6454, %v6687
        %v6703 = vmul.f32 %v6455, %v6687
        %v6704 = vmul.f32 %v6456, %v6687
        %v6705 = vmul.f32 %v6457, %v6687
        %v6706 = vmul.f32 %v6458, %v6687
        %v6707 = vmul.f32 %v6459, %v6687
        %v6708 = vmul.f32 %v6460, %v6687
        %v6709 = vmul.f32 %v6461, %v6687
        %v6710 = vmul.f32 %v6462, %v6687
        %v6711 = vmul.f32 %v6463, %v6687
        %v6712 = vmul.f32 %v6464, %v6687
        %v6713 = vmul.f32 %v6465, %v6687
        %v6714 = vmul.f32 %v6466, %v6687
        %v6715 = vmul.f32 %v6467, %v6687
        %v6716 = vmul.f32 %v6468, %v6687
        %v6717 = vmul.f32 %v6469, %v6687
        %v6718 = vmul.f32 %v6470, %v6687
        %v6719 = vmul.f32 %v6471, %v6687
        %v6720 = vmul.f32 %v6472, %v6687
        %v6721 = vmul.f32 %v6473, %v6687
        %v6722 = vmul.f32 %v6474, %v6687
        %v6723 = vmul.f32 %v6475, %v6687
        %v6724 = vmul.f32 %v6476, %v6687
        %v6725 = vmul.f32 %v6477, %v6687
        %v6726 = vmul.f32 %v6478, %v6687
        %v6727 = vmul.f32 %v6479, %v6687
        %v6728 = vmul.f32 %v6480, %v6687
        %v6730 = vlaneseq
        %v6731 = vshrl.u32 %v6730, 7
        %v6732 = vsub.s32 0, %v6731
        %v6733 = vrot.slane %v3812, %v6732
        %v6735 = vadd.f32 %v6688, %v6733
        %v6736 = vadd.f32 %v6689, %v6733
        %v6737 = vadd.f32 %v6690, %v6733
        %v6738 = vadd.f32 %v6691, %v6733
        %v6739 = vadd.f32 %v6692, %v6733
        %v6740 = vadd.f32 %v6693, %v6733
        %v6741 = vadd.f32 %v6694, %v6733
        %v6742 = vadd.f32 %v6695, %v6733
        %v6743 = vadd.f32 %v6696, %v6733
        %v6744 = vadd.f32 %v6697, %v6733
        %v6745 = vadd.f32 %v6698, %v6733
        %v6746 = vadd.f32 %v6699, %v6733
        %v6747 = vadd.f32 %v6700, %v6733
        %v6748 = vadd.f32 %v6701, %v6733
        %v6749 = vadd.f32 %v6702, %v6733
        %v6750 = vadd.f32 %v6703, %v6733
        %v6751 = vadd.f32 %v6704, %v6733
        %v6752 = vadd.f32 %v6705, %v6733
        %v6753 = vadd.f32 %v6706, %v6733
        %v6754 = vadd.f32 %v6707, %v6733
        %v6755 = vadd.f32 %v6708, %v6733
        %v6756 = vadd.f32 %v6709, %v6733
        %v6757 = vadd.f32 %v6710, %v6733
        %v6758 = vadd.f32 %v6711, %v6733
        %v6759 = vadd.f32 %v6712, %v6733
        %v6760 = vadd.f32 %v6713, %v6733
        %v6761 = vadd.f32 %v6714, %v6733
        %v6762 = vadd.f32 %v6715, %v6733
        %v6763 = vadd.f32 %v6716, %v6733
        %v6764 = vadd.f32 %v6717, %v6733
        %v6765 = vadd.f32 %v6718, %v6733
        %v6766 = vadd.f32 %v6719, %v6733
        %v6767 = vadd.f32 %v6720, %v6733
        %v6768 = vadd.f32 %v6721, %v6733
        %v6769 = vadd.f32 %v6722, %v6733
        %v6770 = vadd.f32 %v6723, %v6733
        %v6771 = vadd.f32 %v6724, %v6733
        %v6772 = vadd.f32 %v6725, %v6733
        %v6773 = vadd.f32 %v6726, %v6733
        %v6774 = vadd.f32 %v6727, %v6733
        %v6775 = vadd.f32 %v6728, %v6733
        %v6776 = vmax.f32 %v6735, 0.0
        %v6777 = vmax.f32 %v6736, 0.0
        %v6778 = vmax.f32 %v6737, 0.0
        %v6779 = vmax.f32 %v6738, 0.0
        %v6780 = vmax.f32 %v6739, 0.0
        %v6781 = vmax.f32 %v6740, 0.0
        %v6782 = vmax.f32 %v6741, 0.0
        %v6783 = vmax.f32 %v6742, 0.0
        %v6784 = vmax.f32 %v6743, 0.0
        %v6785 = vmax.f32 %v6744, 0.0
        %v6786 = vmax.f32 %v6745, 0.0
        %v6787 = vmax.f32 %v6746, 0.0
        %v6788 = vmax.f32 %v6747, 0.0
        %v6789 = vmax.f32 %v6748, 0.0
        %v6790 = vmax.f32 %v6749, 0.0
        %v6791 = vmax.f32 %v6750, 0.0
        %v6792 = vmax.f32 %v6751, 0.0
        %v6793 = vmax.f32 %v6752, 0.0
        %v6794 = vmax.f32 %v6753, 0.0
        %v6795 = vmax.f32 %v6754, 0.0
        %v6796 = vmax.f32 %v6755, 0.0
        %v6797 = vmax.f32 %v6756, 0.0
        %v6798 = vmax.f32 %v6757, 0.0
        %v6799 = vmax.f32 %v6758, 0.0
        %v6800 = vmax.f32 %v6759, 0.0
        %v6801 = vmax.f32 %v6760, 0.0
        %v6802 = vmax.f32 %v6761, 0.0
        %v6803 = vmax.f32 %v6762, 0.0
        %v6804 = vmax.f32 %v6763, 0.0
        %v6805 = vmax.f32 %v6764, 0.0
        %v6806 = vmax.f32 %v6765, 0.0
        %v6807 = vmax.f32 %v6766, 0.0
        %v6808 = vmax.f32 %v6767, 0.0
        %v6809 = vmax.f32 %v6768, 0.0
        %v6810 = vmax.f32 %v6769, 0.0
        %v6811 = vmax.f32 %v6770, 0.0
        %v6812 = vmax.f32 %v6771, 0.0
        %v6813 = vmax.f32 %v6772, 0.0
        %v6814 = vmax.f32 %v6773, 0.0
        %v6815 = vmax.f32 %v6774, 0.0
        %v6816 = vmax.f32 %v6775, 0.0
        %6817 = vst.msk [vmem:[#allocation3] sm:$0xff] %vm3114, 0.0
        %6818 = vst.msk [vmem:[#allocation3 + $0x8] sm:$0xff] %vm3114, 0.0
        %6819 = vst.msk [vmem:[#allocation3 + $0x10] sm:$0xff] %vm3114, 0.0
        %v6820 = vmul.f32 %v6776, %v2871
        %v6821 = vmul.f32 %v6777, %v2876
        %v6822 = vmul.f32 %v6778, %v2881
        %v6823 = vmul.f32 %v6779, %v2886
        %v6824 = vmul.f32 %v6780, %v2891
        %v6825 = vmul.f32 %v6781, %v2896
        %v6826 = vmul.f32 %v6782, %v2901
        %v6827 = vmul.f32 %v6783, %v2906
        %v6828 = vmul.f32 %v6784, %v2911
        %v6829 = vmul.f32 %v6785, %v2916
        %v6830 = vmul.f32 %v6786, %v2921
        %v6831 = vmul.f32 %v6787, %v2926
        %v6832 = vmul.f32 %v6788, %v2931
        %v6833 = vmul.f32 %v6789, %v2936
        %v6834 = vmul.f32 %v6790, %v2941
        %v6835 = vmul.f32 %v6791, %v2946
        %v6836 = vmul.f32 %v6792, %v2951
        %v6837 = vmul.f32 %v6793, %v2956
        %v6838 = vmul.f32 %v6794, %v2961
        %v6839 = vmul.f32 %v6795, %v2966
        %v6840 = vmul.f32 %v6796, %v2971
        %v6841 = vmul.f32 %v6797, %v2976
        %v6842 = vmul.f32 %v6798, %v2981
        %v6843 = vmul.f32 %v6799, %v2986
        %v6844 = vmul.f32 %v6800, %v2991
        %v6845 = vmul.f32 %v6801, %v2996
        %v6846 = vmul.f32 %v6802, %v3001
        %v6847 = vmul.f32 %v6803, %v3006
        %v6848 = vmul.f32 %v6804, %v3011
        %v6849 = vmul.f32 %v6805, %v3016
        %v6850 = vmul.f32 %v6806, %v3021
        %v6851 = vmul.f32 %v6807, %v3026
        %v6852 = vmul.f32 %v6808, %v3031
        %v6853 = vmul.f32 %v6809, %v3036
        %v6854 = vmul.f32 %v6810, %v3041
        %v6855 = vmul.f32 %v6811, %v3046
        %v6856 = vmul.f32 %v6812, %v3051
        %v6857 = vmul.f32 %v6813, %v3056
        %v6858 = vmul.f32 %v6814, %v3061
        %v6859 = vmul.f32 %v6815, %v3066
        %v6860 = vmul.f32 %v6816, %v3071
        %6861 = vst.msk [vmem:[#allocation3 + $0x18] sm:$0xff] %vm3114, %v6820
        %6862 = vst.msk [vmem:[#allocation3 + $0x20] sm:$0xff] %vm3114, %v6821
        %6863 = vst.msk [vmem:[#allocation3 + $0x28] sm:$0xff] %vm3114, %v6822
        %6864 = vst.msk [vmem:[#allocation3 + $0x30] sm:$0xff] %vm3114, %v6823
        %6865 = vst.msk [vmem:[#allocation3 + $0x38] sm:$0xff] %vm3114, %v6824
        %6866 = vst.msk [vmem:[#allocation3 + $0x40] sm:$0xff] %vm3114, %v6825
        %6867 = vst.msk [vmem:[#allocation3 + $0x48] sm:$0xff] %vm3114, %v6826
        %6868 = vst.msk [vmem:[#allocation3 + $0x50] sm:$0xff] %vm3114, %v6827
        %6869 = vst.msk [vmem:[#allocation3 + $0x58] sm:$0xff] %vm3114, %v6828
        %6870 = vst.msk [vmem:[#allocation3 + $0x60] sm:$0xff] %vm3114, %v6829
        %6871 = vst.msk [vmem:[#allocation3 + $0x68] sm:$0xff] %vm3114, %v6830
        %6872 = vst.msk [vmem:[#allocation3 + $0x70] sm:$0xff] %vm3114, %v6831
        %6873 = vst.msk [vmem:[#allocation3 + $0x78] sm:$0xff] %vm3114, %v6832
        %6874 = vst.msk [vmem:[#allocation3 + $0x80] sm:$0xff] %vm3114, %v6833
        %6875 = vst.msk [vmem:[#allocation3 + $0x88] sm:$0xff] %vm3114, %v6834
        %6876 = vst.msk [vmem:[#allocation3 + $0x90] sm:$0xff] %vm3114, %v6835
        %6877 = vst.msk [vmem:[#allocation3 + $0x98] sm:$0xff] %vm3114, %v6836
        %6878 = vst.msk [vmem:[#allocation3 + $0xa0] sm:$0xff] %vm3114, %v6837
        %6879 = vst.msk [vmem:[#allocation3 + $0xa8] sm:$0xff] %vm3114, %v6838
        %6880 = vst.msk [vmem:[#allocation3 + $0xb0] sm:$0xff] %vm3114, %v6839
        %6881 = vst.msk [vmem:[#allocation3 + $0xb8] sm:$0xff] %vm3114, %v6840
        %6882 = vst.msk [vmem:[#allocation3 + $0xc0] sm:$0xff] %vm3114, %v6841
        %6883 = vst.msk [vmem:[#allocation3 + $0xc8] sm:$0xff] %vm3114, %v6842
        %6884 = vst.msk [vmem:[#allocation3 + $0xd0] sm:$0xff] %vm3114, %v6843
        %6885 = vst.msk [vmem:[#allocation3 + $0xd8] sm:$0xff] %vm3114, %v6844
        %6886 = vst.msk [vmem:[#allocation3 + $0xe0] sm:$0xff] %vm3114, %v6845
        %6887 = vst.msk [vmem:[#allocation3 + $0xe8] sm:$0xff] %vm3114, %v6846
        %6888 = vst.msk [vmem:[#allocation3 + $0xf0] sm:$0xff] %vm3114, %v6847
        %6889 = vst.msk [vmem:[#allocation3 + $0xf8] sm:$0xff] %vm3114, %v6848
        %6890 = vst.msk [vmem:[#allocation3 + $0x100] sm:$0xff] %vm3114, %v6849
        %6891 = vst.msk [vmem:[#allocation3 + $0x108] sm:$0xff] %vm3114, %v6850
        %6892 = vst.msk [vmem:[#allocation3 + $0x110] sm:$0xff] %vm3114, %v6851
        %6893 = vst.msk [vmem:[#allocation3 + $0x118] sm:$0xff] %vm3114, %v6852
        %6894 = vst.msk [vmem:[#allocation3 + $0x120] sm:$0xff] %vm3114, %v6853
        %6895 = vst.msk [vmem:[#allocation3 + $0x128] sm:$0xff] %vm3114, %v6854
        %6896 = vst.msk [vmem:[#allocation3 + $0x130] sm:$0xff] %vm3114, %v6855
        %6897 = vst.msk [vmem:[#allocation3 + $0x138] sm:$0xff] %vm3114, %v6856
        %6898 = vst.msk [vmem:[#allocation3 + $0x140] sm:$0xff] %vm3114, %v6857
        %6899 = vst.msk [vmem:[#allocation3 + $0x148] sm:$0xff] %vm3114, %v6858
        %6900 = vst.msk [vmem:[#allocation3 + $0x150] sm:$0xff] %vm3114, %v6859
        %6901 = vst.msk [vmem:[#allocation3 + $0x158] sm:$0xf] %vm3194, %v6860
        %6902 = vst.msk [vmem:[#allocation3 + $0x15c] sm:$0xff] %vm3114, 0.0
        %6903 = vst.msk [vmem:[#allocation3 + $0x164] sm:$0xff] %vm3114, 0.0
        %6904 = vst.msk [vmem:[#allocation3 + $0x16c] sm:$0xff] %vm3114, 0.0
        %6905 = vst.msk [vmem:[#allocation3 + $0x174] sm:$0xff] %vm3114, 0.0
        %6906 = vst.msk [vmem:[#allocation3 + $0x17c] sm:$0x3f] %vm3787, 0.0
        %s6907 = scalar_lea.vmem %s2, 144
        %v6908 = vld [vmem:[%s6907] sm:$0xff]
        %v6909 = vld [vmem:[%s6907 + $0x8] sm:$0xff]
        %v6910 = vld [vmem:[%s6907 + $0x10] sm:$0xff]
        %v6911 = vld [vmem:[%s6907 + $0x18] sm:$0xff]
        %v6912 = vld [vmem:[%s6907 + $0x20] sm:$0xff]
        %v6913 = vld [vmem:[%s6907 + $0x28] sm:$0xff]
        %v6914 = vld [vmem:[%s6907 + $0x30] sm:$0xff]
        %v6915 = vld [vmem:[%s6907 + $0x38] sm:$0xff]
        %v6916 = vld [vmem:[%s6907 + $0x40] sm:$0xff]
        %v6917 = vld [vmem:[%s6907 + $0x48] sm:$0xff]
        %v6918 = vld [vmem:[%s6907 + $0x50] sm:$0xff]
        %v6919 = vld [vmem:[%s6907 + $0x58] sm:$0xff]
        %v6920 = vld [vmem:[%s6907 + $0x60] sm:$0xff]
        %v6921 = vld [vmem:[%s6907 + $0x68] sm:$0xff]
        %v6922 = vld [vmem:[%s6907 + $0x70] sm:$0xff]
        %v6923 = vld [vmem:[%s6907 + $0x78] sm:$0xff]
        %v6924 = vld [vmem:[%s6907 + $0x80] sm:$0xff]
        %v6925 = vld [vmem:[%s6907 + $0x88] sm:$0xff]
        %s6926 = scalar_lea.vmem %s3, 2
        %v6927 = vld [vmem:[%s6926] sm:$0x1]
        %s6928 = scalar_lea.vmem %s4, 2
        %v6929 = vld [vmem:[%s6928] sm:$0x1]
        %s6930 = scalar_lea.vmem %s5, 2
        %v6931 = vld [vmem:[%s6930] sm:$0x1]
        %v6932 = vld [vmem:[#allocation3 + $0x5] sm:$0xff]
        %v6933 = vld [vmem:[#allocation3 + $0xd] sm:$0xff]
        %v6934 = vld [vmem:[#allocation3 + $0x15] sm:$0xff]
        %v6935 = vld [vmem:[#allocation3 + $0x1d] sm:$0xff]
        %v6936 = vld [vmem:[#allocation3 + $0x25] sm:$0xff]
        %v6937 = vld [vmem:[#allocation3 + $0x2d] sm:$0xff]
        %v6938 = vld [vmem:[#allocation3 + $0x35] sm:$0xff]
        %v6939 = vld [vmem:[#allocation3 + $0x3d] sm:$0xff]
        %v6940 = vld [vmem:[#allocation3 + $0x45] sm:$0xff]
        %v6941 = vld [vmem:[#allocation3 + $0x4d] sm:$0xff]
        %v6942 = vld [vmem:[#allocation3 + $0x55] sm:$0xff]
        %v6943 = vld [vmem:[#allocation3 + $0x5d] sm:$0xff]
        %v6944 = vld [vmem:[#allocation3 + $0x65] sm:$0xff]
        %v6945 = vld [vmem:[#allocation3 + $0x6d] sm:$0xff]
        %v6946 = vld [vmem:[#allocation3 + $0x75] sm:$0xff]
        %v6947 = vld [vmem:[#allocation3 + $0x7d] sm:$0xff]
        %v6948 = vld [vmem:[#allocation3 + $0x85] sm:$0xff]
        %v6949 = vld [vmem:[#allocation3 + $0x8d] sm:$0xff]
        %v6950 = vld [vmem:[#allocation3 + $0x95] sm:$0xff]
        %v6951 = vld [vmem:[#allocation3 + $0x9d] sm:$0xff]
        %v6952 = vld [vmem:[#allocation3 + $0xa5] sm:$0xff]
        %v6953 = vld [vmem:[#allocation3 + $0xad] sm:$0xff]
        %v6954 = vld [vmem:[#allocation3 + $0xb5] sm:$0xff]
        %v6955 = vld [vmem:[#allocation3 + $0xbd] sm:$0xff]
        %v6956 = vld [vmem:[#allocation3 + $0xc5] sm:$0xff]
        %v6957 = vld [vmem:[#allocation3 + $0xcd] sm:$0xff]
        %v6958 = vld [vmem:[#allocation3 + $0xd5] sm:$0xff]
        %v6959 = vld [vmem:[#allocation3 + $0xdd] sm:$0xff]
        %v6960 = vld [vmem:[#allocation3 + $0xe5] sm:$0xff]
        %v6961 = vld [vmem:[#allocation3 + $0xed] sm:$0xff]
        %v6962 = vld [vmem:[#allocation3 + $0xf5] sm:$0xff]
        %v6963 = vld [vmem:[#allocation3 + $0xfd] sm:$0xff]
        %v6964 = vld [vmem:[#allocation3 + $0x105] sm:$0xff]
        %v6965 = vld [vmem:[#allocation3 + $0x10d] sm:$0xff]
        %v6966 = vld [vmem:[#allocation3 + $0x115] sm:$0xff]
        %v6967 = vld [vmem:[#allocation3 + $0x11d] sm:$0xff]
        %v6968 = vld [vmem:[#allocation3 + $0x125] sm:$0xff]
        %v6969 = vld [vmem:[#allocation3 + $0x12d] sm:$0xff]
        %v6970 = vld [vmem:[#allocation3 + $0x135] sm:$0xff]
        %v6971 = vld [vmem:[#allocation3 + $0x13d] sm:$0xff]
        %v6972 = vld [vmem:[#allocation3 + $0x145] sm:$0xf]
        %6973 = vst.msk [vmem:[#allocation4] sm:$0xff] %vm3114, %v6932
        %6974 = vst.msk [vmem:[#allocation4 + $0x10] sm:$0xff] %vm3114, %v6933
        %6975 = vst.msk [vmem:[#allocation4 + $0x20] sm:$0xff] %vm3114, %v6934
        %6976 = vst.msk [vmem:[#allocation4 + $0x30] sm:$0xff] %vm3114, %v6935
        %6977 = vst.msk [vmem:[#allocation4 + $0x40] sm:$0xff] %vm3114, %v6936
        %6978 = vst.msk [vmem:[#allocation4 + $0x50] sm:$0xff] %vm3114, %v6937
        %6979 = vst.msk [vmem:[#allocation4 + $0x60] sm:$0xff] %vm3114, %v6938
        %6980 = vst.msk [vmem:[#allocation4 + $0x70] sm:$0xff] %vm3114, %v6939
        %6981 = vst.msk [vmem:[#allocation4 + $0x80] sm:$0xff] %vm3114, %v6940
        %6982 = vst.msk [vmem:[#allocation4 + $0x90] sm:$0xff] %vm3114, %v6941
        %6983 = vst.msk [vmem:[#allocation4 + $0xa0] sm:$0xff] %vm3114, %v6942
        %6984 = vst.msk [vmem:[#allocation4 + $0xb0] sm:$0xff] %vm3114, %v6943
        %6985 = vst.msk [vmem:[#allocation4 + $0xc0] sm:$0xff] %vm3114, %v6944
        %6986 = vst.msk [vmem:[#allocation4 + $0xd0] sm:$0xff] %vm3114, %v6945
        %6987 = vst.msk [vmem:[#allocation4 + $0xe0] sm:$0xff] %vm3114, %v6946
        %6988 = vst.msk [vmem:[#allocation4 + $0xf0] sm:$0xff] %vm3114, %v6947
        %6989 = vst.msk [vmem:[#allocation4 + $0x100] sm:$0xff] %vm3114, %v6948
        %6990 = vst.msk [vmem:[#allocation4 + $0x110] sm:$0xff] %vm3114, %v6949
        %6991 = vst.msk [vmem:[#allocation4 + $0x120] sm:$0xff] %vm3114, %v6950
        %6992 = vst.msk [vmem:[#allocation4 + $0x130] sm:$0xff] %vm3114, %v6951
        %6993 = vst.msk [vmem:[#allocation4 + $0x140] sm:$0xff] %vm3114, %v6952
        %6994 = vst.msk [vmem:[#allocation4 + $0x150] sm:$0xff] %vm3114, %v6953
        %6995 = vst.msk [vmem:[#allocation4 + $0x160] sm:$0xff] %vm3114, %v6954
        %6996 = vst.msk [vmem:[#allocation4 + $0x170] sm:$0xff] %vm3114, %v6955
        %6997 = vst.msk [vmem:[#allocation4 + $0x180] sm:$0xff] %vm3114, %v6956
        %6998 = vst.msk [vmem:[#allocation4 + $0x190] sm:$0xff] %vm3114, %v6957
        %6999 = vst.msk [vmem:[#allocation4 + $0x1a0] sm:$0xff] %vm3114, %v6958
        %7000 = vst.msk [vmem:[#allocation4 + $0x1b0] sm:$0xff] %vm3114, %v6959
        %7001 = vst.msk [vmem:[#allocation4 + $0x1c0] sm:$0xff] %vm3114, %v6960
        %7002 = vst.msk [vmem:[#allocation4 + $0x1d0] sm:$0xff] %vm3114, %v6961
        %7003 = vst.msk [vmem:[#allocation4 + $0x1e0] sm:$0xff] %vm3114, %v6962
        %7004 = vst.msk [vmem:[#allocation4 + $0x1f0] sm:$0xff] %vm3114, %v6963
        %7005 = vst.msk [vmem:[#allocation4 + $0x200] sm:$0xff] %vm3114, %v6964
        %7006 = vst.msk [vmem:[#allocation4 + $0x210] sm:$0xff] %vm3114, %v6965
        %7007 = vst.msk [vmem:[#allocation4 + $0x220] sm:$0xff] %vm3114, %v6966
        %7008 = vst.msk [vmem:[#allocation4 + $0x230] sm:$0xff] %vm3114, %v6967
        %7009 = vst.msk [vmem:[#allocation4 + $0x240] sm:$0xff] %vm3114, %v6968
        %7010 = vst.msk [vmem:[#allocation4 + $0x250] sm:$0xff] %vm3114, %v6969
        %7011 = vst.msk [vmem:[#allocation4 + $0x260] sm:$0xff] %vm3114, %v6970
        %7012 = vst.msk [vmem:[#allocation4 + $0x270] sm:$0xff] %vm3114, %v6971
        %7013 = vst.msk [vmem:[#allocation4 + $0x280] sm:$0xf] %vm3194, %v6972
        %v7014 = vld [vmem:[#allocation3 + $0x6] sm:$0xff]
        %v7015 = vld [vmem:[#allocation3 + $0xe] sm:$0xff]
        %v7016 = vld [vmem:[#allocation3 + $0x16] sm:$0xff]
        %v7017 = vld [vmem:[#allocation3 + $0x1e] sm:$0xff]
        %v7018 = vld [vmem:[#allocation3 + $0x26] sm:$0xff]
        %v7019 = vld [vmem:[#allocation3 + $0x2e] sm:$0xff]
        %v7020 = vld [vmem:[#allocation3 + $0x36] sm:$0xff]
        %v7021 = vld [vmem:[#allocation3 + $0x3e] sm:$0xff]
        %v7022 = vld [vmem:[#allocation3 + $0x46] sm:$0xff]
        %v7023 = vld [vmem:[#allocation3 + $0x4e] sm:$0xff]
        %v7024 = vld [vmem:[#allocation3 + $0x56] sm:$0xff]
        %v7025 = vld [vmem:[#allocation3 + $0x5e] sm:$0xff]
        %v7026 = vld [vmem:[#allocation3 + $0x66] sm:$0xff]
        %v7027 = vld [vmem:[#allocation3 + $0x6e] sm:$0xff]
        %v7028 = vld [vmem:[#allocation3 + $0x76] sm:$0xff]
        %v7029 = vld [vmem:[#allocation3 + $0x7e] sm:$0xff]
        %v7030 = vld [vmem:[#allocation3 + $0x86] sm:$0xff]
        %v7031 = vld [vmem:[#allocation3 + $0x8e] sm:$0xff]
        %v7032 = vld [vmem:[#allocation3 + $0x96] sm:$0xff]
        %v7033 = vld [vmem:[#allocation3 + $0x9e] sm:$0xff]
        %v7034 = vld [vmem:[#allocation3 + $0xa6] sm:$0xff]
        %v7035 = vld [vmem:[#allocation3 + $0xae] sm:$0xff]
        %v7036 = vld [vmem:[#allocation3 + $0xb6] sm:$0xff]
        %v7037 = vld [vmem:[#allocation3 + $0xbe] sm:$0xff]
        %v7038 = vld [vmem:[#allocation3 + $0xc6] sm:$0xff]
        %v7039 = vld [vmem:[#allocation3 + $0xce] sm:$0xff]
        %v7040 = vld [vmem:[#allocation3 + $0xd6] sm:$0xff]
        %v7041 = vld [vmem:[#allocation3 + $0xde] sm:$0xff]
        %v7042 = vld [vmem:[#allocation3 + $0xe6] sm:$0xff]
        %v7043 = vld [vmem:[#allocation3 + $0xee] sm:$0xff]
        %v7044 = vld [vmem:[#allocation3 + $0xf6] sm:$0xff]
        %v7045 = vld [vmem:[#allocation3 + $0xfe] sm:$0xff]
        %v7046 = vld [vmem:[#allocation3 + $0x106] sm:$0xff]
        %v7047 = vld [vmem:[#allocation3 + $0x10e] sm:$0xff]
        %v7048 = vld [vmem:[#allocation3 + $0x116] sm:$0xff]
        %v7049 = vld [vmem:[#allocation3 + $0x11e] sm:$0xff]
        %v7050 = vld [vmem:[#allocation3 + $0x126] sm:$0xff]
        %v7051 = vld [vmem:[#allocation3 + $0x12e] sm:$0xff]
        %v7052 = vld [vmem:[#allocation3 + $0x136] sm:$0xff]
        %v7053 = vld [vmem:[#allocation3 + $0x13e] sm:$0xff]
        %v7054 = vld [vmem:[#allocation3 + $0x146] sm:$0xf]
        %7096 = vrot.lane.b32.xlu0 %v7014, 16
        %v7097 = vpop.permute.xlu0 %7096
        %7098 = vrot.lane.b32.xlu0 %v7015, 16
        %v7099 = vpop.permute.xlu0 %7098
        %7100 = vrot.lane.b32.xlu0 %v7016, 16
        %v7101 = vpop.permute.xlu0 %7100
        %7102 = vrot.lane.b32.xlu0 %v7017, 16
        %v7103 = vpop.permute.xlu0 %7102
        %7104 = vrot.lane.b32.xlu0 %v7018, 16
        %v7105 = vpop.permute.xlu0 %7104
        %7106 = vrot.lane.b32.xlu0 %v7019, 16
        %v7107 = vpop.permute.xlu0 %7106
        %7108 = vrot.lane.b32.xlu0 %v7020, 16
        %v7109 = vpop.permute.xlu0 %7108
        %7110 = vrot.lane.b32.xlu0 %v7021, 16
        %v7111 = vpop.permute.xlu0 %7110
        %7112 = vrot.lane.b32.xlu0 %v7022, 16
        %v7113 = vpop.permute.xlu0 %7112
        %7114 = vrot.lane.b32.xlu0 %v7023, 16
        %v7115 = vpop.permute.xlu0 %7114
        %7116 = vrot.lane.b32.xlu0 %v7024, 16
        %v7117 = vpop.permute.xlu0 %7116
        %7118 = vrot.lane.b32.xlu0 %v7025, 16
        %v7119 = vpop.permute.xlu0 %7118
        %7120 = vrot.lane.b32.xlu0 %v7026, 16
        %v7121 = vpop.permute.xlu0 %7120
        %7122 = vrot.lane.b32.xlu0 %v7027, 16
        %v7123 = vpop.permute.xlu0 %7122
        %7124 = vrot.lane.b32.xlu0 %v7028, 16
        %v7125 = vpop.permute.xlu0 %7124
        %7126 = vrot.lane.b32.xlu0 %v7029, 16
        %v7127 = vpop.permute.xlu0 %7126
        %7128 = vrot.lane.b32.xlu0 %v7030, 16
        %v7129 = vpop.permute.xlu0 %7128
        %7130 = vrot.lane.b32.xlu0 %v7031, 16
        %v7131 = vpop.permute.xlu0 %7130
        %7132 = vrot.lane.b32.xlu0 %v7032, 16
        %v7133 = vpop.permute.xlu0 %7132
        %7134 = vrot.lane.b32.xlu0 %v7033, 16
        %v7135 = vpop.permute.xlu0 %7134
        %7136 = vrot.lane.b32.xlu0 %v7034, 16
        %v7137 = vpop.permute.xlu0 %7136
        %7138 = vrot.lane.b32.xlu0 %v7035, 16
        %v7139 = vpop.permute.xlu0 %7138
        %7140 = vrot.lane.b32.xlu0 %v7036, 16
        %v7141 = vpop.permute.xlu0 %7140
        %7142 = vrot.lane.b32.xlu0 %v7037, 16
        %v7143 = vpop.permute.xlu0 %7142
        %7144 = vrot.lane.b32.xlu0 %v7038, 16
        %v7145 = vpop.permute.xlu0 %7144
        %7146 = vrot.lane.b32.xlu0 %v7039, 16
        %v7147 = vpop.permute.xlu0 %7146
        %7148 = vrot.lane.b32.xlu0 %v7040, 16
        %v7149 = vpop.permute.xlu0 %7148
        %7150 = vrot.lane.b32.xlu0 %v7041, 16
        %v7151 = vpop.permute.xlu0 %7150
        %7152 = vrot.lane.b32.xlu0 %v7042, 16
        %v7153 = vpop.permute.xlu0 %7152
        %7154 = vrot.lane.b32.xlu0 %v7043, 16
        %v7155 = vpop.permute.xlu0 %7154
        %7156 = vrot.lane.b32.xlu0 %v7044, 16
        %v7157 = vpop.permute.xlu0 %7156
        %7158 = vrot.lane.b32.xlu0 %v7045, 16
        %v7159 = vpop.permute.xlu0 %7158
        %7160 = vrot.lane.b32.xlu0 %v7046, 16
        %v7161 = vpop.permute.xlu0 %7160
        %7162 = vrot.lane.b32.xlu0 %v7047, 16
        %v7163 = vpop.permute.xlu0 %7162
        %7164 = vrot.lane.b32.xlu0 %v7048, 16
        %v7165 = vpop.permute.xlu0 %7164
        %7166 = vrot.lane.b32.xlu0 %v7049, 16
        %v7167 = vpop.permute.xlu0 %7166
        %7168 = vrot.lane.b32.xlu0 %v7050, 16
        %v7169 = vpop.permute.xlu0 %7168
        %7170 = vrot.lane.b32.xlu0 %v7051, 16
        %v7171 = vpop.permute.xlu0 %7170
        %7172 = vrot.lane.b32.xlu0 %v7052, 16
        %v7173 = vpop.permute.xlu0 %7172
        %7174 = vrot.lane.b32.xlu0 %v7053, 16
        %v7175 = vpop.permute.xlu0 %7174
        %7176 = vrot.lane.b32.xlu0 %v7054, 16
        %v7177 = vpop.permute.xlu0 %7176
        %7219 = vst.msk [vmem:[#allocation4] sm:$0xff] %vm4100, %v7097
        %7220 = vst.msk [vmem:[#allocation4 + $0x10] sm:$0xff] %vm4100, %v7099
        %7221 = vst.msk [vmem:[#allocation4 + $0x20] sm:$0xff] %vm4100, %v7101
        %7222 = vst.msk [vmem:[#allocation4 + $0x30] sm:$0xff] %vm4100, %v7103
        %7223 = vst.msk [vmem:[#allocation4 + $0x40] sm:$0xff] %vm4100, %v7105
        %7224 = vst.msk [vmem:[#allocation4 + $0x50] sm:$0xff] %vm4100, %v7107
        %7225 = vst.msk [vmem:[#allocation4 + $0x60] sm:$0xff] %vm4100, %v7109
        %7226 = vst.msk [vmem:[#allocation4 + $0x70] sm:$0xff] %vm4100, %v7111
        %7227 = vst.msk [vmem:[#allocation4 + $0x80] sm:$0xff] %vm4100, %v7113
        %7228 = vst.msk [vmem:[#allocation4 + $0x90] sm:$0xff] %vm4100, %v7115
        %7229 = vst.msk [vmem:[#allocation4 + $0xa0] sm:$0xff] %vm4100, %v7117
        %7230 = vst.msk [vmem:[#allocation4 + $0xb0] sm:$0xff] %vm4100, %v7119
        %7231 = vst.msk [vmem:[#allocation4 + $0xc0] sm:$0xff] %vm4100, %v7121
        %7232 = vst.msk [vmem:[#allocation4 + $0xd0] sm:$0xff] %vm4100, %v7123
        %7233 = vst.msk [vmem:[#allocation4 + $0xe0] sm:$0xff] %vm4100, %v7125
        %7234 = vst.msk [vmem:[#allocation4 + $0xf0] sm:$0xff] %vm4100, %v7127
        %7235 = vst.msk [vmem:[#allocation4 + $0x100] sm:$0xff] %vm4100, %v7129
        %7236 = vst.msk [vmem:[#allocation4 + $0x110] sm:$0xff] %vm4100, %v7131
        %7237 = vst.msk [vmem:[#allocation4 + $0x120] sm:$0xff] %vm4100, %v7133
        %7238 = vst.msk [vmem:[#allocation4 + $0x130] sm:$0xff] %vm4100, %v7135
        %7239 = vst.msk [vmem:[#allocation4 + $0x140] sm:$0xff] %vm4100, %v7137
        %7240 = vst.msk [vmem:[#allocation4 + $0x150] sm:$0xff] %vm4100, %v7139
        %7241 = vst.msk [vmem:[#allocation4 + $0x160] sm:$0xff] %vm4100, %v7141
        %7242 = vst.msk [vmem:[#allocation4 + $0x170] sm:$0xff] %vm4100, %v7143
        %7243 = vst.msk [vmem:[#allocation4 + $0x180] sm:$0xff] %vm4100, %v7145
        %7244 = vst.msk [vmem:[#allocation4 + $0x190] sm:$0xff] %vm4100, %v7147
        %7245 = vst.msk [vmem:[#allocation4 + $0x1a0] sm:$0xff] %vm4100, %v7149
        %7246 = vst.msk [vmem:[#allocation4 + $0x1b0] sm:$0xff] %vm4100, %v7151
        %7247 = vst.msk [vmem:[#allocation4 + $0x1c0] sm:$0xff] %vm4100, %v7153
        %7248 = vst.msk [vmem:[#allocation4 + $0x1d0] sm:$0xff] %vm4100, %v7155
        %7249 = vst.msk [vmem:[#allocation4 + $0x1e0] sm:$0xff] %vm4100, %v7157
        %7250 = vst.msk [vmem:[#allocation4 + $0x1f0] sm:$0xff] %vm4100, %v7159
        %7251 = vst.msk [vmem:[#allocation4 + $0x200] sm:$0xff] %vm4100, %v7161
        %7252 = vst.msk [vmem:[#allocation4 + $0x210] sm:$0xff] %vm4100, %v7163
        %7253 = vst.msk [vmem:[#allocation4 + $0x220] sm:$0xff] %vm4100, %v7165
        %7254 = vst.msk [vmem:[#allocation4 + $0x230] sm:$0xff] %vm4100, %v7167
        %7255 = vst.msk [vmem:[#allocation4 + $0x240] sm:$0xff] %vm4100, %v7169
        %7256 = vst.msk [vmem:[#allocation4 + $0x250] sm:$0xff] %vm4100, %v7171
        %7257 = vst.msk [vmem:[#allocation4 + $0x260] sm:$0xff] %vm4100, %v7173
        %7258 = vst.msk [vmem:[#allocation4 + $0x270] sm:$0xff] %vm4100, %v7175
        %7259 = vst.msk [vmem:[#allocation4 + $0x280] sm:$0xf] %vm4141, %v7177
        %v7260 = vld [vmem:[#allocation3 + $0x7] sm:$0xff]
        %v7261 = vld [vmem:[#allocation3 + $0xf] sm:$0xff]
        %v7262 = vld [vmem:[#allocation3 + $0x17] sm:$0xff]
        %v7263 = vld [vmem:[#allocation3 + $0x1f] sm:$0xff]
        %v7264 = vld [vmem:[#allocation3 + $0x27] sm:$0xff]
        %v7265 = vld [vmem:[#allocation3 + $0x2f] sm:$0xff]
        %v7266 = vld [vmem:[#allocation3 + $0x37] sm:$0xff]
        %v7267 = vld [vmem:[#allocation3 + $0x3f] sm:$0xff]
        %v7268 = vld [vmem:[#allocation3 + $0x47] sm:$0xff]
        %v7269 = vld [vmem:[#allocation3 + $0x4f] sm:$0xff]
        %v7270 = vld [vmem:[#allocation3 + $0x57] sm:$0xff]
        %v7271 = vld [vmem:[#allocation3 + $0x5f] sm:$0xff]
        %v7272 = vld [vmem:[#allocation3 + $0x67] sm:$0xff]
        %v7273 = vld [vmem:[#allocation3 + $0x6f] sm:$0xff]
        %v7274 = vld [vmem:[#allocation3 + $0x77] sm:$0xff]
        %v7275 = vld [vmem:[#allocation3 + $0x7f] sm:$0xff]
        %v7276 = vld [vmem:[#allocation3 + $0x87] sm:$0xff]
        %v7277 = vld [vmem:[#allocation3 + $0x8f] sm:$0xff]
        %v7278 = vld [vmem:[#allocation3 + $0x97] sm:$0xff]
        %v7279 = vld [vmem:[#allocation3 + $0x9f] sm:$0xff]
        %v7280 = vld [vmem:[#allocation3 + $0xa7] sm:$0xff]
        %v7281 = vld [vmem:[#allocation3 + $0xaf] sm:$0xff]
        %v7282 = vld [vmem:[#allocation3 + $0xb7] sm:$0xff]
        %v7283 = vld [vmem:[#allocation3 + $0xbf] sm:$0xff]
        %v7284 = vld [vmem:[#allocation3 + $0xc7] sm:$0xff]
        %v7285 = vld [vmem:[#allocation3 + $0xcf] sm:$0xff]
        %v7286 = vld [vmem:[#allocation3 + $0xd7] sm:$0xff]
        %v7287 = vld [vmem:[#allocation3 + $0xdf] sm:$0xff]
        %v7288 = vld [vmem:[#allocation3 + $0xe7] sm:$0xff]
        %v7289 = vld [vmem:[#allocation3 + $0xef] sm:$0xff]
        %v7290 = vld [vmem:[#allocation3 + $0xf7] sm:$0xff]
        %v7291 = vld [vmem:[#allocation3 + $0xff] sm:$0xff]
        %v7292 = vld [vmem:[#allocation3 + $0x107] sm:$0xff]
        %v7293 = vld [vmem:[#allocation3 + $0x10f] sm:$0xff]
        %v7294 = vld [vmem:[#allocation3 + $0x117] sm:$0xff]
        %v7295 = vld [vmem:[#allocation3 + $0x11f] sm:$0xff]
        %v7296 = vld [vmem:[#allocation3 + $0x127] sm:$0xff]
        %v7297 = vld [vmem:[#allocation3 + $0x12f] sm:$0xff]
        %v7298 = vld [vmem:[#allocation3 + $0x137] sm:$0xff]
        %v7299 = vld [vmem:[#allocation3 + $0x13f] sm:$0xff]
        %v7300 = vld [vmem:[#allocation3 + $0x147] sm:$0xf]
        %7342 = vrot.lane.b32.xlu0 %v7260, 32
        %v7343 = vpop.permute.xlu0 %7342
        %7344 = vrot.lane.b32.xlu0 %v7261, 32
        %v7345 = vpop.permute.xlu0 %7344
        %7346 = vrot.lane.b32.xlu0 %v7262, 32
        %v7347 = vpop.permute.xlu0 %7346
        %7348 = vrot.lane.b32.xlu0 %v7263, 32
        %v7349 = vpop.permute.xlu0 %7348
        %7350 = vrot.lane.b32.xlu0 %v7264, 32
        %v7351 = vpop.permute.xlu0 %7350
        %7352 = vrot.lane.b32.xlu0 %v7265, 32
        %v7353 = vpop.permute.xlu0 %7352
        %7354 = vrot.lane.b32.xlu0 %v7266, 32
        %v7355 = vpop.permute.xlu0 %7354
        %7356 = vrot.lane.b32.xlu0 %v7267, 32
        %v7357 = vpop.permute.xlu0 %7356
        %7358 = vrot.lane.b32.xlu0 %v7268, 32
        %v7359 = vpop.permute.xlu0 %7358
        %7360 = vrot.lane.b32.xlu0 %v7269, 32
        %v7361 = vpop.permute.xlu0 %7360
        %7362 = vrot.lane.b32.xlu0 %v7270, 32
        %v7363 = vpop.permute.xlu0 %7362
        %7364 = vrot.lane.b32.xlu0 %v7271, 32
        %v7365 = vpop.permute.xlu0 %7364
        %7366 = vrot.lane.b32.xlu0 %v7272, 32
        %v7367 = vpop.permute.xlu0 %7366
        %7368 = vrot.lane.b32.xlu0 %v7273, 32
        %v7369 = vpop.permute.xlu0 %7368
        %7370 = vrot.lane.b32.xlu0 %v7274, 32
        %v7371 = vpop.permute.xlu0 %7370
        %7372 = vrot.lane.b32.xlu0 %v7275, 32
        %v7373 = vpop.permute.xlu0 %7372
        %7374 = vrot.lane.b32.xlu0 %v7276, 32
        %v7375 = vpop.permute.xlu0 %7374
        %7376 = vrot.lane.b32.xlu0 %v7277, 32
        %v7377 = vpop.permute.xlu0 %7376
        %7378 = vrot.lane.b32.xlu0 %v7278, 32
        %v7379 = vpop.permute.xlu0 %7378
        %7380 = vrot.lane.b32.xlu0 %v7279, 32
        %v7381 = vpop.permute.xlu0 %7380
        %7382 = vrot.lane.b32.xlu0 %v7280, 32
        %v7383 = vpop.permute.xlu0 %7382
        %7384 = vrot.lane.b32.xlu0 %v7281, 32
        %v7385 = vpop.permute.xlu0 %7384
        %7386 = vrot.lane.b32.xlu0 %v7282, 32
        %v7387 = vpop.permute.xlu0 %7386
        %7388 = vrot.lane.b32.xlu0 %v7283, 32
        %v7389 = vpop.permute.xlu0 %7388
        %7390 = vrot.lane.b32.xlu0 %v7284, 32
        %v7391 = vpop.permute.xlu0 %7390
        %7392 = vrot.lane.b32.xlu0 %v7285, 32
        %v7393 = vpop.permute.xlu0 %7392
        %7394 = vrot.lane.b32.xlu0 %v7286, 32
        %v7395 = vpop.permute.xlu0 %7394
        %7396 = vrot.lane.b32.xlu0 %v7287, 32
        %v7397 = vpop.permute.xlu0 %7396
        %7398 = vrot.lane.b32.xlu0 %v7288, 32
        %v7399 = vpop.permute.xlu0 %7398
        %7400 = vrot.lane.b32.xlu0 %v7289, 32
        %v7401 = vpop.permute.xlu0 %7400
        %7402 = vrot.lane.b32.xlu0 %v7290, 32
        %v7403 = vpop.permute.xlu0 %7402
        %7404 = vrot.lane.b32.xlu0 %v7291, 32
        %v7405 = vpop.permute.xlu0 %7404
        %7406 = vrot.lane.b32.xlu0 %v7292, 32
        %v7407 = vpop.permute.xlu0 %7406
        %7408 = vrot.lane.b32.xlu0 %v7293, 32
        %v7409 = vpop.permute.xlu0 %7408
        %7410 = vrot.lane.b32.xlu0 %v7294, 32
        %v7411 = vpop.permute.xlu0 %7410
        %7412 = vrot.lane.b32.xlu0 %v7295, 32
        %v7413 = vpop.permute.xlu0 %7412
        %7414 = vrot.lane.b32.xlu0 %v7296, 32
        %v7415 = vpop.permute.xlu0 %7414
        %7416 = vrot.lane.b32.xlu0 %v7297, 32
        %v7417 = vpop.permute.xlu0 %7416
        %7418 = vrot.lane.b32.xlu0 %v7298, 32
        %v7419 = vpop.permute.xlu0 %7418
        %7420 = vrot.lane.b32.xlu0 %v7299, 32
        %v7421 = vpop.permute.xlu0 %7420
        %7422 = vrot.lane.b32.xlu0 %v7300, 32
        %v7423 = vpop.permute.xlu0 %7422
        %7465 = vst.msk [vmem:[#allocation4] sm:$0xff] %vm4348, %v7343
        %7466 = vst.msk [vmem:[#allocation4 + $0x10] sm:$0xff] %vm4348, %v7345
        %7467 = vst.msk [vmem:[#allocation4 + $0x20] sm:$0xff] %vm4348, %v7347
        %7468 = vst.msk [vmem:[#allocation4 + $0x30] sm:$0xff] %vm4348, %v7349
        %7469 = vst.msk [vmem:[#allocation4 + $0x40] sm:$0xff] %vm4348, %v7351
        %7470 = vst.msk [vmem:[#allocation4 + $0x50] sm:$0xff] %vm4348, %v7353
        %7471 = vst.msk [vmem:[#allocation4 + $0x60] sm:$0xff] %vm4348, %v7355
        %7472 = vst.msk [vmem:[#allocation4 + $0x70] sm:$0xff] %vm4348, %v7357
        %7473 = vst.msk [vmem:[#allocation4 + $0x80] sm:$0xff] %vm4348, %v7359
        %7474 = vst.msk [vmem:[#allocation4 + $0x90] sm:$0xff] %vm4348, %v7361
        %7475 = vst.msk [vmem:[#allocation4 + $0xa0] sm:$0xff] %vm4348, %v7363
        %7476 = vst.msk [vmem:[#allocation4 + $0xb0] sm:$0xff] %vm4348, %v7365
        %7477 = vst.msk [vmem:[#allocation4 + $0xc0] sm:$0xff] %vm4348, %v7367
        %7478 = vst.msk [vmem:[#allocation4 + $0xd0] sm:$0xff] %vm4348, %v7369
        %7479 = vst.msk [vmem:[#allocation4 + $0xe0] sm:$0xff] %vm4348, %v7371
        %7480 = vst.msk [vmem:[#allocation4 + $0xf0] sm:$0xff] %vm4348, %v7373
        %7481 = vst.msk [vmem:[#allocation4 + $0x100] sm:$0xff] %vm4348, %v7375
        %7482 = vst.msk [vmem:[#allocation4 + $0x110] sm:$0xff] %vm4348, %v7377
        %7483 = vst.msk [vmem:[#allocation4 + $0x120] sm:$0xff] %vm4348, %v7379
        %7484 = vst.msk [vmem:[#allocation4 + $0x130] sm:$0xff] %vm4348, %v7381
        %7485 = vst.msk [vmem:[#allocation4 + $0x140] sm:$0xff] %vm4348, %v7383
        %7486 = vst.msk [vmem:[#allocation4 + $0x150] sm:$0xff] %vm4348, %v7385
        %7487 = vst.msk [vmem:[#allocation4 + $0x160] sm:$0xff] %vm4348, %v7387
        %7488 = vst.msk [vmem:[#allocation4 + $0x170] sm:$0xff] %vm4348, %v7389
        %7489 = vst.msk [vmem:[#allocation4 + $0x180] sm:$0xff] %vm4348, %v7391
        %7490 = vst.msk [vmem:[#allocation4 + $0x190] sm:$0xff] %vm4348, %v7393
        %7491 = vst.msk [vmem:[#allocation4 + $0x1a0] sm:$0xff] %vm4348, %v7395
        %7492 = vst.msk [vmem:[#allocation4 + $0x1b0] sm:$0xff] %vm4348, %v7397
        %7493 = vst.msk [vmem:[#allocation4 + $0x1c0] sm:$0xff] %vm4348, %v7399
        %7494 = vst.msk [vmem:[#allocation4 + $0x1d0] sm:$0xff] %vm4348, %v7401
        %7495 = vst.msk [vmem:[#allocation4 + $0x1e0] sm:$0xff] %vm4348, %v7403
        %7496 = vst.msk [vmem:[#allocation4 + $0x1f0] sm:$0xff] %vm4348, %v7405
        %7497 = vst.msk [vmem:[#allocation4 + $0x200] sm:$0xff] %vm4348, %v7407
        %7498 = vst.msk [vmem:[#allocation4 + $0x210] sm:$0xff] %vm4348, %v7409
        %7499 = vst.msk [vmem:[#allocation4 + $0x220] sm:$0xff] %vm4348, %v7411
        %7500 = vst.msk [vmem:[#allocation4 + $0x230] sm:$0xff] %vm4348, %v7413
        %7501 = vst.msk [vmem:[#allocation4 + $0x240] sm:$0xff] %vm4348, %v7415
        %7502 = vst.msk [vmem:[#allocation4 + $0x250] sm:$0xff] %vm4348, %v7417
        %7503 = vst.msk [vmem:[#allocation4 + $0x260] sm:$0xff] %vm4348, %v7419
        %7504 = vst.msk [vmem:[#allocation4 + $0x270] sm:$0xff] %vm4348, %v7421
        %7505 = vst.msk [vmem:[#allocation4 + $0x280] sm:$0xf] %vm4389, %v7423
        %v7506 = vld [vmem:[#allocation3 + $0x17] sm:$0xff]
        %v7507 = vld [vmem:[#allocation3 + $0x1f] sm:$0xff]
        %v7508 = vld [vmem:[#allocation3 + $0x27] sm:$0xff]
        %v7509 = vld [vmem:[#allocation3 + $0x2f] sm:$0xff]
        %v7510 = vld [vmem:[#allocation3 + $0x37] sm:$0xff]
        %v7511 = vld [vmem:[#allocation3 + $0x3f] sm:$0xff]
        %v7512 = vld [vmem:[#allocation3 + $0x47] sm:$0xff]
        %v7513 = vld [vmem:[#allocation3 + $0x4f] sm:$0xff]
        %v7514 = vld [vmem:[#allocation3 + $0x57] sm:$0xff]
        %v7515 = vld [vmem:[#allocation3 + $0x5f] sm:$0xff]
        %v7516 = vld [vmem:[#allocation3 + $0x67] sm:$0xff]
        %v7517 = vld [vmem:[#allocation3 + $0x6f] sm:$0xff]
        %v7518 = vld [vmem:[#allocation3 + $0x77] sm:$0xff]
        %v7519 = vld [vmem:[#allocation3 + $0x7f] sm:$0xff]
        %v7520 = vld [vmem:[#allocation3 + $0x87] sm:$0xff]
        %v7521 = vld [vmem:[#allocation3 + $0x8f] sm:$0xff]
        %v7522 = vld [vmem:[#allocation3 + $0x97] sm:$0xff]
        %v7523 = vld [vmem:[#allocation3 + $0x9f] sm:$0xff]
        %v7524 = vld [vmem:[#allocation3 + $0xa7] sm:$0xff]
        %v7525 = vld [vmem:[#allocation3 + $0xaf] sm:$0xff]
        %v7526 = vld [vmem:[#allocation3 + $0xb7] sm:$0xff]
        %v7527 = vld [vmem:[#allocation3 + $0xbf] sm:$0xff]
        %v7528 = vld [vmem:[#allocation3 + $0xc7] sm:$0xff]
        %v7529 = vld [vmem:[#allocation3 + $0xcf] sm:$0xff]
        %v7530 = vld [vmem:[#allocation3 + $0xd7] sm:$0xff]
        %v7531 = vld [vmem:[#allocation3 + $0xdf] sm:$0xff]
        %v7532 = vld [vmem:[#allocation3 + $0xe7] sm:$0xff]
        %v7533 = vld [vmem:[#allocation3 + $0xef] sm:$0xff]
        %v7534 = vld [vmem:[#allocation3 + $0xf7] sm:$0xff]
        %v7535 = vld [vmem:[#allocation3 + $0xff] sm:$0xff]
        %v7536 = vld [vmem:[#allocation3 + $0x107] sm:$0xff]
        %v7537 = vld [vmem:[#allocation3 + $0x10f] sm:$0xff]
        %v7538 = vld [vmem:[#allocation3 + $0x117] sm:$0xff]
        %v7539 = vld [vmem:[#allocation3 + $0x11f] sm:$0xff]
        %v7540 = vld [vmem:[#allocation3 + $0x127] sm:$0xff]
        %v7541 = vld [vmem:[#allocation3 + $0x12f] sm:$0xff]
        %v7542 = vld [vmem:[#allocation3 + $0x137] sm:$0xff]
        %v7543 = vld [vmem:[#allocation3 + $0x13f] sm:$0xff]
        %v7544 = vld [vmem:[#allocation3 + $0x147] sm:$0xff]
        %v7545 = vld [vmem:[#allocation3 + $0x14f] sm:$0xff]
        %v7546 = vld [vmem:[#allocation3 + $0x157] sm:$0xf]
        %7588 = vrot.lane.b32.xlu0 %v7506, 48
        %v7589 = vpop.permute.xlu0 %7588
        %7590 = vrot.lane.b32.xlu0 %v7507, 48
        %v7591 = vpop.permute.xlu0 %7590
        %7592 = vrot.lane.b32.xlu0 %v7508, 48
        %v7593 = vpop.permute.xlu0 %7592
        %7594 = vrot.lane.b32.xlu0 %v7509, 48
        %v7595 = vpop.permute.xlu0 %7594
        %7596 = vrot.lane.b32.xlu0 %v7510, 48
        %v7597 = vpop.permute.xlu0 %7596
        %7598 = vrot.lane.b32.xlu0 %v7511, 48
        %v7599 = vpop.permute.xlu0 %7598
        %7600 = vrot.lane.b32.xlu0 %v7512, 48
        %v7601 = vpop.permute.xlu0 %7600
        %7602 = vrot.lane.b32.xlu0 %v7513, 48
        %v7603 = vpop.permute.xlu0 %7602
        %7604 = vrot.lane.b32.xlu0 %v7514, 48
        %v7605 = vpop.permute.xlu0 %7604
        %7606 = vrot.lane.b32.xlu0 %v7515, 48
        %v7607 = vpop.permute.xlu0 %7606
        %7608 = vrot.lane.b32.xlu0 %v7516, 48
        %v7609 = vpop.permute.xlu0 %7608
        %7610 = vrot.lane.b32.xlu0 %v7517, 48
        %v7611 = vpop.permute.xlu0 %7610
        %7612 = vrot.lane.b32.xlu0 %v7518, 48
        %v7613 = vpop.permute.xlu0 %7612
        %7614 = vrot.lane.b32.xlu0 %v7519, 48
        %v7615 = vpop.permute.xlu0 %7614
        %7616 = vrot.lane.b32.xlu0 %v7520, 48
        %v7617 = vpop.permute.xlu0 %7616
        %7618 = vrot.lane.b32.xlu0 %v7521, 48
        %v7619 = vpop.permute.xlu0 %7618
        %7620 = vrot.lane.b32.xlu0 %v7522, 48
        %v7621 = vpop.permute.xlu0 %7620
        %7622 = vrot.lane.b32.xlu0 %v7523, 48
        %v7623 = vpop.permute.xlu0 %7622
        %7624 = vrot.lane.b32.xlu0 %v7524, 48
        %v7625 = vpop.permute.xlu0 %7624
        %7626 = vrot.lane.b32.xlu0 %v7525, 48
        %v7627 = vpop.permute.xlu0 %7626
        %7628 = vrot.lane.b32.xlu0 %v7526, 48
        %v7629 = vpop.permute.xlu0 %7628
        %7630 = vrot.lane.b32.xlu0 %v7527, 48
        %v7631 = vpop.permute.xlu0 %7630
        %7632 = vrot.lane.b32.xlu0 %v7528, 48
        %v7633 = vpop.permute.xlu0 %7632
        %7634 = vrot.lane.b32.xlu0 %v7529, 48
        %v7635 = vpop.permute.xlu0 %7634
        %7636 = vrot.lane.b32.xlu0 %v7530, 48
        %v7637 = vpop.permute.xlu0 %7636
        %7638 = vrot.lane.b32.xlu0 %v7531, 48
        %v7639 = vpop.permute.xlu0 %7638
        %7640 = vrot.lane.b32.xlu0 %v7532, 48
        %v7641 = vpop.permute.xlu0 %7640
        %7642 = vrot.lane.b32.xlu0 %v7533, 48
        %v7643 = vpop.permute.xlu0 %7642
        %7644 = vrot.lane.b32.xlu0 %v7534, 48
        %v7645 = vpop.permute.xlu0 %7644
        %7646 = vrot.lane.b32.xlu0 %v7535, 48
        %v7647 = vpop.permute.xlu0 %7646
        %7648 = vrot.lane.b32.xlu0 %v7536, 48
        %v7649 = vpop.permute.xlu0 %7648
        %7650 = vrot.lane.b32.xlu0 %v7537, 48
        %v7651 = vpop.permute.xlu0 %7650
        %7652 = vrot.lane.b32.xlu0 %v7538, 48
        %v7653 = vpop.permute.xlu0 %7652
        %7654 = vrot.lane.b32.xlu0 %v7539, 48
        %v7655 = vpop.permute.xlu0 %7654
        %7656 = vrot.lane.b32.xlu0 %v7540, 48
        %v7657 = vpop.permute.xlu0 %7656
        %7658 = vrot.lane.b32.xlu0 %v7541, 48
        %v7659 = vpop.permute.xlu0 %7658
        %7660 = vrot.lane.b32.xlu0 %v7542, 48
        %v7661 = vpop.permute.xlu0 %7660
        %7662 = vrot.lane.b32.xlu0 %v7543, 48
        %v7663 = vpop.permute.xlu0 %7662
        %7664 = vrot.lane.b32.xlu0 %v7544, 48
        %v7665 = vpop.permute.xlu0 %7664
        %7666 = vrot.lane.b32.xlu0 %v7545, 48
        %v7667 = vpop.permute.xlu0 %7666
        %7668 = vrot.lane.b32.xlu0 %v7546, 48
        %v7669 = vpop.permute.xlu0 %7668
        %7711 = vst.msk [vmem:[#allocation4] sm:$0xff] %vm4596, %v7589
        %7712 = vst.msk [vmem:[#allocation4 + $0x10] sm:$0xff] %vm4596, %v7591
        %7713 = vst.msk [vmem:[#allocation4 + $0x20] sm:$0xff] %vm4596, %v7593
        %7714 = vst.msk [vmem:[#allocation4 + $0x30] sm:$0xff] %vm4596, %v7595
        %7715 = vst.msk [vmem:[#allocation4 + $0x40] sm:$0xff] %vm4596, %v7597
        %7716 = vst.msk [vmem:[#allocation4 + $0x50] sm:$0xff] %vm4596, %v7599
        %7717 = vst.msk [vmem:[#allocation4 + $0x60] sm:$0xff] %vm4596, %v7601
        %7718 = vst.msk [vmem:[#allocation4 + $0x70] sm:$0xff] %vm4596, %v7603
        %7719 = vst.msk [vmem:[#allocation4 + $0x80] sm:$0xff] %vm4596, %v7605
        %7720 = vst.msk [vmem:[#allocation4 + $0x90] sm:$0xff] %vm4596, %v7607
        %7721 = vst.msk [vmem:[#allocation4 + $0xa0] sm:$0xff] %vm4596, %v7609
        %7722 = vst.msk [vmem:[#allocation4 + $0xb0] sm:$0xff] %vm4596, %v7611
        %7723 = vst.msk [vmem:[#allocation4 + $0xc0] sm:$0xff] %vm4596, %v7613
        %7724 = vst.msk [vmem:[#allocation4 + $0xd0] sm:$0xff] %vm4596, %v7615
        %7725 = vst.msk [vmem:[#allocation4 + $0xe0] sm:$0xff] %vm4596, %v7617
        %7726 = vst.msk [vmem:[#allocation4 + $0xf0] sm:$0xff] %vm4596, %v7619
        %7727 = vst.msk [vmem:[#allocation4 + $0x100] sm:$0xff] %vm4596, %v7621
        %7728 = vst.msk [vmem:[#allocation4 + $0x110] sm:$0xff] %vm4596, %v7623
        %7729 = vst.msk [vmem:[#allocation4 + $0x120] sm:$0xff] %vm4596, %v7625
        %7730 = vst.msk [vmem:[#allocation4 + $0x130] sm:$0xff] %vm4596, %v7627
        %7731 = vst.msk [vmem:[#allocation4 + $0x140] sm:$0xff] %vm4596, %v7629
        %7732 = vst.msk [vmem:[#allocation4 + $0x150] sm:$0xff] %vm4596, %v7631
        %7733 = vst.msk [vmem:[#allocation4 + $0x160] sm:$0xff] %vm4596, %v7633
        %7734 = vst.msk [vmem:[#allocation4 + $0x170] sm:$0xff] %vm4596, %v7635
        %7735 = vst.msk [vmem:[#allocation4 + $0x180] sm:$0xff] %vm4596, %v7637
        %7736 = vst.msk [vmem:[#allocation4 + $0x190] sm:$0xff] %vm4596, %v7639
        %7737 = vst.msk [vmem:[#allocation4 + $0x1a0] sm:$0xff] %vm4596, %v7641
        %7738 = vst.msk [vmem:[#allocation4 + $0x1b0] sm:$0xff] %vm4596, %v7643
        %7739 = vst.msk [vmem:[#allocation4 + $0x1c0] sm:$0xff] %vm4596, %v7645
        %7740 = vst.msk [vmem:[#allocation4 + $0x1d0] sm:$0xff] %vm4596, %v7647
        %7741 = vst.msk [vmem:[#allocation4 + $0x1e0] sm:$0xff] %vm4596, %v7649
        %7742 = vst.msk [vmem:[#allocation4 + $0x1f0] sm:$0xff] %vm4596, %v7651
        %7743 = vst.msk [vmem:[#allocation4 + $0x200] sm:$0xff] %vm4596, %v7653
        %7744 = vst.msk [vmem:[#allocation4 + $0x210] sm:$0xff] %vm4596, %v7655
        %7745 = vst.msk [vmem:[#allocation4 + $0x220] sm:$0xff] %vm4596, %v7657
        %7746 = vst.msk [vmem:[#allocation4 + $0x230] sm:$0xff] %vm4596, %v7659
        %7747 = vst.msk [vmem:[#allocation4 + $0x240] sm:$0xff] %vm4596, %v7661
        %7748 = vst.msk [vmem:[#allocation4 + $0x250] sm:$0xff] %vm4596, %v7663
        %7749 = vst.msk [vmem:[#allocation4 + $0x260] sm:$0xff] %vm4596, %v7665
        %7750 = vst.msk [vmem:[#allocation4 + $0x270] sm:$0xff] %vm4596, %v7667
        %7751 = vst.msk [vmem:[#allocation4 + $0x280] sm:$0xf] %vm4637, %v7669
        %v7752 = vld [vmem:[#allocation3 + $0x18] sm:$0xff]
        %v7753 = vld [vmem:[#allocation3 + $0x20] sm:$0xff]
        %v7754 = vld [vmem:[#allocation3 + $0x28] sm:$0xff]
        %v7755 = vld [vmem:[#allocation3 + $0x30] sm:$0xff]
        %v7756 = vld [vmem:[#allocation3 + $0x38] sm:$0xff]
        %v7757 = vld [vmem:[#allocation3 + $0x40] sm:$0xff]
        %v7758 = vld [vmem:[#allocation3 + $0x48] sm:$0xff]
        %v7759 = vld [vmem:[#allocation3 + $0x50] sm:$0xff]
        %v7760 = vld [vmem:[#allocation3 + $0x58] sm:$0xff]
        %v7761 = vld [vmem:[#allocation3 + $0x60] sm:$0xff]
        %v7762 = vld [vmem:[#allocation3 + $0x68] sm:$0xff]
        %v7763 = vld [vmem:[#allocation3 + $0x70] sm:$0xff]
        %v7764 = vld [vmem:[#allocation3 + $0x78] sm:$0xff]
        %v7765 = vld [vmem:[#allocation3 + $0x80] sm:$0xff]
        %v7766 = vld [vmem:[#allocation3 + $0x88] sm:$0xff]
        %v7767 = vld [vmem:[#allocation3 + $0x90] sm:$0xff]
        %v7768 = vld [vmem:[#allocation3 + $0x98] sm:$0xff]
        %v7769 = vld [vmem:[#allocation3 + $0xa0] sm:$0xff]
        %v7770 = vld [vmem:[#allocation3 + $0xa8] sm:$0xff]
        %v7771 = vld [vmem:[#allocation3 + $0xb0] sm:$0xff]
        %v7772 = vld [vmem:[#allocation3 + $0xb8] sm:$0xff]
        %v7773 = vld [vmem:[#allocation3 + $0xc0] sm:$0xff]
        %v7774 = vld [vmem:[#allocation3 + $0xc8] sm:$0xff]
        %v7775 = vld [vmem:[#allocation3 + $0xd0] sm:$0xff]
        %v7776 = vld [vmem:[#allocation3 + $0xd8] sm:$0xff]
        %v7777 = vld [vmem:[#allocation3 + $0xe0] sm:$0xff]
        %v7778 = vld [vmem:[#allocation3 + $0xe8] sm:$0xff]
        %v7779 = vld [vmem:[#allocation3 + $0xf0] sm:$0xff]
        %v7780 = vld [vmem:[#allocation3 + $0xf8] sm:$0xff]
        %v7781 = vld [vmem:[#allocation3 + $0x100] sm:$0xff]
        %v7782 = vld [vmem:[#allocation3 + $0x108] sm:$0xff]
        %v7783 = vld [vmem:[#allocation3 + $0x110] sm:$0xff]
        %v7784 = vld [vmem:[#allocation3 + $0x118] sm:$0xff]
        %v7785 = vld [vmem:[#allocation3 + $0x120] sm:$0xff]
        %v7786 = vld [vmem:[#allocation3 + $0x128] sm:$0xff]
        %v7787 = vld [vmem:[#allocation3 + $0x130] sm:$0xff]
        %v7788 = vld [vmem:[#allocation3 + $0x138] sm:$0xff]
        %v7789 = vld [vmem:[#allocation3 + $0x140] sm:$0xff]
        %v7790 = vld [vmem:[#allocation3 + $0x148] sm:$0xff]
        %v7791 = vld [vmem:[#allocation3 + $0x150] sm:$0xff]
        %v7792 = vld [vmem:[#allocation3 + $0x158] sm:$0xf]
        %7834 = vrot.lane.b32.xlu0 %v7752, 64
        %v7835 = vpop.permute.xlu0 %7834
        %7836 = vrot.lane.b32.xlu0 %v7753, 64
        %v7837 = vpop.permute.xlu0 %7836
        %7838 = vrot.lane.b32.xlu0 %v7754, 64
        %v7839 = vpop.permute.xlu0 %7838
        %7840 = vrot.lane.b32.xlu0 %v7755, 64
        %v7841 = vpop.permute.xlu0 %7840
        %7842 = vrot.lane.b32.xlu0 %v7756, 64
        %v7843 = vpop.permute.xlu0 %7842
        %7844 = vrot.lane.b32.xlu0 %v7757, 64
        %v7845 = vpop.permute.xlu0 %7844
        %7846 = vrot.lane.b32.xlu0 %v7758, 64
        %v7847 = vpop.permute.xlu0 %7846
        %7848 = vrot.lane.b32.xlu0 %v7759, 64
        %v7849 = vpop.permute.xlu0 %7848
        %7850 = vrot.lane.b32.xlu0 %v7760, 64
        %v7851 = vpop.permute.xlu0 %7850
        %7852 = vrot.lane.b32.xlu0 %v7761, 64
        %v7853 = vpop.permute.xlu0 %7852
        %7854 = vrot.lane.b32.xlu0 %v7762, 64
        %v7855 = vpop.permute.xlu0 %7854
        %7856 = vrot.lane.b32.xlu0 %v7763, 64
        %v7857 = vpop.permute.xlu0 %7856
        %7858 = vrot.lane.b32.xlu0 %v7764, 64
        %v7859 = vpop.permute.xlu0 %7858
        %7860 = vrot.lane.b32.xlu0 %v7765, 64
        %v7861 = vpop.permute.xlu0 %7860
        %7862 = vrot.lane.b32.xlu0 %v7766, 64
        %v7863 = vpop.permute.xlu0 %7862
        %7864 = vrot.lane.b32.xlu0 %v7767, 64
        %v7865 = vpop.permute.xlu0 %7864
        %7866 = vrot.lane.b32.xlu0 %v7768, 64
        %v7867 = vpop.permute.xlu0 %7866
        %7868 = vrot.lane.b32.xlu0 %v7769, 64
        %v7869 = vpop.permute.xlu0 %7868
        %7870 = vrot.lane.b32.xlu0 %v7770, 64
        %v7871 = vpop.permute.xlu0 %7870
        %7872 = vrot.lane.b32.xlu0 %v7771, 64
        %v7873 = vpop.permute.xlu0 %7872
        %7874 = vrot.lane.b32.xlu0 %v7772, 64
        %v7875 = vpop.permute.xlu0 %7874
        %7876 = vrot.lane.b32.xlu0 %v7773, 64
        %v7877 = vpop.permute.xlu0 %7876
        %7878 = vrot.lane.b32.xlu0 %v7774, 64
        %v7879 = vpop.permute.xlu0 %7878
        %7880 = vrot.lane.b32.xlu0 %v7775, 64
        %v7881 = vpop.permute.xlu0 %7880
        %7882 = vrot.lane.b32.xlu0 %v7776, 64
        %v7883 = vpop.permute.xlu0 %7882
        %7884 = vrot.lane.b32.xlu0 %v7777, 64
        %v7885 = vpop.permute.xlu0 %7884
        %7886 = vrot.lane.b32.xlu0 %v7778, 64
        %v7887 = vpop.permute.xlu0 %7886
        %7888 = vrot.lane.b32.xlu0 %v7779, 64
        %v7889 = vpop.permute.xlu0 %7888
        %7890 = vrot.lane.b32.xlu0 %v7780, 64
        %v7891 = vpop.permute.xlu0 %7890
        %7892 = vrot.lane.b32.xlu0 %v7781, 64
        %v7893 = vpop.permute.xlu0 %7892
        %7894 = vrot.lane.b32.xlu0 %v7782, 64
        %v7895 = vpop.permute.xlu0 %7894
        %7896 = vrot.lane.b32.xlu0 %v7783, 64
        %v7897 = vpop.permute.xlu0 %7896
        %7898 = vrot.lane.b32.xlu0 %v7784, 64
        %v7899 = vpop.permute.xlu0 %7898
        %7900 = vrot.lane.b32.xlu0 %v7785, 64
        %v7901 = vpop.permute.xlu0 %7900
        %7902 = vrot.lane.b32.xlu0 %v7786, 64
        %v7903 = vpop.permute.xlu0 %7902
        %7904 = vrot.lane.b32.xlu0 %v7787, 64
        %v7905 = vpop.permute.xlu0 %7904
        %7906 = vrot.lane.b32.xlu0 %v7788, 64
        %v7907 = vpop.permute.xlu0 %7906
        %7908 = vrot.lane.b32.xlu0 %v7789, 64
        %v7909 = vpop.permute.xlu0 %7908
        %7910 = vrot.lane.b32.xlu0 %v7790, 64
        %v7911 = vpop.permute.xlu0 %7910
        %7912 = vrot.lane.b32.xlu0 %v7791, 64
        %v7913 = vpop.permute.xlu0 %7912
        %7914 = vrot.lane.b32.xlu0 %v7792, 64
        %v7915 = vpop.permute.xlu0 %7914
        %7957 = vst.msk [vmem:[#allocation4] sm:$0xff] %vm4844, %v7835
        %7958 = vst.msk [vmem:[#allocation4 + $0x10] sm:$0xff] %vm4844, %v7837
        %7959 = vst.msk [vmem:[#allocation4 + $0x20] sm:$0xff] %vm4844, %v7839
        %7960 = vst.msk [vmem:[#allocation4 + $0x30] sm:$0xff] %vm4844, %v7841
        %7961 = vst.msk [vmem:[#allocation4 + $0x40] sm:$0xff] %vm4844, %v7843
        %7962 = vst.msk [vmem:[#allocation4 + $0x50] sm:$0xff] %vm4844, %v7845
        %7963 = vst.msk [vmem:[#allocation4 + $0x60] sm:$0xff] %vm4844, %v7847
        %7964 = vst.msk [vmem:[#allocation4 + $0x70] sm:$0xff] %vm4844, %v7849
        %7965 = vst.msk [vmem:[#allocation4 + $0x80] sm:$0xff] %vm4844, %v7851
        %7966 = vst.msk [vmem:[#allocation4 + $0x90] sm:$0xff] %vm4844, %v7853
        %7967 = vst.msk [vmem:[#allocation4 + $0xa0] sm:$0xff] %vm4844, %v7855
        %7968 = vst.msk [vmem:[#allocation4 + $0xb0] sm:$0xff] %vm4844, %v7857
        %7969 = vst.msk [vmem:[#allocation4 + $0xc0] sm:$0xff] %vm4844, %v7859
        %7970 = vst.msk [vmem:[#allocation4 + $0xd0] sm:$0xff] %vm4844, %v7861
        %7971 = vst.msk [vmem:[#allocation4 + $0xe0] sm:$0xff] %vm4844, %v7863
        %7972 = vst.msk [vmem:[#allocation4 + $0xf0] sm:$0xff] %vm4844, %v7865
        %7973 = vst.msk [vmem:[#allocation4 + $0x100] sm:$0xff] %vm4844, %v7867
        %7974 = vst.msk [vmem:[#allocation4 + $0x110] sm:$0xff] %vm4844, %v7869
        %7975 = vst.msk [vmem:[#allocation4 + $0x120] sm:$0xff] %vm4844, %v7871
        %7976 = vst.msk [vmem:[#allocation4 + $0x130] sm:$0xff] %vm4844, %v7873
        %7977 = vst.msk [vmem:[#allocation4 + $0x140] sm:$0xff] %vm4844, %v7875
        %7978 = vst.msk [vmem:[#allocation4 + $0x150] sm:$0xff] %vm4844, %v7877
        %7979 = vst.msk [vmem:[#allocation4 + $0x160] sm:$0xff] %vm4844, %v7879
        %7980 = vst.msk [vmem:[#allocation4 + $0x170] sm:$0xff] %vm4844, %v7881
        %7981 = vst.msk [vmem:[#allocation4 + $0x180] sm:$0xff] %vm4844, %v7883
        %7982 = vst.msk [vmem:[#allocation4 + $0x190] sm:$0xff] %vm4844, %v7885
        %7983 = vst.msk [vmem:[#allocation4 + $0x1a0] sm:$0xff] %vm4844, %v7887
        %7984 = vst.msk [vmem:[#allocation4 + $0x1b0] sm:$0xff] %vm4844, %v7889
        %7985 = vst.msk [vmem:[#allocation4 + $0x1c0] sm:$0xff] %vm4844, %v7891
        %7986 = vst.msk [vmem:[#allocation4 + $0x1d0] sm:$0xff] %vm4844, %v7893
        %7987 = vst.msk [vmem:[#allocation4 + $0x1e0] sm:$0xff] %vm4844, %v7895
        %7988 = vst.msk [vmem:[#allocation4 + $0x1f0] sm:$0xff] %vm4844, %v7897
        %7989 = vst.msk [vmem:[#allocation4 + $0x200] sm:$0xff] %vm4844, %v7899
        %7990 = vst.msk [vmem:[#allocation4 + $0x210] sm:$0xff] %vm4844, %v7901
        %7991 = vst.msk [vmem:[#allocation4 + $0x220] sm:$0xff] %vm4844, %v7903
        %7992 = vst.msk [vmem:[#allocation4 + $0x230] sm:$0xff] %vm4844, %v7905
        %7993 = vst.msk [vmem:[#allocation4 + $0x240] sm:$0xff] %vm4844, %v7907
        %7994 = vst.msk [vmem:[#allocation4 + $0x250] sm:$0xff] %vm4844, %v7909
        %7995 = vst.msk [vmem:[#allocation4 + $0x260] sm:$0xff] %vm4844, %v7911
        %7996 = vst.msk [vmem:[#allocation4 + $0x270] sm:$0xff] %vm4844, %v7913
        %7997 = vst.msk [vmem:[#allocation4 + $0x280] sm:$0xf] %vm4885, %v7915
        %v7998 = vld [vmem:[#allocation3 + $0x19] sm:$0xff]
        %v7999 = vld [vmem:[#allocation3 + $0x21] sm:$0xff]
        %v8000 = vld [vmem:[#allocation3 + $0x29] sm:$0xff]
        %v8001 = vld [vmem:[#allocation3 + $0x31] sm:$0xff]
        %v8002 = vld [vmem:[#allocation3 + $0x39] sm:$0xff]
        %v8003 = vld [vmem:[#allocation3 + $0x41] sm:$0xff]
        %v8004 = vld [vmem:[#allocation3 + $0x49] sm:$0xff]
        %v8005 = vld [vmem:[#allocation3 + $0x51] sm:$0xff]
        %v8006 = vld [vmem:[#allocation3 + $0x59] sm:$0xff]
        %v8007 = vld [vmem:[#allocation3 + $0x61] sm:$0xff]
        %v8008 = vld [vmem:[#allocation3 + $0x69] sm:$0xff]
        %v8009 = vld [vmem:[#allocation3 + $0x71] sm:$0xff]
        %v8010 = vld [vmem:[#allocation3 + $0x79] sm:$0xff]
        %v8011 = vld [vmem:[#allocation3 + $0x81] sm:$0xff]
        %v8012 = vld [vmem:[#allocation3 + $0x89] sm:$0xff]
        %v8013 = vld [vmem:[#allocation3 + $0x91] sm:$0xff]
        %v8014 = vld [vmem:[#allocation3 + $0x99] sm:$0xff]
        %v8015 = vld [vmem:[#allocation3 + $0xa1] sm:$0xff]
        %v8016 = vld [vmem:[#allocation3 + $0xa9] sm:$0xff]
        %v8017 = vld [vmem:[#allocation3 + $0xb1] sm:$0xff]
        %v8018 = vld [vmem:[#allocation3 + $0xb9] sm:$0xff]
        %v8019 = vld [vmem:[#allocation3 + $0xc1] sm:$0xff]
        %v8020 = vld [vmem:[#allocation3 + $0xc9] sm:$0xff]
        %v8021 = vld [vmem:[#allocation3 + $0xd1] sm:$0xff]
        %v8022 = vld [vmem:[#allocation3 + $0xd9] sm:$0xff]
        %v8023 = vld [vmem:[#allocation3 + $0xe1] sm:$0xff]
        %v8024 = vld [vmem:[#allocation3 + $0xe9] sm:$0xff]
        %v8025 = vld [vmem:[#allocation3 + $0xf1] sm:$0xff]
        %v8026 = vld [vmem:[#allocation3 + $0xf9] sm:$0xff]
        %v8027 = vld [vmem:[#allocation3 + $0x101] sm:$0xff]
        %v8028 = vld [vmem:[#allocation3 + $0x109] sm:$0xff]
        %v8029 = vld [vmem:[#allocation3 + $0x111] sm:$0xff]
        %v8030 = vld [vmem:[#allocation3 + $0x119] sm:$0xff]
        %v8031 = vld [vmem:[#allocation3 + $0x121] sm:$0xff]
        %v8032 = vld [vmem:[#allocation3 + $0x129] sm:$0xff]
        %v8033 = vld [vmem:[#allocation3 + $0x131] sm:$0xff]
        %v8034 = vld [vmem:[#allocation3 + $0x139] sm:$0xff]
        %v8035 = vld [vmem:[#allocation3 + $0x141] sm:$0xff]
        %v8036 = vld [vmem:[#allocation3 + $0x149] sm:$0xff]
        %v8037 = vld [vmem:[#allocation3 + $0x151] sm:$0xff]
        %v8038 = vld [vmem:[#allocation3 + $0x159] sm:$0xf]
        %8080 = vrot.lane.b32.xlu0 %v7998, 80
        %v8081 = vpop.permute.xlu0 %8080
        %8082 = vrot.lane.b32.xlu0 %v7999, 80
        %v8083 = vpop.permute.xlu0 %8082
        %8084 = vrot.lane.b32.xlu0 %v8000, 80
        %v8085 = vpop.permute.xlu0 %8084
        %8086 = vrot.lane.b32.xlu0 %v8001, 80
        %v8087 = vpop.permute.xlu0 %8086
        %8088 = vrot.lane.b32.xlu0 %v8002, 80
        %v8089 = vpop.permute.xlu0 %8088
        %8090 = vrot.lane.b32.xlu0 %v8003, 80
        %v8091 = vpop.permute.xlu0 %8090
        %8092 = vrot.lane.b32.xlu0 %v8004, 80
        %v8093 = vpop.permute.xlu0 %8092
        %8094 = vrot.lane.b32.xlu0 %v8005, 80
        %v8095 = vpop.permute.xlu0 %8094
        %8096 = vrot.lane.b32.xlu0 %v8006, 80
        %v8097 = vpop.permute.xlu0 %8096
        %8098 = vrot.lane.b32.xlu0 %v8007, 80
        %v8099 = vpop.permute.xlu0 %8098
        %8100 = vrot.lane.b32.xlu0 %v8008, 80
        %v8101 = vpop.permute.xlu0 %8100
        %8102 = vrot.lane.b32.xlu0 %v8009, 80
        %v8103 = vpop.permute.xlu0 %8102
        %8104 = vrot.lane.b32.xlu0 %v8010, 80
        %v8105 = vpop.permute.xlu0 %8104
        %8106 = vrot.lane.b32.xlu0 %v8011, 80
        %v8107 = vpop.permute.xlu0 %8106
        %8108 = vrot.lane.b32.xlu0 %v8012, 80
        %v8109 = vpop.permute.xlu0 %8108
        %8110 = vrot.lane.b32.xlu0 %v8013, 80
        %v8111 = vpop.permute.xlu0 %8110
        %8112 = vrot.lane.b32.xlu0 %v8014, 80
        %v8113 = vpop.permute.xlu0 %8112
        %8114 = vrot.lane.b32.xlu0 %v8015, 80
        %v8115 = vpop.permute.xlu0 %8114
        %8116 = vrot.lane.b32.xlu0 %v8016, 80
        %v8117 = vpop.permute.xlu0 %8116
        %8118 = vrot.lane.b32.xlu0 %v8017, 80
        %v8119 = vpop.permute.xlu0 %8118
        %8120 = vrot.lane.b32.xlu0 %v8018, 80
        %v8121 = vpop.permute.xlu0 %8120
        %8122 = vrot.lane.b32.xlu0 %v8019, 80
        %v8123 = vpop.permute.xlu0 %8122
        %8124 = vrot.lane.b32.xlu0 %v8020, 80
        %v8125 = vpop.permute.xlu0 %8124
        %8126 = vrot.lane.b32.xlu0 %v8021, 80
        %v8127 = vpop.permute.xlu0 %8126
        %8128 = vrot.lane.b32.xlu0 %v8022, 80
        %v8129 = vpop.permute.xlu0 %8128
        %8130 = vrot.lane.b32.xlu0 %v8023, 80
        %v8131 = vpop.permute.xlu0 %8130
        %8132 = vrot.lane.b32.xlu0 %v8024, 80
        %v8133 = vpop.permute.xlu0 %8132
        %8134 = vrot.lane.b32.xlu0 %v8025, 80
        %v8135 = vpop.permute.xlu0 %8134
        %8136 = vrot.lane.b32.xlu0 %v8026, 80
        %v8137 = vpop.permute.xlu0 %8136
        %8138 = vrot.lane.b32.xlu0 %v8027, 80
        %v8139 = vpop.permute.xlu0 %8138
        %8140 = vrot.lane.b32.xlu0 %v8028, 80
        %v8141 = vpop.permute.xlu0 %8140
        %8142 = vrot.lane.b32.xlu0 %v8029, 80
        %v8143 = vpop.permute.xlu0 %8142
        %8144 = vrot.lane.b32.xlu0 %v8030, 80
        %v8145 = vpop.permute.xlu0 %8144
        %8146 = vrot.lane.b32.xlu0 %v8031, 80
        %v8147 = vpop.permute.xlu0 %8146
        %8148 = vrot.lane.b32.xlu0 %v8032, 80
        %v8149 = vpop.permute.xlu0 %8148
        %8150 = vrot.lane.b32.xlu0 %v8033, 80
        %v8151 = vpop.permute.xlu0 %8150
        %8152 = vrot.lane.b32.xlu0 %v8034, 80
        %v8153 = vpop.permute.xlu0 %8152
        %8154 = vrot.lane.b32.xlu0 %v8035, 80
        %v8155 = vpop.permute.xlu0 %8154
        %8156 = vrot.lane.b32.xlu0 %v8036, 80
        %v8157 = vpop.permute.xlu0 %8156
        %8158 = vrot.lane.b32.xlu0 %v8037, 80
        %v8159 = vpop.permute.xlu0 %8158
        %8160 = vrot.lane.b32.xlu0 %v8038, 80
        %v8161 = vpop.permute.xlu0 %8160
        %8203 = vst.msk [vmem:[#allocation4] sm:$0xff] %vm5092, %v8081
        %8204 = vst.msk [vmem:[#allocation4 + $0x10] sm:$0xff] %vm5092, %v8083
        %8205 = vst.msk [vmem:[#allocation4 + $0x20] sm:$0xff] %vm5092, %v8085
        %8206 = vst.msk [vmem:[#allocation4 + $0x30] sm:$0xff] %vm5092, %v8087
        %8207 = vst.msk [vmem:[#allocation4 + $0x40] sm:$0xff] %vm5092, %v8089
        %8208 = vst.msk [vmem:[#allocation4 + $0x50] sm:$0xff] %vm5092, %v8091
        %8209 = vst.msk [vmem:[#allocation4 + $0x60] sm:$0xff] %vm5092, %v8093
        %8210 = vst.msk [vmem:[#allocation4 + $0x70] sm:$0xff] %vm5092, %v8095
        %8211 = vst.msk [vmem:[#allocation4 + $0x80] sm:$0xff] %vm5092, %v8097
        %8212 = vst.msk [vmem:[#allocation4 + $0x90] sm:$0xff] %vm5092, %v8099
        %8213 = vst.msk [vmem:[#allocation4 + $0xa0] sm:$0xff] %vm5092, %v8101
        %8214 = vst.msk [vmem:[#allocation4 + $0xb0] sm:$0xff] %vm5092, %v8103
        %8215 = vst.msk [vmem:[#allocation4 + $0xc0] sm:$0xff] %vm5092, %v8105
        %8216 = vst.msk [vmem:[#allocation4 + $0xd0] sm:$0xff] %vm5092, %v8107
        %8217 = vst.msk [vmem:[#allocation4 + $0xe0] sm:$0xff] %vm5092, %v8109
        %8218 = vst.msk [vmem:[#allocation4 + $0xf0] sm:$0xff] %vm5092, %v8111
        %8219 = vst.msk [vmem:[#allocation4 + $0x100] sm:$0xff] %vm5092, %v8113
        %8220 = vst.msk [vmem:[#allocation4 + $0x110] sm:$0xff] %vm5092, %v8115
        %8221 = vst.msk [vmem:[#allocation4 + $0x120] sm:$0xff] %vm5092, %v8117
        %8222 = vst.msk [vmem:[#allocation4 + $0x130] sm:$0xff] %vm5092, %v8119
        %8223 = vst.msk [vmem:[#allocation4 + $0x140] sm:$0xff] %vm5092, %v8121
        %8224 = vst.msk [vmem:[#allocation4 + $0x150] sm:$0xff] %vm5092, %v8123
        %8225 = vst.msk [vmem:[#allocation4 + $0x160] sm:$0xff] %vm5092, %v8125
        %8226 = vst.msk [vmem:[#allocation4 + $0x170] sm:$0xff] %vm5092, %v8127
        %8227 = vst.msk [vmem:[#allocation4 + $0x180] sm:$0xff] %vm5092, %v8129
        %8228 = vst.msk [vmem:[#allocation4 + $0x190] sm:$0xff] %vm5092, %v8131
        %8229 = vst.msk [vmem:[#allocation4 + $0x1a0] sm:$0xff] %vm5092, %v8133
        %8230 = vst.msk [vmem:[#allocation4 + $0x1b0] sm:$0xff] %vm5092, %v8135
        %8231 = vst.msk [vmem:[#allocation4 + $0x1c0] sm:$0xff] %vm5092, %v8137
        %8232 = vst.msk [vmem:[#allocation4 + $0x1d0] sm:$0xff] %vm5092, %v8139
        %8233 = vst.msk [vmem:[#allocation4 + $0x1e0] sm:$0xff] %vm5092, %v8141
        %8234 = vst.msk [vmem:[#allocation4 + $0x1f0] sm:$0xff] %vm5092, %v8143
        %8235 = vst.msk [vmem:[#allocation4 + $0x200] sm:$0xff] %vm5092, %v8145
        %8236 = vst.msk [vmem:[#allocation4 + $0x210] sm:$0xff] %vm5092, %v8147
        %8237 = vst.msk [vmem:[#allocation4 + $0x220] sm:$0xff] %vm5092, %v8149
        %8238 = vst.msk [vmem:[#allocation4 + $0x230] sm:$0xff] %vm5092, %v8151
        %8239 = vst.msk [vmem:[#allocation4 + $0x240] sm:$0xff] %vm5092, %v8153
        %8240 = vst.msk [vmem:[#allocation4 + $0x250] sm:$0xff] %vm5092, %v8155
        %8241 = vst.msk [vmem:[#allocation4 + $0x260] sm:$0xff] %vm5092, %v8157
        %8242 = vst.msk [vmem:[#allocation4 + $0x270] sm:$0xff] %vm5092, %v8159
        %8243 = vst.msk [vmem:[#allocation4 + $0x280] sm:$0xf] %vm5133, %v8161
        %v8244 = vld [vmem:[#allocation3 + $0x29] sm:$0xff]
        %v8245 = vld [vmem:[#allocation3 + $0x31] sm:$0xff]
        %v8246 = vld [vmem:[#allocation3 + $0x39] sm:$0xff]
        %v8247 = vld [vmem:[#allocation3 + $0x41] sm:$0xff]
        %v8248 = vld [vmem:[#allocation3 + $0x49] sm:$0xff]
        %v8249 = vld [vmem:[#allocation3 + $0x51] sm:$0xff]
        %v8250 = vld [vmem:[#allocation3 + $0x59] sm:$0xff]
        %v8251 = vld [vmem:[#allocation3 + $0x61] sm:$0xff]
        %v8252 = vld [vmem:[#allocation3 + $0x69] sm:$0xff]
        %v8253 = vld [vmem:[#allocation3 + $0x71] sm:$0xff]
        %v8254 = vld [vmem:[#allocation3 + $0x79] sm:$0xff]
        %v8255 = vld [vmem:[#allocation3 + $0x81] sm:$0xff]
        %v8256 = vld [vmem:[#allocation3 + $0x89] sm:$0xff]
        %v8257 = vld [vmem:[#allocation3 + $0x91] sm:$0xff]
        %v8258 = vld [vmem:[#allocation3 + $0x99] sm:$0xff]
        %v8259 = vld [vmem:[#allocation3 + $0xa1] sm:$0xff]
        %v8260 = vld [vmem:[#allocation3 + $0xa9] sm:$0xff]
        %v8261 = vld [vmem:[#allocation3 + $0xb1] sm:$0xff]
        %v8262 = vld [vmem:[#allocation3 + $0xb9] sm:$0xff]
        %v8263 = vld [vmem:[#allocation3 + $0xc1] sm:$0xff]
        %v8264 = vld [vmem:[#allocation3 + $0xc9] sm:$0xff]
        %v8265 = vld [vmem:[#allocation3 + $0xd1] sm:$0xff]
        %v8266 = vld [vmem:[#allocation3 + $0xd9] sm:$0xff]
        %v8267 = vld [vmem:[#allocation3 + $0xe1] sm:$0xff]
        %v8268 = vld [vmem:[#allocation3 + $0xe9] sm:$0xff]
        %v8269 = vld [vmem:[#allocation3 + $0xf1] sm:$0xff]
        %v8270 = vld [vmem:[#allocation3 + $0xf9] sm:$0xff]
        %v8271 = vld [vmem:[#allocation3 + $0x101] sm:$0xff]
        %v8272 = vld [vmem:[#allocation3 + $0x109] sm:$0xff]
        %v8273 = vld [vmem:[#allocation3 + $0x111] sm:$0xff]
        %v8274 = vld [vmem:[#allocation3 + $0x119] sm:$0xff]
        %v8275 = vld [vmem:[#allocation3 + $0x121] sm:$0xff]
        %v8276 = vld [vmem:[#allocation3 + $0x129] sm:$0xff]
        %v8277 = vld [vmem:[#allocation3 + $0x131] sm:$0xff]
        %v8278 = vld [vmem:[#allocation3 + $0x139] sm:$0xff]
        %v8279 = vld [vmem:[#allocation3 + $0x141] sm:$0xff]
        %v8280 = vld [vmem:[#allocation3 + $0x149] sm:$0xff]
        %v8281 = vld [vmem:[#allocation3 + $0x151] sm:$0xff]
        %v8282 = vld [vmem:[#allocation3 + $0x159] sm:$0xff]
        %v8283 = vld [vmem:[#allocation3 + $0x161] sm:$0xff]
        %v8284 = vld [vmem:[#allocation3 + $0x169] sm:$0xf]
        %8326 = vrot.lane.b32.xlu0 %v8244, 96
        %v8327 = vpop.permute.xlu0 %8326
        %8328 = vrot.lane.b32.xlu0 %v8245, 96
        %v8329 = vpop.permute.xlu0 %8328
        %8330 = vrot.lane.b32.xlu0 %v8246, 96
        %v8331 = vpop.permute.xlu0 %8330
        %8332 = vrot.lane.b32.xlu0 %v8247, 96
        %v8333 = vpop.permute.xlu0 %8332
        %8334 = vrot.lane.b32.xlu0 %v8248, 96
        %v8335 = vpop.permute.xlu0 %8334
        %8336 = vrot.lane.b32.xlu0 %v8249, 96
        %v8337 = vpop.permute.xlu0 %8336
        %8338 = vrot.lane.b32.xlu0 %v8250, 96
        %v8339 = vpop.permute.xlu0 %8338
        %8340 = vrot.lane.b32.xlu0 %v8251, 96
        %v8341 = vpop.permute.xlu0 %8340
        %8342 = vrot.lane.b32.xlu0 %v8252, 96
        %v8343 = vpop.permute.xlu0 %8342
        %8344 = vrot.lane.b32.xlu0 %v8253, 96
        %v8345 = vpop.permute.xlu0 %8344
        %8346 = vrot.lane.b32.xlu0 %v8254, 96
        %v8347 = vpop.permute.xlu0 %8346
        %8348 = vrot.lane.b32.xlu0 %v8255, 96
        %v8349 = vpop.permute.xlu0 %8348
        %8350 = vrot.lane.b32.xlu0 %v8256, 96
        %v8351 = vpop.permute.xlu0 %8350
        %8352 = vrot.lane.b32.xlu0 %v8257, 96
        %v8353 = vpop.permute.xlu0 %8352
        %8354 = vrot.lane.b32.xlu0 %v8258, 96
        %v8355 = vpop.permute.xlu0 %8354
        %8356 = vrot.lane.b32.xlu0 %v8259, 96
        %v8357 = vpop.permute.xlu0 %8356
        %8358 = vrot.lane.b32.xlu0 %v8260, 96
        %v8359 = vpop.permute.xlu0 %8358
        %8360 = vrot.lane.b32.xlu0 %v8261, 96
        %v8361 = vpop.permute.xlu0 %8360
        %8362 = vrot.lane.b32.xlu0 %v8262, 96
        %v8363 = vpop.permute.xlu0 %8362
        %8364 = vrot.lane.b32.xlu0 %v8263, 96
        %v8365 = vpop.permute.xlu0 %8364
        %8366 = vrot.lane.b32.xlu0 %v8264, 96
        %v8367 = vpop.permute.xlu0 %8366
        %8368 = vrot.lane.b32.xlu0 %v8265, 96
        %v8369 = vpop.permute.xlu0 %8368
        %8370 = vrot.lane.b32.xlu0 %v8266, 96
        %v8371 = vpop.permute.xlu0 %8370
        %8372 = vrot.lane.b32.xlu0 %v8267, 96
        %v8373 = vpop.permute.xlu0 %8372
        %8374 = vrot.lane.b32.xlu0 %v8268, 96
        %v8375 = vpop.permute.xlu0 %8374
        %8376 = vrot.lane.b32.xlu0 %v8269, 96
        %v8377 = vpop.permute.xlu0 %8376
        %8378 = vrot.lane.b32.xlu0 %v8270, 96
        %v8379 = vpop.permute.xlu0 %8378
        %8380 = vrot.lane.b32.xlu0 %v8271, 96
        %v8381 = vpop.permute.xlu0 %8380
        %8382 = vrot.lane.b32.xlu0 %v8272, 96
        %v8383 = vpop.permute.xlu0 %8382
        %8384 = vrot.lane.b32.xlu0 %v8273, 96
        %v8385 = vpop.permute.xlu0 %8384
        %8386 = vrot.lane.b32.xlu0 %v8274, 96
        %v8387 = vpop.permute.xlu0 %8386
        %8388 = vrot.lane.b32.xlu0 %v8275, 96
        %v8389 = vpop.permute.xlu0 %8388
        %8390 = vrot.lane.b32.xlu0 %v8276, 96
        %v8391 = vpop.permute.xlu0 %8390
        %8392 = vrot.lane.b32.xlu0 %v8277, 96
        %v8393 = vpop.permute.xlu0 %8392
        %8394 = vrot.lane.b32.xlu0 %v8278, 96
        %v8395 = vpop.permute.xlu0 %8394
        %8396 = vrot.lane.b32.xlu0 %v8279, 96
        %v8397 = vpop.permute.xlu0 %8396
        %8398 = vrot.lane.b32.xlu0 %v8280, 96
        %v8399 = vpop.permute.xlu0 %8398
        %8400 = vrot.lane.b32.xlu0 %v8281, 96
        %v8401 = vpop.permute.xlu0 %8400
        %8402 = vrot.lane.b32.xlu0 %v8282, 96
        %v8403 = vpop.permute.xlu0 %8402
        %8404 = vrot.lane.b32.xlu0 %v8283, 96
        %v8405 = vpop.permute.xlu0 %8404
        %8406 = vrot.lane.b32.xlu0 %v8284, 96
        %v8407 = vpop.permute.xlu0 %8406
        %8449 = vst.msk [vmem:[#allocation4] sm:$0xff] %vm5340, %v8327
        %8450 = vst.msk [vmem:[#allocation4 + $0x10] sm:$0xff] %vm5340, %v8329
        %8451 = vst.msk [vmem:[#allocation4 + $0x20] sm:$0xff] %vm5340, %v8331
        %8452 = vst.msk [vmem:[#allocation4 + $0x30] sm:$0xff] %vm5340, %v8333
        %8453 = vst.msk [vmem:[#allocation4 + $0x40] sm:$0xff] %vm5340, %v8335
        %8454 = vst.msk [vmem:[#allocation4 + $0x50] sm:$0xff] %vm5340, %v8337
        %8455 = vst.msk [vmem:[#allocation4 + $0x60] sm:$0xff] %vm5340, %v8339
        %8456 = vst.msk [vmem:[#allocation4 + $0x70] sm:$0xff] %vm5340, %v8341
        %8457 = vst.msk [vmem:[#allocation4 + $0x80] sm:$0xff] %vm5340, %v8343
        %8458 = vst.msk [vmem:[#allocation4 + $0x90] sm:$0xff] %vm5340, %v8345
        %8459 = vst.msk [vmem:[#allocation4 + $0xa0] sm:$0xff] %vm5340, %v8347
        %8460 = vst.msk [vmem:[#allocation4 + $0xb0] sm:$0xff] %vm5340, %v8349
        %8461 = vst.msk [vmem:[#allocation4 + $0xc0] sm:$0xff] %vm5340, %v8351
        %8462 = vst.msk [vmem:[#allocation4 + $0xd0] sm:$0xff] %vm5340, %v8353
        %8463 = vst.msk [vmem:[#allocation4 + $0xe0] sm:$0xff] %vm5340, %v8355
        %8464 = vst.msk [vmem:[#allocation4 + $0xf0] sm:$0xff] %vm5340, %v8357
        %8465 = vst.msk [vmem:[#allocation4 + $0x100] sm:$0xff] %vm5340, %v8359
        %8466 = vst.msk [vmem:[#allocation4 + $0x110] sm:$0xff] %vm5340, %v8361
        %8467 = vst.msk [vmem:[#allocation4 + $0x120] sm:$0xff] %vm5340, %v8363
        %8468 = vst.msk [vmem:[#allocation4 + $0x130] sm:$0xff] %vm5340, %v8365
        %8469 = vst.msk [vmem:[#allocation4 + $0x140] sm:$0xff] %vm5340, %v8367
        %8470 = vst.msk [vmem:[#allocation4 + $0x150] sm:$0xff] %vm5340, %v8369
        %8471 = vst.msk [vmem:[#allocation4 + $0x160] sm:$0xff] %vm5340, %v8371
        %8472 = vst.msk [vmem:[#allocation4 + $0x170] sm:$0xff] %vm5340, %v8373
        %8473 = vst.msk [vmem:[#allocation4 + $0x180] sm:$0xff] %vm5340, %v8375
        %8474 = vst.msk [vmem:[#allocation4 + $0x190] sm:$0xff] %vm5340, %v8377
        %8475 = vst.msk [vmem:[#allocation4 + $0x1a0] sm:$0xff] %vm5340, %v8379
        %8476 = vst.msk [vmem:[#allocation4 + $0x1b0] sm:$0xff] %vm5340, %v8381
        %8477 = vst.msk [vmem:[#allocation4 + $0x1c0] sm:$0xff] %vm5340, %v8383
        %8478 = vst.msk [vmem:[#allocation4 + $0x1d0] sm:$0xff] %vm5340, %v8385
        %8479 = vst.msk [vmem:[#allocation4 + $0x1e0] sm:$0xff] %vm5340, %v8387
        %8480 = vst.msk [vmem:[#allocation4 + $0x1f0] sm:$0xff] %vm5340, %v8389
        %8481 = vst.msk [vmem:[#allocation4 + $0x200] sm:$0xff] %vm5340, %v8391
        %8482 = vst.msk [vmem:[#allocation4 + $0x210] sm:$0xff] %vm5340, %v8393
        %8483 = vst.msk [vmem:[#allocation4 + $0x220] sm:$0xff] %vm5340, %v8395
        %8484 = vst.msk [vmem:[#allocation4 + $0x230] sm:$0xff] %vm5340, %v8397
        %8485 = vst.msk [vmem:[#allocation4 + $0x240] sm:$0xff] %vm5340, %v8399
        %8486 = vst.msk [vmem:[#allocation4 + $0x250] sm:$0xff] %vm5340, %v8401
        %8487 = vst.msk [vmem:[#allocation4 + $0x260] sm:$0xff] %vm5340, %v8403
        %8488 = vst.msk [vmem:[#allocation4 + $0x270] sm:$0xff] %vm5340, %v8405
        %8489 = vst.msk [vmem:[#allocation4 + $0x280] sm:$0xf] %vm5381, %v8407
        %v8490 = vld [vmem:[#allocation3 + $0x2a] sm:$0xff]
        %v8491 = vld [vmem:[#allocation3 + $0x32] sm:$0xff]
        %v8492 = vld [vmem:[#allocation3 + $0x3a] sm:$0xff]
        %v8493 = vld [vmem:[#allocation3 + $0x42] sm:$0xff]
        %v8494 = vld [vmem:[#allocation3 + $0x4a] sm:$0xff]
        %v8495 = vld [vmem:[#allocation3 + $0x52] sm:$0xff]
        %v8496 = vld [vmem:[#allocation3 + $0x5a] sm:$0xff]
        %v8497 = vld [vmem:[#allocation3 + $0x62] sm:$0xff]
        %v8498 = vld [vmem:[#allocation3 + $0x6a] sm:$0xff]
        %v8499 = vld [vmem:[#allocation3 + $0x72] sm:$0xff]
        %v8500 = vld [vmem:[#allocation3 + $0x7a] sm:$0xff]
        %v8501 = vld [vmem:[#allocation3 + $0x82] sm:$0xff]
        %v8502 = vld [vmem:[#allocation3 + $0x8a] sm:$0xff]
        %v8503 = vld [vmem:[#allocation3 + $0x92] sm:$0xff]
        %v8504 = vld [vmem:[#allocation3 + $0x9a] sm:$0xff]
        %v8505 = vld [vmem:[#allocation3 + $0xa2] sm:$0xff]
        %v8506 = vld [vmem:[#allocation3 + $0xaa] sm:$0xff]
        %v8507 = vld [vmem:[#allocation3 + $0xb2] sm:$0xff]
        %v8508 = vld [vmem:[#allocation3 + $0xba] sm:$0xff]
        %v8509 = vld [vmem:[#allocation3 + $0xc2] sm:$0xff]
        %v8510 = vld [vmem:[#allocation3 + $0xca] sm:$0xff]
        %v8511 = vld [vmem:[#allocation3 + $0xd2] sm:$0xff]
        %v8512 = vld [vmem:[#allocation3 + $0xda] sm:$0xff]
        %v8513 = vld [vmem:[#allocation3 + $0xe2] sm:$0xff]
        %v8514 = vld [vmem:[#allocation3 + $0xea] sm:$0xff]
        %v8515 = vld [vmem:[#allocation3 + $0xf2] sm:$0xff]
        %v8516 = vld [vmem:[#allocation3 + $0xfa] sm:$0xff]
        %v8517 = vld [vmem:[#allocation3 + $0x102] sm:$0xff]
        %v8518 = vld [vmem:[#allocation3 + $0x10a] sm:$0xff]
        %v8519 = vld [vmem:[#allocation3 + $0x112] sm:$0xff]
        %v8520 = vld [vmem:[#allocation3 + $0x11a] sm:$0xff]
        %v8521 = vld [vmem:[#allocation3 + $0x122] sm:$0xff]
        %v8522 = vld [vmem:[#allocation3 + $0x12a] sm:$0xff]
        %v8523 = vld [vmem:[#allocation3 + $0x132] sm:$0xff]
        %v8524 = vld [vmem:[#allocation3 + $0x13a] sm:$0xff]
        %v8525 = vld [vmem:[#allocation3 + $0x142] sm:$0xff]
        %v8526 = vld [vmem:[#allocation3 + $0x14a] sm:$0xff]
        %v8527 = vld [vmem:[#allocation3 + $0x152] sm:$0xff]
        %v8528 = vld [vmem:[#allocation3 + $0x15a] sm:$0xff]
        %v8529 = vld [vmem:[#allocation3 + $0x162] sm:$0xff]
        %v8530 = vld [vmem:[#allocation3 + $0x16a] sm:$0xf]
        %8572 = vrot.lane.b32.xlu0 %v8490, 112
        %v8573 = vpop.permute.xlu0 %8572
        %8574 = vrot.lane.b32.xlu0 %v8491, 112
        %v8575 = vpop.permute.xlu0 %8574
        %8576 = vrot.lane.b32.xlu0 %v8492, 112
        %v8577 = vpop.permute.xlu0 %8576
        %8578 = vrot.lane.b32.xlu0 %v8493, 112
        %v8579 = vpop.permute.xlu0 %8578
        %8580 = vrot.lane.b32.xlu0 %v8494, 112
        %v8581 = vpop.permute.xlu0 %8580
        %8582 = vrot.lane.b32.xlu0 %v8495, 112
        %v8583 = vpop.permute.xlu0 %8582
        %8584 = vrot.lane.b32.xlu0 %v8496, 112
        %v8585 = vpop.permute.xlu0 %8584
        %8586 = vrot.lane.b32.xlu0 %v8497, 112
        %v8587 = vpop.permute.xlu0 %8586
        %8588 = vrot.lane.b32.xlu0 %v8498, 112
        %v8589 = vpop.permute.xlu0 %8588
        %8590 = vrot.lane.b32.xlu0 %v8499, 112
        %v8591 = vpop.permute.xlu0 %8590
        %8592 = vrot.lane.b32.xlu0 %v8500, 112
        %v8593 = vpop.permute.xlu0 %8592
        %8594 = vrot.lane.b32.xlu0 %v8501, 112
        %v8595 = vpop.permute.xlu0 %8594
        %8596 = vrot.lane.b32.xlu0 %v8502, 112
        %v8597 = vpop.permute.xlu0 %8596
        %8598 = vrot.lane.b32.xlu0 %v8503, 112
        %v8599 = vpop.permute.xlu0 %8598
        %8600 = vrot.lane.b32.xlu0 %v8504, 112
        %v8601 = vpop.permute.xlu0 %8600
        %8602 = vrot.lane.b32.xlu0 %v8505, 112
        %v8603 = vpop.permute.xlu0 %8602
        %8604 = vrot.lane.b32.xlu0 %v8506, 112
        %v8605 = vpop.permute.xlu0 %8604
        %8606 = vrot.lane.b32.xlu0 %v8507, 112
        %v8607 = vpop.permute.xlu0 %8606
        %8608 = vrot.lane.b32.xlu0 %v8508, 112
        %v8609 = vpop.permute.xlu0 %8608
        %8610 = vrot.lane.b32.xlu0 %v8509, 112
        %v8611 = vpop.permute.xlu0 %8610
        %8612 = vrot.lane.b32.xlu0 %v8510, 112
        %v8613 = vpop.permute.xlu0 %8612
        %8614 = vrot.lane.b32.xlu0 %v8511, 112
        %v8615 = vpop.permute.xlu0 %8614
        %8616 = vrot.lane.b32.xlu0 %v8512, 112
        %v8617 = vpop.permute.xlu0 %8616
        %8618 = vrot.lane.b32.xlu0 %v8513, 112
        %v8619 = vpop.permute.xlu0 %8618
        %8620 = vrot.lane.b32.xlu0 %v8514, 112
        %v8621 = vpop.permute.xlu0 %8620
        %8622 = vrot.lane.b32.xlu0 %v8515, 112
        %v8623 = vpop.permute.xlu0 %8622
        %8624 = vrot.lane.b32.xlu0 %v8516, 112
        %v8625 = vpop.permute.xlu0 %8624
        %8626 = vrot.lane.b32.xlu0 %v8517, 112
        %v8627 = vpop.permute.xlu0 %8626
        %8628 = vrot.lane.b32.xlu0 %v8518, 112
        %v8629 = vpop.permute.xlu0 %8628
        %8630 = vrot.lane.b32.xlu0 %v8519, 112
        %v8631 = vpop.permute.xlu0 %8630
        %8632 = vrot.lane.b32.xlu0 %v8520, 112
        %v8633 = vpop.permute.xlu0 %8632
        %8634 = vrot.lane.b32.xlu0 %v8521, 112
        %v8635 = vpop.permute.xlu0 %8634
        %8636 = vrot.lane.b32.xlu0 %v8522, 112
        %v8637 = vpop.permute.xlu0 %8636
        %8638 = vrot.lane.b32.xlu0 %v8523, 112
        %v8639 = vpop.permute.xlu0 %8638
        %8640 = vrot.lane.b32.xlu0 %v8524, 112
        %v8641 = vpop.permute.xlu0 %8640
        %8642 = vrot.lane.b32.xlu0 %v8525, 112
        %v8643 = vpop.permute.xlu0 %8642
        %8644 = vrot.lane.b32.xlu0 %v8526, 112
        %v8645 = vpop.permute.xlu0 %8644
        %8646 = vrot.lane.b32.xlu0 %v8527, 112
        %v8647 = vpop.permute.xlu0 %8646
        %8648 = vrot.lane.b32.xlu0 %v8528, 112
        %v8649 = vpop.permute.xlu0 %8648
        %8650 = vrot.lane.b32.xlu0 %v8529, 112
        %v8651 = vpop.permute.xlu0 %8650
        %8652 = vrot.lane.b32.xlu0 %v8530, 112
        %v8653 = vpop.permute.xlu0 %8652
        %8695 = vst.msk [vmem:[#allocation4] sm:$0xff] %vm5588, %v8573
        %8696 = vst.msk [vmem:[#allocation4 + $0x10] sm:$0xff] %vm5588, %v8575
        %8697 = vst.msk [vmem:[#allocation4 + $0x20] sm:$0xff] %vm5588, %v8577
        %8698 = vst.msk [vmem:[#allocation4 + $0x30] sm:$0xff] %vm5588, %v8579
        %8699 = vst.msk [vmem:[#allocation4 + $0x40] sm:$0xff] %vm5588, %v8581
        %8700 = vst.msk [vmem:[#allocation4 + $0x50] sm:$0xff] %vm5588, %v8583
        %8701 = vst.msk [vmem:[#allocation4 + $0x60] sm:$0xff] %vm5588, %v8585
        %8702 = vst.msk [vmem:[#allocation4 + $0x70] sm:$0xff] %vm5588, %v8587
        %8703 = vst.msk [vmem:[#allocation4 + $0x80] sm:$0xff] %vm5588, %v8589
        %8704 = vst.msk [vmem:[#allocation4 + $0x90] sm:$0xff] %vm5588, %v8591
        %8705 = vst.msk [vmem:[#allocation4 + $0xa0] sm:$0xff] %vm5588, %v8593
        %8706 = vst.msk [vmem:[#allocation4 + $0xb0] sm:$0xff] %vm5588, %v8595
        %8707 = vst.msk [vmem:[#allocation4 + $0xc0] sm:$0xff] %vm5588, %v8597
        %8708 = vst.msk [vmem:[#allocation4 + $0xd0] sm:$0xff] %vm5588, %v8599
        %8709 = vst.msk [vmem:[#allocation4 + $0xe0] sm:$0xff] %vm5588, %v8601
        %8710 = vst.msk [vmem:[#allocation4 + $0xf0] sm:$0xff] %vm5588, %v8603
        %8711 = vst.msk [vmem:[#allocation4 + $0x100] sm:$0xff] %vm5588, %v8605
        %8712 = vst.msk [vmem:[#allocation4 + $0x110] sm:$0xff] %vm5588, %v8607
        %8713 = vst.msk [vmem:[#allocation4 + $0x120] sm:$0xff] %vm5588, %v8609
        %8714 = vst.msk [vmem:[#allocation4 + $0x130] sm:$0xff] %vm5588, %v8611
        %8715 = vst.msk [vmem:[#allocation4 + $0x140] sm:$0xff] %vm5588, %v8613
        %8716 = vst.msk [vmem:[#allocation4 + $0x150] sm:$0xff] %vm5588, %v8615
        %8717 = vst.msk [vmem:[#allocation4 + $0x160] sm:$0xff] %vm5588, %v8617
        %8718 = vst.msk [vmem:[#allocation4 + $0x170] sm:$0xff] %vm5588, %v8619
        %8719 = vst.msk [vmem:[#allocation4 + $0x180] sm:$0xff] %vm5588, %v8621
        %8720 = vst.msk [vmem:[#allocation4 + $0x190] sm:$0xff] %vm5588, %v8623
        %8721 = vst.msk [vmem:[#allocation4 + $0x1a0] sm:$0xff] %vm5588, %v8625
        %8722 = vst.msk [vmem:[#allocation4 + $0x1b0] sm:$0xff] %vm5588, %v8627
        %8723 = vst.msk [vmem:[#allocation4 + $0x1c0] sm:$0xff] %vm5588, %v8629
        %8724 = vst.msk [vmem:[#allocation4 + $0x1d0] sm:$0xff] %vm5588, %v8631
        %8725 = vst.msk [vmem:[#allocation4 + $0x1e0] sm:$0xff] %vm5588, %v8633
        %8726 = vst.msk [vmem:[#allocation4 + $0x1f0] sm:$0xff] %vm5588, %v8635
        %8727 = vst.msk [vmem:[#allocation4 + $0x200] sm:$0xff] %vm5588, %v8637
        %8728 = vst.msk [vmem:[#allocation4 + $0x210] sm:$0xff] %vm5588, %v8639
        %8729 = vst.msk [vmem:[#allocation4 + $0x220] sm:$0xff] %vm5588, %v8641
        %8730 = vst.msk [vmem:[#allocation4 + $0x230] sm:$0xff] %vm5588, %v8643
        %8731 = vst.msk [vmem:[#allocation4 + $0x240] sm:$0xff] %vm5588, %v8645
        %8732 = vst.msk [vmem:[#allocation4 + $0x250] sm:$0xff] %vm5588, %v8647
        %8733 = vst.msk [vmem:[#allocation4 + $0x260] sm:$0xff] %vm5588, %v8649
        %8734 = vst.msk [vmem:[#allocation4 + $0x270] sm:$0xff] %vm5588, %v8651
        %8735 = vst.msk [vmem:[#allocation4 + $0x280] sm:$0xf] %vm5629, %v8653
        %v8736 = vld [vmem:[#allocation3 + $0x2b] sm:$0xff]
        %v8737 = vld [vmem:[#allocation3 + $0x33] sm:$0xff]
        %v8738 = vld [vmem:[#allocation3 + $0x3b] sm:$0xff]
        %v8739 = vld [vmem:[#allocation3 + $0x43] sm:$0xff]
        %v8740 = vld [vmem:[#allocation3 + $0x4b] sm:$0xff]
        %v8741 = vld [vmem:[#allocation3 + $0x53] sm:$0xff]
        %v8742 = vld [vmem:[#allocation3 + $0x5b] sm:$0xff]
        %v8743 = vld [vmem:[#allocation3 + $0x63] sm:$0xff]
        %v8744 = vld [vmem:[#allocation3 + $0x6b] sm:$0xff]
        %v8745 = vld [vmem:[#allocation3 + $0x73] sm:$0xff]
        %v8746 = vld [vmem:[#allocation3 + $0x7b] sm:$0xff]
        %v8747 = vld [vmem:[#allocation3 + $0x83] sm:$0xff]
        %v8748 = vld [vmem:[#allocation3 + $0x8b] sm:$0xff]
        %v8749 = vld [vmem:[#allocation3 + $0x93] sm:$0xff]
        %v8750 = vld [vmem:[#allocation3 + $0x9b] sm:$0xff]
        %v8751 = vld [vmem:[#allocation3 + $0xa3] sm:$0xff]
        %v8752 = vld [vmem:[#allocation3 + $0xab] sm:$0xff]
        %v8753 = vld [vmem:[#allocation3 + $0xb3] sm:$0xff]
        %v8754 = vld [vmem:[#allocation3 + $0xbb] sm:$0xff]
        %v8755 = vld [vmem:[#allocation3 + $0xc3] sm:$0xff]
        %v8756 = vld [vmem:[#allocation3 + $0xcb] sm:$0xff]
        %v8757 = vld [vmem:[#allocation3 + $0xd3] sm:$0xff]
        %v8758 = vld [vmem:[#allocation3 + $0xdb] sm:$0xff]
        %v8759 = vld [vmem:[#allocation3 + $0xe3] sm:$0xff]
        %v8760 = vld [vmem:[#allocation3 + $0xeb] sm:$0xff]
        %v8761 = vld [vmem:[#allocation3 + $0xf3] sm:$0xff]
        %v8762 = vld [vmem:[#allocation3 + $0xfb] sm:$0xff]
        %v8763 = vld [vmem:[#allocation3 + $0x103] sm:$0xff]
        %v8764 = vld [vmem:[#allocation3 + $0x10b] sm:$0xff]
        %v8765 = vld [vmem:[#allocation3 + $0x113] sm:$0xff]
        %v8766 = vld [vmem:[#allocation3 + $0x11b] sm:$0xff]
        %v8767 = vld [vmem:[#allocation3 + $0x123] sm:$0xff]
        %v8768 = vld [vmem:[#allocation3 + $0x12b] sm:$0xff]
        %v8769 = vld [vmem:[#allocation3 + $0x133] sm:$0xff]
        %v8770 = vld [vmem:[#allocation3 + $0x13b] sm:$0xff]
        %v8771 = vld [vmem:[#allocation3 + $0x143] sm:$0xff]
        %v8772 = vld [vmem:[#allocation3 + $0x14b] sm:$0xff]
        %v8773 = vld [vmem:[#allocation3 + $0x153] sm:$0xff]
        %v8774 = vld [vmem:[#allocation3 + $0x15b] sm:$0xff]
        %v8775 = vld [vmem:[#allocation3 + $0x163] sm:$0xff]
        %v8776 = vld [vmem:[#allocation3 + $0x16b] sm:$0xf]
        %8777 = vst.msk [vmem:[#allocation4 + $0x8] sm:$0xff] %vm3114, %v8736
        %8778 = vst.msk [vmem:[#allocation4 + $0x18] sm:$0xff] %vm3114, %v8737
        %8779 = vst.msk [vmem:[#allocation4 + $0x28] sm:$0xff] %vm3114, %v8738
        %8780 = vst.msk [vmem:[#allocation4 + $0x38] sm:$0xff] %vm3114, %v8739
        %8781 = vst.msk [vmem:[#allocation4 + $0x48] sm:$0xff] %vm3114, %v8740
        %8782 = vst.msk [vmem:[#allocation4 + $0x58] sm:$0xff] %vm3114, %v8741
        %8783 = vst.msk [vmem:[#allocation4 + $0x68] sm:$0xff] %vm3114, %v8742
        %8784 = vst.msk [vmem:[#allocation4 + $0x78] sm:$0xff] %vm3114, %v8743
        %8785 = vst.msk [vmem:[#allocation4 + $0x88] sm:$0xff] %vm3114, %v8744
        %8786 = vst.msk [vmem:[#allocation4 + $0x98] sm:$0xff] %vm3114, %v8745
        %8787 = vst.msk [vmem:[#allocation4 + $0xa8] sm:$0xff] %vm3114, %v8746
        %8788 = vst.msk [vmem:[#allocation4 + $0xb8] sm:$0xff] %vm3114, %v8747
        %8789 = vst.msk [vmem:[#allocation4 + $0xc8] sm:$0xff] %vm3114, %v8748
        %8790 = vst.msk [vmem:[#allocation4 + $0xd8] sm:$0xff] %vm3114, %v8749
        %8791 = vst.msk [vmem:[#allocation4 + $0xe8] sm:$0xff] %vm3114, %v8750
        %8792 = vst.msk [vmem:[#allocation4 + $0xf8] sm:$0xff] %vm3114, %v8751
        %8793 = vst.msk [vmem:[#allocation4 + $0x108] sm:$0xff] %vm3114, %v8752
        %8794 = vst.msk [vmem:[#allocation4 + $0x118] sm:$0xff] %vm3114, %v8753
        %8795 = vst.msk [vmem:[#allocation4 + $0x128] sm:$0xff] %vm3114, %v8754
        %8796 = vst.msk [vmem:[#allocation4 + $0x138] sm:$0xff] %vm3114, %v8755
        %8797 = vst.msk [vmem:[#allocation4 + $0x148] sm:$0xff] %vm3114, %v8756
        %8798 = vst.msk [vmem:[#allocation4 + $0x158] sm:$0xff] %vm3114, %v8757
        %8799 = vst.msk [vmem:[#allocation4 + $0x168] sm:$0xff] %vm3114, %v8758
        %8800 = vst.msk [vmem:[#allocation4 + $0x178] sm:$0xff] %vm3114, %v8759
        %8801 = vst.msk [vmem:[#allocation4 + $0x188] sm:$0xff] %vm3114, %v8760
        %8802 = vst.msk [vmem:[#allocation4 + $0x198] sm:$0xff] %vm3114, %v8761
        %8803 = vst.msk [vmem:[#allocation4 + $0x1a8] sm:$0xff] %vm3114, %v8762
        %8804 = vst.msk [vmem:[#allocation4 + $0x1b8] sm:$0xff] %vm3114, %v8763
        %8805 = vst.msk [vmem:[#allocation4 + $0x1c8] sm:$0xff] %vm3114, %v8764
        %8806 = vst.msk [vmem:[#allocation4 + $0x1d8] sm:$0xff] %vm3114, %v8765
        %8807 = vst.msk [vmem:[#allocation4 + $0x1e8] sm:$0xff] %vm3114, %v8766
        %8808 = vst.msk [vmem:[#allocation4 + $0x1f8] sm:$0xff] %vm3114, %v8767
        %8809 = vst.msk [vmem:[#allocation4 + $0x208] sm:$0xff] %vm3114, %v8768
        %8810 = vst.msk [vmem:[#allocation4 + $0x218] sm:$0xff] %vm3114, %v8769
        %8811 = vst.msk [vmem:[#allocation4 + $0x228] sm:$0xff] %vm3114, %v8770
        %8812 = vst.msk [vmem:[#allocation4 + $0x238] sm:$0xff] %vm3114, %v8771
        %8813 = vst.msk [vmem:[#allocation4 + $0x248] sm:$0xff] %vm3114, %v8772
        %8814 = vst.msk [vmem:[#allocation4 + $0x258] sm:$0xff] %vm3114, %v8773
        %8815 = vst.msk [vmem:[#allocation4 + $0x268] sm:$0xff] %vm3114, %v8774
        %8816 = vst.msk [vmem:[#allocation4 + $0x278] sm:$0xff] %vm3114, %v8775
        %8817 = vst.msk [vmem:[#allocation4 + $0x288] sm:$0xf] %vm3194, %v8776
        %v8818 = vld [vmem:[#allocation4] sm:$0xff]
        %v8819 = vld [vmem:[#allocation4 + $0x8] sm:$0xff]
        %v8820 = vld [vmem:[#allocation4 + $0x10] sm:$0xff]
        %v8821 = vld [vmem:[#allocation4 + $0x18] sm:$0xff]
        %v8822 = vld [vmem:[#allocation4 + $0x20] sm:$0xff]
        %v8823 = vld [vmem:[#allocation4 + $0x28] sm:$0xff]
        %v8824 = vld [vmem:[#allocation4 + $0x30] sm:$0xff]
        %v8825 = vld [vmem:[#allocation4 + $0x38] sm:$0xff]
        %v8826 = vld [vmem:[#allocation4 + $0x40] sm:$0xff]
        %v8827 = vld [vmem:[#allocation4 + $0x48] sm:$0xff]
        %v8828 = vld [vmem:[#allocation4 + $0x50] sm:$0xff]
        %v8829 = vld [vmem:[#allocation4 + $0x58] sm:$0xff]
        %v8830 = vld [vmem:[#allocation4 + $0x60] sm:$0xff]
        %v8831 = vld [vmem:[#allocation4 + $0x68] sm:$0xff]
        %v8832 = vld [vmem:[#allocation4 + $0x70] sm:$0xff]
        %v8833 = vld [vmem:[#allocation4 + $0x78] sm:$0xff]
        %v8834 = vld [vmem:[#allocation4 + $0x80] sm:$0xff]
        %v8835 = vld [vmem:[#allocation4 + $0x88] sm:$0xff]
        %v8836 = vld [vmem:[#allocation4 + $0x90] sm:$0xff]
        %v8837 = vld [vmem:[#allocation4 + $0x98] sm:$0xff]
        %v8838 = vld [vmem:[#allocation4 + $0xa0] sm:$0xff]
        %v8839 = vld [vmem:[#allocation4 + $0xa8] sm:$0xff]
        %v8840 = vld [vmem:[#allocation4 + $0xb0] sm:$0xff]
        %v8841 = vld [vmem:[#allocation4 + $0xb8] sm:$0xff]
        %v8842 = vld [vmem:[#allocation4 + $0xc0] sm:$0xff]
        %v8843 = vld [vmem:[#allocation4 + $0xc8] sm:$0xff]
        %v8844 = vld [vmem:[#allocation4 + $0xd0] sm:$0xff]
        %v8845 = vld [vmem:[#allocation4 + $0xd8] sm:$0xff]
        %v8846 = vld [vmem:[#allocation4 + $0xe0] sm:$0xff]
        %v8847 = vld [vmem:[#allocation4 + $0xe8] sm:$0xff]
        %v8848 = vld [vmem:[#allocation4 + $0xf0] sm:$0xff]
        %v8849 = vld [vmem:[#allocation4 + $0xf8] sm:$0xff]
        %v8850 = vld [vmem:[#allocation4 + $0x100] sm:$0xff]
        %v8851 = vld [vmem:[#allocation4 + $0x108] sm:$0xff]
        %v8852 = vld [vmem:[#allocation4 + $0x110] sm:$0xff]
        %v8853 = vld [vmem:[#allocation4 + $0x118] sm:$0xff]
        %v8854 = vld [vmem:[#allocation4 + $0x120] sm:$0xff]
        %v8855 = vld [vmem:[#allocation4 + $0x128] sm:$0xff]
        %v8856 = vld [vmem:[#allocation4 + $0x130] sm:$0xff]
        %v8857 = vld [vmem:[#allocation4 + $0x138] sm:$0xff]
        %v8858 = vld [vmem:[#allocation4 + $0x140] sm:$0xff]
        %v8859 = vld [vmem:[#allocation4 + $0x148] sm:$0xff]
        %v8860 = vld [vmem:[#allocation4 + $0x150] sm:$0xff]
        %v8861 = vld [vmem:[#allocation4 + $0x158] sm:$0xff]
        %v8862 = vld [vmem:[#allocation4 + $0x160] sm:$0xff]
        %v8863 = vld [vmem:[#allocation4 + $0x168] sm:$0xff]
        %v8864 = vld [vmem:[#allocation4 + $0x170] sm:$0xff]
        %v8865 = vld [vmem:[#allocation4 + $0x178] sm:$0xff]
        %v8866 = vld [vmem:[#allocation4 + $0x180] sm:$0xff]
        %v8867 = vld [vmem:[#allocation4 + $0x188] sm:$0xff]
        %v8868 = vld [vmem:[#allocation4 + $0x190] sm:$0xff]
        %v8869 = vld [vmem:[#allocation4 + $0x198] sm:$0xff]
        %v8870 = vld [vmem:[#allocation4 + $0x1a0] sm:$0xff]
        %v8871 = vld [vmem:[#allocation4 + $0x1a8] sm:$0xff]
        %v8872 = vld [vmem:[#allocation4 + $0x1b0] sm:$0xff]
        %v8873 = vld [vmem:[#allocation4 + $0x1b8] sm:$0xff]
        %v8874 = vld [vmem:[#allocation4 + $0x1c0] sm:$0xff]
        %v8875 = vld [vmem:[#allocation4 + $0x1c8] sm:$0xff]
        %v8876 = vld [vmem:[#allocation4 + $0x1d0] sm:$0xff]
        %v8877 = vld [vmem:[#allocation4 + $0x1d8] sm:$0xff]
        %v8878 = vld [vmem:[#allocation4 + $0x1e0] sm:$0xff]
        %v8879 = vld [vmem:[#allocation4 + $0x1e8] sm:$0xff]
        %v8880 = vld [vmem:[#allocation4 + $0x1f0] sm:$0xff]
        %v8881 = vld [vmem:[#allocation4 + $0x1f8] sm:$0xff]
        %v8882 = vld [vmem:[#allocation4 + $0x200] sm:$0xff]
        %v8883 = vld [vmem:[#allocation4 + $0x208] sm:$0xff]
        %v8884 = vld [vmem:[#allocation4 + $0x210] sm:$0xff]
        %v8885 = vld [vmem:[#allocation4 + $0x218] sm:$0xff]
        %v8886 = vld [vmem:[#allocation4 + $0x220] sm:$0xff]
        %v8887 = vld [vmem:[#allocation4 + $0x228] sm:$0xff]
        %v8888 = vld [vmem:[#allocation4 + $0x230] sm:$0xff]
        %v8889 = vld [vmem:[#allocation4 + $0x238] sm:$0xff]
        %v8890 = vld [vmem:[#allocation4 + $0x240] sm:$0xff]
        %v8891 = vld [vmem:[#allocation4 + $0x248] sm:$0xff]
        %v8892 = vld [vmem:[#allocation4 + $0x250] sm:$0xff]
        %v8893 = vld [vmem:[#allocation4 + $0x258] sm:$0xff]
        %v8894 = vld [vmem:[#allocation4 + $0x260] sm:$0xff]
        %v8895 = vld [vmem:[#allocation4 + $0x268] sm:$0xff]
        %v8896 = vld [vmem:[#allocation4 + $0x270] sm:$0xff]
        %v8897 = vld [vmem:[#allocation4 + $0x278] sm:$0xff]
        %v8898 = vld [vmem:[#allocation4 + $0x280] sm:$0xf]
        %v8899 = vld [vmem:[#allocation4 + $0x288] sm:$0xf]
        %v8901 = vlaneseq
        %v8902 = vshrl.u32 %v8901, 7
        %v8903 = vsub.s32 0, %v8902
        %v8904 = vrot.slane %v6927, %v8903
        %v8907 = vsel %vm3114, %v8819, 0
        %v8910 = vsel %vm3114, %v8821, 0
        %v8913 = vsel %vm3114, %v8823, 0
        %v8916 = vsel %vm3114, %v8825, 0
        %v8919 = vsel %vm3114, %v8827, 0
        %v8922 = vsel %vm3114, %v8829, 0
        %v8925 = vsel %vm3114, %v8831, 0
        %v8928 = vsel %vm3114, %v8833, 0
        %v8931 = vsel %vm3114, %v8835, 0
        %v8934 = vsel %vm3114, %v8837, 0
        %v8937 = vsel %vm3114, %v8839, 0
        %v8940 = vsel %vm3114, %v8841, 0
        %v8943 = vsel %vm3114, %v8843, 0
        %v8946 = vsel %vm3114, %v8845, 0
        %v8949 = vsel %vm3114, %v8847, 0
        %v8952 = vsel %vm3114, %v8849, 0
        %v8955 = vsel %vm3114, %v8851, 0
        %v8958 = vsel %vm3114, %v8853, 0
        %v8961 = vsel %vm3114, %v8855, 0
        %v8964 = vsel %vm3114, %v8857, 0
        %v8967 = vsel %vm3114, %v8859, 0
        %v8970 = vsel %vm3114, %v8861, 0
        %v8973 = vsel %vm3114, %v8863, 0
        %v8976 = vsel %vm3114, %v8865, 0
        %v8979 = vsel %vm3114, %v8867, 0
        %v8982 = vsel %vm3114, %v8869, 0
        %v8985 = vsel %vm3114, %v8871, 0
        %v8988 = vsel %vm3114, %v8873, 0
        %v8991 = vsel %vm3114, %v8875, 0
        %v8994 = vsel %vm3114, %v8877, 0
        %v8997 = vsel %vm3114, %v8879, 0
        %v9000 = vsel %vm3114, %v8881, 0
        %v9003 = vsel %vm3114, %v8883, 0
        %v9006 = vsel %vm3114, %v8885, 0
        %v9009 = vsel %vm3114, %v8887, 0
        %v9012 = vsel %vm3114, %v8889, 0
        %v9015 = vsel %vm3114, %v8891, 0
        %v9018 = vsel %vm3114, %v8893, 0
        %v9021 = vsel %vm3114, %v8895, 0
        %v9024 = vsel %vm3114, %v8897, 0
        %v9027 = vsel %vm3114, %v8899, 0
        %9029 = vmatprep.subr.mxu0 0.0
        %9030 = vmatpush1.msra.mxu0 %v6908
        %9031 = vmatprep.subr.mxu0 0.0
        %9032 = vmatpush1.msra.mxu0 %v6909
        %9033 = vmatprep.subr.mxu0 0.0
        %9034 = vmatpush1.msra.mxu0 %v6910
        %9035 = vmatprep.subr.mxu0 0.0
        %9036 = vmatpush1.msra.mxu0 %v6911
        %9037 = vmatprep.subr.mxu0 0.0
        %9038 = vmatpush1.msra.mxu0 %v6912
        %9039 = vmatprep.subr.mxu0 0.0
        %9040 = vmatpush1.msra.mxu0 %v6913
        %9041 = vmatprep.subr.mxu0 0.0
        %9042 = vmatpush1.msra.mxu0 %v6914
        %9043 = vmatprep.subr.mxu0 0.0
        %9044 = vmatpush1.msra.mxu0 %v6915
        %9045 = vmatprep.subr.mxu0 0.0
        %9046 = vmatpush1.msra.mxu0 %v6916
        %9047 = vmatprep.subr.mxu0 0.0
        %9048 = vmatpush1.msra.mxu0 %v6917
        %9049 = vmatprep.subr.mxu0 0.0
        %9050 = vmatpush1.msra.mxu0 %v6918
        %9051 = vmatprep.subr.mxu0 0.0
        %9052 = vmatpush1.msra.mxu0 %v6919
        %9053 = vmatprep.subr.mxu0 0.0
        %9054 = vmatpush1.msra.mxu0 %v6920
        %9055 = vmatprep.subr.mxu0 0.0
        %9056 = vmatpush1.msra.mxu0 %v6921
        %9057 = vmatprep.subr.mxu0 0.0
        %9058 = vmatpush1.msra.mxu0 %v6922
        %9059 = vmatprep.subr.mxu0 0.0
        %9060 = vmatpush1.msra.mxu0 %v6923
        %9061 = vmatprep.subr.mxu0 0.0
        %9062 = vmatpush1.msra.mxu0 %v6924
        %9063 = vmatprep.subr.mxu0 0.0
        %9064 = vmatpush1.msra.mxu0 %v6925
        %9065 = vmatprep.subr.mxu0 0.0
        %9066 = vmatpush1.msra.mxu0 0.0
        %9067 = vmatprep.subr.mxu0 0.0
        %9068 = vmatpush1.msra.mxu0 0.0
        %9069 = vmatprep.subr.mxu0 0.0
        %9070 = vmatpush1.msra.mxu0 0.0
        %9071 = vmatprep.subr.mxu0 0.0
        %9072 = vmatpush1.msra.mxu0 0.0
        %9073 = vmatprep.subr.mxu0 0.0
        %9074 = vmatpush1.msra.mxu0 0.0
        %9075 = vmatprep.subr.mxu0 0.0
        %9076 = vmatpush1.msra.mxu0 0.0
        %9077 = vmatprep.subr.mxu0 0.0
        %9078 = vmatpush1.msra.mxu0 0.0
        %9079 = vmatprep.subr.mxu0 0.0
        %9080 = vmatpush1.msra.mxu0 0.0
        %9081 = vmatprep.subr.mxu0 0.0
        %9082 = vmatpush1.msra.mxu0 0.0
        %9083 = vmatprep.subr.mxu0 0.0
        %9084 = vmatpush1.msra.mxu0 0.0
        %9085 = vmatprep.subr.mxu0 0.0
        %9086 = vmatpush1.msra.mxu0 0.0
        %9087 = vmatprep.subr.mxu0 0.0
        %9088 = vmatpush1.msra.mxu0 0.0
        %9089 = vmatprep.subr.mxu0 0.0
        %9090 = vmatpush1.msra.mxu0 0.0
        %9091 = vmatprep.subr.mxu0 0.0
        %9092 = vmatpush1.msra.mxu0 0.0
        %9093 = vmatprep.mubr.f32.mxu0 %v8907
        %9094 = vmatmul.mubr.f32.gmra.mrb[0].mxu0 %v8818
        %v9095 = vpop.f32.mrb[0].mxu0
        %v9096 = vadd.f32 %v8904, %v9095
        %v9097 = vpop.f32.mrb[0].mxu0
        %9098 = vmatprep.mubr.f32.mxu0 %v8910
        %9099 = vmatmul.mubr.f32.gmra.mrb[0].mxu0 %v8820
        %v9100 = vpop.f32.mrb[0].mxu0
        %v9101 = vadd.f32 %v8904, %v9100
        %v9102 = vpop.f32.mrb[0].mxu0
        %9103 = vmatprep.mubr.f32.mxu0 %v8913
        %9104 = vmatmul.mubr.f32.gmra.mrb[0].mxu0 %v8822
        %v9105 = vpop.f32.mrb[0].mxu0
        %v9106 = vadd.f32 %v8904, %v9105
        %v9107 = vpop.f32.mrb[0].mxu0
        %9108 = vmatprep.mubr.f32.mxu0 %v8916
        %9109 = vmatmul.mubr.f32.gmra.mrb[0].mxu0 %v8824
        %v9110 = vpop.f32.mrb[0].mxu0
        %v9111 = vadd.f32 %v8904, %v9110
        %v9112 = vpop.f32.mrb[0].mxu0
        %9113 = vmatprep.mubr.f32.mxu0 %v8919
        %9114 = vmatmul.mubr.f32.gmra.mrb[0].mxu0 %v8826
        %v9115 = vpop.f32.mrb[0].mxu0
        %v9116 = vadd.f32 %v8904, %v9115
        %v9117 = vpop.f32.mrb[0].mxu0
        %9118 = vmatprep.mubr.f32.mxu0 %v8922
        %9119 = vmatmul.mubr.f32.gmra.mrb[0].mxu0 %v8828
        %v9120 = vpop.f32.mrb[0].mxu0
        %v9121 = vadd.f32 %v8904, %v9120
        %v9122 = vpop.f32.mrb[0].mxu0
        %9123 = vmatprep.mubr.f32.mxu0 %v8925
        %9124 = vmatmul.mubr.f32.gmra.mrb[0].mxu0 %v8830
        %v9125 = vpop.f32.mrb[0].mxu0
        %v9126 = vadd.f32 %v8904, %v9125
        %v9127 = vpop.f32.mrb[0].mxu0
        %9128 = vmatprep.mubr.f32.mxu0 %v8928
        %9129 = vmatmul.mubr.f32.gmra.mrb[0].mxu0 %v8832
        %v9130 = vpop.f32.mrb[0].mxu0
        %v9131 = vadd.f32 %v8904, %v9130
        %v9132 = vpop.f32.mrb[0].mxu0
        %9133 = vmatprep.mubr.f32.mxu0 %v8931
        %9134 = vmatmul.mubr.f32.gmra.mrb[0].mxu0 %v8834
        %v9135 = vpop.f32.mrb[0].mxu0
        %v9136 = vadd.f32 %v8904, %v9135
        %v9137 = vpop.f32.mrb[0].mxu0
        %9138 = vmatprep.mubr.f32.mxu0 %v8934
        %9139 = vmatmul.mubr.f32.gmra.mrb[0].mxu0 %v8836
        %v9140 = vpop.f32.mrb[0].mxu0
        %v9141 = vadd.f32 %v8904, %v9140
        %v9142 = vpop.f32.mrb[0].mxu0
        %9143 = vmatprep.mubr.f32.mxu0 %v8937
        %9144 = vmatmul.mubr.f32.gmra.mrb[0].mxu0 %v8838
        %v9145 = vpop.f32.mrb[0].mxu0
        %v9146 = vadd.f32 %v8904, %v9145
        %v9147 = vpop.f32.mrb[0].mxu0
        %9148 = vmatprep.mubr.f32.mxu0 %v8940
        %9149 = vmatmul.mubr.f32.gmra.mrb[0].mxu0 %v8840
        %v9150 = vpop.f32.mrb[0].mxu0
        %v9151 = vadd.f32 %v8904, %v9150
        %v9152 = vpop.f32.mrb[0].mxu0
        %9153 = vmatprep.mubr.f32.mxu0 %v8943
        %9154 = vmatmul.mubr.f32.gmra.mrb[0].mxu0 %v8842
        %v9155 = vpop.f32.mrb[0].mxu0
        %v9156 = vadd.f32 %v8904, %v9155
        %v9157 = vpop.f32.mrb[0].mxu0
        %9158 = vmatprep.mubr.f32.mxu0 %v8946
        %9159 = vmatmul.mubr.f32.gmra.mrb[0].mxu0 %v8844
        %v9160 = vpop.f32.mrb[0].mxu0
        %v9161 = vadd.f32 %v8904, %v9160
        %v9162 = vpop.f32.mrb[0].mxu0
        %9163 = vmatprep.mubr.f32.mxu0 %v8949
        %9164 = vmatmul.mubr.f32.gmra.mrb[0].mxu0 %v8846
        %v9165 = vpop.f32.mrb[0].mxu0
        %v9166 = vadd.f32 %v8904, %v9165
        %v9167 = vpop.f32.mrb[0].mxu0
        %9168 = vmatprep.mubr.f32.mxu0 %v8952
        %9169 = vmatmul.mubr.f32.gmra.mrb[0].mxu0 %v8848
        %v9170 = vpop.f32.mrb[0].mxu0
        %v9171 = vadd.f32 %v8904, %v9170
        %v9172 = vpop.f32.mrb[0].mxu0
        %9173 = vmatprep.mubr.f32.mxu0 %v8955
        %9174 = vmatmul.mubr.f32.gmra.mrb[0].mxu0 %v8850
        %v9175 = vpop.f32.mrb[0].mxu0
        %v9176 = vadd.f32 %v8904, %v9175
        %v9177 = vpop.f32.mrb[0].mxu0
        %9178 = vmatprep.mubr.f32.mxu0 %v8958
        %9179 = vmatmul.mubr.f32.gmra.mrb[0].mxu0 %v8852
        %v9180 = vpop.f32.mrb[0].mxu0
        %v9181 = vadd.f32 %v8904, %v9180
        %v9182 = vpop.f32.mrb[0].mxu0
        %9183 = vmatprep.mubr.f32.mxu0 %v8961
        %9184 = vmatmul.mubr.f32.gmra.mrb[0].mxu0 %v8854
        %v9185 = vpop.f32.mrb[0].mxu0
        %v9186 = vadd.f32 %v8904, %v9185
        %v9187 = vpop.f32.mrb[0].mxu0
        %9188 = vmatprep.mubr.f32.mxu0 %v8964
        %9189 = vmatmul.mubr.f32.gmra.mrb[0].mxu0 %v8856
        %v9190 = vpop.f32.mrb[0].mxu0
        %v9191 = vadd.f32 %v8904, %v9190
        %v9192 = vpop.f32.mrb[0].mxu0
        %9193 = vmatprep.mubr.f32.mxu0 %v8967
        %9194 = vmatmul.mubr.f32.gmra.mrb[0].mxu0 %v8858
        %v9195 = vpop.f32.mrb[0].mxu0
        %v9196 = vadd.f32 %v8904, %v9195
        %v9197 = vpop.f32.mrb[0].mxu0
        %9198 = vmatprep.mubr.f32.mxu0 %v8970
        %9199 = vmatmul.mubr.f32.gmra.mrb[0].mxu0 %v8860
        %v9200 = vpop.f32.mrb[0].mxu0
        %v9201 = vadd.f32 %v8904, %v9200
        %v9202 = vpop.f32.mrb[0].mxu0
        %9203 = vmatprep.mubr.f32.mxu0 %v8973
        %9204 = vmatmul.mubr.f32.gmra.mrb[0].mxu0 %v8862
        %v9205 = vpop.f32.mrb[0].mxu0
        %v9206 = vadd.f32 %v8904, %v9205
        %v9207 = vpop.f32.mrb[0].mxu0
        %9208 = vmatprep.mubr.f32.mxu0 %v8976
        %9209 = vmatmul.mubr.f32.gmra.mrb[0].mxu0 %v8864
        %v9210 = vpop.f32.mrb[0].mxu0
        %v9211 = vadd.f32 %v8904, %v9210
        %v9212 = vpop.f32.mrb[0].mxu0
        %9213 = vmatprep.mubr.f32.mxu0 %v8979
        %9214 = vmatmul.mubr.f32.gmra.mrb[0].mxu0 %v8866
        %v9215 = vpop.f32.mrb[0].mxu0
        %v9216 = vadd.f32 %v8904, %v9215
        %v9217 = vpop.f32.mrb[0].mxu0
        %9218 = vmatprep.mubr.f32.mxu0 %v8982
        %9219 = vmatmul.mubr.f32.gmra.mrb[0].mxu0 %v8868
        %v9220 = vpop.f32.mrb[0].mxu0
        %v9221 = vadd.f32 %v8904, %v9220
        %v9222 = vpop.f32.mrb[0].mxu0
        %9223 = vmatprep.mubr.f32.mxu0 %v8985
        %9224 = vmatmul.mubr.f32.gmra.mrb[0].mxu0 %v8870
        %v9225 = vpop.f32.mrb[0].mxu0
        %v9226 = vadd.f32 %v8904, %v9225
        %v9227 = vpop.f32.mrb[0].mxu0
        %9228 = vmatprep.mubr.f32.mxu0 %v8988
        %9229 = vmatmul.mubr.f32.gmra.mrb[0].mxu0 %v8872
        %v9230 = vpop.f32.mrb[0].mxu0
        %v9231 = vadd.f32 %v8904, %v9230
        %v9232 = vpop.f32.mrb[0].mxu0
        %9233 = vmatprep.mubr.f32.mxu0 %v8991
        %9234 = vmatmul.mubr.f32.gmra.mrb[0].mxu0 %v8874
        %v9235 = vpop.f32.mrb[0].mxu0
        %v9236 = vadd.f32 %v8904, %v9235
        %v9237 = vpop.f32.mrb[0].mxu0
        %9238 = vmatprep.mubr.f32.mxu0 %v8994
        %9239 = vmatmul.mubr.f32.gmra.mrb[0].mxu0 %v8876
        %v9240 = vpop.f32.mrb[0].mxu0
        %v9241 = vadd.f32 %v8904, %v9240
        %v9242 = vpop.f32.mrb[0].mxu0
        %9243 = vmatprep.mubr.f32.mxu0 %v8997
        %9244 = vmatmul.mubr.f32.gmra.mrb[0].mxu0 %v8878
        %v9245 = vpop.f32.mrb[0].mxu0
        %v9246 = vadd.f32 %v8904, %v9245
        %v9247 = vpop.f32.mrb[0].mxu0
        %9248 = vmatprep.mubr.f32.mxu0 %v9000
        %9249 = vmatmul.mubr.f32.gmra.mrb[0].mxu0 %v8880
        %v9250 = vpop.f32.mrb[0].mxu0
        %v9251 = vadd.f32 %v8904, %v9250
        %v9252 = vpop.f32.mrb[0].mxu0
        %9253 = vmatprep.mubr.f32.mxu0 %v9003
        %9254 = vmatmul.mubr.f32.gmra.mrb[0].mxu0 %v8882
        %v9255 = vpop.f32.mrb[0].mxu0
        %v9256 = vadd.f32 %v8904, %v9255
        %v9257 = vpop.f32.mrb[0].mxu0
        %9258 = vmatprep.mubr.f32.mxu0 %v9006
        %9259 = vmatmul.mubr.f32.gmra.mrb[0].mxu0 %v8884
        %v9260 = vpop.f32.mrb[0].mxu0
        %v9261 = vadd.f32 %v8904, %v9260
        %v9262 = vpop.f32.mrb[0].mxu0
        %9263 = vmatprep.mubr.f32.mxu0 %v9009
        %9264 = vmatmul.mubr.f32.gmra.mrb[0].mxu0 %v8886
        %v9265 = vpop.f32.mrb[0].mxu0
        %v9266 = vadd.f32 %v8904, %v9265
        %v9267 = vpop.f32.mrb[0].mxu0
        %9268 = vmatprep.mubr.f32.mxu0 %v9012
        %9269 = vmatmul.mubr.f32.gmra.mrb[0].mxu0 %v8888
        %v9270 = vpop.f32.mrb[0].mxu0
        %v9271 = vadd.f32 %v8904, %v9270
        %v9272 = vpop.f32.mrb[0].mxu0
        %9273 = vmatprep.mubr.f32.mxu0 %v9015
        %9274 = vmatmul.mubr.f32.gmra.mrb[0].mxu0 %v8890
        %v9275 = vpop.f32.mrb[0].mxu0
        %v9276 = vadd.f32 %v8904, %v9275
        %v9277 = vpop.f32.mrb[0].mxu0
        %9278 = vmatprep.mubr.f32.mxu0 %v9018
        %9279 = vmatmul.mubr.f32.gmra.mrb[0].mxu0 %v8892
        %v9280 = vpop.f32.mrb[0].mxu0
        %v9281 = vadd.f32 %v8904, %v9280
        %v9282 = vpop.f32.mrb[0].mxu0
        %9283 = vmatprep.mubr.f32.mxu0 %v9021
        %9284 = vmatmul.mubr.f32.gmra.mrb[0].mxu0 %v8894
        %v9285 = vpop.f32.mrb[0].mxu0
        %v9286 = vadd.f32 %v8904, %v9285
        %v9287 = vpop.f32.mrb[0].mxu0
        %9288 = vmatprep.mubr.f32.mxu0 %v9024
        %9289 = vmatmul.mubr.f32.gmra.mrb[0].mxu0 %v8896
        %v9290 = vpop.f32.mrb[0].mxu0
        %v9291 = vadd.f32 %v8904, %v9290
        %v9292 = vpop.f32.mrb[0].mxu0
        %9293 = vmatprep.mubr.f32.mxu0 %v9027
        %9294 = vmatmul.mubr.f32.gmra.mrb[0].mxu0 %v8898
        %v9295 = vpop.f32.mrb[0].mxu0
        %v9296 = vadd.f32 %v8904, %v9295
        %v9297 = vpop.f32.mrb[0].mxu0
        %9298 = vdwg.mxu0
        %v9299 = vmul.f32 %v9096, %v2871
        %v9300 = vmul.f32 %v9101, %v2876
        %v9301 = vmul.f32 %v9106, %v2881
        %v9302 = vmul.f32 %v9111, %v2886
        %v9303 = vmul.f32 %v9116, %v2891
        %v9304 = vmul.f32 %v9121, %v2896
        %v9305 = vmul.f32 %v9126, %v2901
        %v9306 = vmul.f32 %v9131, %v2906
        %v9307 = vmul.f32 %v9136, %v2911
        %v9308 = vmul.f32 %v9141, %v2916
        %v9309 = vmul.f32 %v9146, %v2921
        %v9310 = vmul.f32 %v9151, %v2926
        %v9311 = vmul.f32 %v9156, %v2931
        %v9312 = vmul.f32 %v9161, %v2936
        %v9313 = vmul.f32 %v9166, %v2941
        %v9314 = vmul.f32 %v9171, %v2946
        %v9315 = vmul.f32 %v9176, %v2951
        %v9316 = vmul.f32 %v9181, %v2956
        %v9317 = vmul.f32 %v9186, %v2961
        %v9318 = vmul.f32 %v9191, %v2966
        %v9319 = vmul.f32 %v9196, %v2971
        %v9320 = vmul.f32 %v9201, %v2976
        %v9321 = vmul.f32 %v9206, %v2981
        %v9322 = vmul.f32 %v9211, %v2986
        %v9323 = vmul.f32 %v9216, %v2991
        %v9324 = vmul.f32 %v9221, %v2996
        %v9325 = vmul.f32 %v9226, %v3001
        %v9326 = vmul.f32 %v9231, %v3006
        %v9327 = vmul.f32 %v9236, %v3011
        %v9328 = vmul.f32 %v9241, %v3016
        %v9329 = vmul.f32 %v9246, %v3021
        %v9330 = vmul.f32 %v9251, %v3026
        %v9331 = vmul.f32 %v9256, %v3031
        %v9332 = vmul.f32 %v9261, %v3036
        %v9333 = vmul.f32 %v9266, %v3041
        %v9334 = vmul.f32 %v9271, %v3046
        %v9335 = vmul.f32 %v9276, %v3051
        %v9336 = vmul.f32 %v9281, %v3056
        %v9337 = vmul.f32 %v9286, %v3061
        %v9338 = vmul.f32 %v9291, %v3066
        %v9339 = vmul.f32 %v9296, %v3071
        %v9340 = vsel %vm3114, %v9299, 0.0
        %v9341 = vsel %vm3114, %v9300, 0.0
        %v9342 = vadd.f32 %v9340, %v9341
        %v9343 = vsel %vm3114, %v9301, 0.0
        %v9344 = vadd.f32 %v9342, %v9343
        %v9345 = vsel %vm3114, %v9302, 0.0
        %v9346 = vadd.f32 %v9344, %v9345
        %v9347 = vsel %vm3114, %v9303, 0.0
        %v9348 = vadd.f32 %v9346, %v9347
        %v9349 = vsel %vm3114, %v9304, 0.0
        %v9350 = vadd.f32 %v9348, %v9349
        %v9351 = vsel %vm3114, %v9305, 0.0
        %v9352 = vadd.f32 %v9350, %v9351
        %v9353 = vsel %vm3114, %v9306, 0.0
        %v9354 = vadd.f32 %v9352, %v9353
        %v9355 = vsel %vm3114, %v9307, 0.0
        %v9356 = vadd.f32 %v9354, %v9355
        %v9357 = vsel %vm3114, %v9308, 0.0
        %v9358 = vadd.f32 %v9356, %v9357
        %v9359 = vsel %vm3114, %v9309, 0.0
        %v9360 = vadd.f32 %v9358, %v9359
        %v9361 = vsel %vm3114, %v9310, 0.0
        %v9362 = vadd.f32 %v9360, %v9361
        %v9363 = vsel %vm3114, %v9311, 0.0
        %v9364 = vadd.f32 %v9362, %v9363
        %v9365 = vsel %vm3114, %v9312, 0.0
        %v9366 = vadd.f32 %v9364, %v9365
        %v9367 = vsel %vm3114, %v9313, 0.0
        %v9368 = vadd.f32 %v9366, %v9367
        %v9369 = vsel %vm3114, %v9314, 0.0
        %v9370 = vadd.f32 %v9368, %v9369
        %v9371 = vsel %vm3114, %v9315, 0.0
        %v9372 = vadd.f32 %v9370, %v9371
        %v9373 = vsel %vm3114, %v9316, 0.0
        %v9374 = vadd.f32 %v9372, %v9373
        %v9375 = vsel %vm3114, %v9317, 0.0
        %v9376 = vadd.f32 %v9374, %v9375
        %v9377 = vsel %vm3114, %v9318, 0.0
        %v9378 = vadd.f32 %v9376, %v9377
        %v9379 = vsel %vm3114, %v9319, 0.0
        %v9380 = vadd.f32 %v9378, %v9379
        %v9381 = vsel %vm3114, %v9320, 0.0
        %v9382 = vadd.f32 %v9380, %v9381
        %v9383 = vsel %vm3114, %v9321, 0.0
        %v9384 = vadd.f32 %v9382, %v9383
        %v9385 = vsel %vm3114, %v9322, 0.0
        %v9386 = vadd.f32 %v9384, %v9385
        %v9387 = vsel %vm3114, %v9323, 0.0
        %v9388 = vadd.f32 %v9386, %v9387
        %v9389 = vsel %vm3114, %v9324, 0.0
        %v9390 = vadd.f32 %v9388, %v9389
        %v9391 = vsel %vm3114, %v9325, 0.0
        %v9392 = vadd.f32 %v9390, %v9391
        %v9393 = vsel %vm3114, %v9326, 0.0
        %v9394 = vadd.f32 %v9392, %v9393
        %v9395 = vsel %vm3114, %v9327, 0.0
        %v9396 = vadd.f32 %v9394, %v9395
        %v9397 = vsel %vm3114, %v9328, 0.0
        %v9398 = vadd.f32 %v9396, %v9397
        %v9399 = vsel %vm3114, %v9329, 0.0
        %v9400 = vadd.f32 %v9398, %v9399
        %v9401 = vsel %vm3114, %v9330, 0.0
        %v9402 = vadd.f32 %v9400, %v9401
        %v9403 = vsel %vm3114, %v9331, 0.0
        %v9404 = vadd.f32 %v9402, %v9403
        %v9405 = vsel %vm3114, %v9332, 0.0
        %v9406 = vadd.f32 %v9404, %v9405
        %v9407 = vsel %vm3114, %v9333, 0.0
        %v9408 = vadd.f32 %v9406, %v9407
        %v9409 = vsel %vm3114, %v9334, 0.0
        %v9410 = vadd.f32 %v9408, %v9409
        %v9411 = vsel %vm3114, %v9335, 0.0
        %v9412 = vadd.f32 %v9410, %v9411
        %v9413 = vsel %vm3114, %v9336, 0.0
        %v9414 = vadd.f32 %v9412, %v9413
        %v9415 = vsel %vm3114, %v9337, 0.0
        %v9416 = vadd.f32 %v9414, %v9415
        %v9417 = vsel %vm3114, %v9338, 0.0
        %v9418 = vadd.f32 %v9416, %v9417
        %v9419 = vsel %vm3194, %v9339, 0.0
        %v9420 = vadd.f32 %v9418, %v9419
        %v9421 = vrot.slane %v9420, 4
        %v9422 = vadd.f32 %v9420, %v9421
        %v9423 = vrot.slane %v9422, 2
        %v9424 = vadd.f32 %v9422, %v9423
        %v9425 = vrot.slane %v9424, 1
        %v9426 = vadd.f32 %v9424, %v9425
        %v9428 = vsel %vm3114, %v9426, 0
        %9430 = vmatprep.subr.mxu0 0.0
        %9431 = vmatpush1.msra.mxu0 %v345
        %9432 = vmatprep.subr.mxu0 0.0
        %9433 = vmatpush1.msra.mxu0 %v346
        %9434 = vmatprep.subr.mxu0 0.0
        %9435 = vmatpush1.msra.mxu0 0.0
        %9436 = vmatprep.subr.mxu0 0.0
        %9437 = vmatpush1.msra.mxu0 0.0
        %9438 = vmatprep.subr.mxu0 0.0
        %9439 = vmatpush1.msra.mxu0 0.0
        %9440 = vmatprep.subr.mxu0 0.0
        %9441 = vmatpush1.msra.mxu0 0.0
        %9442 = vmatprep.subr.mxu0 0.0
        %9443 = vmatpush1.msra.mxu0 0.0
        %9444 = vmatprep.subr.mxu0 0.0
        %9445 = vmatpush1.msra.mxu0 0.0
        %9446 = vmatprep.subr.mxu0 0.0
        %9447 = vmatpush1.msra.mxu0 0.0
        %9448 = vmatprep.subr.mxu0 0.0
        %9449 = vmatpush1.msra.mxu0 0.0
        %9450 = vmatprep.subr.mxu0 0.0
        %9451 = vmatpush1.msra.mxu0 0.0
        %9452 = vmatprep.subr.mxu0 0.0
        %9453 = vmatpush1.msra.mxu0 0.0
        %9454 = vmatprep.subr.mxu0 0.0
        %9455 = vmatpush1.msra.mxu0 0.0
        %9456 = vmatprep.subr.mxu0 0.0
        %9457 = vmatpush1.msra.mxu0 0.0
        %9458 = vmatprep.subr.mxu0 0.0
        %9459 = vmatpush1.msra.mxu0 0.0
        %9460 = vmatprep.subr.mxu0 0.0
        %9461 = vmatpush1.msra.mxu0 0.0
        %9462 = vmatprep.subr.mxu0 0.0
        %9463 = vmatpush1.msra.mxu0 0.0
        %9464 = vmatprep.subr.mxu0 0.0
        %9465 = vmatpush1.msra.mxu0 0.0
        %9466 = vmatprep.subr.mxu0 0.0
        %9467 = vmatpush1.msra.mxu0 0.0
        %9468 = vmatprep.subr.mxu0 0.0
        %9469 = vmatpush1.msra.mxu0 0.0
        %9470 = vmatprep.subr.mxu0 0.0
        %9471 = vmatpush1.msra.mxu0 0.0
        %9472 = vmatprep.subr.mxu0 0.0
        %9473 = vmatpush1.msra.mxu0 0.0
        %9474 = vmatprep.subr.mxu0 0.0
        %9475 = vmatpush1.msra.mxu0 0.0
        %9476 = vmatprep.subr.mxu0 0.0
        %9477 = vmatpush1.msra.mxu0 0.0
        %9478 = vmatprep.subr.mxu0 0.0
        %9479 = vmatpush1.msra.mxu0 0.0
        %9480 = vmatprep.subr.mxu0 0.0
        %9481 = vmatpush1.msra.mxu0 0.0
        %9482 = vmatprep.subr.mxu0 0.0
        %9483 = vmatpush1.msra.mxu0 0.0
        %9484 = vmatprep.subr.mxu0 0.0
        %9485 = vmatpush1.msra.mxu0 0.0
        %9486 = vmatprep.subr.mxu0 0.0
        %9487 = vmatpush1.msra.mxu0 0.0
        %9488 = vmatprep.subr.mxu0 0.0
        %9489 = vmatpush1.msra.mxu0 0.0
        %9490 = vmatprep.subr.mxu0 0.0
        %9491 = vmatpush1.msra.mxu0 0.0
        %9492 = vmatprep.subr.mxu0 0.0
        %9493 = vmatpush1.msra.mxu0 0.0
        %9494 = vmatprep.mubr.f32.mxu0 0.0
        %9495 = vmatmul.mubr.f32.gmra.mrb[0].mxu0 %v9428
        %v9496 = vpop.f32.mrb[0].mxu0
        %v9497 = vadd.f32 0.0, %v9496
        %v9498 = vpop.f32.mrb[0].mxu0
        %9499 = vdwg.mxu0
        %v9500 = vlaneseq
        %v9501 = vshrl.u32 %v9500, 7
        %v9502 = vsub.s32 0, %v9501
        %v9503 = vrot.slane %v9497, %v9502
        %v9504 = vsub.f32 %v9096, %v9503
        %v9505 = vsub.f32 %v9101, %v9503
        %v9506 = vsub.f32 %v9106, %v9503
        %v9507 = vsub.f32 %v9111, %v9503
        %v9508 = vsub.f32 %v9116, %v9503
        %v9509 = vsub.f32 %v9121, %v9503
        %v9510 = vsub.f32 %v9126, %v9503
        %v9511 = vsub.f32 %v9131, %v9503
        %v9512 = vsub.f32 %v9136, %v9503
        %v9513 = vsub.f32 %v9141, %v9503
        %v9514 = vsub.f32 %v9146, %v9503
        %v9515 = vsub.f32 %v9151, %v9503
        %v9516 = vsub.f32 %v9156, %v9503
        %v9517 = vsub.f32 %v9161, %v9503
        %v9518 = vsub.f32 %v9166, %v9503
        %v9519 = vsub.f32 %v9171, %v9503
        %v9520 = vsub.f32 %v9176, %v9503
        %v9521 = vsub.f32 %v9181, %v9503
        %v9522 = vsub.f32 %v9186, %v9503
        %v9523 = vsub.f32 %v9191, %v9503
        %v9524 = vsub.f32 %v9196, %v9503
        %v9525 = vsub.f32 %v9201, %v9503
        %v9526 = vsub.f32 %v9206, %v9503
        %v9527 = vsub.f32 %v9211, %v9503
        %v9528 = vsub.f32 %v9216, %v9503
        %v9529 = vsub.f32 %v9221, %v9503
        %v9530 = vsub.f32 %v9226, %v9503
        %v9531 = vsub.f32 %v9231, %v9503
        %v9532 = vsub.f32 %v9236, %v9503
        %v9533 = vsub.f32 %v9241, %v9503
        %v9534 = vsub.f32 %v9246, %v9503
        %v9535 = vsub.f32 %v9251, %v9503
        %v9536 = vsub.f32 %v9256, %v9503
        %v9537 = vsub.f32 %v9261, %v9503
        %v9538 = vsub.f32 %v9266, %v9503
        %v9539 = vsub.f32 %v9271, %v9503
        %v9540 = vsub.f32 %v9276, %v9503
        %v9541 = vsub.f32 %v9281, %v9503
        %v9542 = vsub.f32 %v9286, %v9503
        %v9543 = vsub.f32 %v9291, %v9503
        %v9544 = vsub.f32 %v9296, %v9503
        %v9545 = vmul.f32 %v9504, %v2871
        %v9546 = vmul.f32 %v9505, %v2876
        %v9547 = vmul.f32 %v9506, %v2881
        %v9548 = vmul.f32 %v9507, %v2886
        %v9549 = vmul.f32 %v9508, %v2891
        %v9550 = vmul.f32 %v9509, %v2896
        %v9551 = vmul.f32 %v9510, %v2901
        %v9552 = vmul.f32 %v9511, %v2906
        %v9553 = vmul.f32 %v9512, %v2911
        %v9554 = vmul.f32 %v9513, %v2916
        %v9555 = vmul.f32 %v9514, %v2921
        %v9556 = vmul.f32 %v9515, %v2926
        %v9557 = vmul.f32 %v9516, %v2931
        %v9558 = vmul.f32 %v9517, %v2936
        %v9559 = vmul.f32 %v9518, %v2941
        %v9560 = vmul.f32 %v9519, %v2946
        %v9561 = vmul.f32 %v9520, %v2951
        %v9562 = vmul.f32 %v9521, %v2956
        %v9563 = vmul.f32 %v9522, %v2961
        %v9564 = vmul.f32 %v9523, %v2966
        %v9565 = vmul.f32 %v9524, %v2971
        %v9566 = vmul.f32 %v9525, %v2976
        %v9567 = vmul.f32 %v9526, %v2981
        %v9568 = vmul.f32 %v9527, %v2986
        %v9569 = vmul.f32 %v9528, %v2991
        %v9570 = vmul.f32 %v9529, %v2996
        %v9571 = vmul.f32 %v9530, %v3001
        %v9572 = vmul.f32 %v9531, %v3006
        %v9573 = vmul.f32 %v9532, %v3011
        %v9574 = vmul.f32 %v9533, %v3016
        %v9575 = vmul.f32 %v9534, %v3021
        %v9576 = vmul.f32 %v9535, %v3026
        %v9577 = vmul.f32 %v9536, %v3031
        %v9578 = vmul.f32 %v9537, %v3036
        %v9579 = vmul.f32 %v9538, %v3041
        %v9580 = vmul.f32 %v9539, %v3046
        %v9581 = vmul.f32 %v9540, %v3051
        %v9582 = vmul.f32 %v9541, %v3056
        %v9583 = vmul.f32 %v9542, %v3061
        %v9584 = vmul.f32 %v9543, %v3066
        %v9585 = vmul.f32 %v9544, %v3071
        %v9586 = vmul.f32 %v9545, %v9545
        %v9587 = vmul.f32 %v9546, %v9546
        %v9588 = vmul.f32 %v9547, %v9547
        %v9589 = vmul.f32 %v9548, %v9548
        %v9590 = vmul.f32 %v9549, %v9549
        %v9591 = vmul.f32 %v9550, %v9550
        %v9592 = vmul.f32 %v9551, %v9551
        %v9593 = vmul.f32 %v9552, %v9552
        %v9594 = vmul.f32 %v9553, %v9553
        %v9595 = vmul.f32 %v9554, %v9554
        %v9596 = vmul.f32 %v9555, %v9555
        %v9597 = vmul.f32 %v9556, %v9556
        %v9598 = vmul.f32 %v9557, %v9557
        %v9599 = vmul.f32 %v9558, %v9558
        %v9600 = vmul.f32 %v9559, %v9559
        %v9601 = vmul.f32 %v9560, %v9560
        %v9602 = vmul.f32 %v9561, %v9561
        %v9603 = vmul.f32 %v9562, %v9562
        %v9604 = vmul.f32 %v9563, %v9563
        %v9605 = vmul.f32 %v9564, %v9564
        %v9606 = vmul.f32 %v9565, %v9565
        %v9607 = vmul.f32 %v9566, %v9566
        %v9608 = vmul.f32 %v9567, %v9567
        %v9609 = vmul.f32 %v9568, %v9568
        %v9610 = vmul.f32 %v9569, %v9569
        %v9611 = vmul.f32 %v9570, %v9570
        %v9612 = vmul.f32 %v9571, %v9571
        %v9613 = vmul.f32 %v9572, %v9572
        %v9614 = vmul.f32 %v9573, %v9573
        %v9615 = vmul.f32 %v9574, %v9574
        %v9616 = vmul.f32 %v9575, %v9575
        %v9617 = vmul.f32 %v9576, %v9576
        %v9618 = vmul.f32 %v9577, %v9577
        %v9619 = vmul.f32 %v9578, %v9578
        %v9620 = vmul.f32 %v9579, %v9579
        %v9621 = vmul.f32 %v9580, %v9580
        %v9622 = vmul.f32 %v9581, %v9581
        %v9623 = vmul.f32 %v9582, %v9582
        %v9624 = vmul.f32 %v9583, %v9583
        %v9625 = vmul.f32 %v9584, %v9584
        %v9626 = vmul.f32 %v9585, %v9585
        %v9627 = vsel %vm3114, %v9586, 0.0
        %v9628 = vsel %vm3114, %v9587, 0.0
        %v9629 = vadd.f32 %v9627, %v9628
        %v9630 = vsel %vm3114, %v9588, 0.0
        %v9631 = vadd.f32 %v9629, %v9630
        %v9632 = vsel %vm3114, %v9589, 0.0
        %v9633 = vadd.f32 %v9631, %v9632
        %v9634 = vsel %vm3114, %v9590, 0.0
        %v9635 = vadd.f32 %v9633, %v9634
        %v9636 = vsel %vm3114, %v9591, 0.0
        %v9637 = vadd.f32 %v9635, %v9636
        %v9638 = vsel %vm3114, %v9592, 0.0
        %v9639 = vadd.f32 %v9637, %v9638
        %v9640 = vsel %vm3114, %v9593, 0.0
        %v9641 = vadd.f32 %v9639, %v9640
        %v9642 = vsel %vm3114, %v9594, 0.0
        %v9643 = vadd.f32 %v9641, %v9642
        %v9644 = vsel %vm3114, %v9595, 0.0
        %v9645 = vadd.f32 %v9643, %v9644
        %v9646 = vsel %vm3114, %v9596, 0.0
        %v9647 = vadd.f32 %v9645, %v9646
        %v9648 = vsel %vm3114, %v9597, 0.0
        %v9649 = vadd.f32 %v9647, %v9648
        %v9650 = vsel %vm3114, %v9598, 0.0
        %v9651 = vadd.f32 %v9649, %v9650
        %v9652 = vsel %vm3114, %v9599, 0.0
        %v9653 = vadd.f32 %v9651, %v9652
        %v9654 = vsel %vm3114, %v9600, 0.0
        %v9655 = vadd.f32 %v9653, %v9654
        %v9656 = vsel %vm3114, %v9601, 0.0
        %v9657 = vadd.f32 %v9655, %v9656
        %v9658 = vsel %vm3114, %v9602, 0.0
        %v9659 = vadd.f32 %v9657, %v9658
        %v9660 = vsel %vm3114, %v9603, 0.0
        %v9661 = vadd.f32 %v9659, %v9660
        %v9662 = vsel %vm3114, %v9604, 0.0
        %v9663 = vadd.f32 %v9661, %v9662
        %v9664 = vsel %vm3114, %v9605, 0.0
        %v9665 = vadd.f32 %v9663, %v9664
        %v9666 = vsel %vm3114, %v9606, 0.0
        %v9667 = vadd.f32 %v9665, %v9666
        %v9668 = vsel %vm3114, %v9607, 0.0
        %v9669 = vadd.f32 %v9667, %v9668
        %v9670 = vsel %vm3114, %v9608, 0.0
        %v9671 = vadd.f32 %v9669, %v9670
        %v9672 = vsel %vm3114, %v9609, 0.0
        %v9673 = vadd.f32 %v9671, %v9672
        %v9674 = vsel %vm3114, %v9610, 0.0
        %v9675 = vadd.f32 %v9673, %v9674
        %v9676 = vsel %vm3114, %v9611, 0.0
        %v9677 = vadd.f32 %v9675, %v9676
        %v9678 = vsel %vm3114, %v9612, 0.0
        %v9679 = vadd.f32 %v9677, %v9678
        %v9680 = vsel %vm3114, %v9613, 0.0
        %v9681 = vadd.f32 %v9679, %v9680
        %v9682 = vsel %vm3114, %v9614, 0.0
        %v9683 = vadd.f32 %v9681, %v9682
        %v9684 = vsel %vm3114, %v9615, 0.0
        %v9685 = vadd.f32 %v9683, %v9684
        %v9686 = vsel %vm3114, %v9616, 0.0
        %v9687 = vadd.f32 %v9685, %v9686
        %v9688 = vsel %vm3114, %v9617, 0.0
        %v9689 = vadd.f32 %v9687, %v9688
        %v9690 = vsel %vm3114, %v9618, 0.0
        %v9691 = vadd.f32 %v9689, %v9690
        %v9692 = vsel %vm3114, %v9619, 0.0
        %v9693 = vadd.f32 %v9691, %v9692
        %v9694 = vsel %vm3114, %v9620, 0.0
        %v9695 = vadd.f32 %v9693, %v9694
        %v9696 = vsel %vm3114, %v9621, 0.0
        %v9697 = vadd.f32 %v9695, %v9696
        %v9698 = vsel %vm3114, %v9622, 0.0
        %v9699 = vadd.f32 %v9697, %v9698
        %v9700 = vsel %vm3114, %v9623, 0.0
        %v9701 = vadd.f32 %v9699, %v9700
        %v9702 = vsel %vm3114, %v9624, 0.0
        %v9703 = vadd.f32 %v9701, %v9702
        %v9704 = vsel %vm3114, %v9625, 0.0
        %v9705 = vadd.f32 %v9703, %v9704
        %v9706 = vsel %vm3194, %v9626, 0.0
        %v9707 = vadd.f32 %v9705, %v9706
        %v9708 = vrot.slane %v9707, 4
        %v9709 = vadd.f32 %v9707, %v9708
        %v9710 = vrot.slane %v9709, 2
        %v9711 = vadd.f32 %v9709, %v9710
        %v9712 = vrot.slane %v9711, 1
        %v9713 = vadd.f32 %v9711, %v9712
        %v9715 = vsel %vm3114, %v9713, 0
        %9717 = vmatprep.subr.mxu0 0.0
        %9718 = vmatpush1.msra.mxu0 %v345
        %9719 = vmatprep.subr.mxu0 0.0
        %9720 = vmatpush1.msra.mxu0 %v346
        %9721 = vmatprep.subr.mxu0 0.0
        %9722 = vmatpush1.msra.mxu0 0.0
        %9723 = vmatprep.subr.mxu0 0.0
        %9724 = vmatpush1.msra.mxu0 0.0
        %9725 = vmatprep.subr.mxu0 0.0
        %9726 = vmatpush1.msra.mxu0 0.0
        %9727 = vmatprep.subr.mxu0 0.0
        %9728 = vmatpush1.msra.mxu0 0.0
        %9729 = vmatprep.subr.mxu0 0.0
        %9730 = vmatpush1.msra.mxu0 0.0
        %9731 = vmatprep.subr.mxu0 0.0
        %9732 = vmatpush1.msra.mxu0 0.0
        %9733 = vmatprep.subr.mxu0 0.0
        %9734 = vmatpush1.msra.mxu0 0.0
        %9735 = vmatprep.subr.mxu0 0.0
        %9736 = vmatpush1.msra.mxu0 0.0
        %9737 = vmatprep.subr.mxu0 0.0
        %9738 = vmatpush1.msra.mxu0 0.0
        %9739 = vmatprep.subr.mxu0 0.0
        %9740 = vmatpush1.msra.mxu0 0.0
        %9741 = vmatprep.subr.mxu0 0.0
        %9742 = vmatpush1.msra.mxu0 0.0
        %9743 = vmatprep.subr.mxu0 0.0
        %9744 = vmatpush1.msra.mxu0 0.0
        %9745 = vmatprep.subr.mxu0 0.0
        %9746 = vmatpush1.msra.mxu0 0.0
        %9747 = vmatprep.subr.mxu0 0.0
        %9748 = vmatpush1.msra.mxu0 0.0
        %9749 = vmatprep.subr.mxu0 0.0
        %9750 = vmatpush1.msra.mxu0 0.0
        %9751 = vmatprep.subr.mxu0 0.0
        %9752 = vmatpush1.msra.mxu0 0.0
        %9753 = vmatprep.subr.mxu0 0.0
        %9754 = vmatpush1.msra.mxu0 0.0
        %9755 = vmatprep.subr.mxu0 0.0
        %9756 = vmatpush1.msra.mxu0 0.0
        %9757 = vmatprep.subr.mxu0 0.0
        %9758 = vmatpush1.msra.mxu0 0.0
        %9759 = vmatprep.subr.mxu0 0.0
        %9760 = vmatpush1.msra.mxu0 0.0
        %9761 = vmatprep.subr.mxu0 0.0
        %9762 = vmatpush1.msra.mxu0 0.0
        %9763 = vmatprep.subr.mxu0 0.0
        %9764 = vmatpush1.msra.mxu0 0.0
        %9765 = vmatprep.subr.mxu0 0.0
        %9766 = vmatpush1.msra.mxu0 0.0
        %9767 = vmatprep.subr.mxu0 0.0
        %9768 = vmatpush1.msra.mxu0 0.0
        %9769 = vmatprep.subr.mxu0 0.0
        %9770 = vmatpush1.msra.mxu0 0.0
        %9771 = vmatprep.subr.mxu0 0.0
        %9772 = vmatpush1.msra.mxu0 0.0
        %9773 = vmatprep.subr.mxu0 0.0
        %9774 = vmatpush1.msra.mxu0 0.0
        %9775 = vmatprep.subr.mxu0 0.0
        %9776 = vmatpush1.msra.mxu0 0.0
        %9777 = vmatprep.subr.mxu0 0.0
        %9778 = vmatpush1.msra.mxu0 0.0
        %9779 = vmatprep.subr.mxu0 0.0
        %9780 = vmatpush1.msra.mxu0 0.0
        %9781 = vmatprep.mubr.f32.mxu0 0.0
        %9782 = vmatmul.mubr.f32.gmra.mrb[0].mxu0 %v9715
        %v9783 = vpop.f32.mrb[0].mxu0
        %v9784 = vadd.f32 1e-05, %v9783
        %v9785 = vpop.f32.mrb[0].mxu0
        %9786 = vdwg.mxu0
        %v9787 = vrsqrt.pop %v9784
        %v9788 = vmul.f32 %v9787, %v6929
        %v9789 = vlaneseq
        %v9790 = vshrl.u32 %v9789, 7
        %v9791 = vsub.s32 0, %v9790
        %v9792 = vrot.slane %v9788, %v9791
        %v9793 = vmul.f32 %v9545, %v9792
        %v9794 = vmul.f32 %v9546, %v9792
        %v9795 = vmul.f32 %v9547, %v9792
        %v9796 = vmul.f32 %v9548, %v9792
        %v9797 = vmul.f32 %v9549, %v9792
        %v9798 = vmul.f32 %v9550, %v9792
        %v9799 = vmul.f32 %v9551, %v9792
        %v9800 = vmul.f32 %v9552, %v9792
        %v9801 = vmul.f32 %v9553, %v9792
        %v9802 = vmul.f32 %v9554, %v9792
        %v9803 = vmul.f32 %v9555, %v9792
        %v9804 = vmul.f32 %v9556, %v9792
        %v9805 = vmul.f32 %v9557, %v9792
        %v9806 = vmul.f32 %v9558, %v9792
        %v9807 = vmul.f32 %v9559, %v9792
        %v9808 = vmul.f32 %v9560, %v9792
        %v9809 = vmul.f32 %v9561, %v9792
        %v9810 = vmul.f32 %v9562, %v9792
        %v9811 = vmul.f32 %v9563, %v9792
        %v9812 = vmul.f32 %v9564, %v9792
        %v9813 = vmul.f32 %v9565, %v9792
        %v9814 = vmul.f32 %v9566, %v9792
        %v9815 = vmul.f32 %v9567, %v9792
        %v9816 = vmul.f32 %v9568, %v9792
        %v9817 = vmul.f32 %v9569, %v9792
        %v9818 = vmul.f32 %v9570, %v9792
        %v9819 = vmul.f32 %v9571, %v9792
        %v9820 = vmul.f32 %v9572, %v9792
        %v9821 = vmul.f32 %v9573, %v9792
        %v9822 = vmul.f32 %v9574, %v9792
        %v9823 = vmul.f32 %v9575, %v9792
        %v9824 = vmul.f32 %v9576, %v9792
        %v9825 = vmul.f32 %v9577, %v9792
        %v9826 = vmul.f32 %v9578, %v9792
        %v9827 = vmul.f32 %v9579, %v9792
        %v9828 = vmul.f32 %v9580, %v9792
        %v9829 = vmul.f32 %v9581, %v9792
        %v9830 = vmul.f32 %v9582, %v9792
        %v9831 = vmul.f32 %v9583, %v9792
        %v9832 = vmul.f32 %v9584, %v9792
        %v9833 = vmul.f32 %v9585, %v9792
        %v9835 = vlaneseq
        %v9836 = vshrl.u32 %v9835, 7
        %v9837 = vsub.s32 0, %v9836
        %v9838 = vrot.slane %v6931, %v9837
        %v9840 = vadd.f32 %v9793, %v9838
        %v9841 = vadd.f32 %v9794, %v9838
        %v9842 = vadd.f32 %v9795, %v9838
        %v9843 = vadd.f32 %v9796, %v9838
        %v9844 = vadd.f32 %v9797, %v9838
        %v9845 = vadd.f32 %v9798, %v9838
        %v9846 = vadd.f32 %v9799, %v9838
        %v9847 = vadd.f32 %v9800, %v9838
        %v9848 = vadd.f32 %v9801, %v9838
        %v9849 = vadd.f32 %v9802, %v9838
        %v9850 = vadd.f32 %v9803, %v9838
        %v9851 = vadd.f32 %v9804, %v9838
        %v9852 = vadd.f32 %v9805, %v9838
        %v9853 = vadd.f32 %v9806, %v9838
        %v9854 = vadd.f32 %v9807, %v9838
        %v9855 = vadd.f32 %v9808, %v9838
        %v9856 = vadd.f32 %v9809, %v9838
        %v9857 = vadd.f32 %v9810, %v9838
        %v9858 = vadd.f32 %v9811, %v9838
        %v9859 = vadd.f32 %v9812, %v9838
        %v9860 = vadd.f32 %v9813, %v9838
        %v9861 = vadd.f32 %v9814, %v9838
        %v9862 = vadd.f32 %v9815, %v9838
        %v9863 = vadd.f32 %v9816, %v9838
        %v9864 = vadd.f32 %v9817, %v9838
        %v9865 = vadd.f32 %v9818, %v9838
        %v9866 = vadd.f32 %v9819, %v9838
        %v9867 = vadd.f32 %v9820, %v9838
        %v9868 = vadd.f32 %v9821, %v9838
        %v9869 = vadd.f32 %v9822, %v9838
        %v9870 = vadd.f32 %v9823, %v9838
        %v9871 = vadd.f32 %v9824, %v9838
        %v9872 = vadd.f32 %v9825, %v9838
        %v9873 = vadd.f32 %v9826, %v9838
        %v9874 = vadd.f32 %v9827, %v9838
        %v9875 = vadd.f32 %v9828, %v9838
        %v9876 = vadd.f32 %v9829, %v9838
        %v9877 = vadd.f32 %v9830, %v9838
        %v9878 = vadd.f32 %v9831, %v9838
        %v9879 = vadd.f32 %v9832, %v9838
        %v9880 = vadd.f32 %v9833, %v9838
        %v9881 = vmax.f32 %v9840, 0.0
        %v9882 = vmax.f32 %v9841, 0.0
        %v9883 = vmax.f32 %v9842, 0.0
        %v9884 = vmax.f32 %v9843, 0.0
        %v9885 = vmax.f32 %v9844, 0.0
        %v9886 = vmax.f32 %v9845, 0.0
        %v9887 = vmax.f32 %v9846, 0.0
        %v9888 = vmax.f32 %v9847, 0.0
        %v9889 = vmax.f32 %v9848, 0.0
        %v9890 = vmax.f32 %v9849, 0.0
        %v9891 = vmax.f32 %v9850, 0.0
        %v9892 = vmax.f32 %v9851, 0.0
        %v9893 = vmax.f32 %v9852, 0.0
        %v9894 = vmax.f32 %v9853, 0.0
        %v9895 = vmax.f32 %v9854, 0.0
        %v9896 = vmax.f32 %v9855, 0.0
        %v9897 = vmax.f32 %v9856, 0.0
        %v9898 = vmax.f32 %v9857, 0.0
        %v9899 = vmax.f32 %v9858, 0.0
        %v9900 = vmax.f32 %v9859, 0.0
        %v9901 = vmax.f32 %v9860, 0.0
        %v9902 = vmax.f32 %v9861, 0.0
        %v9903 = vmax.f32 %v9862, 0.0
        %v9904 = vmax.f32 %v9863, 0.0
        %v9905 = vmax.f32 %v9864, 0.0
        %v9906 = vmax.f32 %v9865, 0.0
        %v9907 = vmax.f32 %v9866, 0.0
        %v9908 = vmax.f32 %v9867, 0.0
        %v9909 = vmax.f32 %v9868, 0.0
        %v9910 = vmax.f32 %v9869, 0.0
        %v9911 = vmax.f32 %v9870, 0.0
        %v9912 = vmax.f32 %v9871, 0.0
        %v9913 = vmax.f32 %v9872, 0.0
        %v9914 = vmax.f32 %v9873, 0.0
        %v9915 = vmax.f32 %v9874, 0.0
        %v9916 = vmax.f32 %v9875, 0.0
        %v9917 = vmax.f32 %v9876, 0.0
        %v9918 = vmax.f32 %v9877, 0.0
        %v9919 = vmax.f32 %v9878, 0.0
        %v9920 = vmax.f32 %v9879, 0.0
        %v9921 = vmax.f32 %v9880, 0.0
        %9922 = vst.msk [vmem:[#allocation2] sm:$0xff] %vm3114, %v9881
        %9923 = vst.msk [vmem:[#allocation2 + $0x8] sm:$0xff] %vm3114, %v9882
        %9924 = vst.msk [vmem:[#allocation2 + $0x10] sm:$0xff] %vm3114, %v9883
        %9925 = vst.msk [vmem:[#allocation2 + $0x18] sm:$0xff] %vm3114, %v9884
        %9926 = vst.msk [vmem:[#allocation2 + $0x20] sm:$0xff] %vm3114, %v9885
        %9927 = vst.msk [vmem:[#allocation2 + $0x28] sm:$0xff] %vm3114, %v9886
        %9928 = vst.msk [vmem:[#allocation2 + $0x30] sm:$0xff] %vm3114, %v9887
        %9929 = vst.msk [vmem:[#allocation2 + $0x38] sm:$0xff] %vm3114, %v9888
        %9930 = vst.msk [vmem:[#allocation2 + $0x40] sm:$0xff] %vm3114, %v9889
        %9931 = vst.msk [vmem:[#allocation2 + $0x48] sm:$0xff] %vm3114, %v9890
        %9932 = vst.msk [vmem:[#allocation2 + $0x50] sm:$0xff] %vm3114, %v9891
        %9933 = vst.msk [vmem:[#allocation2 + $0x58] sm:$0xff] %vm3114, %v9892
        %9934 = vst.msk [vmem:[#allocation2 + $0x60] sm:$0xff] %vm3114, %v9893
        %9935 = vst.msk [vmem:[#allocation2 + $0x68] sm:$0xff] %vm3114, %v9894
        %9936 = vst.msk [vmem:[#allocation2 + $0x70] sm:$0xff] %vm3114, %v9895
        %9937 = vst.msk [vmem:[#allocation2 + $0x78] sm:$0xff] %vm3114, %v9896
        %9938 = vst.msk [vmem:[#allocation2 + $0x80] sm:$0xff] %vm3114, %v9897
        %9939 = vst.msk [vmem:[#allocation2 + $0x88] sm:$0xff] %vm3114, %v9898
        %9940 = vst.msk [vmem:[#allocation2 + $0x90] sm:$0xff] %vm3114, %v9899
        %9941 = vst.msk [vmem:[#allocation2 + $0x98] sm:$0xff] %vm3114, %v9900
        %9942 = vst.msk [vmem:[#allocation2 + $0xa0] sm:$0xff] %vm3114, %v9901
        %9943 = vst.msk [vmem:[#allocation2 + $0xa8] sm:$0xff] %vm3114, %v9902
        %9944 = vst.msk [vmem:[#allocation2 + $0xb0] sm:$0xff] %vm3114, %v9903
        %9945 = vst.msk [vmem:[#allocation2 + $0xb8] sm:$0xff] %vm3114, %v9904
        %9946 = vst.msk [vmem:[#allocation2 + $0xc0] sm:$0xff] %vm3114, %v9905
        %9947 = vst.msk [vmem:[#allocation2 + $0xc8] sm:$0xff] %vm3114, %v9906
        %9948 = vst.msk [vmem:[#allocation2 + $0xd0] sm:$0xff] %vm3114, %v9907
        %9949 = vst.msk [vmem:[#allocation2 + $0xd8] sm:$0xff] %vm3114, %v9908
        %9950 = vst.msk [vmem:[#allocation2 + $0xe0] sm:$0xff] %vm3114, %v9909
        %9951 = vst.msk [vmem:[#allocation2 + $0xe8] sm:$0xff] %vm3114, %v9910
        %9952 = vst.msk [vmem:[#allocation2 + $0xf0] sm:$0xff] %vm3114, %v9911
        %9953 = vst.msk [vmem:[#allocation2 + $0xf8] sm:$0xff] %vm3114, %v9912
        %9954 = vst.msk [vmem:[#allocation2 + $0x100] sm:$0xff] %vm3114, %v9913
        %9955 = vst.msk [vmem:[#allocation2 + $0x108] sm:$0xff] %vm3114, %v9914
        %9956 = vst.msk [vmem:[#allocation2 + $0x110] sm:$0xff] %vm3114, %v9915
        %9957 = vst.msk [vmem:[#allocation2 + $0x118] sm:$0xff] %vm3114, %v9916
        %9958 = vst.msk [vmem:[#allocation2 + $0x120] sm:$0xff] %vm3114, %v9917
        %9959 = vst.msk [vmem:[#allocation2 + $0x128] sm:$0xff] %vm3114, %v9918
        %9960 = vst.msk [vmem:[#allocation2 + $0x130] sm:$0xff] %vm3114, %v9919
        %9961 = vst.msk [vmem:[#allocation2 + $0x138] sm:$0xff] %vm3114, %v9920
        %9962 = vst.msk [vmem:[#allocation2 + $0x140] sm:$0xf] %vm3194, %v9921
        %v9963 = vld [vmem:[#allocation2] ss:$2 sm:$0xff]
        %s9964 = scalar_lea.vmem [#allocation2], 1
        %v9965 = vld [vmem:[%s9964] ss:$2 sm:$0xff]
        %v9966 = vmax.f32 %v9963, %v9965
        %s9967 = scalar_lea.vmem [#allocation2], 18
        %v9968 = vld [vmem:[%s9967] ss:$2 sm:$0xff]
        %s9969 = scalar_lea.vmem [#allocation2], 19
        %v9970 = vld [vmem:[%s9969] ss:$2 sm:$0xff]
        %v9971 = vmax.f32 %v9968, %v9970
        %v9972 = vmax.f32 %v9966, %v9971
        %9973 = vst.msk [vmem:[%s298] sm:$0xff] %vm3114, %v9972
        %s9974 = scalar_lea.vmem [#allocation2], 36
        %v9975 = vld [vmem:[%s9974] ss:$2 sm:$0xff]
        %s9976 = scalar_lea.vmem [#allocation2], 37
        %v9977 = vld [vmem:[%s9976] ss:$2 sm:$0xff]
        %v9978 = vmax.f32 %v9975, %v9977
        %s9979 = scalar_lea.vmem [#allocation2], 54
        %v9980 = vld [vmem:[%s9979] ss:$2 sm:$0xff]
        %s9981 = scalar_lea.vmem [#allocation2], 55
        %v9982 = vld [vmem:[%s9981] ss:$2 sm:$0xff]
        %v9983 = vmax.f32 %v9980, %v9982
        %v9984 = vmax.f32 %v9978, %v9983
        %s9985 = scalar_lea.vmem %s298, 8 [#allocation5]
        %9986 = vst.msk [vmem:[%s9985] sm:$0xff] %vm3114, %v9984
        %s9987 = scalar_lea.vmem [#allocation2], 72
        %v9988 = vld [vmem:[%s9987] ss:$2 sm:$0xff]
        %s9989 = scalar_lea.vmem [#allocation2], 73
        %v9990 = vld [vmem:[%s9989] ss:$2 sm:$0xff]
        %v9991 = vmax.f32 %v9988, %v9990
        %s9992 = scalar_lea.vmem [#allocation2], 90
        %v9993 = vld [vmem:[%s9992] ss:$2 sm:$0xff]
        %s9994 = scalar_lea.vmem [#allocation2], 91
        %v9995 = vld [vmem:[%s9994] ss:$2 sm:$0xff]
        %v9996 = vmax.f32 %v9993, %v9995
        %v9997 = vmax.f32 %v9991, %v9996
        %s9998 = scalar_lea.vmem %s298, 16 [#allocation5]
        %9999 = vst.msk [vmem:[%s9998] sm:$0xff] %vm3114, %v9997
        %s10000 = scalar_lea.vmem [#allocation2], 108
        %v10001 = vld [vmem:[%s10000] ss:$2 sm:$0xff]
        %s10002 = scalar_lea.vmem [#allocation2], 109
        %v10003 = vld [vmem:[%s10002] ss:$2 sm:$0xff]
        %v10004 = vmax.f32 %v10001, %v10003
        %s10005 = scalar_lea.vmem [#allocation2], 126
        %v10006 = vld [vmem:[%s10005] ss:$2 sm:$0xff]
        %s10007 = scalar_lea.vmem [#allocation2], 127
        %v10008 = vld [vmem:[%s10007] ss:$2 sm:$0xff]
        %v10009 = vmax.f32 %v10006, %v10008
        %v10010 = vmax.f32 %v10004, %v10009
        %s10011 = scalar_lea.vmem %s298, 24 [#allocation5]
        %10012 = vst.msk [vmem:[%s10011] sm:$0xff] %vm3114, %v10010
        %s10013 = scalar_lea.vmem [#allocation2], 144
        %v10014 = vld [vmem:[%s10013] ss:$2 sm:$0xff]
        %s10015 = scalar_lea.vmem [#allocation2], 145
        %v10016 = vld [vmem:[%s10015] ss:$2 sm:$0xff]
        %v10017 = vmax.f32 %v10014, %v10016
        %s10018 = scalar_lea.vmem [#allocation2], 162
        %v10019 = vld [vmem:[%s10018] ss:$2 sm:$0xff]
        %s10020 = scalar_lea.vmem [#allocation2], 163
        %v10021 = vld [vmem:[%s10020] ss:$2 sm:$0xff]
        %v10022 = vmax.f32 %v10019, %v10021
        %v10023 = vmax.f32 %v10017, %v10022
        %s10024 = scalar_lea.vmem %s298, 32 [#allocation5]
        %10025 = vst.msk [vmem:[%s10024] sm:$0xff] %vm3114, %v10023
        %s10026 = scalar_lea.vmem [#allocation2], 180
        %v10027 = vld [vmem:[%s10026] ss:$2 sm:$0xff]
        %s10028 = scalar_lea.vmem [#allocation2], 181
        %v10029 = vld [vmem:[%s10028] ss:$2 sm:$0xff]
        %v10030 = vmax.f32 %v10027, %v10029
        %s10031 = scalar_lea.vmem [#allocation2], 198
        %v10032 = vld [vmem:[%s10031] ss:$2 sm:$0xff]
        %s10033 = scalar_lea.vmem [#allocation2], 199
        %v10034 = vld [vmem:[%s10033] ss:$2 sm:$0xff]
        %v10035 = vmax.f32 %v10032, %v10034
        %v10036 = vmax.f32 %v10030, %v10035
        %s10037 = scalar_lea.vmem %s298, 40 [#allocation5]
        %10038 = vst.msk [vmem:[%s10037] sm:$0xff] %vm3114, %v10036
        %s10039 = scalar_lea.vmem [#allocation2], 216
        %v10040 = vld [vmem:[%s10039] ss:$2 sm:$0xff]
        %s10041 = scalar_lea.vmem [#allocation2], 217
        %v10042 = vld [vmem:[%s10041] ss:$2 sm:$0xff]
        %v10043 = vmax.f32 %v10040, %v10042
        %s10044 = scalar_lea.vmem [#allocation2], 234
        %v10045 = vld [vmem:[%s10044] ss:$2 sm:$0xff]
        %s10046 = scalar_lea.vmem [#allocation2], 235
        %v10047 = vld [vmem:[%s10046] ss:$2 sm:$0xff]
        %v10048 = vmax.f32 %v10045, %v10047
        %v10049 = vmax.f32 %v10043, %v10048
        %s10050 = scalar_lea.vmem %s298, 48 [#allocation5]
        %10051 = vst.msk [vmem:[%s10050] sm:$0xff] %vm3114, %v10049
        %s10052 = scalar_lea.vmem [#allocation2], 252
        %v10053 = vld [vmem:[%s10052] ss:$2 sm:$0xff]
        %s10054 = scalar_lea.vmem [#allocation2], 253
        %v10055 = vld [vmem:[%s10054] ss:$2 sm:$0xff]
        %v10056 = vmax.f32 %v10053, %v10055
        %s10057 = scalar_lea.vmem [#allocation2], 270
        %v10058 = vld [vmem:[%s10057] ss:$2 sm:$0xff]
        %s10059 = scalar_lea.vmem [#allocation2], 271
        %v10060 = vld [vmem:[%s10059] ss:$2 sm:$0xff]
        %v10061 = vmax.f32 %v10058, %v10060
        %v10062 = vmax.f32 %v10056, %v10061
        %s10063 = scalar_lea.vmem %s298, 56 [#allocation5]
        %10064 = vst.msk [vmem:[%s10063] sm:$0xff] %vm3114, %v10062
        %s10065 = sand.u32 %s203, 1
        %s10066 = scalar_lea.sflag [#allocation6], %s10065
        %s10067 = sand.u32 %s203, 1
        %s10068 = smul.addr %s10067, 64
        %s10069 = scalar_lea.vmem [#allocation5], %s10068
        // Predicated region
        $region53: #{tpu_custom_call.1} parent=51 // pred_check
          %p10070 = pneg %p213
        $region54: #{tpu_custom_call.1} parent=51 // pred_check_branch
          %10072 = sbr.rel (%p10070) target = $region56
        $region55: #{tpu_custom_call.1} parent=51 // pred_region
          %s10074 = ssub.s32 1024, 1024
          %10075 = vsyncadd %s10066, %s10074
          %s10076 = smul.addr %s22, 8
          %s10077 = smul.addr %s10076, 128
          %s10078 = scalar_lea.hbm %s8, %s10077
          %s10079 = sshll.u32 %s10069, 4
          %s10080 = int_to_ptr.vmem [resolvable:$true] %s10079
          %10085 = dma.vmem_to_hbm [thread:$0]  %s10080, 1024, %s10078, %s10066, 128, 128, 8
        $region56: #{tpu_custom_call.1} parent=51 // pred_fallthru
          _
      $region52: #{tpu_custom_call.1} parent=5 // pred_fallthru
        _
      %p10086 = scmp.le.s32.totalorder 2, %s17
      // Predicated region
      $region57: #{tpu_custom_call.1} parent=5 // pred_check
        %p10087 = pneg %p10086
      $region58: #{tpu_custom_call.1} parent=5 // pred_check_branch
        %10089 = sbr.rel (%p10087) target = $region60
      $region59: #{tpu_custom_call.1} parent=5 // pred_region
        %s10090 = ssub.s32 %s17, 2
        // Predicated region
        $region61: #{tpu_custom_call.1} parent=59 // pred_check
          %p10091 = pneg %p219
        $region62: #{tpu_custom_call.1} parent=59 // pred_check_branch
          %10093 = sbr.rel (%p10091) target = $region64
        $region63: #{tpu_custom_call.1} parent=59 // pred_region
          %s10094 = sand.u32 %s204, 1
          %s10095 = scalar_lea.sflag [#allocation6], %s10094
          %s10096 = sand.u32 %s204, 1
          %s10097 = smul.addr %s10096, 64
          %s10098 = scalar_lea.vmem [#allocation5], %s10097
          %10099 = dma.done %s10095, 1024
        $region64: #{tpu_custom_call.1} parent=59 // pred_fallthru
          _
      $region60: #{tpu_custom_call.1} parent=5 // pred_fallthru
        _
    $region6: #{tpu_custom_call.1} parent=1 // loop_footer
      %s21 = sadd.s32 1, %s17
    $region7: #{tpu_custom_call.1} parent=1 // loop_footer_branch
      %16 = sbr.rel target = $region3
    $region8: #{tpu_custom_call.1} parent=1 // loop_exit
      _
    %10100 = vsyncpa [#allocation6], 1
    %s10101 = scalar_lea.sflag [#allocation6], 1
    %10102 = vsyncpa %s10101, 1

</llo_original>
